<compile_context>
chip_gen: v5e
topology: v5e:2x2
jax: 0.10.0
libtpu: 0.0.40
codegen_flags: <defaults>
</compile_context>

<pallas_src>
import functools

import numpy as np
import jax
import jax.numpy as jnp
from jax.experimental import pallas as pl
from jax.experimental.pallas import tpu as pltpu


# ----------------------------------------------------------------------------
# Fused window-attention Pallas kernel
# ----------------------------------------------------------------------------
def _fused_window_attn_kernel(x_ref, wqkv_ref, wp_ref, pb_ref, rel_ref,
                              bdm_ref, seg_ref, hexp_ref, *rest,
                              num_heads: int, has_mask: bool,
                              mxu_dtype=jnp.float32):
    """One grid step processes a group of G windows.

    x_ref    : (G*N, C)   flattened window tokens
    wqkv_ref : (C, 3C)    fused qkv weight (scale folded into Q columns)
    wp_ref   : (C, C)     output projection weight
    pb_ref   : (1, C)     output projection bias
    rel_ref  : (N, L)     rel-pos bias, lane-dense: [n, h*N+m] = bias[h, n, m]
    bdm_ref  : (L, C)     0/1 block-diag mask: [h*N+m, c] = (c in head h)
    seg_ref  : (L, nH)    0/1 segment-sum indicator: [h*N+m, h'] = (h == h')
    hexp_ref : (nH, C)    0/1 head->channel expand: [h, c] = (c in head h)
    rest     : (mask_ref?, o_ref); mask_ref: (G, N, N), o_ref: (G*N, C)
    """
    if has_mask:
        mask_ref, o_ref = rest
    else:
        (o_ref,) = rest

    GN, C = x_ref.shape
    nH = num_heads
    N = rel_ref.shape[0]          # tokens per window
    L = nH * N                    # packed score width (128 for these shapes)
    G = GN // N                   # windows handled this grid step

    cast = (lambda a: a.astype(mxu_dtype)) if mxu_dtype != jnp.float32 else (lambda a: a)

    x = x_ref[...]                                                     # (GN, C)

    # --- fused QKV projection: ONE (GN, C) @ (C, 3C) MXU op -----------------
    qkv = jnp.dot(cast(x), cast(wqkv_ref[...]),
                  preferred_element_type=jnp.float32)                  # (GN, 3C)
    q = qkv[:, :C].reshape(G, N, C)            # heads packed along lanes
    k = qkv[:, C:2 * C].reshape(G, N, C)
    v = qkv[:, 2 * C:].reshape(G, N, C)

    # --- block-diagonal expanded K / V: (G, L, C) ---------------------------
    # kx[g, h*N+m, c] = k[g, m, c] if channel c belongs to head h else 0.
    bdm = bdm_ref[...]                                                 # (L, C)
    kx = jnp.concatenate([k] * nH, axis=1) * bdm[None]                 # (G, L, C)
    vx = jnp.concatenate([v] * nH, axis=1) * bdm[None]                 # (G, L, C)

    # --- lane-dense scores: (G, N, L), lanes = head-major keys --------------
    s = jnp.einsum("gnc,gjc->gnj", cast(q), cast(kx),
                   preferred_element_type=jnp.float32)                 # (G, N, L)
    s = s + rel_ref[...][None]                                         # rel bias
    if has_mask:
        mblk = mask_ref[...]                                           # (G, N, N)
        s = s + jnp.concatenate([mblk] * nH, axis=-1)                  # same per head

    # --- softmax over each head's N-lane segment ----------------------------
    # Subtracting the GLOBAL per-row max (over all heads) is mathematically
    # identical per segment and avoids a lane<->sublane relayout; it is safe
    # unless mask magnitudes differ by ~1e2 across heads (not the case here).
    s = s - jnp.max(s, axis=-1, keepdims=True)
    p = jnp.exp(s)                                                     # lane-dense EUP
    denom = jnp.dot(p.reshape(GN, L), seg_ref[...],
                    preferred_element_type=jnp.float32)                # (GN, nH)
    rinv = 1.0 / denom                                                 # exact recip

    # --- P @ V: contraction L, output already head-packed (GN, C) -----------
    o = jnp.einsum("gnj,gjc->gnc", cast(p), cast(vx),
                   preferred_element_type=jnp.float32).reshape(GN, C)
    o = o * jnp.dot(rinv, hexp_ref[...],
                    preferred_element_type=jnp.float32)                # per-head 1/denom

    # --- output projection: ONE (GN, C) @ (C, C) dot + bias ------------------
    o_ref[...] = jnp.dot(cast(o), cast(wp_ref[...]),
                         preferred_element_type=jnp.float32) + pb_ref[...]


# ----------------------------------------------------------------------------
# Wrapper
# ----------------------------------------------------------------------------
def _num_tensorcores() -> int:
    """Best-effort TensorCore-per-chip count (2 on v7x / megacore, else 1)."""
    try:
        d = jax.devices()[0]
        nc = getattr(d, "num_cores", None)
        if isinstance(nc, int) and nc >= 1:
            return nc
        kind = str(getattr(d, "device_kind", "")).lower()
        if any(t in kind for t in ("v7", "7x", "v4", "v5p")):
            return 2
    except Exception:
        pass
    return 1


def window_attention(x, params, mask=None, *, num_heads, mxu_dtype=jnp.float32):
    """x: (B_, N, C) float32.  mask: optional (nW, N, N).  Returns (B_, N, C)."""
    B_, N, C = x.shape
    nH = num_heads
    hd = C // nH
    L = nH * N
    scale = hd ** -0.5

    qkv_w = params["qkv_w"]                        # (C, 3C) == torch qkv.weight.T
    proj_w = params["proj_w"]                      # (C, C)  == torch proj.weight.T
    proj_b = params["proj_b"]                      # (C,)

    # Fold the softmax scale into the Q columns of the fused QKV weight.
    wqkv = jnp.concatenate([qkv_w[:, :C] * scale, qkv_w[:, C:]], axis=1)   # (C, 3C)
    pb = proj_b.reshape(1, C)

    # Relative-position bias, pre-packed lane-dense: rel_dense[n, h*N+m] = bias[h,n,m]
    table = params["rel_bias_table"]               # ((2Wh-1)(2Ww-1), nH)
    idx = params["rel_pos_index"]                  # (N, N) int32
    rel = table[idx.reshape(-1)].reshape(N, N, nH)                     # (n, m, h)
    rel_dense = jnp.transpose(rel, (0, 2, 1)).reshape(N, L)            # (N, L)

    # Constant 0/1 indicator matrices (trace-time numpy constants, tiny).
    bd_mask = np.kron(np.eye(nH, dtype=np.float32), np.ones((N, hd), np.float32))   # (L, C)
    seg_ind = np.kron(np.eye(nH, dtype=np.float32), np.ones((N, 1), np.float32))    # (L, nH)
    head_expand = np.kron(np.eye(nH, dtype=np.float32), np.ones((1, hd), np.float32))  # (nH, C)

    # One grid step on single-TC chips; two "parallel" steps on dual-TC chips.
    n_tc = _num_tensorcores()
    n_groups = 2 if (n_tc >= 2 and B_ % 2 == 0 and B_ >= 2) else 1
    G = B_ // n_groups
    GN = G * N

    x2 = x.reshape(B_ * N, C)
    has_mask = mask is not None

    inputs = [x2, wqkv, proj_w, pb, rel_dense,
              jnp.asarray(bd_mask), jnp.asarray(seg_ind), jnp.asarray(head_expand)]
    in_specs = [
        pl.BlockSpec((GN, C), lambda g: (g, 0)),        # x
        pl.BlockSpec((C, 3 * C), lambda g: (0, 0)),     # fused qkv weight
        pl.BlockSpec((C, C), lambda g: (0, 0)),         # proj weight
        pl.BlockSpec((1, C), lambda g: (0, 0)),         # proj bias
        pl.BlockSpec((N, L), lambda g: (0, 0)),         # rel bias (lane-dense)
        pl.BlockSpec((L, C), lambda g: (0, 0)),         # block-diag head mask
        pl.BlockSpec((L, nH), lambda g: (0, 0)),        # segment-sum indicator
        pl.BlockSpec((nH, C), lambda g: (0, 0)),        # head -> channel expand
    ]
    if has_mask:
        nW = mask.shape[0]
        # (B_, N, N): no nH factor — 8x smaller than the old (B_, nH, N, N) slab.
        mask_full = jnp.tile(mask, (B_ // nW, 1, 1))
        inputs.append(mask_full)
        in_specs.append(pl.BlockSpec((G, N, N), lambda g: (g, 0, 0)))

    kern = functools.partial(_fused_window_attn_kernel, num_heads=nH,
                             has_mask=has_mask, mxu_dtype=mxu_dtype)

    flops = 2 * B_ * N * C * (4 * C) + 4 * B_ * N * L * C
    bytes_accessed = (2 * B_ * N * C + C * 3 * C + C * C + C
                      + N * L + L * C + L * nH + nH * C) * 4
    if has_mask:
        bytes_accessed += B_ * N * N * 4

    out = pl.pallas_call(
        kern,
        out_shape=jax.ShapeDtypeStruct((B_ * N, C), jnp.float32),
        grid=(n_groups,),
        in_specs=in_specs,
        out_specs=pl.BlockSpec((GN, C), lambda g: (g, 0)),
        compiler_params=pltpu.CompilerParams(
            dimension_semantics=("parallel",)),
        cost_estimate=pl.CostEstimate(
            flops=int(flops),
            transcendentals=int(B_ * N * L),
            bytes_accessed=int(bytes_accessed)),
    )(*inputs)

    return out.reshape(B_, N, C)


# ----------------------------------------------------------------------------
# Pure-JAX reference (mirrors the PyTorch forward exactly)
# ----------------------------------------------------------------------------
def window_attention_ref(x, params, mask=None, *, num_heads):
    B_, N, C = x.shape
    nH = num_heads
    hd = C // nH
    scale = hd ** -0.5

    qkv = x @ params["qkv_w"]                                   # (B_, N, 3C)
    qkv = qkv.reshape(B_, N, 3, nH, hd).transpose(2, 0, 3, 1, 4)
    q, k, v = qkv[0] * scale, qkv[1], qkv[2]
    attn = jnp.einsum("bhnd,bhmd->bhnm", q, k)

    table = params["rel_bias_table"]
    idx = params["rel_pos_index"]
    rel = table[idx.reshape(-1)].reshape(N, N, nH).transpose(2, 0, 1)
    attn = attn + rel[None]

    if mask is not None:
        nW = mask.shape[0]
        attn = attn.reshape(B_ // nW, nW, nH, N, N) + mask[None, :, None]
        attn = attn.reshape(B_, nH, N, N)

    attn = jax.nn.softmax(attn, axis=-1)
    out = jnp.einsum("bhnm,bhmd->bhnd", attn, v)
    out = out.transpose(0, 2, 1, 3).reshape(B_, N, C)
    return out @ params["proj_w"] + params["proj_b"]


# ----------------------------------------------------------------------------
# Deterministic parameter init
# ----------------------------------------------------------------------------
def _relative_position_index(Wh, Ww):
    coords = np.stack(np.meshgrid(np.arange(Wh), np.arange(Ww), indexing="ij"))
    flat = coords.reshape(2, -1)
    rel = flat[:, :, None] - flat[:, None, :]
    rel = rel.transpose(1, 2, 0).copy()
    rel[:, :, 0] += Wh - 1
    rel[:, :, 1] += Ww - 1
    rel[:, :, 0] *= 2 * Ww - 1
    return rel.sum(-1)                                          # (N, N) int


def init_params(key, dim, window_size, num_heads):
    k1, k2, k3, k4 = jax.random.split(key, 4)
    Wh, Ww = window_size
    return {
        "qkv_w": 0.1 * jax.random.normal(k1, (dim, 3 * dim), jnp.float32),
        "proj_w": 0.1 * jax.random.normal(k2, (dim, dim), jnp.float32),
        "proj_b": 0.1 * jax.random.normal(k3, (dim,), jnp.float32),
        "rel_bias_table": 0.1 * jax.random.normal(
            k4, ((2 * Wh - 1) * (2 * Ww - 1), num_heads), jnp.float32),
        "rel_pos_index": jnp.asarray(_relative_position_index(Wh, Ww), jnp.int32),
    }


# ----------------------------------------------------------------------------
if __name__ == "__main__":
    key = jax.random.PRNGKey(0)
    k_param, k_x, k_mask = jax.random.split(key, 3)

    DIM, HEADS, WIN = 32, 8, (4, 4)          # head_dim = 4
    N = WIN[0] * WIN[1]                      # tokens per window = 16
    NW = 16                                  # windows per image
    BATCH = 2
    B_ = BATCH * NW                          # 32 windows total

    params = init_params(k_param, DIM, WIN, HEADS)
    x = jax.random.normal(k_x, (B_, N, DIM), jnp.float32)

    fwd = jax.jit(functools.partial(window_attention, num_heads=HEADS))
    ref = functools.partial(window_attention_ref, num_heads=HEADS)

    # --- mask=None path ---
    out = jax.block_until_ready(fwd(x, params))
    exp = ref(x, params)
    assert out.shape == (B_, N, DIM), out.shape
    assert bool(jnp.all(jnp.isfinite(out)))
    err = float(jnp.max(jnp.abs(out - exp)))
    assert err < 5e-3, f"no-mask max abs err {err}"

    # --- masked (shifted-window style) path ---
    mask = jax.random.normal(k_mask, (NW, N, N), jnp.float32)
    out_m = jax.block_until_ready(fwd(x, params, mask))
    exp_m = ref(x, params, mask)
    err_m = float(jnp.max(jnp.abs(out_m - exp_m)))
    assert err_m < 5e-3, f"masked max abs err {err_m}"

    print("KERNEL_OK")
</pallas_src>

<mosaic_0001>
module attributes {stable_mosaic.version = 11 : i64} {
  func.func @_fused_window_attn_kernel(%arg0: i32, %arg1: memref<512x32xf32, #tpu.memory_space<vmem>>, %arg2: memref<32x96xf32, #tpu.memory_space<vmem>>, %arg3: memref<32x32xf32, #tpu.memory_space<vmem>>, %arg4: memref<1x32xf32, #tpu.memory_space<vmem>>, %arg5: memref<16x128xf32, #tpu.memory_space<vmem>>, %arg6: memref<128x32xf32, #tpu.memory_space<vmem>>, %arg7: memref<128x8xf32, #tpu.memory_space<vmem>>, %arg8: memref<8x32xf32, #tpu.memory_space<vmem>>, %arg9: memref<512x32xf32, #tpu.memory_space<vmem>>) attributes {dimension_semantics = [#tpu.dimension_semantics<parallel>], iteration_bounds = array<i64: 1>, scalar_prefetch = 0 : i64, scratch_operands = 0 : i64, tpu.core_type = #tpu.core_type<tc>, window_params = [{transform_indices = @transform_0, window_bounds = array<i64: 512, 32>}, {pipeline_mode = #tpu.pipeline_mode<synchronous>, transform_indices = @transform_1, window_bounds = array<i64: 32, 96>}, {pipeline_mode = #tpu.pipeline_mode<synchronous>, transform_indices = @transform_2, window_bounds = array<i64: 32, 32>}, {pipeline_mode = #tpu.pipeline_mode<synchronous>, transform_indices = @transform_3, window_bounds = array<i64: 1, 32>}, {pipeline_mode = #tpu.pipeline_mode<synchronous>, transform_indices = @transform_4, window_bounds = array<i64: 16, 128>}, {pipeline_mode = #tpu.pipeline_mode<synchronous>, transform_indices = @transform_5, window_bounds = array<i64: 128, 32>}, {pipeline_mode = #tpu.pipeline_mode<synchronous>, transform_indices = @transform_6, window_bounds = array<i64: 128, 8>}, {pipeline_mode = #tpu.pipeline_mode<synchronous>, transform_indices = @transform_7, window_bounds = array<i64: 8, 32>}, {transform_indices = @transform_8, window_bounds = array<i64: 512, 32>}]} {
    %c0 = arith.constant 0 : index
    %c0_0 = arith.constant 0 : index
    %0 = vector.load %arg1[%c0, %c0_0] : memref<512x32xf32, #tpu.memory_space<vmem>>, vector<512x32xf32>
    %c0_1 = arith.constant 0 : index
    %c0_2 = arith.constant 0 : index
    %1 = vector.load %arg2[%c0_1, %c0_2] : memref<32x96xf32, #tpu.memory_space<vmem>>, vector<32x96xf32>
    %cst = arith.constant dense<0.000000e+00> : vector<512x96xf32>
    %2 = tpu.matmul %0, %1, %cst {dimension_numbers = #tpu.dot_dimension_numbers<[1], [0], [0], [1], [0, 0, 1, 1], [], []>} : vector<512x32xf32>, vector<32x96xf32>, vector<512x96xf32> -> vector<512x96xf32>
    %3 = vector.extract_strided_slice %2 {offsets = [0, 0], sizes = [512, 32], strides = [1, 1]} : vector<512x96xf32> to vector<512x32xf32>
    %4 = vector.shape_cast %3 : vector<512x32xf32> to vector<32x16x32xf32>
    %5 = vector.extract_strided_slice %2 {offsets = [0, 32], sizes = [512, 32], strides = [1, 1]} : vector<512x96xf32> to vector<512x32xf32>
    %6 = vector.shape_cast %5 : vector<512x32xf32> to vector<32x16x32xf32>
    %7 = vector.extract_strided_slice %2 {offsets = [0, 64], sizes = [512, 32], strides = [1, 1]} : vector<512x96xf32> to vector<512x32xf32>
    %8 = vector.shape_cast %7 : vector<512x32xf32> to vector<32x16x32xf32>
    %c0_3 = arith.constant 0 : index
    %c0_4 = arith.constant 0 : index
    %9 = vector.load %arg6[%c0_3, %c0_4] : memref<128x32xf32, #tpu.memory_space<vmem>>, vector<128x32xf32>
    %10 = tpu.concatenate %6, %6, %6, %6, %6, %6, %6, %6 in 1 : vector<32x16x32xf32>, vector<32x16x32xf32>, vector<32x16x32xf32>, vector<32x16x32xf32>, vector<32x16x32xf32>, vector<32x16x32xf32>, vector<32x16x32xf32>, vector<32x16x32xf32> -> vector<32x128x32xf32>
    %11 = vector.shape_cast %9 : vector<128x32xf32> to vector<1x128x32xf32>
    %12 = vector.broadcast %11 : vector<1x128x32xf32> to vector<32x128x32xf32>
    %13 = arith.mulf %10, %12 : vector<32x128x32xf32>
    %14 = tpu.concatenate %8, %8, %8, %8, %8, %8, %8, %8 in 1 : vector<32x16x32xf32>, vector<32x16x32xf32>, vector<32x16x32xf32>, vector<32x16x32xf32>, vector<32x16x32xf32>, vector<32x16x32xf32>, vector<32x16x32xf32>, vector<32x16x32xf32> -> vector<32x128x32xf32>
    %15 = vector.shape_cast %9 : vector<128x32xf32> to vector<1x128x32xf32>
    %16 = vector.broadcast %15 : vector<1x128x32xf32> to vector<32x128x32xf32>
    %17 = arith.mulf %14, %16 : vector<32x128x32xf32>
    "tpu.trace_start"() <{level = 10 : i32, message = "gnc,gjc->gnj"}> : () -> ()
    %cst_5 = arith.constant dense<0.000000e+00> : vector<32x16x128xf32>
    %18 = tpu.matmul %4, %13, %cst_5 {dimension_numbers = #tpu.dot_dimension_numbers<[2], [2], [1], [1], [0, 0, 0, 1, 1, 1], [0], [0]>} : vector<32x16x32xf32>, vector<32x128x32xf32>, vector<32x16x128xf32> -> vector<32x16x128xf32>
    "tpu.trace_stop"() : () -> ()
    %c0_6 = arith.constant 0 : index
    %c0_7 = arith.constant 0 : index
    %19 = vector.load %arg5[%c0_6, %c0_7] : memref<16x128xf32, #tpu.memory_space<vmem>>, vector<16x128xf32>
    %20 = vector.shape_cast %19 : vector<16x128xf32> to vector<1x16x128xf32>
    %21 = vector.broadcast %20 : vector<1x16x128xf32> to vector<32x16x128xf32>
    %22 = arith.addf %18, %21 : vector<32x16x128xf32>
    %cst_8 = arith.constant dense<0xFF800000> : vector<32x16xf32>
    %23 = vector.multi_reduction <maximumf>, %22, %cst_8 [2] : vector<32x16x128xf32> to vector<32x16xf32>
    %24 = vector.shape_cast %23 : vector<32x16xf32> to vector<32x16x1xf32>
    %25 = vector.broadcast %24 : vector<32x16x1xf32> to vector<32x16x128xf32>
    %26 = arith.subf %22, %25 : vector<32x16x128xf32>
    %27 = math.exp %26 : vector<32x16x128xf32>
    %28 = vector.shape_cast %27 : vector<32x16x128xf32> to vector<512x128xf32>
    %c0_9 = arith.constant 0 : index
    %c0_10 = arith.constant 0 : index
    %29 = vector.load %arg7[%c0_9, %c0_10] : memref<128x8xf32, #tpu.memory_space<vmem>>, vector<128x8xf32>
    %cst_11 = arith.constant dense<0.000000e+00> : vector<512x8xf32>
    %30 = tpu.matmul %28, %29, %cst_11 {dimension_numbers = #tpu.dot_dimension_numbers<[1], [0], [0], [1], [0, 0, 1, 1], [], []>} : vector<512x128xf32>, vector<128x8xf32>, vector<512x8xf32> -> vector<512x8xf32>
    %cst_12 = arith.constant 1.000000e+00 : f32
    %31 = vector.broadcast %cst_12 : f32 to vector<512x8xf32>
    %32 = arith.divf %31, %30 : vector<512x8xf32>
    "tpu.trace_start"() <{level = 10 : i32, message = "gnj,gjc->gnc"}> : () -> ()
    %cst_13 = arith.constant dense<0.000000e+00> : vector<32x16x32xf32>
    %33 = tpu.matmul %27, %17, %cst_13 {dimension_numbers = #tpu.dot_dimension_numbers<[2], [1], [1], [2], [0, 0, 0, 1, 1, 2], [0], [0]>} : vector<32x16x128xf32>, vector<32x128x32xf32>, vector<32x16x32xf32> -> vector<32x16x32xf32>
    "tpu.trace_stop"() : () -> ()
    %34 = vector.shape_cast %33 : vector<32x16x32xf32> to vector<512x32xf32>
    %c0_14 = arith.constant 0 : index
    %c0_15 = arith.constant 0 : index
    %35 = vector.load %arg8[%c0_14, %c0_15] : memref<8x32xf32, #tpu.memory_space<vmem>>, vector<8x32xf32>
    %cst_16 = arith.constant dense<0.000000e+00> : vector<512x32xf32>
    %36 = tpu.matmul %32, %35, %cst_16 {dimension_numbers = #tpu.dot_dimension_numbers<[1], [0], [0], [1], [0, 0, 1, 1], [], []>} : vector<512x8xf32>, vector<8x32xf32>, vector<512x32xf32> -> vector<512x32xf32>
    %37 = arith.mulf %34, %36 : vector<512x32xf32>
    %c0_17 = arith.constant 0 : index
    %c0_18 = arith.constant 0 : index
    %38 = vector.load %arg3[%c0_17, %c0_18] : memref<32x32xf32, #tpu.memory_space<vmem>>, vector<32x32xf32>
    %cst_19 = arith.constant dense<0.000000e+00> : vector<512x32xf32>
    %39 = tpu.matmul %37, %38, %cst_19 {dimension_numbers = #tpu.dot_dimension_numbers<[1], [0], [0], [1], [0, 0, 1, 1], [], []>} : vector<512x32xf32>, vector<32x32xf32>, vector<512x32xf32> -> vector<512x32xf32>
    %c0_20 = arith.constant 0 : index
    %c0_21 = arith.constant 0 : index
    %40 = vector.load %arg4[%c0_20, %c0_21] : memref<1x32xf32, #tpu.memory_space<vmem>>, vector<1x32xf32>
    %41 = vector.broadcast %40 : vector<1x32xf32> to vector<512x32xf32>
    %42 = arith.addf %39, %41 : vector<512x32xf32>
    %c0_22 = arith.constant 0 : index
    %c0_23 = arith.constant 0 : index
    %43 = vector.load %arg9[%c0_22, %c0_23] : memref<512x32xf32, #tpu.memory_space<vmem>>, vector<512x32xf32>
    tpu.vector_store %arg9[%c0_22, %c0_23], %42 {strides = array<i32>} : memref<512x32xf32, #tpu.memory_space<vmem>>, vector<512x32xf32>,
    return
  }
  func.func @transform_0(%arg0: i32) -> (i32, i32) {
    %c0_i32 = arith.constant 0 : i32
    %c0_i32_0 = arith.constant 0 : i32
    return %arg0, %c0_i32 : i32, i32
  }
  func.func @transform_1(%arg0: i32) -> (i32, i32) {
    %c0_i32 = arith.constant 0 : i32
    %c0_i32_0 = arith.constant 0 : i32
    %c0_i32_1 = arith.constant 0 : i32
    return %c0_i32, %c0_i32_0 : i32, i32
  }
  func.func @transform_2(%arg0: i32) -> (i32, i32) {
    %c0_i32 = arith.constant 0 : i32
    %c0_i32_0 = arith.constant 0 : i32
    %c0_i32_1 = arith.constant 0 : i32
    return %c0_i32, %c0_i32_0 : i32, i32
  }
  func.func @transform_3(%arg0: i32) -> (i32, i32) {
    %c0_i32 = arith.constant 0 : i32
    %c0_i32_0 = arith.constant 0 : i32
    %c0_i32_1 = arith.constant 0 : i32
    return %c0_i32, %c0_i32_0 : i32, i32
  }
  func.func @transform_4(%arg0: i32) -> (i32, i32) {
    %c0_i32 = arith.constant 0 : i32
    %c0_i32_0 = arith.constant 0 : i32
    %c0_i32_1 = arith.constant 0 : i32
    return %c0_i32, %c0_i32_0 : i32, i32
  }
  func.func @transform_5(%arg0: i32) -> (i32, i32) {
    %c0_i32 = arith.constant 0 : i32
    %c0_i32_0 = arith.constant 0 : i32
    %c0_i32_1 = arith.constant 0 : i32
    return %c0_i32, %c0_i32_0 : i32, i32
  }
  func.func @transform_6(%arg0: i32) -> (i32, i32) {
    %c0_i32 = arith.constant 0 : i32
    %c0_i32_0 = arith.constant 0 : i32
    %c0_i32_1 = arith.constant 0 : i32
    return %c0_i32, %c0_i32_0 : i32, i32
  }
  func.func @transform_7(%arg0: i32) -> (i32, i32) {
    %c0_i32 = arith.constant 0 : i32
    %c0_i32_0 = arith.constant 0 : i32
    %c0_i32_1 = arith.constant 0 : i32
    return %c0_i32, %c0_i32_0 : i32, i32
  }
  func.func @transform_8(%arg0: i32) -> (i32, i32) {
    %c0_i32 = arith.constant 0 : i32
    %c0_i32_0 = arith.constant 0 : i32
    return %arg0, %c0_i32 : i32, i32
  }
}

</mosaic_0001>

<llo_original>
// kernel: window_attention.1
$region0: #{window_attention.1}
  #allocation0 [shape = 'u32[]', space=smem, size = 0x4, offset = 0x4, fixed_abs, tag = 'smem constant byte address 0x4 - core index']
  #allocation1 [shape = 'u32[72,128]{1,0:T(1,128)}', space=vmem, size = 0x9000, scoped, tag = 'internal scratch']
  %s0 = inlined_call_operand.vmem [shape: f32[512,32], index: 0, kind: input, shape index: {}]
  %s1 = inlined_call_operand.vmem [shape: f32[32,96], index: 1, kind: input, shape index: {}]
  %s2 = inlined_call_operand.vmem [shape: f32[32,32], index: 2, kind: input, shape index: {}]
  %s3 = inlined_call_operand.vmem [shape: f32[1,32], index: 3, kind: input, shape index: {}]
  %s4 = inlined_call_operand.vmem [shape: f32[16,128], index: 4, kind: input, shape index: {}]
  %s5 = inlined_call_operand.vmem [shape: f32[128,32], index: 5, kind: input, shape index: {}]
  %s6 = inlined_call_operand.vmem [shape: f32[128,8], index: 6, kind: input, shape index: {}]
  %s7 = inlined_call_operand.vmem [shape: f32[8,32], index: 7, kind: input, shape index: {}]
  %s8 = inlined_call_operand.hbm [shape: f32[512,32], index: 8, kind: output, shape index: {}]
  %s9 = sld [smem:[#allocation0]]
  $region42: #{window_attention.1} parent=0
    _
  %s11 = ssub.s32 1, %s9
  %s12 = scalar_select 0, %s11, %s9
  $region1: #{window_attention.1} parent=0
    #allocation2 [shape = 'u8[262144]{0}', space=vmem, size = 0x40000, scoped, tag = 'output window, operand 0, single buffered']
    #allocation3 [shape = 's32[1]{0}', space=sflag, size = 0x4, scoped, tag = 'scoped memory for window_attention.1']
    %13 = vsyncpa [#allocation3], 0
    // Predicated region
    $region2: #{window_attention.1} parent=1 // pred_check
      _
    $region3: #{window_attention.1} parent=1 // pred_check_branch
      %15 = sbr.rel (0) target = $region5
    $region4: #{window_attention.1} parent=1 // pred_region
      _
    $region5: #{window_attention.1} parent=1 // pred_fallthru
      _
    // Predicated region
    $region6: #{window_attention.1} parent=1 // pred_check
      _
    $region7: #{window_attention.1} parent=1 // pred_check_branch
      %17 = sbr.rel (0) target = $region9
    $region8: #{window_attention.1} parent=1 // pred_region
      _
    $region9: #{window_attention.1} parent=1 // pred_fallthru
      _
    // Predicated region
    $region10: #{window_attention.1} parent=1 // pred_check
      _
    $region11: #{window_attention.1} parent=1 // pred_check_branch
      %19 = sbr.rel (0) target = $region13
    $region12: #{window_attention.1} parent=1 // pred_region
      _
    $region13: #{window_attention.1} parent=1 // pred_fallthru
      _
    // Predicated region
    $region14: #{window_attention.1} parent=1 // pred_check
      _
    $region15: #{window_attention.1} parent=1 // pred_check_branch
      %21 = sbr.rel (0) target = $region17
    $region16: #{window_attention.1} parent=1 // pred_region
      _
    $region17: #{window_attention.1} parent=1 // pred_fallthru
      _
    // Predicated region
    $region18: #{window_attention.1} parent=1 // pred_check
      _
    $region19: #{window_attention.1} parent=1 // pred_check_branch
      %23 = sbr.rel (0) target = $region21
    $region20: #{window_attention.1} parent=1 // pred_region
      _
    $region21: #{window_attention.1} parent=1 // pred_fallthru
      _
    // Predicated region
    $region22: #{window_attention.1} parent=1 // pred_check
      _
    $region23: #{window_attention.1} parent=1 // pred_check_branch
      %25 = sbr.rel (0) target = $region25
    $region24: #{window_attention.1} parent=1 // pred_region
      _
    $region25: #{window_attention.1} parent=1 // pred_fallthru
      _
    // Predicated region
    $region26: #{window_attention.1} parent=1 // pred_check
      _
    $region27: #{window_attention.1} parent=1 // pred_check_branch
      %27 = sbr.rel (0) target = $region29
    $region28: #{window_attention.1} parent=1 // pred_region
      _
    $region29: #{window_attention.1} parent=1 // pred_fallthru
      _
    // Predicated region
    $region30: #{window_attention.1} parent=1 // pred_check
      _
    $region31: #{window_attention.1} parent=1 // pred_check_branch
      %29 = sbr.rel (0) target = $region33
    $region32: #{window_attention.1} parent=1 // pred_region
      _
    $region33: #{window_attention.1} parent=1 // pred_fallthru
      _
    %v30 = vld [vmem:[%s0] sm:$0xff]
    %v31 = vld [vmem:[%s0 + $0x8] sm:$0xff]
    %v32 = vld [vmem:[%s0 + $0x10] sm:$0xff]
    %v33 = vld [vmem:[%s0 + $0x18] sm:$0xff]
    %v34 = vld [vmem:[%s0 + $0x20] sm:$0xff]
    %v35 = vld [vmem:[%s0 + $0x28] sm:$0xff]
    %v36 = vld [vmem:[%s0 + $0x30] sm:$0xff]
    %v37 = vld [vmem:[%s0 + $0x38] sm:$0xff]
    %v38 = vld [vmem:[%s0 + $0x40] sm:$0xff]
    %v39 = vld [vmem:[%s0 + $0x48] sm:$0xff]
    %v40 = vld [vmem:[%s0 + $0x50] sm:$0xff]
    %v41 = vld [vmem:[%s0 + $0x58] sm:$0xff]
    %v42 = vld [vmem:[%s0 + $0x60] sm:$0xff]
    %v43 = vld [vmem:[%s0 + $0x68] sm:$0xff]
    %v44 = vld [vmem:[%s0 + $0x70] sm:$0xff]
    %v45 = vld [vmem:[%s0 + $0x78] sm:$0xff]
    %v46 = vld [vmem:[%s0 + $0x80] sm:$0xff]
    %v47 = vld [vmem:[%s0 + $0x88] sm:$0xff]
    %v48 = vld [vmem:[%s0 + $0x90] sm:$0xff]
    %v49 = vld [vmem:[%s0 + $0x98] sm:$0xff]
    %v50 = vld [vmem:[%s0 + $0xa0] sm:$0xff]
    %v51 = vld [vmem:[%s0 + $0xa8] sm:$0xff]
    %v52 = vld [vmem:[%s0 + $0xb0] sm:$0xff]
    %v53 = vld [vmem:[%s0 + $0xb8] sm:$0xff]
    %v54 = vld [vmem:[%s0 + $0xc0] sm:$0xff]
    %v55 = vld [vmem:[%s0 + $0xc8] sm:$0xff]
    %v56 = vld [vmem:[%s0 + $0xd0] sm:$0xff]
    %v57 = vld [vmem:[%s0 + $0xd8] sm:$0xff]
    %v58 = vld [vmem:[%s0 + $0xe0] sm:$0xff]
    %v59 = vld [vmem:[%s0 + $0xe8] sm:$0xff]
    %v60 = vld [vmem:[%s0 + $0xf0] sm:$0xff]
    %v61 = vld [vmem:[%s0 + $0xf8] sm:$0xff]
    %v62 = vld [vmem:[%s0 + $0x100] sm:$0xff]
    %v63 = vld [vmem:[%s0 + $0x108] sm:$0xff]
    %v64 = vld [vmem:[%s0 + $0x110] sm:$0xff]
    %v65 = vld [vmem:[%s0 + $0x118] sm:$0xff]
    %v66 = vld [vmem:[%s0 + $0x120] sm:$0xff]
    %v67 = vld [vmem:[%s0 + $0x128] sm:$0xff]
    %v68 = vld [vmem:[%s0 + $0x130] sm:$0xff]
    %v69 = vld [vmem:[%s0 + $0x138] sm:$0xff]
    %v70 = vld [vmem:[%s0 + $0x140] sm:$0xff]
    %v71 = vld [vmem:[%s0 + $0x148] sm:$0xff]
    %v72 = vld [vmem:[%s0 + $0x150] sm:$0xff]
    %v73 = vld [vmem:[%s0 + $0x158] sm:$0xff]
    %v74 = vld [vmem:[%s0 + $0x160] sm:$0xff]
    %v75 = vld [vmem:[%s0 + $0x168] sm:$0xff]
    %v76 = vld [vmem:[%s0 + $0x170] sm:$0xff]
    %v77 = vld [vmem:[%s0 + $0x178] sm:$0xff]
    %v78 = vld [vmem:[%s0 + $0x180] sm:$0xff]
    %v79 = vld [vmem:[%s0 + $0x188] sm:$0xff]
    %v80 = vld [vmem:[%s0 + $0x190] sm:$0xff]
    %v81 = vld [vmem:[%s0 + $0x198] sm:$0xff]
    %v82 = vld [vmem:[%s0 + $0x1a0] sm:$0xff]
    %v83 = vld [vmem:[%s0 + $0x1a8] sm:$0xff]
    %v84 = vld [vmem:[%s0 + $0x1b0] sm:$0xff]
    %v85 = vld [vmem:[%s0 + $0x1b8] sm:$0xff]
    %v86 = vld [vmem:[%s0 + $0x1c0] sm:$0xff]
    %v87 = vld [vmem:[%s0 + $0x1c8] sm:$0xff]
    %v88 = vld [vmem:[%s0 + $0x1d0] sm:$0xff]
    %v89 = vld [vmem:[%s0 + $0x1d8] sm:$0xff]
    %v90 = vld [vmem:[%s0 + $0x1e0] sm:$0xff]
    %v91 = vld [vmem:[%s0 + $0x1e8] sm:$0xff]
    %v92 = vld [vmem:[%s0 + $0x1f0] sm:$0xff]
    %v93 = vld [vmem:[%s0 + $0x1f8] sm:$0xff]
    %v94 = vld [vmem:[%s1] sm:$0xff]
    %v95 = vld [vmem:[%s1 + $0x8] sm:$0xff]
    %v96 = vld [vmem:[%s1 + $0x10] sm:$0xff]
    %v97 = vld [vmem:[%s1 + $0x18] sm:$0xff]
    %vm98 = vcmask 261120
    %v100 = vsel %vm98, %v30, 0
    %v103 = vsel %vm98, %v31, 0
    %v106 = vsel %vm98, %v32, 0
    %v109 = vsel %vm98, %v33, 0
    %v112 = vsel %vm98, %v34, 0
    %v115 = vsel %vm98, %v35, 0
    %v118 = vsel %vm98, %v36, 0
    %v121 = vsel %vm98, %v37, 0
    %v124 = vsel %vm98, %v38, 0
    %v127 = vsel %vm98, %v39, 0
    %v130 = vsel %vm98, %v40, 0
    %v133 = vsel %vm98, %v41, 0
    %v136 = vsel %vm98, %v42, 0
    %v139 = vsel %vm98, %v43, 0
    %v142 = vsel %vm98, %v44, 0
    %v145 = vsel %vm98, %v45, 0
    %v148 = vsel %vm98, %v46, 0
    %v151 = vsel %vm98, %v47, 0
    %v154 = vsel %vm98, %v48, 0
    %v157 = vsel %vm98, %v49, 0
    %v160 = vsel %vm98, %v50, 0
    %v163 = vsel %vm98, %v51, 0
    %v166 = vsel %vm98, %v52, 0
    %v169 = vsel %vm98, %v53, 0
    %v172 = vsel %vm98, %v54, 0
    %v175 = vsel %vm98, %v55, 0
    %v178 = vsel %vm98, %v56, 0
    %v181 = vsel %vm98, %v57, 0
    %v184 = vsel %vm98, %v58, 0
    %v187 = vsel %vm98, %v59, 0
    %v190 = vsel %vm98, %v60, 0
    %v193 = vsel %vm98, %v61, 0
    %v196 = vsel %vm98, %v62, 0
    %v199 = vsel %vm98, %v63, 0
    %v202 = vsel %vm98, %v64, 0
    %v205 = vsel %vm98, %v65, 0
    %v208 = vsel %vm98, %v66, 0
    %v211 = vsel %vm98, %v67, 0
    %v214 = vsel %vm98, %v68, 0
    %v217 = vsel %vm98, %v69, 0
    %v220 = vsel %vm98, %v70, 0
    %v223 = vsel %vm98, %v71, 0
    %v226 = vsel %vm98, %v72, 0
    %v229 = vsel %vm98, %v73, 0
    %v232 = vsel %vm98, %v74, 0
    %v235 = vsel %vm98, %v75, 0
    %v238 = vsel %vm98, %v76, 0
    %v241 = vsel %vm98, %v77, 0
    %v244 = vsel %vm98, %v78, 0
    %v247 = vsel %vm98, %v79, 0
    %v250 = vsel %vm98, %v80, 0
    %v253 = vsel %vm98, %v81, 0
    %v256 = vsel %vm98, %v82, 0
    %v259 = vsel %vm98, %v83, 0
    %v262 = vsel %vm98, %v84, 0
    %v265 = vsel %vm98, %v85, 0
    %v268 = vsel %vm98, %v86, 0
    %v271 = vsel %vm98, %v87, 0
    %v274 = vsel %vm98, %v88, 0
    %v277 = vsel %vm98, %v89, 0
    %v280 = vsel %vm98, %v90, 0
    %v283 = vsel %vm98, %v91, 0
    %v286 = vsel %vm98, %v92, 0
    %v289 = vsel %vm98, %v93, 0
    %291 = vmatpush.msra.mxu0 0.0
    %292 = vmatpush.msra.mxu0 0.0
    %293 = vmatpush.msra.mxu0 0.0
    %294 = vmatpush.msra.mxu0 0.0
    %295 = vmatpush.msra.mxu0 0.0
    %296 = vmatpush.msra.mxu0 0.0
    %297 = vmatpush.msra.mxu0 0.0
    %298 = vmatpush.msra.mxu0 0.0
    %299 = vmatpush.msra.mxu0 0.0
    %300 = vmatpush.msra.mxu0 0.0
    %301 = vmatpush.msra.mxu0 0.0
    %302 = vmatpush.msra.mxu0 0.0
    %303 = vmatpush.msra.mxu0 %v97
    %304 = vmatpush.msra.mxu0 %v96
    %305 = vmatpush.msra.mxu0 %v95
    %306 = vmatpush.msra.mxu0 %v94
    %307 = vmatmul.f32.gmra.mxu0 %v100
    %v308 = vpop.f32.mrf.mxu0
    %v309 = vadd.f32 0.0, %v308
    %310 = vmatmul.f32.gmra.mxu0 %v103
    %v311 = vpop.f32.mrf.mxu0
    %v312 = vadd.f32 0.0, %v311
    %313 = vmatmul.f32.gmra.mxu0 %v106
    %v314 = vpop.f32.mrf.mxu0
    %v315 = vadd.f32 0.0, %v314
    %316 = vmatmul.f32.gmra.mxu0 %v109
    %v317 = vpop.f32.mrf.mxu0
    %v318 = vadd.f32 0.0, %v317
    %319 = vmatmul.f32.gmra.mxu0 %v112
    %v320 = vpop.f32.mrf.mxu0
    %v321 = vadd.f32 0.0, %v320
    %322 = vmatmul.f32.gmra.mxu0 %v115
    %v323 = vpop.f32.mrf.mxu0
    %v324 = vadd.f32 0.0, %v323
    %325 = vmatmul.f32.gmra.mxu0 %v118
    %v326 = vpop.f32.mrf.mxu0
    %v327 = vadd.f32 0.0, %v326
    %328 = vmatmul.f32.gmra.mxu0 %v121
    %v329 = vpop.f32.mrf.mxu0
    %v330 = vadd.f32 0.0, %v329
    %331 = vmatmul.f32.gmra.mxu0 %v124
    %v332 = vpop.f32.mrf.mxu0
    %v333 = vadd.f32 0.0, %v332
    %334 = vmatmul.f32.gmra.mxu0 %v127
    %v335 = vpop.f32.mrf.mxu0
    %v336 = vadd.f32 0.0, %v335
    %337 = vmatmul.f32.gmra.mxu0 %v130
    %v338 = vpop.f32.mrf.mxu0
    %v339 = vadd.f32 0.0, %v338
    %340 = vmatmul.f32.gmra.mxu0 %v133
    %v341 = vpop.f32.mrf.mxu0
    %v342 = vadd.f32 0.0, %v341
    %343 = vmatmul.f32.gmra.mxu0 %v136
    %v344 = vpop.f32.mrf.mxu0
    %v345 = vadd.f32 0.0, %v344
    %346 = vmatmul.f32.gmra.mxu0 %v139
    %v347 = vpop.f32.mrf.mxu0
    %v348 = vadd.f32 0.0, %v347
    %349 = vmatmul.f32.gmra.mxu0 %v142
    %v350 = vpop.f32.mrf.mxu0
    %v351 = vadd.f32 0.0, %v350
    %352 = vmatmul.f32.gmra.mxu0 %v145
    %v353 = vpop.f32.mrf.mxu0
    %v354 = vadd.f32 0.0, %v353
    %355 = vmatmul.f32.gmra.mxu0 %v148
    %v356 = vpop.f32.mrf.mxu0
    %v357 = vadd.f32 0.0, %v356
    %358 = vmatmul.f32.gmra.mxu0 %v151
    %v359 = vpop.f32.mrf.mxu0
    %v360 = vadd.f32 0.0, %v359
    %361 = vmatmul.f32.gmra.mxu0 %v154
    %v362 = vpop.f32.mrf.mxu0
    %v363 = vadd.f32 0.0, %v362
    %364 = vmatmul.f32.gmra.mxu0 %v157
    %v365 = vpop.f32.mrf.mxu0
    %v366 = vadd.f32 0.0, %v365
    %367 = vmatmul.f32.gmra.mxu0 %v160
    %v368 = vpop.f32.mrf.mxu0
    %v369 = vadd.f32 0.0, %v368
    %370 = vmatmul.f32.gmra.mxu0 %v163
    %v371 = vpop.f32.mrf.mxu0
    %v372 = vadd.f32 0.0, %v371
    %373 = vmatmul.f32.gmra.mxu0 %v166
    %v374 = vpop.f32.mrf.mxu0
    %v375 = vadd.f32 0.0, %v374
    %376 = vmatmul.f32.gmra.mxu0 %v169
    %v377 = vpop.f32.mrf.mxu0
    %v378 = vadd.f32 0.0, %v377
    %379 = vmatmul.f32.gmra.mxu0 %v172
    %v380 = vpop.f32.mrf.mxu0
    %v381 = vadd.f32 0.0, %v380
    %382 = vmatmul.f32.gmra.mxu0 %v175
    %v383 = vpop.f32.mrf.mxu0
    %v384 = vadd.f32 0.0, %v383
    %385 = vmatmul.f32.gmra.mxu0 %v178
    %v386 = vpop.f32.mrf.mxu0
    %v387 = vadd.f32 0.0, %v386
    %388 = vmatmul.f32.gmra.mxu0 %v181
    %v389 = vpop.f32.mrf.mxu0
    %v390 = vadd.f32 0.0, %v389
    %391 = vmatmul.f32.gmra.mxu0 %v184
    %v392 = vpop.f32.mrf.mxu0
    %v393 = vadd.f32 0.0, %v392
    %394 = vmatmul.f32.gmra.mxu0 %v187
    %v395 = vpop.f32.mrf.mxu0
    %v396 = vadd.f32 0.0, %v395
    %397 = vmatmul.f32.gmra.mxu0 %v190
    %v398 = vpop.f32.mrf.mxu0
    %v399 = vadd.f32 0.0, %v398
    %400 = vmatmul.f32.gmra.mxu0 %v193
    %v401 = vpop.f32.mrf.mxu0
    %v402 = vadd.f32 0.0, %v401
    %403 = vmatmul.f32.gmra.mxu0 %v196
    %v404 = vpop.f32.mrf.mxu0
    %v405 = vadd.f32 0.0, %v404
    %406 = vmatmul.f32.gmra.mxu0 %v199
    %v407 = vpop.f32.mrf.mxu0
    %v408 = vadd.f32 0.0, %v407
    %409 = vmatmul.f32.gmra.mxu0 %v202
    %v410 = vpop.f32.mrf.mxu0
    %v411 = vadd.f32 0.0, %v410
    %412 = vmatmul.f32.gmra.mxu0 %v205
    %v413 = vpop.f32.mrf.mxu0
    %v414 = vadd.f32 0.0, %v413
    %415 = vmatmul.f32.gmra.mxu0 %v208
    %v416 = vpop.f32.mrf.mxu0
    %v417 = vadd.f32 0.0, %v416
    %418 = vmatmul.f32.gmra.mxu0 %v211
    %v419 = vpop.f32.mrf.mxu0
    %v420 = vadd.f32 0.0, %v419
    %421 = vmatmul.f32.gmra.mxu0 %v214
    %v422 = vpop.f32.mrf.mxu0
    %v423 = vadd.f32 0.0, %v422
    %424 = vmatmul.f32.gmra.mxu0 %v217
    %v425 = vpop.f32.mrf.mxu0
    %v426 = vadd.f32 0.0, %v425
    %427 = vmatmul.f32.gmra.mxu0 %v220
    %v428 = vpop.f32.mrf.mxu0
    %v429 = vadd.f32 0.0, %v428
    %430 = vmatmul.f32.gmra.mxu0 %v223
    %v431 = vpop.f32.mrf.mxu0
    %v432 = vadd.f32 0.0, %v431
    %433 = vmatmul.f32.gmra.mxu0 %v226
    %v434 = vpop.f32.mrf.mxu0
    %v435 = vadd.f32 0.0, %v434
    %436 = vmatmul.f32.gmra.mxu0 %v229
    %v437 = vpop.f32.mrf.mxu0
    %v438 = vadd.f32 0.0, %v437
    %439 = vmatmul.f32.gmra.mxu0 %v232
    %v440 = vpop.f32.mrf.mxu0
    %v441 = vadd.f32 0.0, %v440
    %442 = vmatmul.f32.gmra.mxu0 %v235
    %v443 = vpop.f32.mrf.mxu0
    %v444 = vadd.f32 0.0, %v443
    %445 = vmatmul.f32.gmra.mxu0 %v238
    %v446 = vpop.f32.mrf.mxu0
    %v447 = vadd.f32 0.0, %v446
    %448 = vmatmul.f32.gmra.mxu0 %v241
    %v449 = vpop.f32.mrf.mxu0
    %v450 = vadd.f32 0.0, %v449
    %451 = vmatmul.f32.gmra.mxu0 %v244
    %v452 = vpop.f32.mrf.mxu0
    %v453 = vadd.f32 0.0, %v452
    %454 = vmatmul.f32.gmra.mxu0 %v247
    %v455 = vpop.f32.mrf.mxu0
    %v456 = vadd.f32 0.0, %v455
    %457 = vmatmul.f32.gmra.mxu0 %v250
    %v458 = vpop.f32.mrf.mxu0
    %v459 = vadd.f32 0.0, %v458
    %460 = vmatmul.f32.gmra.mxu0 %v253
    %v461 = vpop.f32.mrf.mxu0
    %v462 = vadd.f32 0.0, %v461
    %463 = vmatmul.f32.gmra.mxu0 %v256
    %v464 = vpop.f32.mrf.mxu0
    %v465 = vadd.f32 0.0, %v464
    %466 = vmatmul.f32.gmra.mxu0 %v259
    %v467 = vpop.f32.mrf.mxu0
    %v468 = vadd.f32 0.0, %v467
    %469 = vmatmul.f32.gmra.mxu0 %v262
    %v470 = vpop.f32.mrf.mxu0
    %v471 = vadd.f32 0.0, %v470
    %472 = vmatmul.f32.gmra.mxu0 %v265
    %v473 = vpop.f32.mrf.mxu0
    %v474 = vadd.f32 0.0, %v473
    %475 = vmatmul.f32.gmra.mxu0 %v268
    %v476 = vpop.f32.mrf.mxu0
    %v477 = vadd.f32 0.0, %v476
    %478 = vmatmul.f32.gmra.mxu0 %v271
    %v479 = vpop.f32.mrf.mxu0
    %v480 = vadd.f32 0.0, %v479
    %481 = vmatmul.f32.gmra.mxu0 %v274
    %v482 = vpop.f32.mrf.mxu0
    %v483 = vadd.f32 0.0, %v482
    %484 = vmatmul.f32.gmra.mxu0 %v277
    %v485 = vpop.f32.mrf.mxu0
    %v486 = vadd.f32 0.0, %v485
    %487 = vmatmul.f32.gmra.mxu0 %v280
    %v488 = vpop.f32.mrf.mxu0
    %v489 = vadd.f32 0.0, %v488
    %490 = vmatmul.f32.gmra.mxu0 %v283
    %v491 = vpop.f32.mrf.mxu0
    %v492 = vadd.f32 0.0, %v491
    %493 = vmatmul.f32.gmra.mxu0 %v286
    %v494 = vpop.f32.mrf.mxu0
    %v495 = vadd.f32 0.0, %v494
    %496 = vmatmul.f32.gmra.mxu0 %v289
    %v497 = vpop.f32.mrf.mxu0
    %v498 = vadd.f32 0.0, %v497
    %499 = vdwg.mxu0
    %v500 = vld [vmem:[%s5] sm:$0xff]
    %v501 = vld [vmem:[%s5 + $0x8] sm:$0xff]
    %v502 = vld [vmem:[%s5 + $0x10] sm:$0xff]
    %v503 = vld [vmem:[%s5 + $0x18] sm:$0xff]
    %v504 = vld [vmem:[%s5 + $0x20] sm:$0xff]
    %v505 = vld [vmem:[%s5 + $0x28] sm:$0xff]
    %v506 = vld [vmem:[%s5 + $0x30] sm:$0xff]
    %v507 = vld [vmem:[%s5 + $0x38] sm:$0xff]
    %v508 = vld [vmem:[%s5 + $0x40] sm:$0xff]
    %v509 = vld [vmem:[%s5 + $0x48] sm:$0xff]
    %v510 = vld [vmem:[%s5 + $0x50] sm:$0xff]
    %v511 = vld [vmem:[%s5 + $0x58] sm:$0xff]
    %v512 = vld [vmem:[%s5 + $0x60] sm:$0xff]
    %v513 = vld [vmem:[%s5 + $0x68] sm:$0xff]
    %v514 = vld [vmem:[%s5 + $0x70] sm:$0xff]
    %v515 = vld [vmem:[%s5 + $0x78] sm:$0xff]
    %532 = vrot.lane.b32.xlu0 %v500, 32
    %v533 = vpop.permute.xlu0 %532
    %534 = vrot.lane.b32.xlu0 %v501, 32
    %v535 = vpop.permute.xlu0 %534
    %536 = vrot.lane.b32.xlu0 %v502, 32
    %v537 = vpop.permute.xlu0 %536
    %538 = vrot.lane.b32.xlu0 %v503, 32
    %v539 = vpop.permute.xlu0 %538
    %540 = vrot.lane.b32.xlu0 %v504, 32
    %v541 = vpop.permute.xlu0 %540
    %542 = vrot.lane.b32.xlu0 %v505, 32
    %v543 = vpop.permute.xlu0 %542
    %544 = vrot.lane.b32.xlu0 %v506, 32
    %v545 = vpop.permute.xlu0 %544
    %546 = vrot.lane.b32.xlu0 %v507, 32
    %v547 = vpop.permute.xlu0 %546
    %548 = vrot.lane.b32.xlu0 %v508, 32
    %v549 = vpop.permute.xlu0 %548
    %550 = vrot.lane.b32.xlu0 %v509, 32
    %v551 = vpop.permute.xlu0 %550
    %552 = vrot.lane.b32.xlu0 %v510, 32
    %v553 = vpop.permute.xlu0 %552
    %554 = vrot.lane.b32.xlu0 %v511, 32
    %v555 = vpop.permute.xlu0 %554
    %556 = vrot.lane.b32.xlu0 %v512, 32
    %v557 = vpop.permute.xlu0 %556
    %558 = vrot.lane.b32.xlu0 %v513, 32
    %v559 = vpop.permute.xlu0 %558
    %560 = vrot.lane.b32.xlu0 %v514, 32
    %v561 = vpop.permute.xlu0 %560
    %562 = vrot.lane.b32.xlu0 %v515, 32
    %v563 = vpop.permute.xlu0 %562
    %v580 = vmul.f32 %v309, %v533
    %v581 = vmul.f32 %v312, %v535
    %v582 = vmul.f32 %v309, %v537
    %v583 = vmul.f32 %v312, %v539
    %v584 = vmul.f32 %v309, %v541
    %v585 = vmul.f32 %v312, %v543
    %v586 = vmul.f32 %v309, %v545
    %v587 = vmul.f32 %v312, %v547
    %v588 = vmul.f32 %v309, %v549
    %v589 = vmul.f32 %v312, %v551
    %v590 = vmul.f32 %v309, %v553
    %v591 = vmul.f32 %v312, %v555
    %v592 = vmul.f32 %v309, %v557
    %v593 = vmul.f32 %v312, %v559
    %v594 = vmul.f32 %v309, %v561
    %v595 = vmul.f32 %v312, %v563
    %v596 = vmul.f32 %v315, %v533
    %v597 = vmul.f32 %v318, %v535
    %v598 = vmul.f32 %v315, %v537
    %v599 = vmul.f32 %v318, %v539
    %v600 = vmul.f32 %v315, %v541
    %v601 = vmul.f32 %v318, %v543
    %v602 = vmul.f32 %v315, %v545
    %v603 = vmul.f32 %v318, %v547
    %v604 = vmul.f32 %v315, %v549
    %v605 = vmul.f32 %v318, %v551
    %v606 = vmul.f32 %v315, %v553
    %v607 = vmul.f32 %v318, %v555
    %v608 = vmul.f32 %v315, %v557
    %v609 = vmul.f32 %v318, %v559
    %v610 = vmul.f32 %v315, %v561
    %v611 = vmul.f32 %v318, %v563
    %v612 = vmul.f32 %v321, %v533
    %v613 = vmul.f32 %v324, %v535
    %v614 = vmul.f32 %v321, %v537
    %v615 = vmul.f32 %v324, %v539
    %v616 = vmul.f32 %v321, %v541
    %v617 = vmul.f32 %v324, %v543
    %v618 = vmul.f32 %v321, %v545
    %v619 = vmul.f32 %v324, %v547
    %v620 = vmul.f32 %v321, %v549
    %v621 = vmul.f32 %v324, %v551
    %v622 = vmul.f32 %v321, %v553
    %v623 = vmul.f32 %v324, %v555
    %v624 = vmul.f32 %v321, %v557
    %v625 = vmul.f32 %v324, %v559
    %v626 = vmul.f32 %v321, %v561
    %v627 = vmul.f32 %v324, %v563
    %v628 = vmul.f32 %v327, %v533
    %v629 = vmul.f32 %v330, %v535
    %v630 = vmul.f32 %v327, %v537
    %v631 = vmul.f32 %v330, %v539
    %v632 = vmul.f32 %v327, %v541
    %v633 = vmul.f32 %v330, %v543
    %v634 = vmul.f32 %v327, %v545
    %v635 = vmul.f32 %v330, %v547
    %v636 = vmul.f32 %v327, %v549
    %v637 = vmul.f32 %v330, %v551
    %v638 = vmul.f32 %v327, %v553
    %v639 = vmul.f32 %v330, %v555
    %v640 = vmul.f32 %v327, %v557
    %v641 = vmul.f32 %v330, %v559
    %v642 = vmul.f32 %v327, %v561
    %v643 = vmul.f32 %v330, %v563
    %v644 = vmul.f32 %v333, %v533
    %v645 = vmul.f32 %v336, %v535
    %v646 = vmul.f32 %v333, %v537
    %v647 = vmul.f32 %v336, %v539
    %v648 = vmul.f32 %v333, %v541
    %v649 = vmul.f32 %v336, %v543
    %v650 = vmul.f32 %v333, %v545
    %v651 = vmul.f32 %v336, %v547
    %v652 = vmul.f32 %v333, %v549
    %v653 = vmul.f32 %v336, %v551
    %v654 = vmul.f32 %v333, %v553
    %v655 = vmul.f32 %v336, %v555
    %v656 = vmul.f32 %v333, %v557
    %v657 = vmul.f32 %v336, %v559
    %v658 = vmul.f32 %v333, %v561
    %v659 = vmul.f32 %v336, %v563
    %v660 = vmul.f32 %v339, %v533
    %v661 = vmul.f32 %v342, %v535
    %v662 = vmul.f32 %v339, %v537
    %v663 = vmul.f32 %v342, %v539
    %v664 = vmul.f32 %v339, %v541
    %v665 = vmul.f32 %v342, %v543
    %v666 = vmul.f32 %v339, %v545
    %v667 = vmul.f32 %v342, %v547
    %v668 = vmul.f32 %v339, %v549
    %v669 = vmul.f32 %v342, %v551
    %v670 = vmul.f32 %v339, %v553
    %v671 = vmul.f32 %v342, %v555
    %v672 = vmul.f32 %v339, %v557
    %v673 = vmul.f32 %v342, %v559
    %v674 = vmul.f32 %v339, %v561
    %v675 = vmul.f32 %v342, %v563
    %v676 = vmul.f32 %v345, %v533
    %v677 = vmul.f32 %v348, %v535
    %v678 = vmul.f32 %v345, %v537
    %v679 = vmul.f32 %v348, %v539
    %v680 = vmul.f32 %v345, %v541
    %v681 = vmul.f32 %v348, %v543
    %v682 = vmul.f32 %v345, %v545
    %v683 = vmul.f32 %v348, %v547
    %v684 = vmul.f32 %v345, %v549
    %v685 = vmul.f32 %v348, %v551
    %v686 = vmul.f32 %v345, %v553
    %v687 = vmul.f32 %v348, %v555
    %v688 = vmul.f32 %v345, %v557
    %v689 = vmul.f32 %v348, %v559
    %v690 = vmul.f32 %v345, %v561
    %v691 = vmul.f32 %v348, %v563
    %v692 = vmul.f32 %v351, %v533
    %v693 = vmul.f32 %v354, %v535
    %v694 = vmul.f32 %v351, %v537
    %v695 = vmul.f32 %v354, %v539
    %v696 = vmul.f32 %v351, %v541
    %v697 = vmul.f32 %v354, %v543
    %v698 = vmul.f32 %v351, %v545
    %v699 = vmul.f32 %v354, %v547
    %v700 = vmul.f32 %v351, %v549
    %v701 = vmul.f32 %v354, %v551
    %v702 = vmul.f32 %v351, %v553
    %v703 = vmul.f32 %v354, %v555
    %v704 = vmul.f32 %v351, %v557
    %v705 = vmul.f32 %v354, %v559
    %v706 = vmul.f32 %v351, %v561
    %v707 = vmul.f32 %v354, %v563
    %v708 = vmul.f32 %v357, %v533
    %v709 = vmul.f32 %v360, %v535
    %v710 = vmul.f32 %v357, %v537
    %v711 = vmul.f32 %v360, %v539
    %v712 = vmul.f32 %v357, %v541
    %v713 = vmul.f32 %v360, %v543
    %v714 = vmul.f32 %v357, %v545
    %v715 = vmul.f32 %v360, %v547
    %v716 = vmul.f32 %v357, %v549
    %v717 = vmul.f32 %v360, %v551
    %v718 = vmul.f32 %v357, %v553
    %v719 = vmul.f32 %v360, %v555
    %v720 = vmul.f32 %v357, %v557
    %v721 = vmul.f32 %v360, %v559
    %v722 = vmul.f32 %v357, %v561
    %v723 = vmul.f32 %v360, %v563
    %v724 = vmul.f32 %v363, %v533
    %v725 = vmul.f32 %v366, %v535
    %v726 = vmul.f32 %v363, %v537
    %v727 = vmul.f32 %v366, %v539
    %v728 = vmul.f32 %v363, %v541
    %v729 = vmul.f32 %v366, %v543
    %v730 = vmul.f32 %v363, %v545
    %v731 = vmul.f32 %v366, %v547
    %v732 = vmul.f32 %v363, %v549
    %v733 = vmul.f32 %v366, %v551
    %v734 = vmul.f32 %v363, %v553
    %v735 = vmul.f32 %v366, %v555
    %v736 = vmul.f32 %v363, %v557
    %v737 = vmul.f32 %v366, %v559
    %v738 = vmul.f32 %v363, %v561
    %v739 = vmul.f32 %v366, %v563
    %v740 = vmul.f32 %v369, %v533
    %v741 = vmul.f32 %v372, %v535
    %v742 = vmul.f32 %v369, %v537
    %v743 = vmul.f32 %v372, %v539
    %v744 = vmul.f32 %v369, %v541
    %v745 = vmul.f32 %v372, %v543
    %v746 = vmul.f32 %v369, %v545
    %v747 = vmul.f32 %v372, %v547
    %v748 = vmul.f32 %v369, %v549
    %v749 = vmul.f32 %v372, %v551
    %v750 = vmul.f32 %v369, %v553
    %v751 = vmul.f32 %v372, %v555
    %v752 = vmul.f32 %v369, %v557
    %v753 = vmul.f32 %v372, %v559
    %v754 = vmul.f32 %v369, %v561
    %v755 = vmul.f32 %v372, %v563
    %v756 = vmul.f32 %v375, %v533
    %v757 = vmul.f32 %v378, %v535
    %v758 = vmul.f32 %v375, %v537
    %v759 = vmul.f32 %v378, %v539
    %v760 = vmul.f32 %v375, %v541
    %v761 = vmul.f32 %v378, %v543
    %v762 = vmul.f32 %v375, %v545
    %v763 = vmul.f32 %v378, %v547
    %v764 = vmul.f32 %v375, %v549
    %v765 = vmul.f32 %v378, %v551
    %v766 = vmul.f32 %v375, %v553
    %v767 = vmul.f32 %v378, %v555
    %v768 = vmul.f32 %v375, %v557
    %v769 = vmul.f32 %v378, %v559
    %v770 = vmul.f32 %v375, %v561
    %v771 = vmul.f32 %v378, %v563
    %v772 = vmul.f32 %v381, %v533
    %v773 = vmul.f32 %v384, %v535
    %v774 = vmul.f32 %v381, %v537
    %v775 = vmul.f32 %v384, %v539
    %v776 = vmul.f32 %v381, %v541
    %v777 = vmul.f32 %v384, %v543
    %v778 = vmul.f32 %v381, %v545
    %v779 = vmul.f32 %v384, %v547
    %v780 = vmul.f32 %v381, %v549
    %v781 = vmul.f32 %v384, %v551
    %v782 = vmul.f32 %v381, %v553
    %v783 = vmul.f32 %v384, %v555
    %v784 = vmul.f32 %v381, %v557
    %v785 = vmul.f32 %v384, %v559
    %v786 = vmul.f32 %v381, %v561
    %v787 = vmul.f32 %v384, %v563
    %v788 = vmul.f32 %v387, %v533
    %v789 = vmul.f32 %v390, %v535
    %v790 = vmul.f32 %v387, %v537
    %v791 = vmul.f32 %v390, %v539
    %v792 = vmul.f32 %v387, %v541
    %v793 = vmul.f32 %v390, %v543
    %v794 = vmul.f32 %v387, %v545
    %v795 = vmul.f32 %v390, %v547
    %v796 = vmul.f32 %v387, %v549
    %v797 = vmul.f32 %v390, %v551
    %v798 = vmul.f32 %v387, %v553
    %v799 = vmul.f32 %v390, %v555
    %v800 = vmul.f32 %v387, %v557
    %v801 = vmul.f32 %v390, %v559
    %v802 = vmul.f32 %v387, %v561
    %v803 = vmul.f32 %v390, %v563
    %v804 = vmul.f32 %v393, %v533
    %v805 = vmul.f32 %v396, %v535
    %v806 = vmul.f32 %v393, %v537
    %v807 = vmul.f32 %v396, %v539
    %v808 = vmul.f32 %v393, %v541
    %v809 = vmul.f32 %v396, %v543
    %v810 = vmul.f32 %v393, %v545
    %v811 = vmul.f32 %v396, %v547
    %v812 = vmul.f32 %v393, %v549
    %v813 = vmul.f32 %v396, %v551
    %v814 = vmul.f32 %v393, %v553
    %v815 = vmul.f32 %v396, %v555
    %v816 = vmul.f32 %v393, %v557
    %v817 = vmul.f32 %v396, %v559
    %v818 = vmul.f32 %v393, %v561
    %v819 = vmul.f32 %v396, %v563
    %v820 = vmul.f32 %v399, %v533
    %v821 = vmul.f32 %v402, %v535
    %v822 = vmul.f32 %v399, %v537
    %v823 = vmul.f32 %v402, %v539
    %v824 = vmul.f32 %v399, %v541
    %v825 = vmul.f32 %v402, %v543
    %v826 = vmul.f32 %v399, %v545
    %v827 = vmul.f32 %v402, %v547
    %v828 = vmul.f32 %v399, %v549
    %v829 = vmul.f32 %v402, %v551
    %v830 = vmul.f32 %v399, %v553
    %v831 = vmul.f32 %v402, %v555
    %v832 = vmul.f32 %v399, %v557
    %v833 = vmul.f32 %v402, %v559
    %v834 = vmul.f32 %v399, %v561
    %v835 = vmul.f32 %v402, %v563
    %v836 = vmul.f32 %v405, %v533
    %v837 = vmul.f32 %v408, %v535
    %v838 = vmul.f32 %v405, %v537
    %v839 = vmul.f32 %v408, %v539
    %v840 = vmul.f32 %v405, %v541
    %v841 = vmul.f32 %v408, %v543
    %v842 = vmul.f32 %v405, %v545
    %v843 = vmul.f32 %v408, %v547
    %v844 = vmul.f32 %v405, %v549
    %v845 = vmul.f32 %v408, %v551
    %v846 = vmul.f32 %v405, %v553
    %v847 = vmul.f32 %v408, %v555
    %v848 = vmul.f32 %v405, %v557
    %v849 = vmul.f32 %v408, %v559
    %v850 = vmul.f32 %v405, %v561
    %v851 = vmul.f32 %v408, %v563
    %v852 = vmul.f32 %v411, %v533
    %v853 = vmul.f32 %v414, %v535
    %v854 = vmul.f32 %v411, %v537
    %v855 = vmul.f32 %v414, %v539
    %v856 = vmul.f32 %v411, %v541
    %v857 = vmul.f32 %v414, %v543
    %v858 = vmul.f32 %v411, %v545
    %v859 = vmul.f32 %v414, %v547
    %v860 = vmul.f32 %v411, %v549
    %v861 = vmul.f32 %v414, %v551
    %v862 = vmul.f32 %v411, %v553
    %v863 = vmul.f32 %v414, %v555
    %v864 = vmul.f32 %v411, %v557
    %v865 = vmul.f32 %v414, %v559
    %v866 = vmul.f32 %v411, %v561
    %v867 = vmul.f32 %v414, %v563
    %v868 = vmul.f32 %v417, %v533
    %v869 = vmul.f32 %v420, %v535
    %v870 = vmul.f32 %v417, %v537
    %v871 = vmul.f32 %v420, %v539
    %v872 = vmul.f32 %v417, %v541
    %v873 = vmul.f32 %v420, %v543
    %v874 = vmul.f32 %v417, %v545
    %v875 = vmul.f32 %v420, %v547
    %v876 = vmul.f32 %v417, %v549
    %v877 = vmul.f32 %v420, %v551
    %v878 = vmul.f32 %v417, %v553
    %v879 = vmul.f32 %v420, %v555
    %v880 = vmul.f32 %v417, %v557
    %v881 = vmul.f32 %v420, %v559
    %v882 = vmul.f32 %v417, %v561
    %v883 = vmul.f32 %v420, %v563
    %v884 = vmul.f32 %v423, %v533
    %v885 = vmul.f32 %v426, %v535
    %v886 = vmul.f32 %v423, %v537
    %v887 = vmul.f32 %v426, %v539
    %v888 = vmul.f32 %v423, %v541
    %v889 = vmul.f32 %v426, %v543
    %v890 = vmul.f32 %v423, %v545
    %v891 = vmul.f32 %v426, %v547
    %v892 = vmul.f32 %v423, %v549
    %v893 = vmul.f32 %v426, %v551
    %v894 = vmul.f32 %v423, %v553
    %v895 = vmul.f32 %v426, %v555
    %v896 = vmul.f32 %v423, %v557
    %v897 = vmul.f32 %v426, %v559
    %v898 = vmul.f32 %v423, %v561
    %v899 = vmul.f32 %v426, %v563
    %v900 = vmul.f32 %v429, %v533
    %v901 = vmul.f32 %v432, %v535
    %v902 = vmul.f32 %v429, %v537
    %v903 = vmul.f32 %v432, %v539
    %v904 = vmul.f32 %v429, %v541
    %v905 = vmul.f32 %v432, %v543
    %v906 = vmul.f32 %v429, %v545
    %v907 = vmul.f32 %v432, %v547
    %v908 = vmul.f32 %v429, %v549
    %v909 = vmul.f32 %v432, %v551
    %v910 = vmul.f32 %v429, %v553
    %v911 = vmul.f32 %v432, %v555
    %v912 = vmul.f32 %v429, %v557
    %v913 = vmul.f32 %v432, %v559
    %v914 = vmul.f32 %v429, %v561
    %v915 = vmul.f32 %v432, %v563
    %v916 = vmul.f32 %v435, %v533
    %v917 = vmul.f32 %v438, %v535
    %v918 = vmul.f32 %v435, %v537
    %v919 = vmul.f32 %v438, %v539
    %v920 = vmul.f32 %v435, %v541
    %v921 = vmul.f32 %v438, %v543
    %v922 = vmul.f32 %v435, %v545
    %v923 = vmul.f32 %v438, %v547
    %v924 = vmul.f32 %v435, %v549
    %v925 = vmul.f32 %v438, %v551
    %v926 = vmul.f32 %v435, %v553
    %v927 = vmul.f32 %v438, %v555
    %v928 = vmul.f32 %v435, %v557
    %v929 = vmul.f32 %v438, %v559
    %v930 = vmul.f32 %v435, %v561
    %v931 = vmul.f32 %v438, %v563
    %v932 = vmul.f32 %v441, %v533
    %v933 = vmul.f32 %v444, %v535
    %v934 = vmul.f32 %v441, %v537
    %v935 = vmul.f32 %v444, %v539
    %v936 = vmul.f32 %v441, %v541
    %v937 = vmul.f32 %v444, %v543
    %v938 = vmul.f32 %v441, %v545
    %v939 = vmul.f32 %v444, %v547
    %v940 = vmul.f32 %v441, %v549
    %v941 = vmul.f32 %v444, %v551
    %v942 = vmul.f32 %v441, %v553
    %v943 = vmul.f32 %v444, %v555
    %v944 = vmul.f32 %v441, %v557
    %v945 = vmul.f32 %v444, %v559
    %v946 = vmul.f32 %v441, %v561
    %v947 = vmul.f32 %v444, %v563
    %v948 = vmul.f32 %v447, %v533
    %v949 = vmul.f32 %v450, %v535
    %v950 = vmul.f32 %v447, %v537
    %v951 = vmul.f32 %v450, %v539
    %v952 = vmul.f32 %v447, %v541
    %v953 = vmul.f32 %v450, %v543
    %v954 = vmul.f32 %v447, %v545
    %v955 = vmul.f32 %v450, %v547
    %v956 = vmul.f32 %v447, %v549
    %v957 = vmul.f32 %v450, %v551
    %v958 = vmul.f32 %v447, %v553
    %v959 = vmul.f32 %v450, %v555
    %v960 = vmul.f32 %v447, %v557
    %v961 = vmul.f32 %v450, %v559
    %v962 = vmul.f32 %v447, %v561
    %v963 = vmul.f32 %v450, %v563
    %v964 = vmul.f32 %v453, %v533
    %v965 = vmul.f32 %v456, %v535
    %v966 = vmul.f32 %v453, %v537
    %v967 = vmul.f32 %v456, %v539
    %v968 = vmul.f32 %v453, %v541
    %v969 = vmul.f32 %v456, %v543
    %v970 = vmul.f32 %v453, %v545
    %v971 = vmul.f32 %v456, %v547
    %v972 = vmul.f32 %v453, %v549
    %v973 = vmul.f32 %v456, %v551
    %v974 = vmul.f32 %v453, %v553
    %v975 = vmul.f32 %v456, %v555
    %v976 = vmul.f32 %v453, %v557
    %v977 = vmul.f32 %v456, %v559
    %v978 = vmul.f32 %v453, %v561
    %v979 = vmul.f32 %v456, %v563
    %v980 = vmul.f32 %v459, %v533
    %v981 = vmul.f32 %v462, %v535
    %v982 = vmul.f32 %v459, %v537
    %v983 = vmul.f32 %v462, %v539
    %v984 = vmul.f32 %v459, %v541
    %v985 = vmul.f32 %v462, %v543
    %v986 = vmul.f32 %v459, %v545
    %v987 = vmul.f32 %v462, %v547
    %v988 = vmul.f32 %v459, %v549
    %v989 = vmul.f32 %v462, %v551
    %v990 = vmul.f32 %v459, %v553
    %v991 = vmul.f32 %v462, %v555
    %v992 = vmul.f32 %v459, %v557
    %v993 = vmul.f32 %v462, %v559
    %v994 = vmul.f32 %v459, %v561
    %v995 = vmul.f32 %v462, %v563
    %v996 = vmul.f32 %v465, %v533
    %v997 = vmul.f32 %v468, %v535
    %v998 = vmul.f32 %v465, %v537
    %v999 = vmul.f32 %v468, %v539
    %v1000 = vmul.f32 %v465, %v541
    %v1001 = vmul.f32 %v468, %v543
    %v1002 = vmul.f32 %v465, %v545
    %v1003 = vmul.f32 %v468, %v547
    %v1004 = vmul.f32 %v465, %v549
    %v1005 = vmul.f32 %v468, %v551
    %v1006 = vmul.f32 %v465, %v553
    %v1007 = vmul.f32 %v468, %v555
    %v1008 = vmul.f32 %v465, %v557
    %v1009 = vmul.f32 %v468, %v559
    %v1010 = vmul.f32 %v465, %v561
    %v1011 = vmul.f32 %v468, %v563
    %v1012 = vmul.f32 %v471, %v533
    %v1013 = vmul.f32 %v474, %v535
    %v1014 = vmul.f32 %v471, %v537
    %v1015 = vmul.f32 %v474, %v539
    %v1016 = vmul.f32 %v471, %v541
    %v1017 = vmul.f32 %v474, %v543
    %v1018 = vmul.f32 %v471, %v545
    %v1019 = vmul.f32 %v474, %v547
    %v1020 = vmul.f32 %v471, %v549
    %v1021 = vmul.f32 %v474, %v551
    %v1022 = vmul.f32 %v471, %v553
    %v1023 = vmul.f32 %v474, %v555
    %v1024 = vmul.f32 %v471, %v557
    %v1025 = vmul.f32 %v474, %v559
    %v1026 = vmul.f32 %v471, %v561
    %v1027 = vmul.f32 %v474, %v563
    %v1028 = vmul.f32 %v477, %v533
    %v1029 = vmul.f32 %v480, %v535
    %v1030 = vmul.f32 %v477, %v537
    %v1031 = vmul.f32 %v480, %v539
    %v1032 = vmul.f32 %v477, %v541
    %v1033 = vmul.f32 %v480, %v543
    %v1034 = vmul.f32 %v477, %v545
    %v1035 = vmul.f32 %v480, %v547
    %v1036 = vmul.f32 %v477, %v549
    %v1037 = vmul.f32 %v480, %v551
    %v1038 = vmul.f32 %v477, %v553
    %v1039 = vmul.f32 %v480, %v555
    %v1040 = vmul.f32 %v477, %v557
    %v1041 = vmul.f32 %v480, %v559
    %v1042 = vmul.f32 %v477, %v561
    %v1043 = vmul.f32 %v480, %v563
    %v1044 = vmul.f32 %v483, %v533
    %v1045 = vmul.f32 %v486, %v535
    %v1046 = vmul.f32 %v483, %v537
    %v1047 = vmul.f32 %v486, %v539
    %v1048 = vmul.f32 %v483, %v541
    %v1049 = vmul.f32 %v486, %v543
    %v1050 = vmul.f32 %v483, %v545
    %v1051 = vmul.f32 %v486, %v547
    %v1052 = vmul.f32 %v483, %v549
    %v1053 = vmul.f32 %v486, %v551
    %v1054 = vmul.f32 %v483, %v553
    %v1055 = vmul.f32 %v486, %v555
    %v1056 = vmul.f32 %v483, %v557
    %v1057 = vmul.f32 %v486, %v559
    %v1058 = vmul.f32 %v483, %v561
    %v1059 = vmul.f32 %v486, %v563
    %v1060 = vmul.f32 %v489, %v533
    %v1061 = vmul.f32 %v492, %v535
    %v1062 = vmul.f32 %v489, %v537
    %v1063 = vmul.f32 %v492, %v539
    %v1064 = vmul.f32 %v489, %v541
    %v1065 = vmul.f32 %v492, %v543
    %v1066 = vmul.f32 %v489, %v545
    %v1067 = vmul.f32 %v492, %v547
    %v1068 = vmul.f32 %v489, %v549
    %v1069 = vmul.f32 %v492, %v551
    %v1070 = vmul.f32 %v489, %v553
    %v1071 = vmul.f32 %v492, %v555
    %v1072 = vmul.f32 %v489, %v557
    %v1073 = vmul.f32 %v492, %v559
    %v1074 = vmul.f32 %v489, %v561
    %v1075 = vmul.f32 %v492, %v563
    %v1076 = vmul.f32 %v495, %v533
    %v1077 = vmul.f32 %v498, %v535
    %v1078 = vmul.f32 %v495, %v537
    %v1079 = vmul.f32 %v498, %v539
    %v1080 = vmul.f32 %v495, %v541
    %v1081 = vmul.f32 %v498, %v543
    %v1082 = vmul.f32 %v495, %v545
    %v1083 = vmul.f32 %v498, %v547
    %v1084 = vmul.f32 %v495, %v549
    %v1085 = vmul.f32 %v498, %v551
    %v1086 = vmul.f32 %v495, %v553
    %v1087 = vmul.f32 %v498, %v555
    %v1088 = vmul.f32 %v495, %v557
    %v1089 = vmul.f32 %v498, %v559
    %v1090 = vmul.f32 %v495, %v561
    %v1091 = vmul.f32 %v498, %v563
    %1092 = vrot.lane.b32.xlu0 %v500, 64
    %v1093 = vpop.permute.xlu0 %1092
    %1094 = vrot.lane.b32.xlu0 %v501, 64
    %v1095 = vpop.permute.xlu0 %1094
    %1096 = vrot.lane.b32.xlu0 %v502, 64
    %v1097 = vpop.permute.xlu0 %1096
    %1098 = vrot.lane.b32.xlu0 %v503, 64
    %v1099 = vpop.permute.xlu0 %1098
    %1100 = vrot.lane.b32.xlu0 %v504, 64
    %v1101 = vpop.permute.xlu0 %1100
    %1102 = vrot.lane.b32.xlu0 %v505, 64
    %v1103 = vpop.permute.xlu0 %1102
    %1104 = vrot.lane.b32.xlu0 %v506, 64
    %v1105 = vpop.permute.xlu0 %1104
    %1106 = vrot.lane.b32.xlu0 %v507, 64
    %v1107 = vpop.permute.xlu0 %1106
    %1108 = vrot.lane.b32.xlu0 %v508, 64
    %v1109 = vpop.permute.xlu0 %1108
    %1110 = vrot.lane.b32.xlu0 %v509, 64
    %v1111 = vpop.permute.xlu0 %1110
    %1112 = vrot.lane.b32.xlu0 %v510, 64
    %v1113 = vpop.permute.xlu0 %1112
    %1114 = vrot.lane.b32.xlu0 %v511, 64
    %v1115 = vpop.permute.xlu0 %1114
    %1116 = vrot.lane.b32.xlu0 %v512, 64
    %v1117 = vpop.permute.xlu0 %1116
    %1118 = vrot.lane.b32.xlu0 %v513, 64
    %v1119 = vpop.permute.xlu0 %1118
    %1120 = vrot.lane.b32.xlu0 %v514, 64
    %v1121 = vpop.permute.xlu0 %1120
    %1122 = vrot.lane.b32.xlu0 %v515, 64
    %v1123 = vpop.permute.xlu0 %1122
    %v1140 = vmul.f32 %v309, %v1093
    %v1141 = vmul.f32 %v312, %v1095
    %v1142 = vmul.f32 %v309, %v1097
    %v1143 = vmul.f32 %v312, %v1099
    %v1144 = vmul.f32 %v309, %v1101
    %v1145 = vmul.f32 %v312, %v1103
    %v1146 = vmul.f32 %v309, %v1105
    %v1147 = vmul.f32 %v312, %v1107
    %v1148 = vmul.f32 %v309, %v1109
    %v1149 = vmul.f32 %v312, %v1111
    %v1150 = vmul.f32 %v309, %v1113
    %v1151 = vmul.f32 %v312, %v1115
    %v1152 = vmul.f32 %v309, %v1117
    %v1153 = vmul.f32 %v312, %v1119
    %v1154 = vmul.f32 %v309, %v1121
    %v1155 = vmul.f32 %v312, %v1123
    %v1156 = vmul.f32 %v315, %v1093
    %v1157 = vmul.f32 %v318, %v1095
    %v1158 = vmul.f32 %v315, %v1097
    %v1159 = vmul.f32 %v318, %v1099
    %v1160 = vmul.f32 %v315, %v1101
    %v1161 = vmul.f32 %v318, %v1103
    %v1162 = vmul.f32 %v315, %v1105
    %v1163 = vmul.f32 %v318, %v1107
    %v1164 = vmul.f32 %v315, %v1109
    %v1165 = vmul.f32 %v318, %v1111
    %v1166 = vmul.f32 %v315, %v1113
    %v1167 = vmul.f32 %v318, %v1115
    %v1168 = vmul.f32 %v315, %v1117
    %v1169 = vmul.f32 %v318, %v1119
    %v1170 = vmul.f32 %v315, %v1121
    %v1171 = vmul.f32 %v318, %v1123
    %v1172 = vmul.f32 %v321, %v1093
    %v1173 = vmul.f32 %v324, %v1095
    %v1174 = vmul.f32 %v321, %v1097
    %v1175 = vmul.f32 %v324, %v1099
    %v1176 = vmul.f32 %v321, %v1101
    %v1177 = vmul.f32 %v324, %v1103
    %v1178 = vmul.f32 %v321, %v1105
    %v1179 = vmul.f32 %v324, %v1107
    %v1180 = vmul.f32 %v321, %v1109
    %v1181 = vmul.f32 %v324, %v1111
    %v1182 = vmul.f32 %v321, %v1113
    %v1183 = vmul.f32 %v324, %v1115
    %v1184 = vmul.f32 %v321, %v1117
    %v1185 = vmul.f32 %v324, %v1119
    %v1186 = vmul.f32 %v321, %v1121
    %v1187 = vmul.f32 %v324, %v1123
    %v1188 = vmul.f32 %v327, %v1093
    %v1189 = vmul.f32 %v330, %v1095
    %v1190 = vmul.f32 %v327, %v1097
    %v1191 = vmul.f32 %v330, %v1099
    %v1192 = vmul.f32 %v327, %v1101
    %v1193 = vmul.f32 %v330, %v1103
    %v1194 = vmul.f32 %v327, %v1105
    %v1195 = vmul.f32 %v330, %v1107
    %v1196 = vmul.f32 %v327, %v1109
    %v1197 = vmul.f32 %v330, %v1111
    %v1198 = vmul.f32 %v327, %v1113
    %v1199 = vmul.f32 %v330, %v1115
    %v1200 = vmul.f32 %v327, %v1117
    %v1201 = vmul.f32 %v330, %v1119
    %v1202 = vmul.f32 %v327, %v1121
    %v1203 = vmul.f32 %v330, %v1123
    %v1204 = vmul.f32 %v333, %v1093
    %v1205 = vmul.f32 %v336, %v1095
    %v1206 = vmul.f32 %v333, %v1097
    %v1207 = vmul.f32 %v336, %v1099
    %v1208 = vmul.f32 %v333, %v1101
    %v1209 = vmul.f32 %v336, %v1103
    %v1210 = vmul.f32 %v333, %v1105
    %v1211 = vmul.f32 %v336, %v1107
    %v1212 = vmul.f32 %v333, %v1109
    %v1213 = vmul.f32 %v336, %v1111
    %v1214 = vmul.f32 %v333, %v1113
    %v1215 = vmul.f32 %v336, %v1115
    %v1216 = vmul.f32 %v333, %v1117
    %v1217 = vmul.f32 %v336, %v1119
    %v1218 = vmul.f32 %v333, %v1121
    %v1219 = vmul.f32 %v336, %v1123
    %v1220 = vmul.f32 %v339, %v1093
    %v1221 = vmul.f32 %v342, %v1095
    %v1222 = vmul.f32 %v339, %v1097
    %v1223 = vmul.f32 %v342, %v1099
    %v1224 = vmul.f32 %v339, %v1101
    %v1225 = vmul.f32 %v342, %v1103
    %v1226 = vmul.f32 %v339, %v1105
    %v1227 = vmul.f32 %v342, %v1107
    %v1228 = vmul.f32 %v339, %v1109
    %v1229 = vmul.f32 %v342, %v1111
    %v1230 = vmul.f32 %v339, %v1113
    %v1231 = vmul.f32 %v342, %v1115
    %v1232 = vmul.f32 %v339, %v1117
    %v1233 = vmul.f32 %v342, %v1119
    %v1234 = vmul.f32 %v339, %v1121
    %v1235 = vmul.f32 %v342, %v1123
    %v1236 = vmul.f32 %v345, %v1093
    %v1237 = vmul.f32 %v348, %v1095
    %v1238 = vmul.f32 %v345, %v1097
    %v1239 = vmul.f32 %v348, %v1099
    %v1240 = vmul.f32 %v345, %v1101
    %v1241 = vmul.f32 %v348, %v1103
    %v1242 = vmul.f32 %v345, %v1105
    %v1243 = vmul.f32 %v348, %v1107
    %v1244 = vmul.f32 %v345, %v1109
    %v1245 = vmul.f32 %v348, %v1111
    %v1246 = vmul.f32 %v345, %v1113
    %v1247 = vmul.f32 %v348, %v1115
    %v1248 = vmul.f32 %v345, %v1117
    %v1249 = vmul.f32 %v348, %v1119
    %v1250 = vmul.f32 %v345, %v1121
    %v1251 = vmul.f32 %v348, %v1123
    %v1252 = vmul.f32 %v351, %v1093
    %v1253 = vmul.f32 %v354, %v1095
    %v1254 = vmul.f32 %v351, %v1097
    %v1255 = vmul.f32 %v354, %v1099
    %v1256 = vmul.f32 %v351, %v1101
    %v1257 = vmul.f32 %v354, %v1103
    %v1258 = vmul.f32 %v351, %v1105
    %v1259 = vmul.f32 %v354, %v1107
    %v1260 = vmul.f32 %v351, %v1109
    %v1261 = vmul.f32 %v354, %v1111
    %v1262 = vmul.f32 %v351, %v1113
    %v1263 = vmul.f32 %v354, %v1115
    %v1264 = vmul.f32 %v351, %v1117
    %v1265 = vmul.f32 %v354, %v1119
    %v1266 = vmul.f32 %v351, %v1121
    %v1267 = vmul.f32 %v354, %v1123
    %v1268 = vmul.f32 %v357, %v1093
    %v1269 = vmul.f32 %v360, %v1095
    %v1270 = vmul.f32 %v357, %v1097
    %v1271 = vmul.f32 %v360, %v1099
    %v1272 = vmul.f32 %v357, %v1101
    %v1273 = vmul.f32 %v360, %v1103
    %v1274 = vmul.f32 %v357, %v1105
    %v1275 = vmul.f32 %v360, %v1107
    %v1276 = vmul.f32 %v357, %v1109
    %v1277 = vmul.f32 %v360, %v1111
    %v1278 = vmul.f32 %v357, %v1113
    %v1279 = vmul.f32 %v360, %v1115
    %v1280 = vmul.f32 %v357, %v1117
    %v1281 = vmul.f32 %v360, %v1119
    %v1282 = vmul.f32 %v357, %v1121
    %v1283 = vmul.f32 %v360, %v1123
    %v1284 = vmul.f32 %v363, %v1093
    %v1285 = vmul.f32 %v366, %v1095
    %v1286 = vmul.f32 %v363, %v1097
    %v1287 = vmul.f32 %v366, %v1099
    %v1288 = vmul.f32 %v363, %v1101
    %v1289 = vmul.f32 %v366, %v1103
    %v1290 = vmul.f32 %v363, %v1105
    %v1291 = vmul.f32 %v366, %v1107
    %v1292 = vmul.f32 %v363, %v1109
    %v1293 = vmul.f32 %v366, %v1111
    %v1294 = vmul.f32 %v363, %v1113
    %v1295 = vmul.f32 %v366, %v1115
    %v1296 = vmul.f32 %v363, %v1117
    %v1297 = vmul.f32 %v366, %v1119
    %v1298 = vmul.f32 %v363, %v1121
    %v1299 = vmul.f32 %v366, %v1123
    %v1300 = vmul.f32 %v369, %v1093
    %v1301 = vmul.f32 %v372, %v1095
    %v1302 = vmul.f32 %v369, %v1097
    %v1303 = vmul.f32 %v372, %v1099
    %v1304 = vmul.f32 %v369, %v1101
    %v1305 = vmul.f32 %v372, %v1103
    %v1306 = vmul.f32 %v369, %v1105
    %v1307 = vmul.f32 %v372, %v1107
    %v1308 = vmul.f32 %v369, %v1109
    %v1309 = vmul.f32 %v372, %v1111
    %v1310 = vmul.f32 %v369, %v1113
    %v1311 = vmul.f32 %v372, %v1115
    %v1312 = vmul.f32 %v369, %v1117
    %v1313 = vmul.f32 %v372, %v1119
    %v1314 = vmul.f32 %v369, %v1121
    %v1315 = vmul.f32 %v372, %v1123
    %v1316 = vmul.f32 %v375, %v1093
    %v1317 = vmul.f32 %v378, %v1095
    %v1318 = vmul.f32 %v375, %v1097
    %v1319 = vmul.f32 %v378, %v1099
    %v1320 = vmul.f32 %v375, %v1101
    %v1321 = vmul.f32 %v378, %v1103
    %v1322 = vmul.f32 %v375, %v1105
    %v1323 = vmul.f32 %v378, %v1107
    %v1324 = vmul.f32 %v375, %v1109
    %v1325 = vmul.f32 %v378, %v1111
    %v1326 = vmul.f32 %v375, %v1113
    %v1327 = vmul.f32 %v378, %v1115
    %v1328 = vmul.f32 %v375, %v1117
    %v1329 = vmul.f32 %v378, %v1119
    %v1330 = vmul.f32 %v375, %v1121
    %v1331 = vmul.f32 %v378, %v1123
    %v1332 = vmul.f32 %v381, %v1093
    %v1333 = vmul.f32 %v384, %v1095
    %v1334 = vmul.f32 %v381, %v1097
    %v1335 = vmul.f32 %v384, %v1099
    %v1336 = vmul.f32 %v381, %v1101
    %v1337 = vmul.f32 %v384, %v1103
    %v1338 = vmul.f32 %v381, %v1105
    %v1339 = vmul.f32 %v384, %v1107
    %v1340 = vmul.f32 %v381, %v1109
    %v1341 = vmul.f32 %v384, %v1111
    %v1342 = vmul.f32 %v381, %v1113
    %v1343 = vmul.f32 %v384, %v1115
    %v1344 = vmul.f32 %v381, %v1117
    %v1345 = vmul.f32 %v384, %v1119
    %v1346 = vmul.f32 %v381, %v1121
    %v1347 = vmul.f32 %v384, %v1123
    %v1348 = vmul.f32 %v387, %v1093
    %v1349 = vmul.f32 %v390, %v1095
    %v1350 = vmul.f32 %v387, %v1097
    %v1351 = vmul.f32 %v390, %v1099
    %v1352 = vmul.f32 %v387, %v1101
    %v1353 = vmul.f32 %v390, %v1103
    %v1354 = vmul.f32 %v387, %v1105
    %v1355 = vmul.f32 %v390, %v1107
    %v1356 = vmul.f32 %v387, %v1109
    %v1357 = vmul.f32 %v390, %v1111
    %v1358 = vmul.f32 %v387, %v1113
    %v1359 = vmul.f32 %v390, %v1115
    %v1360 = vmul.f32 %v387, %v1117
    %v1361 = vmul.f32 %v390, %v1119
    %v1362 = vmul.f32 %v387, %v1121
    %v1363 = vmul.f32 %v390, %v1123
    %v1364 = vmul.f32 %v393, %v1093
    %v1365 = vmul.f32 %v396, %v1095
    %v1366 = vmul.f32 %v393, %v1097
    %v1367 = vmul.f32 %v396, %v1099
    %v1368 = vmul.f32 %v393, %v1101
    %v1369 = vmul.f32 %v396, %v1103
    %v1370 = vmul.f32 %v393, %v1105
    %v1371 = vmul.f32 %v396, %v1107
    %v1372 = vmul.f32 %v393, %v1109
    %v1373 = vmul.f32 %v396, %v1111
    %v1374 = vmul.f32 %v393, %v1113
    %v1375 = vmul.f32 %v396, %v1115
    %v1376 = vmul.f32 %v393, %v1117
    %v1377 = vmul.f32 %v396, %v1119
    %v1378 = vmul.f32 %v393, %v1121
    %v1379 = vmul.f32 %v396, %v1123
    %v1380 = vmul.f32 %v399, %v1093
    %v1381 = vmul.f32 %v402, %v1095
    %v1382 = vmul.f32 %v399, %v1097
    %v1383 = vmul.f32 %v402, %v1099
    %v1384 = vmul.f32 %v399, %v1101
    %v1385 = vmul.f32 %v402, %v1103
    %v1386 = vmul.f32 %v399, %v1105
    %v1387 = vmul.f32 %v402, %v1107
    %v1388 = vmul.f32 %v399, %v1109
    %v1389 = vmul.f32 %v402, %v1111
    %v1390 = vmul.f32 %v399, %v1113
    %v1391 = vmul.f32 %v402, %v1115
    %v1392 = vmul.f32 %v399, %v1117
    %v1393 = vmul.f32 %v402, %v1119
    %v1394 = vmul.f32 %v399, %v1121
    %v1395 = vmul.f32 %v402, %v1123
    %v1396 = vmul.f32 %v405, %v1093
    %v1397 = vmul.f32 %v408, %v1095
    %v1398 = vmul.f32 %v405, %v1097
    %v1399 = vmul.f32 %v408, %v1099
    %v1400 = vmul.f32 %v405, %v1101
    %v1401 = vmul.f32 %v408, %v1103
    %v1402 = vmul.f32 %v405, %v1105
    %v1403 = vmul.f32 %v408, %v1107
    %v1404 = vmul.f32 %v405, %v1109
    %v1405 = vmul.f32 %v408, %v1111
    %v1406 = vmul.f32 %v405, %v1113
    %v1407 = vmul.f32 %v408, %v1115
    %v1408 = vmul.f32 %v405, %v1117
    %v1409 = vmul.f32 %v408, %v1119
    %v1410 = vmul.f32 %v405, %v1121
    %v1411 = vmul.f32 %v408, %v1123
    %v1412 = vmul.f32 %v411, %v1093
    %v1413 = vmul.f32 %v414, %v1095
    %v1414 = vmul.f32 %v411, %v1097
    %v1415 = vmul.f32 %v414, %v1099
    %v1416 = vmul.f32 %v411, %v1101
    %v1417 = vmul.f32 %v414, %v1103
    %v1418 = vmul.f32 %v411, %v1105
    %v1419 = vmul.f32 %v414, %v1107
    %v1420 = vmul.f32 %v411, %v1109
    %v1421 = vmul.f32 %v414, %v1111
    %v1422 = vmul.f32 %v411, %v1113
    %v1423 = vmul.f32 %v414, %v1115
    %v1424 = vmul.f32 %v411, %v1117
    %v1425 = vmul.f32 %v414, %v1119
    %v1426 = vmul.f32 %v411, %v1121
    %v1427 = vmul.f32 %v414, %v1123
    %v1428 = vmul.f32 %v417, %v1093
    %v1429 = vmul.f32 %v420, %v1095
    %v1430 = vmul.f32 %v417, %v1097
    %v1431 = vmul.f32 %v420, %v1099
    %v1432 = vmul.f32 %v417, %v1101
    %v1433 = vmul.f32 %v420, %v1103
    %v1434 = vmul.f32 %v417, %v1105
    %v1435 = vmul.f32 %v420, %v1107
    %v1436 = vmul.f32 %v417, %v1109
    %v1437 = vmul.f32 %v420, %v1111
    %v1438 = vmul.f32 %v417, %v1113
    %v1439 = vmul.f32 %v420, %v1115
    %v1440 = vmul.f32 %v417, %v1117
    %v1441 = vmul.f32 %v420, %v1119
    %v1442 = vmul.f32 %v417, %v1121
    %v1443 = vmul.f32 %v420, %v1123
    %v1444 = vmul.f32 %v423, %v1093
    %v1445 = vmul.f32 %v426, %v1095
    %v1446 = vmul.f32 %v423, %v1097
    %v1447 = vmul.f32 %v426, %v1099
    %v1448 = vmul.f32 %v423, %v1101
    %v1449 = vmul.f32 %v426, %v1103
    %v1450 = vmul.f32 %v423, %v1105
    %v1451 = vmul.f32 %v426, %v1107
    %v1452 = vmul.f32 %v423, %v1109
    %v1453 = vmul.f32 %v426, %v1111
    %v1454 = vmul.f32 %v423, %v1113
    %v1455 = vmul.f32 %v426, %v1115
    %v1456 = vmul.f32 %v423, %v1117
    %v1457 = vmul.f32 %v426, %v1119
    %v1458 = vmul.f32 %v423, %v1121
    %v1459 = vmul.f32 %v426, %v1123
    %v1460 = vmul.f32 %v429, %v1093
    %v1461 = vmul.f32 %v432, %v1095
    %v1462 = vmul.f32 %v429, %v1097
    %v1463 = vmul.f32 %v432, %v1099
    %v1464 = vmul.f32 %v429, %v1101
    %v1465 = vmul.f32 %v432, %v1103
    %v1466 = vmul.f32 %v429, %v1105
    %v1467 = vmul.f32 %v432, %v1107
    %v1468 = vmul.f32 %v429, %v1109
    %v1469 = vmul.f32 %v432, %v1111
    %v1470 = vmul.f32 %v429, %v1113
    %v1471 = vmul.f32 %v432, %v1115
    %v1472 = vmul.f32 %v429, %v1117
    %v1473 = vmul.f32 %v432, %v1119
    %v1474 = vmul.f32 %v429, %v1121
    %v1475 = vmul.f32 %v432, %v1123
    %v1476 = vmul.f32 %v435, %v1093
    %v1477 = vmul.f32 %v438, %v1095
    %v1478 = vmul.f32 %v435, %v1097
    %v1479 = vmul.f32 %v438, %v1099
    %v1480 = vmul.f32 %v435, %v1101
    %v1481 = vmul.f32 %v438, %v1103
    %v1482 = vmul.f32 %v435, %v1105
    %v1483 = vmul.f32 %v438, %v1107
    %v1484 = vmul.f32 %v435, %v1109
    %v1485 = vmul.f32 %v438, %v1111
    %v1486 = vmul.f32 %v435, %v1113
    %v1487 = vmul.f32 %v438, %v1115
    %v1488 = vmul.f32 %v435, %v1117
    %v1489 = vmul.f32 %v438, %v1119
    %v1490 = vmul.f32 %v435, %v1121
    %v1491 = vmul.f32 %v438, %v1123
    %v1492 = vmul.f32 %v441, %v1093
    %v1493 = vmul.f32 %v444, %v1095
    %v1494 = vmul.f32 %v441, %v1097
    %v1495 = vmul.f32 %v444, %v1099
    %v1496 = vmul.f32 %v441, %v1101
    %v1497 = vmul.f32 %v444, %v1103
    %v1498 = vmul.f32 %v441, %v1105
    %v1499 = vmul.f32 %v444, %v1107
    %v1500 = vmul.f32 %v441, %v1109
    %v1501 = vmul.f32 %v444, %v1111
    %v1502 = vmul.f32 %v441, %v1113
    %v1503 = vmul.f32 %v444, %v1115
    %v1504 = vmul.f32 %v441, %v1117
    %v1505 = vmul.f32 %v444, %v1119
    %v1506 = vmul.f32 %v441, %v1121
    %v1507 = vmul.f32 %v444, %v1123
    %v1508 = vmul.f32 %v447, %v1093
    %v1509 = vmul.f32 %v450, %v1095
    %v1510 = vmul.f32 %v447, %v1097
    %v1511 = vmul.f32 %v450, %v1099
    %v1512 = vmul.f32 %v447, %v1101
    %v1513 = vmul.f32 %v450, %v1103
    %v1514 = vmul.f32 %v447, %v1105
    %v1515 = vmul.f32 %v450, %v1107
    %v1516 = vmul.f32 %v447, %v1109
    %v1517 = vmul.f32 %v450, %v1111
    %v1518 = vmul.f32 %v447, %v1113
    %v1519 = vmul.f32 %v450, %v1115
    %v1520 = vmul.f32 %v447, %v1117
    %v1521 = vmul.f32 %v450, %v1119
    %v1522 = vmul.f32 %v447, %v1121
    %v1523 = vmul.f32 %v450, %v1123
    %v1524 = vmul.f32 %v453, %v1093
    %v1525 = vmul.f32 %v456, %v1095
    %v1526 = vmul.f32 %v453, %v1097
    %v1527 = vmul.f32 %v456, %v1099
    %v1528 = vmul.f32 %v453, %v1101
    %v1529 = vmul.f32 %v456, %v1103
    %v1530 = vmul.f32 %v453, %v1105
    %v1531 = vmul.f32 %v456, %v1107
    %v1532 = vmul.f32 %v453, %v1109
    %v1533 = vmul.f32 %v456, %v1111
    %v1534 = vmul.f32 %v453, %v1113
    %v1535 = vmul.f32 %v456, %v1115
    %v1536 = vmul.f32 %v453, %v1117
    %v1537 = vmul.f32 %v456, %v1119
    %v1538 = vmul.f32 %v453, %v1121
    %v1539 = vmul.f32 %v456, %v1123
    %v1540 = vmul.f32 %v459, %v1093
    %v1541 = vmul.f32 %v462, %v1095
    %v1542 = vmul.f32 %v459, %v1097
    %v1543 = vmul.f32 %v462, %v1099
    %v1544 = vmul.f32 %v459, %v1101
    %v1545 = vmul.f32 %v462, %v1103
    %v1546 = vmul.f32 %v459, %v1105
    %v1547 = vmul.f32 %v462, %v1107
    %v1548 = vmul.f32 %v459, %v1109
    %v1549 = vmul.f32 %v462, %v1111
    %v1550 = vmul.f32 %v459, %v1113
    %v1551 = vmul.f32 %v462, %v1115
    %v1552 = vmul.f32 %v459, %v1117
    %v1553 = vmul.f32 %v462, %v1119
    %v1554 = vmul.f32 %v459, %v1121
    %v1555 = vmul.f32 %v462, %v1123
    %v1556 = vmul.f32 %v465, %v1093
    %v1557 = vmul.f32 %v468, %v1095
    %v1558 = vmul.f32 %v465, %v1097
    %v1559 = vmul.f32 %v468, %v1099
    %v1560 = vmul.f32 %v465, %v1101
    %v1561 = vmul.f32 %v468, %v1103
    %v1562 = vmul.f32 %v465, %v1105
    %v1563 = vmul.f32 %v468, %v1107
    %v1564 = vmul.f32 %v465, %v1109
    %v1565 = vmul.f32 %v468, %v1111
    %v1566 = vmul.f32 %v465, %v1113
    %v1567 = vmul.f32 %v468, %v1115
    %v1568 = vmul.f32 %v465, %v1117
    %v1569 = vmul.f32 %v468, %v1119
    %v1570 = vmul.f32 %v465, %v1121
    %v1571 = vmul.f32 %v468, %v1123
    %v1572 = vmul.f32 %v471, %v1093
    %v1573 = vmul.f32 %v474, %v1095
    %v1574 = vmul.f32 %v471, %v1097
    %v1575 = vmul.f32 %v474, %v1099
    %v1576 = vmul.f32 %v471, %v1101
    %v1577 = vmul.f32 %v474, %v1103
    %v1578 = vmul.f32 %v471, %v1105
    %v1579 = vmul.f32 %v474, %v1107
    %v1580 = vmul.f32 %v471, %v1109
    %v1581 = vmul.f32 %v474, %v1111
    %v1582 = vmul.f32 %v471, %v1113
    %v1583 = vmul.f32 %v474, %v1115
    %v1584 = vmul.f32 %v471, %v1117
    %v1585 = vmul.f32 %v474, %v1119
    %v1586 = vmul.f32 %v471, %v1121
    %v1587 = vmul.f32 %v474, %v1123
    %v1588 = vmul.f32 %v477, %v1093
    %v1589 = vmul.f32 %v480, %v1095
    %v1590 = vmul.f32 %v477, %v1097
    %v1591 = vmul.f32 %v480, %v1099
    %v1592 = vmul.f32 %v477, %v1101
    %v1593 = vmul.f32 %v480, %v1103
    %v1594 = vmul.f32 %v477, %v1105
    %v1595 = vmul.f32 %v480, %v1107
    %v1596 = vmul.f32 %v477, %v1109
    %v1597 = vmul.f32 %v480, %v1111
    %v1598 = vmul.f32 %v477, %v1113
    %v1599 = vmul.f32 %v480, %v1115
    %v1600 = vmul.f32 %v477, %v1117
    %v1601 = vmul.f32 %v480, %v1119
    %v1602 = vmul.f32 %v477, %v1121
    %v1603 = vmul.f32 %v480, %v1123
    %v1604 = vmul.f32 %v483, %v1093
    %v1605 = vmul.f32 %v486, %v1095
    %v1606 = vmul.f32 %v483, %v1097
    %v1607 = vmul.f32 %v486, %v1099
    %v1608 = vmul.f32 %v483, %v1101
    %v1609 = vmul.f32 %v486, %v1103
    %v1610 = vmul.f32 %v483, %v1105
    %v1611 = vmul.f32 %v486, %v1107
    %v1612 = vmul.f32 %v483, %v1109
    %v1613 = vmul.f32 %v486, %v1111
    %v1614 = vmul.f32 %v483, %v1113
    %v1615 = vmul.f32 %v486, %v1115
    %v1616 = vmul.f32 %v483, %v1117
    %v1617 = vmul.f32 %v486, %v1119
    %v1618 = vmul.f32 %v483, %v1121
    %v1619 = vmul.f32 %v486, %v1123
    %v1620 = vmul.f32 %v489, %v1093
    %v1621 = vmul.f32 %v492, %v1095
    %v1622 = vmul.f32 %v489, %v1097
    %v1623 = vmul.f32 %v492, %v1099
    %v1624 = vmul.f32 %v489, %v1101
    %v1625 = vmul.f32 %v492, %v1103
    %v1626 = vmul.f32 %v489, %v1105
    %v1627 = vmul.f32 %v492, %v1107
    %v1628 = vmul.f32 %v489, %v1109
    %v1629 = vmul.f32 %v492, %v1111
    %v1630 = vmul.f32 %v489, %v1113
    %v1631 = vmul.f32 %v492, %v1115
    %v1632 = vmul.f32 %v489, %v1117
    %v1633 = vmul.f32 %v492, %v1119
    %v1634 = vmul.f32 %v489, %v1121
    %v1635 = vmul.f32 %v492, %v1123
    %v1636 = vmul.f32 %v495, %v1093
    %v1637 = vmul.f32 %v498, %v1095
    %v1638 = vmul.f32 %v495, %v1097
    %v1639 = vmul.f32 %v498, %v1099
    %v1640 = vmul.f32 %v495, %v1101
    %v1641 = vmul.f32 %v498, %v1103
    %v1642 = vmul.f32 %v495, %v1105
    %v1643 = vmul.f32 %v498, %v1107
    %v1644 = vmul.f32 %v495, %v1109
    %v1645 = vmul.f32 %v498, %v1111
    %v1646 = vmul.f32 %v495, %v1113
    %v1647 = vmul.f32 %v498, %v1115
    %v1648 = vmul.f32 %v495, %v1117
    %v1649 = vmul.f32 %v498, %v1119
    %v1650 = vmul.f32 %v495, %v1121
    %v1651 = vmul.f32 %v498, %v1123
    %v1652 = vld [vmem:[%s4] sm:$0xff]
    %v1653 = vld [vmem:[%s4 + $0x8] sm:$0xff]
    %1670 = vrot.lane.b32.xlu0 %v580, 96
    %v1671 = vpop.permute.xlu0 %1670
    %1672 = vrot.lane.b32.xlu0 %v581, 96
    %v1673 = vpop.permute.xlu0 %1672
    %1674 = vrot.lane.b32.xlu0 %v582, 96
    %v1675 = vpop.permute.xlu0 %1674
    %1676 = vrot.lane.b32.xlu0 %v583, 96
    %v1677 = vpop.permute.xlu0 %1676
    %1678 = vrot.lane.b32.xlu0 %v584, 96
    %v1679 = vpop.permute.xlu0 %1678
    %1680 = vrot.lane.b32.xlu0 %v585, 96
    %v1681 = vpop.permute.xlu0 %1680
    %1682 = vrot.lane.b32.xlu0 %v586, 96
    %v1683 = vpop.permute.xlu0 %1682
    %1684 = vrot.lane.b32.xlu0 %v587, 96
    %v1685 = vpop.permute.xlu0 %1684
    %1686 = vrot.lane.b32.xlu0 %v588, 96
    %v1687 = vpop.permute.xlu0 %1686
    %1688 = vrot.lane.b32.xlu0 %v589, 96
    %v1689 = vpop.permute.xlu0 %1688
    %1690 = vrot.lane.b32.xlu0 %v590, 96
    %v1691 = vpop.permute.xlu0 %1690
    %1692 = vrot.lane.b32.xlu0 %v591, 96
    %v1693 = vpop.permute.xlu0 %1692
    %1694 = vrot.lane.b32.xlu0 %v592, 96
    %v1695 = vpop.permute.xlu0 %1694
    %1696 = vrot.lane.b32.xlu0 %v593, 96
    %v1697 = vpop.permute.xlu0 %1696
    %1698 = vrot.lane.b32.xlu0 %v594, 96
    %v1699 = vpop.permute.xlu0 %1698
    %1700 = vrot.lane.b32.xlu0 %v595, 96
    %v1701 = vpop.permute.xlu0 %1700
    %v1703 = vsel %vm98, %v309, 0
    %v1706 = vsel %vm98, %v312, 0
    %v1708 = vsel %vm98, %v1671, 0
    %v1710 = vsel %vm98, %v1673, 0
    %v1712 = vsel %vm98, %v1675, 0
    %v1714 = vsel %vm98, %v1677, 0
    %v1716 = vsel %vm98, %v1679, 0
    %v1718 = vsel %vm98, %v1681, 0
    %v1720 = vsel %vm98, %v1683, 0
    %v1722 = vsel %vm98, %v1685, 0
    %v1724 = vsel %vm98, %v1687, 0
    %v1726 = vsel %vm98, %v1689, 0
    %v1728 = vsel %vm98, %v1691, 0
    %v1730 = vsel %vm98, %v1693, 0
    %v1732 = vsel %vm98, %v1695, 0
    %v1734 = vsel %vm98, %v1697, 0
    %v1736 = vsel %vm98, %v1699, 0
    %v1738 = vsel %vm98, %v1701, 0
    %1740 = vmatpush.xpose.msra.mxu0 %v1738
    %1741 = vmatpush.xpose.msra.mxu0 %v1736
    %1742 = vmatpush.xpose.msra.mxu0 %v1734
    %1743 = vmatpush.xpose.msra.mxu0 %v1732
    %1744 = vmatpush.xpose.msra.mxu0 %v1730
    %1745 = vmatpush.xpose.msra.mxu0 %v1728
    %1746 = vmatpush.xpose.msra.mxu0 %v1726
    %1747 = vmatpush.xpose.msra.mxu0 %v1724
    %1748 = vmatpush.xpose.msra.mxu0 %v1722
    %1749 = vmatpush.xpose.msra.mxu0 %v1720
    %1750 = vmatpush.xpose.msra.mxu0 %v1718
    %1751 = vmatpush.xpose.msra.mxu0 %v1716
    %1752 = vmatpush.xpose.msra.mxu0 %v1714
    %1753 = vmatpush.xpose.msra.mxu0 %v1712
    %1754 = vmatpush.xpose.msra.mxu0 %v1710
    %1755 = vmatpush.xpose.msra.mxu0 %v1708
    %1756 = vmatmul.f32.gmra.mxu0 %v1703
    %v1757 = vpop.f32.mrf.mxu0
    %v1758 = vadd.f32 %v1652, %v1757
    %1759 = vmatmul.f32.gmra.mxu0 %v1706
    %v1760 = vpop.f32.mrf.mxu0
    %v1761 = vadd.f32 %v1653, %v1760
    %1762 = vdwg.mxu0
    %1779 = vrot.lane.b32.xlu0 %v596, 96
    %v1780 = vpop.permute.xlu0 %1779
    %1781 = vrot.lane.b32.xlu0 %v597, 96
    %v1782 = vpop.permute.xlu0 %1781
    %1783 = vrot.lane.b32.xlu0 %v598, 96
    %v1784 = vpop.permute.xlu0 %1783
    %1785 = vrot.lane.b32.xlu0 %v599, 96
    %v1786 = vpop.permute.xlu0 %1785
    %1787 = vrot.lane.b32.xlu0 %v600, 96
    %v1788 = vpop.permute.xlu0 %1787
    %1789 = vrot.lane.b32.xlu0 %v601, 96
    %v1790 = vpop.permute.xlu0 %1789
    %1791 = vrot.lane.b32.xlu0 %v602, 96
    %v1792 = vpop.permute.xlu0 %1791
    %1793 = vrot.lane.b32.xlu0 %v603, 96
    %v1794 = vpop.permute.xlu0 %1793
    %1795 = vrot.lane.b32.xlu0 %v604, 96
    %v1796 = vpop.permute.xlu0 %1795
    %1797 = vrot.lane.b32.xlu0 %v605, 96
    %v1798 = vpop.permute.xlu0 %1797
    %1799 = vrot.lane.b32.xlu0 %v606, 96
    %v1800 = vpop.permute.xlu0 %1799
    %1801 = vrot.lane.b32.xlu0 %v607, 96
    %v1802 = vpop.permute.xlu0 %1801
    %1803 = vrot.lane.b32.xlu0 %v608, 96
    %v1804 = vpop.permute.xlu0 %1803
    %1805 = vrot.lane.b32.xlu0 %v609, 96
    %v1806 = vpop.permute.xlu0 %1805
    %1807 = vrot.lane.b32.xlu0 %v610, 96
    %v1808 = vpop.permute.xlu0 %1807
    %1809 = vrot.lane.b32.xlu0 %v611, 96
    %v1810 = vpop.permute.xlu0 %1809
    %v1812 = vsel %vm98, %v315, 0
    %v1815 = vsel %vm98, %v318, 0
    %v1817 = vsel %vm98, %v1780, 0
    %v1819 = vsel %vm98, %v1782, 0
    %v1821 = vsel %vm98, %v1784, 0
    %v1823 = vsel %vm98, %v1786, 0
    %v1825 = vsel %vm98, %v1788, 0
    %v1827 = vsel %vm98, %v1790, 0
    %v1829 = vsel %vm98, %v1792, 0
    %v1831 = vsel %vm98, %v1794, 0
    %v1833 = vsel %vm98, %v1796, 0
    %v1835 = vsel %vm98, %v1798, 0
    %v1837 = vsel %vm98, %v1800, 0
    %v1839 = vsel %vm98, %v1802, 0
    %v1841 = vsel %vm98, %v1804, 0
    %v1843 = vsel %vm98, %v1806, 0
    %v1845 = vsel %vm98, %v1808, 0
    %v1847 = vsel %vm98, %v1810, 0
    %1849 = vmatpush.xpose.msra.mxu0 %v1847
    %1850 = vmatpush.xpose.msra.mxu0 %v1845
    %1851 = vmatpush.xpose.msra.mxu0 %v1843
    %1852 = vmatpush.xpose.msra.mxu0 %v1841
    %1853 = vmatpush.xpose.msra.mxu0 %v1839
    %1854 = vmatpush.xpose.msra.mxu0 %v1837
    %1855 = vmatpush.xpose.msra.mxu0 %v1835
    %1856 = vmatpush.xpose.msra.mxu0 %v1833
    %1857 = vmatpush.xpose.msra.mxu0 %v1831
    %1858 = vmatpush.xpose.msra.mxu0 %v1829
    %1859 = vmatpush.xpose.msra.mxu0 %v1827
    %1860 = vmatpush.xpose.msra.mxu0 %v1825
    %1861 = vmatpush.xpose.msra.mxu0 %v1823
    %1862 = vmatpush.xpose.msra.mxu0 %v1821
    %1863 = vmatpush.xpose.msra.mxu0 %v1819
    %1864 = vmatpush.xpose.msra.mxu0 %v1817
    %1865 = vmatmul.f32.gmra.mxu0 %v1812
    %v1866 = vpop.f32.mrf.mxu0
    %v1867 = vadd.f32 %v1652, %v1866
    %1868 = vmatmul.f32.gmra.mxu0 %v1815
    %v1869 = vpop.f32.mrf.mxu0
    %v1870 = vadd.f32 %v1653, %v1869
    %1871 = vdwg.mxu0
    %1888 = vrot.lane.b32.xlu0 %v612, 96
    %v1889 = vpop.permute.xlu0 %1888
    %1890 = vrot.lane.b32.xlu0 %v613, 96
    %v1891 = vpop.permute.xlu0 %1890
    %1892 = vrot.lane.b32.xlu0 %v614, 96
    %v1893 = vpop.permute.xlu0 %1892
    %1894 = vrot.lane.b32.xlu0 %v615, 96
    %v1895 = vpop.permute.xlu0 %1894
    %1896 = vrot.lane.b32.xlu0 %v616, 96
    %v1897 = vpop.permute.xlu0 %1896
    %1898 = vrot.lane.b32.xlu0 %v617, 96
    %v1899 = vpop.permute.xlu0 %1898
    %1900 = vrot.lane.b32.xlu0 %v618, 96
    %v1901 = vpop.permute.xlu0 %1900
    %1902 = vrot.lane.b32.xlu0 %v619, 96
    %v1903 = vpop.permute.xlu0 %1902
    %1904 = vrot.lane.b32.xlu0 %v620, 96
    %v1905 = vpop.permute.xlu0 %1904
    %1906 = vrot.lane.b32.xlu0 %v621, 96
    %v1907 = vpop.permute.xlu0 %1906
    %1908 = vrot.lane.b32.xlu0 %v622, 96
    %v1909 = vpop.permute.xlu0 %1908
    %1910 = vrot.lane.b32.xlu0 %v623, 96
    %v1911 = vpop.permute.xlu0 %1910
    %1912 = vrot.lane.b32.xlu0 %v624, 96
    %v1913 = vpop.permute.xlu0 %1912
    %1914 = vrot.lane.b32.xlu0 %v625, 96
    %v1915 = vpop.permute.xlu0 %1914
    %1916 = vrot.lane.b32.xlu0 %v626, 96
    %v1917 = vpop.permute.xlu0 %1916
    %1918 = vrot.lane.b32.xlu0 %v627, 96
    %v1919 = vpop.permute.xlu0 %1918
    %v1921 = vsel %vm98, %v321, 0
    %v1924 = vsel %vm98, %v324, 0
    %v1926 = vsel %vm98, %v1889, 0
    %v1928 = vsel %vm98, %v1891, 0
    %v1930 = vsel %vm98, %v1893, 0
    %v1932 = vsel %vm98, %v1895, 0
    %v1934 = vsel %vm98, %v1897, 0
    %v1936 = vsel %vm98, %v1899, 0
    %v1938 = vsel %vm98, %v1901, 0
    %v1940 = vsel %vm98, %v1903, 0
    %v1942 = vsel %vm98, %v1905, 0
    %v1944 = vsel %vm98, %v1907, 0
    %v1946 = vsel %vm98, %v1909, 0
    %v1948 = vsel %vm98, %v1911, 0
    %v1950 = vsel %vm98, %v1913, 0
    %v1952 = vsel %vm98, %v1915, 0
    %v1954 = vsel %vm98, %v1917, 0
    %v1956 = vsel %vm98, %v1919, 0
    %1958 = vmatpush.xpose.msra.mxu0 %v1956
    %1959 = vmatpush.xpose.msra.mxu0 %v1954
    %1960 = vmatpush.xpose.msra.mxu0 %v1952
    %1961 = vmatpush.xpose.msra.mxu0 %v1950
    %1962 = vmatpush.xpose.msra.mxu0 %v1948
    %1963 = vmatpush.xpose.msra.mxu0 %v1946
    %1964 = vmatpush.xpose.msra.mxu0 %v1944
    %1965 = vmatpush.xpose.msra.mxu0 %v1942
    %1966 = vmatpush.xpose.msra.mxu0 %v1940
    %1967 = vmatpush.xpose.msra.mxu0 %v1938
    %1968 = vmatpush.xpose.msra.mxu0 %v1936
    %1969 = vmatpush.xpose.msra.mxu0 %v1934
    %1970 = vmatpush.xpose.msra.mxu0 %v1932
    %1971 = vmatpush.xpose.msra.mxu0 %v1930
    %1972 = vmatpush.xpose.msra.mxu0 %v1928
    %1973 = vmatpush.xpose.msra.mxu0 %v1926
    %1974 = vmatmul.f32.gmra.mxu0 %v1921
    %v1975 = vpop.f32.mrf.mxu0
    %v1976 = vadd.f32 %v1652, %v1975
    %1977 = vmatmul.f32.gmra.mxu0 %v1924
    %v1978 = vpop.f32.mrf.mxu0
    %v1979 = vadd.f32 %v1653, %v1978
    %1980 = vdwg.mxu0
    %1997 = vrot.lane.b32.xlu0 %v628, 96
    %v1998 = vpop.permute.xlu0 %1997
    %1999 = vrot.lane.b32.xlu0 %v629, 96
    %v2000 = vpop.permute.xlu0 %1999
    %2001 = vrot.lane.b32.xlu0 %v630, 96
    %v2002 = vpop.permute.xlu0 %2001
    %2003 = vrot.lane.b32.xlu0 %v631, 96
    %v2004 = vpop.permute.xlu0 %2003
    %2005 = vrot.lane.b32.xlu0 %v632, 96
    %v2006 = vpop.permute.xlu0 %2005
    %2007 = vrot.lane.b32.xlu0 %v633, 96
    %v2008 = vpop.permute.xlu0 %2007
    %2009 = vrot.lane.b32.xlu0 %v634, 96
    %v2010 = vpop.permute.xlu0 %2009
    %2011 = vrot.lane.b32.xlu0 %v635, 96
    %v2012 = vpop.permute.xlu0 %2011
    %2013 = vrot.lane.b32.xlu0 %v636, 96
    %v2014 = vpop.permute.xlu0 %2013
    %2015 = vrot.lane.b32.xlu0 %v637, 96
    %v2016 = vpop.permute.xlu0 %2015
    %2017 = vrot.lane.b32.xlu0 %v638, 96
    %v2018 = vpop.permute.xlu0 %2017
    %2019 = vrot.lane.b32.xlu0 %v639, 96
    %v2020 = vpop.permute.xlu0 %2019
    %2021 = vrot.lane.b32.xlu0 %v640, 96
    %v2022 = vpop.permute.xlu0 %2021
    %2023 = vrot.lane.b32.xlu0 %v641, 96
    %v2024 = vpop.permute.xlu0 %2023
    %2025 = vrot.lane.b32.xlu0 %v642, 96
    %v2026 = vpop.permute.xlu0 %2025
    %2027 = vrot.lane.b32.xlu0 %v643, 96
    %v2028 = vpop.permute.xlu0 %2027
    %v2030 = vsel %vm98, %v327, 0
    %v2033 = vsel %vm98, %v330, 0
    %v2035 = vsel %vm98, %v1998, 0
    %v2037 = vsel %vm98, %v2000, 0
    %v2039 = vsel %vm98, %v2002, 0
    %v2041 = vsel %vm98, %v2004, 0
    %v2043 = vsel %vm98, %v2006, 0
    %v2045 = vsel %vm98, %v2008, 0
    %v2047 = vsel %vm98, %v2010, 0
    %v2049 = vsel %vm98, %v2012, 0
    %v2051 = vsel %vm98, %v2014, 0
    %v2053 = vsel %vm98, %v2016, 0
    %v2055 = vsel %vm98, %v2018, 0
    %v2057 = vsel %vm98, %v2020, 0
    %v2059 = vsel %vm98, %v2022, 0
    %v2061 = vsel %vm98, %v2024, 0
    %v2063 = vsel %vm98, %v2026, 0
    %v2065 = vsel %vm98, %v2028, 0
    %2067 = vmatpush.xpose.msra.mxu0 %v2065
    %2068 = vmatpush.xpose.msra.mxu0 %v2063
    %2069 = vmatpush.xpose.msra.mxu0 %v2061
    %2070 = vmatpush.xpose.msra.mxu0 %v2059
    %2071 = vmatpush.xpose.msra.mxu0 %v2057
    %2072 = vmatpush.xpose.msra.mxu0 %v2055
    %2073 = vmatpush.xpose.msra.mxu0 %v2053
    %2074 = vmatpush.xpose.msra.mxu0 %v2051
    %2075 = vmatpush.xpose.msra.mxu0 %v2049
    %2076 = vmatpush.xpose.msra.mxu0 %v2047
    %2077 = vmatpush.xpose.msra.mxu0 %v2045
    %2078 = vmatpush.xpose.msra.mxu0 %v2043
    %2079 = vmatpush.xpose.msra.mxu0 %v2041
    %2080 = vmatpush.xpose.msra.mxu0 %v2039
    %2081 = vmatpush.xpose.msra.mxu0 %v2037
    %2082 = vmatpush.xpose.msra.mxu0 %v2035
    %2083 = vmatmul.f32.gmra.mxu0 %v2030
    %v2084 = vpop.f32.mrf.mxu0
    %v2085 = vadd.f32 %v1652, %v2084
    %2086 = vmatmul.f32.gmra.mxu0 %v2033
    %v2087 = vpop.f32.mrf.mxu0
    %v2088 = vadd.f32 %v1653, %v2087
    %2089 = vdwg.mxu0
    %2106 = vrot.lane.b32.xlu0 %v644, 96
    %v2107 = vpop.permute.xlu0 %2106
    %2108 = vrot.lane.b32.xlu0 %v645, 96
    %v2109 = vpop.permute.xlu0 %2108
    %2110 = vrot.lane.b32.xlu0 %v646, 96
    %v2111 = vpop.permute.xlu0 %2110
    %2112 = vrot.lane.b32.xlu0 %v647, 96
    %v2113 = vpop.permute.xlu0 %2112
    %2114 = vrot.lane.b32.xlu0 %v648, 96
    %v2115 = vpop.permute.xlu0 %2114
    %2116 = vrot.lane.b32.xlu0 %v649, 96
    %v2117 = vpop.permute.xlu0 %2116
    %2118 = vrot.lane.b32.xlu0 %v650, 96
    %v2119 = vpop.permute.xlu0 %2118
    %2120 = vrot.lane.b32.xlu0 %v651, 96
    %v2121 = vpop.permute.xlu0 %2120
    %2122 = vrot.lane.b32.xlu0 %v652, 96
    %v2123 = vpop.permute.xlu0 %2122
    %2124 = vrot.lane.b32.xlu0 %v653, 96
    %v2125 = vpop.permute.xlu0 %2124
    %2126 = vrot.lane.b32.xlu0 %v654, 96
    %v2127 = vpop.permute.xlu0 %2126
    %2128 = vrot.lane.b32.xlu0 %v655, 96
    %v2129 = vpop.permute.xlu0 %2128
    %2130 = vrot.lane.b32.xlu0 %v656, 96
    %v2131 = vpop.permute.xlu0 %2130
    %2132 = vrot.lane.b32.xlu0 %v657, 96
    %v2133 = vpop.permute.xlu0 %2132
    %2134 = vrot.lane.b32.xlu0 %v658, 96
    %v2135 = vpop.permute.xlu0 %2134
    %2136 = vrot.lane.b32.xlu0 %v659, 96
    %v2137 = vpop.permute.xlu0 %2136
    %v2139 = vsel %vm98, %v333, 0
    %v2142 = vsel %vm98, %v336, 0
    %v2144 = vsel %vm98, %v2107, 0
    %v2146 = vsel %vm98, %v2109, 0
    %v2148 = vsel %vm98, %v2111, 0
    %v2150 = vsel %vm98, %v2113, 0
    %v2152 = vsel %vm98, %v2115, 0
    %v2154 = vsel %vm98, %v2117, 0
    %v2156 = vsel %vm98, %v2119, 0
    %v2158 = vsel %vm98, %v2121, 0
    %v2160 = vsel %vm98, %v2123, 0
    %v2162 = vsel %vm98, %v2125, 0
    %v2164 = vsel %vm98, %v2127, 0
    %v2166 = vsel %vm98, %v2129, 0
    %v2168 = vsel %vm98, %v2131, 0
    %v2170 = vsel %vm98, %v2133, 0
    %v2172 = vsel %vm98, %v2135, 0
    %v2174 = vsel %vm98, %v2137, 0
    %2176 = vmatpush.xpose.msra.mxu0 %v2174
    %2177 = vmatpush.xpose.msra.mxu0 %v2172
    %2178 = vmatpush.xpose.msra.mxu0 %v2170
    %2179 = vmatpush.xpose.msra.mxu0 %v2168
    %2180 = vmatpush.xpose.msra.mxu0 %v2166
    %2181 = vmatpush.xpose.msra.mxu0 %v2164
    %2182 = vmatpush.xpose.msra.mxu0 %v2162
    %2183 = vmatpush.xpose.msra.mxu0 %v2160
    %2184 = vmatpush.xpose.msra.mxu0 %v2158
    %2185 = vmatpush.xpose.msra.mxu0 %v2156
    %2186 = vmatpush.xpose.msra.mxu0 %v2154
    %2187 = vmatpush.xpose.msra.mxu0 %v2152
    %2188 = vmatpush.xpose.msra.mxu0 %v2150
    %2189 = vmatpush.xpose.msra.mxu0 %v2148
    %2190 = vmatpush.xpose.msra.mxu0 %v2146
    %2191 = vmatpush.xpose.msra.mxu0 %v2144
    %2192 = vmatmul.f32.gmra.mxu0 %v2139
    %v2193 = vpop.f32.mrf.mxu0
    %v2194 = vadd.f32 %v1652, %v2193
    %2195 = vmatmul.f32.gmra.mxu0 %v2142
    %v2196 = vpop.f32.mrf.mxu0
    %v2197 = vadd.f32 %v1653, %v2196
    %2198 = vdwg.mxu0
    %2215 = vrot.lane.b32.xlu0 %v660, 96
    %v2216 = vpop.permute.xlu0 %2215
    %2217 = vrot.lane.b32.xlu0 %v661, 96
    %v2218 = vpop.permute.xlu0 %2217
    %2219 = vrot.lane.b32.xlu0 %v662, 96
    %v2220 = vpop.permute.xlu0 %2219
    %2221 = vrot.lane.b32.xlu0 %v663, 96
    %v2222 = vpop.permute.xlu0 %2221
    %2223 = vrot.lane.b32.xlu0 %v664, 96
    %v2224 = vpop.permute.xlu0 %2223
    %2225 = vrot.lane.b32.xlu0 %v665, 96
    %v2226 = vpop.permute.xlu0 %2225
    %2227 = vrot.lane.b32.xlu0 %v666, 96
    %v2228 = vpop.permute.xlu0 %2227
    %2229 = vrot.lane.b32.xlu0 %v667, 96
    %v2230 = vpop.permute.xlu0 %2229
    %2231 = vrot.lane.b32.xlu0 %v668, 96
    %v2232 = vpop.permute.xlu0 %2231
    %2233 = vrot.lane.b32.xlu0 %v669, 96
    %v2234 = vpop.permute.xlu0 %2233
    %2235 = vrot.lane.b32.xlu0 %v670, 96
    %v2236 = vpop.permute.xlu0 %2235
    %2237 = vrot.lane.b32.xlu0 %v671, 96
    %v2238 = vpop.permute.xlu0 %2237
    %2239 = vrot.lane.b32.xlu0 %v672, 96
    %v2240 = vpop.permute.xlu0 %2239
    %2241 = vrot.lane.b32.xlu0 %v673, 96
    %v2242 = vpop.permute.xlu0 %2241
    %2243 = vrot.lane.b32.xlu0 %v674, 96
    %v2244 = vpop.permute.xlu0 %2243
    %2245 = vrot.lane.b32.xlu0 %v675, 96
    %v2246 = vpop.permute.xlu0 %2245
    %v2248 = vsel %vm98, %v339, 0
    %v2251 = vsel %vm98, %v342, 0
    %v2253 = vsel %vm98, %v2216, 0
    %v2255 = vsel %vm98, %v2218, 0
    %v2257 = vsel %vm98, %v2220, 0
    %v2259 = vsel %vm98, %v2222, 0
    %v2261 = vsel %vm98, %v2224, 0
    %v2263 = vsel %vm98, %v2226, 0
    %v2265 = vsel %vm98, %v2228, 0
    %v2267 = vsel %vm98, %v2230, 0
    %v2269 = vsel %vm98, %v2232, 0
    %v2271 = vsel %vm98, %v2234, 0
    %v2273 = vsel %vm98, %v2236, 0
    %v2275 = vsel %vm98, %v2238, 0
    %v2277 = vsel %vm98, %v2240, 0
    %v2279 = vsel %vm98, %v2242, 0
    %v2281 = vsel %vm98, %v2244, 0
    %v2283 = vsel %vm98, %v2246, 0
    %2285 = vmatpush.xpose.msra.mxu0 %v2283
    %2286 = vmatpush.xpose.msra.mxu0 %v2281
    %2287 = vmatpush.xpose.msra.mxu0 %v2279
    %2288 = vmatpush.xpose.msra.mxu0 %v2277
    %2289 = vmatpush.xpose.msra.mxu0 %v2275
    %2290 = vmatpush.xpose.msra.mxu0 %v2273
    %2291 = vmatpush.xpose.msra.mxu0 %v2271
    %2292 = vmatpush.xpose.msra.mxu0 %v2269
    %2293 = vmatpush.xpose.msra.mxu0 %v2267
    %2294 = vmatpush.xpose.msra.mxu0 %v2265
    %2295 = vmatpush.xpose.msra.mxu0 %v2263
    %2296 = vmatpush.xpose.msra.mxu0 %v2261
    %2297 = vmatpush.xpose.msra.mxu0 %v2259
    %2298 = vmatpush.xpose.msra.mxu0 %v2257
    %2299 = vmatpush.xpose.msra.mxu0 %v2255
    %2300 = vmatpush.xpose.msra.mxu0 %v2253
    %2301 = vmatmul.f32.gmra.mxu0 %v2248
    %v2302 = vpop.f32.mrf.mxu0
    %v2303 = vadd.f32 %v1652, %v2302
    %2304 = vmatmul.f32.gmra.mxu0 %v2251
    %v2305 = vpop.f32.mrf.mxu0
    %v2306 = vadd.f32 %v1653, %v2305
    %2307 = vdwg.mxu0
    %2324 = vrot.lane.b32.xlu0 %v676, 96
    %v2325 = vpop.permute.xlu0 %2324
    %2326 = vrot.lane.b32.xlu0 %v677, 96
    %v2327 = vpop.permute.xlu0 %2326
    %2328 = vrot.lane.b32.xlu0 %v678, 96
    %v2329 = vpop.permute.xlu0 %2328
    %2330 = vrot.lane.b32.xlu0 %v679, 96
    %v2331 = vpop.permute.xlu0 %2330
    %2332 = vrot.lane.b32.xlu0 %v680, 96
    %v2333 = vpop.permute.xlu0 %2332
    %2334 = vrot.lane.b32.xlu0 %v681, 96
    %v2335 = vpop.permute.xlu0 %2334
    %2336 = vrot.lane.b32.xlu0 %v682, 96
    %v2337 = vpop.permute.xlu0 %2336
    %2338 = vrot.lane.b32.xlu0 %v683, 96
    %v2339 = vpop.permute.xlu0 %2338
    %2340 = vrot.lane.b32.xlu0 %v684, 96
    %v2341 = vpop.permute.xlu0 %2340
    %2342 = vrot.lane.b32.xlu0 %v685, 96
    %v2343 = vpop.permute.xlu0 %2342
    %2344 = vrot.lane.b32.xlu0 %v686, 96
    %v2345 = vpop.permute.xlu0 %2344
    %2346 = vrot.lane.b32.xlu0 %v687, 96
    %v2347 = vpop.permute.xlu0 %2346
    %2348 = vrot.lane.b32.xlu0 %v688, 96
    %v2349 = vpop.permute.xlu0 %2348
    %2350 = vrot.lane.b32.xlu0 %v689, 96
    %v2351 = vpop.permute.xlu0 %2350
    %2352 = vrot.lane.b32.xlu0 %v690, 96
    %v2353 = vpop.permute.xlu0 %2352
    %2354 = vrot.lane.b32.xlu0 %v691, 96
    %v2355 = vpop.permute.xlu0 %2354
    %v2357 = vsel %vm98, %v345, 0
    %v2360 = vsel %vm98, %v348, 0
    %v2362 = vsel %vm98, %v2325, 0
    %v2364 = vsel %vm98, %v2327, 0
    %v2366 = vsel %vm98, %v2329, 0
    %v2368 = vsel %vm98, %v2331, 0
    %v2370 = vsel %vm98, %v2333, 0
    %v2372 = vsel %vm98, %v2335, 0
    %v2374 = vsel %vm98, %v2337, 0
    %v2376 = vsel %vm98, %v2339, 0
    %v2378 = vsel %vm98, %v2341, 0
    %v2380 = vsel %vm98, %v2343, 0
    %v2382 = vsel %vm98, %v2345, 0
    %v2384 = vsel %vm98, %v2347, 0
    %v2386 = vsel %vm98, %v2349, 0
    %v2388 = vsel %vm98, %v2351, 0
    %v2390 = vsel %vm98, %v2353, 0
    %v2392 = vsel %vm98, %v2355, 0
    %2394 = vmatpush.xpose.msra.mxu0 %v2392
    %2395 = vmatpush.xpose.msra.mxu0 %v2390
    %2396 = vmatpush.xpose.msra.mxu0 %v2388
    %2397 = vmatpush.xpose.msra.mxu0 %v2386
    %2398 = vmatpush.xpose.msra.mxu0 %v2384
    %2399 = vmatpush.xpose.msra.mxu0 %v2382
    %2400 = vmatpush.xpose.msra.mxu0 %v2380
    %2401 = vmatpush.xpose.msra.mxu0 %v2378
    %2402 = vmatpush.xpose.msra.mxu0 %v2376
    %2403 = vmatpush.xpose.msra.mxu0 %v2374
    %2404 = vmatpush.xpose.msra.mxu0 %v2372
    %2405 = vmatpush.xpose.msra.mxu0 %v2370
    %2406 = vmatpush.xpose.msra.mxu0 %v2368
    %2407 = vmatpush.xpose.msra.mxu0 %v2366
    %2408 = vmatpush.xpose.msra.mxu0 %v2364
    %2409 = vmatpush.xpose.msra.mxu0 %v2362
    %2410 = vmatmul.f32.gmra.mxu0 %v2357
    %v2411 = vpop.f32.mrf.mxu0
    %v2412 = vadd.f32 %v1652, %v2411
    %2413 = vmatmul.f32.gmra.mxu0 %v2360
    %v2414 = vpop.f32.mrf.mxu0
    %v2415 = vadd.f32 %v1653, %v2414
    %2416 = vdwg.mxu0
    %2433 = vrot.lane.b32.xlu0 %v692, 96
    %v2434 = vpop.permute.xlu0 %2433
    %2435 = vrot.lane.b32.xlu0 %v693, 96
    %v2436 = vpop.permute.xlu0 %2435
    %2437 = vrot.lane.b32.xlu0 %v694, 96
    %v2438 = vpop.permute.xlu0 %2437
    %2439 = vrot.lane.b32.xlu0 %v695, 96
    %v2440 = vpop.permute.xlu0 %2439
    %2441 = vrot.lane.b32.xlu0 %v696, 96
    %v2442 = vpop.permute.xlu0 %2441
    %2443 = vrot.lane.b32.xlu0 %v697, 96
    %v2444 = vpop.permute.xlu0 %2443
    %2445 = vrot.lane.b32.xlu0 %v698, 96
    %v2446 = vpop.permute.xlu0 %2445
    %2447 = vrot.lane.b32.xlu0 %v699, 96
    %v2448 = vpop.permute.xlu0 %2447
    %2449 = vrot.lane.b32.xlu0 %v700, 96
    %v2450 = vpop.permute.xlu0 %2449
    %2451 = vrot.lane.b32.xlu0 %v701, 96
    %v2452 = vpop.permute.xlu0 %2451
    %2453 = vrot.lane.b32.xlu0 %v702, 96
    %v2454 = vpop.permute.xlu0 %2453
    %2455 = vrot.lane.b32.xlu0 %v703, 96
    %v2456 = vpop.permute.xlu0 %2455
    %2457 = vrot.lane.b32.xlu0 %v704, 96
    %v2458 = vpop.permute.xlu0 %2457
    %2459 = vrot.lane.b32.xlu0 %v705, 96
    %v2460 = vpop.permute.xlu0 %2459
    %2461 = vrot.lane.b32.xlu0 %v706, 96
    %v2462 = vpop.permute.xlu0 %2461
    %2463 = vrot.lane.b32.xlu0 %v707, 96
    %v2464 = vpop.permute.xlu0 %2463
    %v2466 = vsel %vm98, %v351, 0
    %v2469 = vsel %vm98, %v354, 0
    %v2471 = vsel %vm98, %v2434, 0
    %v2473 = vsel %vm98, %v2436, 0
    %v2475 = vsel %vm98, %v2438, 0
    %v2477 = vsel %vm98, %v2440, 0
    %v2479 = vsel %vm98, %v2442, 0
    %v2481 = vsel %vm98, %v2444, 0
    %v2483 = vsel %vm98, %v2446, 0
    %v2485 = vsel %vm98, %v2448, 0
    %v2487 = vsel %vm98, %v2450, 0
    %v2489 = vsel %vm98, %v2452, 0
    %v2491 = vsel %vm98, %v2454, 0
    %v2493 = vsel %vm98, %v2456, 0
    %v2495 = vsel %vm98, %v2458, 0
    %v2497 = vsel %vm98, %v2460, 0
    %v2499 = vsel %vm98, %v2462, 0
    %v2501 = vsel %vm98, %v2464, 0
    %2503 = vmatpush.xpose.msra.mxu0 %v2501
    %2504 = vmatpush.xpose.msra.mxu0 %v2499
    %2505 = vmatpush.xpose.msra.mxu0 %v2497
    %2506 = vmatpush.xpose.msra.mxu0 %v2495
    %2507 = vmatpush.xpose.msra.mxu0 %v2493
    %2508 = vmatpush.xpose.msra.mxu0 %v2491
    %2509 = vmatpush.xpose.msra.mxu0 %v2489
    %2510 = vmatpush.xpose.msra.mxu0 %v2487
    %2511 = vmatpush.xpose.msra.mxu0 %v2485
    %2512 = vmatpush.xpose.msra.mxu0 %v2483
    %2513 = vmatpush.xpose.msra.mxu0 %v2481
    %2514 = vmatpush.xpose.msra.mxu0 %v2479
    %2515 = vmatpush.xpose.msra.mxu0 %v2477
    %2516 = vmatpush.xpose.msra.mxu0 %v2475
    %2517 = vmatpush.xpose.msra.mxu0 %v2473
    %2518 = vmatpush.xpose.msra.mxu0 %v2471
    %2519 = vmatmul.f32.gmra.mxu0 %v2466
    %v2520 = vpop.f32.mrf.mxu0
    %v2521 = vadd.f32 %v1652, %v2520
    %2522 = vmatmul.f32.gmra.mxu0 %v2469
    %v2523 = vpop.f32.mrf.mxu0
    %v2524 = vadd.f32 %v1653, %v2523
    %2525 = vdwg.mxu0
    %2542 = vrot.lane.b32.xlu0 %v708, 96
    %v2543 = vpop.permute.xlu0 %2542
    %2544 = vrot.lane.b32.xlu0 %v709, 96
    %v2545 = vpop.permute.xlu0 %2544
    %2546 = vrot.lane.b32.xlu0 %v710, 96
    %v2547 = vpop.permute.xlu0 %2546
    %2548 = vrot.lane.b32.xlu0 %v711, 96
    %v2549 = vpop.permute.xlu0 %2548
    %2550 = vrot.lane.b32.xlu0 %v712, 96
    %v2551 = vpop.permute.xlu0 %2550
    %2552 = vrot.lane.b32.xlu0 %v713, 96
    %v2553 = vpop.permute.xlu0 %2552
    %2554 = vrot.lane.b32.xlu0 %v714, 96
    %v2555 = vpop.permute.xlu0 %2554
    %2556 = vrot.lane.b32.xlu0 %v715, 96
    %v2557 = vpop.permute.xlu0 %2556
    %2558 = vrot.lane.b32.xlu0 %v716, 96
    %v2559 = vpop.permute.xlu0 %2558
    %2560 = vrot.lane.b32.xlu0 %v717, 96
    %v2561 = vpop.permute.xlu0 %2560
    %2562 = vrot.lane.b32.xlu0 %v718, 96
    %v2563 = vpop.permute.xlu0 %2562
    %2564 = vrot.lane.b32.xlu0 %v719, 96
    %v2565 = vpop.permute.xlu0 %2564
    %2566 = vrot.lane.b32.xlu0 %v720, 96
    %v2567 = vpop.permute.xlu0 %2566
    %2568 = vrot.lane.b32.xlu0 %v721, 96
    %v2569 = vpop.permute.xlu0 %2568
    %2570 = vrot.lane.b32.xlu0 %v722, 96
    %v2571 = vpop.permute.xlu0 %2570
    %2572 = vrot.lane.b32.xlu0 %v723, 96
    %v2573 = vpop.permute.xlu0 %2572
    %v2575 = vsel %vm98, %v357, 0
    %v2578 = vsel %vm98, %v360, 0
    %v2580 = vsel %vm98, %v2543, 0
    %v2582 = vsel %vm98, %v2545, 0
    %v2584 = vsel %vm98, %v2547, 0
    %v2586 = vsel %vm98, %v2549, 0
    %v2588 = vsel %vm98, %v2551, 0
    %v2590 = vsel %vm98, %v2553, 0
    %v2592 = vsel %vm98, %v2555, 0
    %v2594 = vsel %vm98, %v2557, 0
    %v2596 = vsel %vm98, %v2559, 0
    %v2598 = vsel %vm98, %v2561, 0
    %v2600 = vsel %vm98, %v2563, 0
    %v2602 = vsel %vm98, %v2565, 0
    %v2604 = vsel %vm98, %v2567, 0
    %v2606 = vsel %vm98, %v2569, 0
    %v2608 = vsel %vm98, %v2571, 0
    %v2610 = vsel %vm98, %v2573, 0
    %2612 = vmatpush.xpose.msra.mxu0 %v2610
    %2613 = vmatpush.xpose.msra.mxu0 %v2608
    %2614 = vmatpush.xpose.msra.mxu0 %v2606
    %2615 = vmatpush.xpose.msra.mxu0 %v2604
    %2616 = vmatpush.xpose.msra.mxu0 %v2602
    %2617 = vmatpush.xpose.msra.mxu0 %v2600
    %2618 = vmatpush.xpose.msra.mxu0 %v2598
    %2619 = vmatpush.xpose.msra.mxu0 %v2596
    %2620 = vmatpush.xpose.msra.mxu0 %v2594
    %2621 = vmatpush.xpose.msra.mxu0 %v2592
    %2622 = vmatpush.xpose.msra.mxu0 %v2590
    %2623 = vmatpush.xpose.msra.mxu0 %v2588
    %2624 = vmatpush.xpose.msra.mxu0 %v2586
    %2625 = vmatpush.xpose.msra.mxu0 %v2584
    %2626 = vmatpush.xpose.msra.mxu0 %v2582
    %2627 = vmatpush.xpose.msra.mxu0 %v2580
    %2628 = vmatmul.f32.gmra.mxu0 %v2575
    %v2629 = vpop.f32.mrf.mxu0
    %v2630 = vadd.f32 %v1652, %v2629
    %2631 = vmatmul.f32.gmra.mxu0 %v2578
    %v2632 = vpop.f32.mrf.mxu0
    %v2633 = vadd.f32 %v1653, %v2632
    %2634 = vdwg.mxu0
    %2651 = vrot.lane.b32.xlu0 %v724, 96
    %v2652 = vpop.permute.xlu0 %2651
    %2653 = vrot.lane.b32.xlu0 %v725, 96
    %v2654 = vpop.permute.xlu0 %2653
    %2655 = vrot.lane.b32.xlu0 %v726, 96
    %v2656 = vpop.permute.xlu0 %2655
    %2657 = vrot.lane.b32.xlu0 %v727, 96
    %v2658 = vpop.permute.xlu0 %2657
    %2659 = vrot.lane.b32.xlu0 %v728, 96
    %v2660 = vpop.permute.xlu0 %2659
    %2661 = vrot.lane.b32.xlu0 %v729, 96
    %v2662 = vpop.permute.xlu0 %2661
    %2663 = vrot.lane.b32.xlu0 %v730, 96
    %v2664 = vpop.permute.xlu0 %2663
    %2665 = vrot.lane.b32.xlu0 %v731, 96
    %v2666 = vpop.permute.xlu0 %2665
    %2667 = vrot.lane.b32.xlu0 %v732, 96
    %v2668 = vpop.permute.xlu0 %2667
    %2669 = vrot.lane.b32.xlu0 %v733, 96
    %v2670 = vpop.permute.xlu0 %2669
    %2671 = vrot.lane.b32.xlu0 %v734, 96
    %v2672 = vpop.permute.xlu0 %2671
    %2673 = vrot.lane.b32.xlu0 %v735, 96
    %v2674 = vpop.permute.xlu0 %2673
    %2675 = vrot.lane.b32.xlu0 %v736, 96
    %v2676 = vpop.permute.xlu0 %2675
    %2677 = vrot.lane.b32.xlu0 %v737, 96
    %v2678 = vpop.permute.xlu0 %2677
    %2679 = vrot.lane.b32.xlu0 %v738, 96
    %v2680 = vpop.permute.xlu0 %2679
    %2681 = vrot.lane.b32.xlu0 %v739, 96
    %v2682 = vpop.permute.xlu0 %2681
    %v2684 = vsel %vm98, %v363, 0
    %v2687 = vsel %vm98, %v366, 0
    %v2689 = vsel %vm98, %v2652, 0
    %v2691 = vsel %vm98, %v2654, 0
    %v2693 = vsel %vm98, %v2656, 0
    %v2695 = vsel %vm98, %v2658, 0
    %v2697 = vsel %vm98, %v2660, 0
    %v2699 = vsel %vm98, %v2662, 0
    %v2701 = vsel %vm98, %v2664, 0
    %v2703 = vsel %vm98, %v2666, 0
    %v2705 = vsel %vm98, %v2668, 0
    %v2707 = vsel %vm98, %v2670, 0
    %v2709 = vsel %vm98, %v2672, 0
    %v2711 = vsel %vm98, %v2674, 0
    %v2713 = vsel %vm98, %v2676, 0
    %v2715 = vsel %vm98, %v2678, 0
    %v2717 = vsel %vm98, %v2680, 0
    %v2719 = vsel %vm98, %v2682, 0
    %2721 = vmatpush.xpose.msra.mxu0 %v2719
    %2722 = vmatpush.xpose.msra.mxu0 %v2717
    %2723 = vmatpush.xpose.msra.mxu0 %v2715
    %2724 = vmatpush.xpose.msra.mxu0 %v2713
    %2725 = vmatpush.xpose.msra.mxu0 %v2711
    %2726 = vmatpush.xpose.msra.mxu0 %v2709
    %2727 = vmatpush.xpose.msra.mxu0 %v2707
    %2728 = vmatpush.xpose.msra.mxu0 %v2705
    %2729 = vmatpush.xpose.msra.mxu0 %v2703
    %2730 = vmatpush.xpose.msra.mxu0 %v2701
    %2731 = vmatpush.xpose.msra.mxu0 %v2699
    %2732 = vmatpush.xpose.msra.mxu0 %v2697
    %2733 = vmatpush.xpose.msra.mxu0 %v2695
    %2734 = vmatpush.xpose.msra.mxu0 %v2693
    %2735 = vmatpush.xpose.msra.mxu0 %v2691
    %2736 = vmatpush.xpose.msra.mxu0 %v2689
    %2737 = vmatmul.f32.gmra.mxu0 %v2684
    %v2738 = vpop.f32.mrf.mxu0
    %v2739 = vadd.f32 %v1652, %v2738
    %2740 = vmatmul.f32.gmra.mxu0 %v2687
    %v2741 = vpop.f32.mrf.mxu0
    %v2742 = vadd.f32 %v1653, %v2741
    %2743 = vdwg.mxu0
    %2760 = vrot.lane.b32.xlu0 %v740, 96
    %v2761 = vpop.permute.xlu0 %2760
    %2762 = vrot.lane.b32.xlu0 %v741, 96
    %v2763 = vpop.permute.xlu0 %2762
    %2764 = vrot.lane.b32.xlu0 %v742, 96
    %v2765 = vpop.permute.xlu0 %2764
    %2766 = vrot.lane.b32.xlu0 %v743, 96
    %v2767 = vpop.permute.xlu0 %2766
    %2768 = vrot.lane.b32.xlu0 %v744, 96
    %v2769 = vpop.permute.xlu0 %2768
    %2770 = vrot.lane.b32.xlu0 %v745, 96
    %v2771 = vpop.permute.xlu0 %2770
    %2772 = vrot.lane.b32.xlu0 %v746, 96
    %v2773 = vpop.permute.xlu0 %2772
    %2774 = vrot.lane.b32.xlu0 %v747, 96
    %v2775 = vpop.permute.xlu0 %2774
    %2776 = vrot.lane.b32.xlu0 %v748, 96
    %v2777 = vpop.permute.xlu0 %2776
    %2778 = vrot.lane.b32.xlu0 %v749, 96
    %v2779 = vpop.permute.xlu0 %2778
    %2780 = vrot.lane.b32.xlu0 %v750, 96
    %v2781 = vpop.permute.xlu0 %2780
    %2782 = vrot.lane.b32.xlu0 %v751, 96
    %v2783 = vpop.permute.xlu0 %2782
    %2784 = vrot.lane.b32.xlu0 %v752, 96
    %v2785 = vpop.permute.xlu0 %2784
    %2786 = vrot.lane.b32.xlu0 %v753, 96
    %v2787 = vpop.permute.xlu0 %2786
    %2788 = vrot.lane.b32.xlu0 %v754, 96
    %v2789 = vpop.permute.xlu0 %2788
    %2790 = vrot.lane.b32.xlu0 %v755, 96
    %v2791 = vpop.permute.xlu0 %2790
    %v2793 = vsel %vm98, %v369, 0
    %v2796 = vsel %vm98, %v372, 0
    %v2798 = vsel %vm98, %v2761, 0
    %v2800 = vsel %vm98, %v2763, 0
    %v2802 = vsel %vm98, %v2765, 0
    %v2804 = vsel %vm98, %v2767, 0
    %v2806 = vsel %vm98, %v2769, 0
    %v2808 = vsel %vm98, %v2771, 0
    %v2810 = vsel %vm98, %v2773, 0
    %v2812 = vsel %vm98, %v2775, 0
    %v2814 = vsel %vm98, %v2777, 0
    %v2816 = vsel %vm98, %v2779, 0
    %v2818 = vsel %vm98, %v2781, 0
    %v2820 = vsel %vm98, %v2783, 0
    %v2822 = vsel %vm98, %v2785, 0
    %v2824 = vsel %vm98, %v2787, 0
    %v2826 = vsel %vm98, %v2789, 0
    %v2828 = vsel %vm98, %v2791, 0
    %2830 = vmatpush.xpose.msra.mxu0 %v2828
    %2831 = vmatpush.xpose.msra.mxu0 %v2826
    %2832 = vmatpush.xpose.msra.mxu0 %v2824
    %2833 = vmatpush.xpose.msra.mxu0 %v2822
    %2834 = vmatpush.xpose.msra.mxu0 %v2820
    %2835 = vmatpush.xpose.msra.mxu0 %v2818
    %2836 = vmatpush.xpose.msra.mxu0 %v2816
    %2837 = vmatpush.xpose.msra.mxu0 %v2814
    %2838 = vmatpush.xpose.msra.mxu0 %v2812
    %2839 = vmatpush.xpose.msra.mxu0 %v2810
    %2840 = vmatpush.xpose.msra.mxu0 %v2808
    %2841 = vmatpush.xpose.msra.mxu0 %v2806
    %2842 = vmatpush.xpose.msra.mxu0 %v2804
    %2843 = vmatpush.xpose.msra.mxu0 %v2802
    %2844 = vmatpush.xpose.msra.mxu0 %v2800
    %2845 = vmatpush.xpose.msra.mxu0 %v2798
    %2846 = vmatmul.f32.gmra.mxu0 %v2793
    %v2847 = vpop.f32.mrf.mxu0
    %v2848 = vadd.f32 %v1652, %v2847
    %2849 = vmatmul.f32.gmra.mxu0 %v2796
    %v2850 = vpop.f32.mrf.mxu0
    %v2851 = vadd.f32 %v1653, %v2850
    %2852 = vdwg.mxu0
    %2869 = vrot.lane.b32.xlu0 %v756, 96
    %v2870 = vpop.permute.xlu0 %2869
    %2871 = vrot.lane.b32.xlu0 %v757, 96
    %v2872 = vpop.permute.xlu0 %2871
    %2873 = vrot.lane.b32.xlu0 %v758, 96
    %v2874 = vpop.permute.xlu0 %2873
    %2875 = vrot.lane.b32.xlu0 %v759, 96
    %v2876 = vpop.permute.xlu0 %2875
    %2877 = vrot.lane.b32.xlu0 %v760, 96
    %v2878 = vpop.permute.xlu0 %2877
    %2879 = vrot.lane.b32.xlu0 %v761, 96
    %v2880 = vpop.permute.xlu0 %2879
    %2881 = vrot.lane.b32.xlu0 %v762, 96
    %v2882 = vpop.permute.xlu0 %2881
    %2883 = vrot.lane.b32.xlu0 %v763, 96
    %v2884 = vpop.permute.xlu0 %2883
    %2885 = vrot.lane.b32.xlu0 %v764, 96
    %v2886 = vpop.permute.xlu0 %2885
    %2887 = vrot.lane.b32.xlu0 %v765, 96
    %v2888 = vpop.permute.xlu0 %2887
    %2889 = vrot.lane.b32.xlu0 %v766, 96
    %v2890 = vpop.permute.xlu0 %2889
    %2891 = vrot.lane.b32.xlu0 %v767, 96
    %v2892 = vpop.permute.xlu0 %2891
    %2893 = vrot.lane.b32.xlu0 %v768, 96
    %v2894 = vpop.permute.xlu0 %2893
    %2895 = vrot.lane.b32.xlu0 %v769, 96
    %v2896 = vpop.permute.xlu0 %2895
    %2897 = vrot.lane.b32.xlu0 %v770, 96
    %v2898 = vpop.permute.xlu0 %2897
    %2899 = vrot.lane.b32.xlu0 %v771, 96
    %v2900 = vpop.permute.xlu0 %2899
    %v2902 = vsel %vm98, %v375, 0
    %v2905 = vsel %vm98, %v378, 0
    %v2907 = vsel %vm98, %v2870, 0
    %v2909 = vsel %vm98, %v2872, 0
    %v2911 = vsel %vm98, %v2874, 0
    %v2913 = vsel %vm98, %v2876, 0
    %v2915 = vsel %vm98, %v2878, 0
    %v2917 = vsel %vm98, %v2880, 0
    %v2919 = vsel %vm98, %v2882, 0
    %v2921 = vsel %vm98, %v2884, 0
    %v2923 = vsel %vm98, %v2886, 0
    %v2925 = vsel %vm98, %v2888, 0
    %v2927 = vsel %vm98, %v2890, 0
    %v2929 = vsel %vm98, %v2892, 0
    %v2931 = vsel %vm98, %v2894, 0
    %v2933 = vsel %vm98, %v2896, 0
    %v2935 = vsel %vm98, %v2898, 0
    %v2937 = vsel %vm98, %v2900, 0
    %2939 = vmatpush.xpose.msra.mxu0 %v2937
    %2940 = vmatpush.xpose.msra.mxu0 %v2935
    %2941 = vmatpush.xpose.msra.mxu0 %v2933
    %2942 = vmatpush.xpose.msra.mxu0 %v2931
    %2943 = vmatpush.xpose.msra.mxu0 %v2929
    %2944 = vmatpush.xpose.msra.mxu0 %v2927
    %2945 = vmatpush.xpose.msra.mxu0 %v2925
    %2946 = vmatpush.xpose.msra.mxu0 %v2923
    %2947 = vmatpush.xpose.msra.mxu0 %v2921
    %2948 = vmatpush.xpose.msra.mxu0 %v2919
    %2949 = vmatpush.xpose.msra.mxu0 %v2917
    %2950 = vmatpush.xpose.msra.mxu0 %v2915
    %2951 = vmatpush.xpose.msra.mxu0 %v2913
    %2952 = vmatpush.xpose.msra.mxu0 %v2911
    %2953 = vmatpush.xpose.msra.mxu0 %v2909
    %2954 = vmatpush.xpose.msra.mxu0 %v2907
    %2955 = vmatmul.f32.gmra.mxu0 %v2902
    %v2956 = vpop.f32.mrf.mxu0
    %v2957 = vadd.f32 %v1652, %v2956
    %2958 = vmatmul.f32.gmra.mxu0 %v2905
    %v2959 = vpop.f32.mrf.mxu0
    %v2960 = vadd.f32 %v1653, %v2959
    %2961 = vdwg.mxu0
    %2978 = vrot.lane.b32.xlu0 %v772, 96
    %v2979 = vpop.permute.xlu0 %2978
    %2980 = vrot.lane.b32.xlu0 %v773, 96
    %v2981 = vpop.permute.xlu0 %2980
    %2982 = vrot.lane.b32.xlu0 %v774, 96
    %v2983 = vpop.permute.xlu0 %2982
    %2984 = vrot.lane.b32.xlu0 %v775, 96
    %v2985 = vpop.permute.xlu0 %2984
    %2986 = vrot.lane.b32.xlu0 %v776, 96
    %v2987 = vpop.permute.xlu0 %2986
    %2988 = vrot.lane.b32.xlu0 %v777, 96
    %v2989 = vpop.permute.xlu0 %2988
    %2990 = vrot.lane.b32.xlu0 %v778, 96
    %v2991 = vpop.permute.xlu0 %2990
    %2992 = vrot.lane.b32.xlu0 %v779, 96
    %v2993 = vpop.permute.xlu0 %2992
    %2994 = vrot.lane.b32.xlu0 %v780, 96
    %v2995 = vpop.permute.xlu0 %2994
    %2996 = vrot.lane.b32.xlu0 %v781, 96
    %v2997 = vpop.permute.xlu0 %2996
    %2998 = vrot.lane.b32.xlu0 %v782, 96
    %v2999 = vpop.permute.xlu0 %2998
    %3000 = vrot.lane.b32.xlu0 %v783, 96
    %v3001 = vpop.permute.xlu0 %3000
    %3002 = vrot.lane.b32.xlu0 %v784, 96
    %v3003 = vpop.permute.xlu0 %3002
    %3004 = vrot.lane.b32.xlu0 %v785, 96
    %v3005 = vpop.permute.xlu0 %3004
    %3006 = vrot.lane.b32.xlu0 %v786, 96
    %v3007 = vpop.permute.xlu0 %3006
    %3008 = vrot.lane.b32.xlu0 %v787, 96
    %v3009 = vpop.permute.xlu0 %3008
    %v3011 = vsel %vm98, %v381, 0
    %v3014 = vsel %vm98, %v384, 0
    %v3016 = vsel %vm98, %v2979, 0
    %v3018 = vsel %vm98, %v2981, 0
    %v3020 = vsel %vm98, %v2983, 0
    %v3022 = vsel %vm98, %v2985, 0
    %v3024 = vsel %vm98, %v2987, 0
    %v3026 = vsel %vm98, %v2989, 0
    %v3028 = vsel %vm98, %v2991, 0
    %v3030 = vsel %vm98, %v2993, 0
    %v3032 = vsel %vm98, %v2995, 0
    %v3034 = vsel %vm98, %v2997, 0
    %v3036 = vsel %vm98, %v2999, 0
    %v3038 = vsel %vm98, %v3001, 0
    %v3040 = vsel %vm98, %v3003, 0
    %v3042 = vsel %vm98, %v3005, 0
    %v3044 = vsel %vm98, %v3007, 0
    %v3046 = vsel %vm98, %v3009, 0
    %3048 = vmatpush.xpose.msra.mxu0 %v3046
    %3049 = vmatpush.xpose.msra.mxu0 %v3044
    %3050 = vmatpush.xpose.msra.mxu0 %v3042
    %3051 = vmatpush.xpose.msra.mxu0 %v3040
    %3052 = vmatpush.xpose.msra.mxu0 %v3038
    %3053 = vmatpush.xpose.msra.mxu0 %v3036
    %3054 = vmatpush.xpose.msra.mxu0 %v3034
    %3055 = vmatpush.xpose.msra.mxu0 %v3032
    %3056 = vmatpush.xpose.msra.mxu0 %v3030
    %3057 = vmatpush.xpose.msra.mxu0 %v3028
    %3058 = vmatpush.xpose.msra.mxu0 %v3026
    %3059 = vmatpush.xpose.msra.mxu0 %v3024
    %3060 = vmatpush.xpose.msra.mxu0 %v3022
    %3061 = vmatpush.xpose.msra.mxu0 %v3020
    %3062 = vmatpush.xpose.msra.mxu0 %v3018
    %3063 = vmatpush.xpose.msra.mxu0 %v3016
    %3064 = vmatmul.f32.gmra.mxu0 %v3011
    %v3065 = vpop.f32.mrf.mxu0
    %v3066 = vadd.f32 %v1652, %v3065
    %3067 = vmatmul.f32.gmra.mxu0 %v3014
    %v3068 = vpop.f32.mrf.mxu0
    %v3069 = vadd.f32 %v1653, %v3068
    %3070 = vdwg.mxu0
    %3087 = vrot.lane.b32.xlu0 %v788, 96
    %v3088 = vpop.permute.xlu0 %3087
    %3089 = vrot.lane.b32.xlu0 %v789, 96
    %v3090 = vpop.permute.xlu0 %3089
    %3091 = vrot.lane.b32.xlu0 %v790, 96
    %v3092 = vpop.permute.xlu0 %3091
    %3093 = vrot.lane.b32.xlu0 %v791, 96
    %v3094 = vpop.permute.xlu0 %3093
    %3095 = vrot.lane.b32.xlu0 %v792, 96
    %v3096 = vpop.permute.xlu0 %3095
    %3097 = vrot.lane.b32.xlu0 %v793, 96
    %v3098 = vpop.permute.xlu0 %3097
    %3099 = vrot.lane.b32.xlu0 %v794, 96
    %v3100 = vpop.permute.xlu0 %3099
    %3101 = vrot.lane.b32.xlu0 %v795, 96
    %v3102 = vpop.permute.xlu0 %3101
    %3103 = vrot.lane.b32.xlu0 %v796, 96
    %v3104 = vpop.permute.xlu0 %3103
    %3105 = vrot.lane.b32.xlu0 %v797, 96
    %v3106 = vpop.permute.xlu0 %3105
    %3107 = vrot.lane.b32.xlu0 %v798, 96
    %v3108 = vpop.permute.xlu0 %3107
    %3109 = vrot.lane.b32.xlu0 %v799, 96
    %v3110 = vpop.permute.xlu0 %3109
    %3111 = vrot.lane.b32.xlu0 %v800, 96
    %v3112 = vpop.permute.xlu0 %3111
    %3113 = vrot.lane.b32.xlu0 %v801, 96
    %v3114 = vpop.permute.xlu0 %3113
    %3115 = vrot.lane.b32.xlu0 %v802, 96
    %v3116 = vpop.permute.xlu0 %3115
    %3117 = vrot.lane.b32.xlu0 %v803, 96
    %v3118 = vpop.permute.xlu0 %3117
    %v3120 = vsel %vm98, %v387, 0
    %v3123 = vsel %vm98, %v390, 0
    %v3125 = vsel %vm98, %v3088, 0
    %v3127 = vsel %vm98, %v3090, 0
    %v3129 = vsel %vm98, %v3092, 0
    %v3131 = vsel %vm98, %v3094, 0
    %v3133 = vsel %vm98, %v3096, 0
    %v3135 = vsel %vm98, %v3098, 0
    %v3137 = vsel %vm98, %v3100, 0
    %v3139 = vsel %vm98, %v3102, 0
    %v3141 = vsel %vm98, %v3104, 0
    %v3143 = vsel %vm98, %v3106, 0
    %v3145 = vsel %vm98, %v3108, 0
    %v3147 = vsel %vm98, %v3110, 0
    %v3149 = vsel %vm98, %v3112, 0
    %v3151 = vsel %vm98, %v3114, 0
    %v3153 = vsel %vm98, %v3116, 0
    %v3155 = vsel %vm98, %v3118, 0
    %3157 = vmatpush.xpose.msra.mxu0 %v3155
    %3158 = vmatpush.xpose.msra.mxu0 %v3153
    %3159 = vmatpush.xpose.msra.mxu0 %v3151
    %3160 = vmatpush.xpose.msra.mxu0 %v3149
    %3161 = vmatpush.xpose.msra.mxu0 %v3147
    %3162 = vmatpush.xpose.msra.mxu0 %v3145
    %3163 = vmatpush.xpose.msra.mxu0 %v3143
    %3164 = vmatpush.xpose.msra.mxu0 %v3141
    %3165 = vmatpush.xpose.msra.mxu0 %v3139
    %3166 = vmatpush.xpose.msra.mxu0 %v3137
    %3167 = vmatpush.xpose.msra.mxu0 %v3135
    %3168 = vmatpush.xpose.msra.mxu0 %v3133
    %3169 = vmatpush.xpose.msra.mxu0 %v3131
    %3170 = vmatpush.xpose.msra.mxu0 %v3129
    %3171 = vmatpush.xpose.msra.mxu0 %v3127
    %3172 = vmatpush.xpose.msra.mxu0 %v3125
    %3173 = vmatmul.f32.gmra.mxu0 %v3120
    %v3174 = vpop.f32.mrf.mxu0
    %v3175 = vadd.f32 %v1652, %v3174
    %3176 = vmatmul.f32.gmra.mxu0 %v3123
    %v3177 = vpop.f32.mrf.mxu0
    %v3178 = vadd.f32 %v1653, %v3177
    %3179 = vdwg.mxu0
    %3196 = vrot.lane.b32.xlu0 %v804, 96
    %v3197 = vpop.permute.xlu0 %3196
    %3198 = vrot.lane.b32.xlu0 %v805, 96
    %v3199 = vpop.permute.xlu0 %3198
    %3200 = vrot.lane.b32.xlu0 %v806, 96
    %v3201 = vpop.permute.xlu0 %3200
    %3202 = vrot.lane.b32.xlu0 %v807, 96
    %v3203 = vpop.permute.xlu0 %3202
    %3204 = vrot.lane.b32.xlu0 %v808, 96
    %v3205 = vpop.permute.xlu0 %3204
    %3206 = vrot.lane.b32.xlu0 %v809, 96
    %v3207 = vpop.permute.xlu0 %3206
    %3208 = vrot.lane.b32.xlu0 %v810, 96
    %v3209 = vpop.permute.xlu0 %3208
    %3210 = vrot.lane.b32.xlu0 %v811, 96
    %v3211 = vpop.permute.xlu0 %3210
    %3212 = vrot.lane.b32.xlu0 %v812, 96
    %v3213 = vpop.permute.xlu0 %3212
    %3214 = vrot.lane.b32.xlu0 %v813, 96
    %v3215 = vpop.permute.xlu0 %3214
    %3216 = vrot.lane.b32.xlu0 %v814, 96
    %v3217 = vpop.permute.xlu0 %3216
    %3218 = vrot.lane.b32.xlu0 %v815, 96
    %v3219 = vpop.permute.xlu0 %3218
    %3220 = vrot.lane.b32.xlu0 %v816, 96
    %v3221 = vpop.permute.xlu0 %3220
    %3222 = vrot.lane.b32.xlu0 %v817, 96
    %v3223 = vpop.permute.xlu0 %3222
    %3224 = vrot.lane.b32.xlu0 %v818, 96
    %v3225 = vpop.permute.xlu0 %3224
    %3226 = vrot.lane.b32.xlu0 %v819, 96
    %v3227 = vpop.permute.xlu0 %3226
    %v3229 = vsel %vm98, %v393, 0
    %v3232 = vsel %vm98, %v396, 0
    %v3234 = vsel %vm98, %v3197, 0
    %v3236 = vsel %vm98, %v3199, 0
    %v3238 = vsel %vm98, %v3201, 0
    %v3240 = vsel %vm98, %v3203, 0
    %v3242 = vsel %vm98, %v3205, 0
    %v3244 = vsel %vm98, %v3207, 0
    %v3246 = vsel %vm98, %v3209, 0
    %v3248 = vsel %vm98, %v3211, 0
    %v3250 = vsel %vm98, %v3213, 0
    %v3252 = vsel %vm98, %v3215, 0
    %v3254 = vsel %vm98, %v3217, 0
    %v3256 = vsel %vm98, %v3219, 0
    %v3258 = vsel %vm98, %v3221, 0
    %v3260 = vsel %vm98, %v3223, 0
    %v3262 = vsel %vm98, %v3225, 0
    %v3264 = vsel %vm98, %v3227, 0
    %3266 = vmatpush.xpose.msra.mxu0 %v3264
    %3267 = vmatpush.xpose.msra.mxu0 %v3262
    %3268 = vmatpush.xpose.msra.mxu0 %v3260
    %3269 = vmatpush.xpose.msra.mxu0 %v3258
    %3270 = vmatpush.xpose.msra.mxu0 %v3256
    %3271 = vmatpush.xpose.msra.mxu0 %v3254
    %3272 = vmatpush.xpose.msra.mxu0 %v3252
    %3273 = vmatpush.xpose.msra.mxu0 %v3250
    %3274 = vmatpush.xpose.msra.mxu0 %v3248
    %3275 = vmatpush.xpose.msra.mxu0 %v3246
    %3276 = vmatpush.xpose.msra.mxu0 %v3244
    %3277 = vmatpush.xpose.msra.mxu0 %v3242
    %3278 = vmatpush.xpose.msra.mxu0 %v3240
    %3279 = vmatpush.xpose.msra.mxu0 %v3238
    %3280 = vmatpush.xpose.msra.mxu0 %v3236
    %3281 = vmatpush.xpose.msra.mxu0 %v3234
    %3282 = vmatmul.f32.gmra.mxu0 %v3229
    %v3283 = vpop.f32.mrf.mxu0
    %v3284 = vadd.f32 %v1652, %v3283
    %3285 = vmatmul.f32.gmra.mxu0 %v3232
    %v3286 = vpop.f32.mrf.mxu0
    %v3287 = vadd.f32 %v1653, %v3286
    %3288 = vdwg.mxu0
    %3305 = vrot.lane.b32.xlu0 %v820, 96
    %v3306 = vpop.permute.xlu0 %3305
    %3307 = vrot.lane.b32.xlu0 %v821, 96
    %v3308 = vpop.permute.xlu0 %3307
    %3309 = vrot.lane.b32.xlu0 %v822, 96
    %v3310 = vpop.permute.xlu0 %3309
    %3311 = vrot.lane.b32.xlu0 %v823, 96
    %v3312 = vpop.permute.xlu0 %3311
    %3313 = vrot.lane.b32.xlu0 %v824, 96
    %v3314 = vpop.permute.xlu0 %3313
    %3315 = vrot.lane.b32.xlu0 %v825, 96
    %v3316 = vpop.permute.xlu0 %3315
    %3317 = vrot.lane.b32.xlu0 %v826, 96
    %v3318 = vpop.permute.xlu0 %3317
    %3319 = vrot.lane.b32.xlu0 %v827, 96
    %v3320 = vpop.permute.xlu0 %3319
    %3321 = vrot.lane.b32.xlu0 %v828, 96
    %v3322 = vpop.permute.xlu0 %3321
    %3323 = vrot.lane.b32.xlu0 %v829, 96
    %v3324 = vpop.permute.xlu0 %3323
    %3325 = vrot.lane.b32.xlu0 %v830, 96
    %v3326 = vpop.permute.xlu0 %3325
    %3327 = vrot.lane.b32.xlu0 %v831, 96
    %v3328 = vpop.permute.xlu0 %3327
    %3329 = vrot.lane.b32.xlu0 %v832, 96
    %v3330 = vpop.permute.xlu0 %3329
    %3331 = vrot.lane.b32.xlu0 %v833, 96
    %v3332 = vpop.permute.xlu0 %3331
    %3333 = vrot.lane.b32.xlu0 %v834, 96
    %v3334 = vpop.permute.xlu0 %3333
    %3335 = vrot.lane.b32.xlu0 %v835, 96
    %v3336 = vpop.permute.xlu0 %3335
    %v3338 = vsel %vm98, %v399, 0
    %v3341 = vsel %vm98, %v402, 0
    %v3343 = vsel %vm98, %v3306, 0
    %v3345 = vsel %vm98, %v3308, 0
    %v3347 = vsel %vm98, %v3310, 0
    %v3349 = vsel %vm98, %v3312, 0
    %v3351 = vsel %vm98, %v3314, 0
    %v3353 = vsel %vm98, %v3316, 0
    %v3355 = vsel %vm98, %v3318, 0
    %v3357 = vsel %vm98, %v3320, 0
    %v3359 = vsel %vm98, %v3322, 0
    %v3361 = vsel %vm98, %v3324, 0
    %v3363 = vsel %vm98, %v3326, 0
    %v3365 = vsel %vm98, %v3328, 0
    %v3367 = vsel %vm98, %v3330, 0
    %v3369 = vsel %vm98, %v3332, 0
    %v3371 = vsel %vm98, %v3334, 0
    %v3373 = vsel %vm98, %v3336, 0
    %3375 = vmatpush.xpose.msra.mxu0 %v3373
    %3376 = vmatpush.xpose.msra.mxu0 %v3371
    %3377 = vmatpush.xpose.msra.mxu0 %v3369
    %3378 = vmatpush.xpose.msra.mxu0 %v3367
    %3379 = vmatpush.xpose.msra.mxu0 %v3365
    %3380 = vmatpush.xpose.msra.mxu0 %v3363
    %3381 = vmatpush.xpose.msra.mxu0 %v3361
    %3382 = vmatpush.xpose.msra.mxu0 %v3359
    %3383 = vmatpush.xpose.msra.mxu0 %v3357
    %3384 = vmatpush.xpose.msra.mxu0 %v3355
    %3385 = vmatpush.xpose.msra.mxu0 %v3353
    %3386 = vmatpush.xpose.msra.mxu0 %v3351
    %3387 = vmatpush.xpose.msra.mxu0 %v3349
    %3388 = vmatpush.xpose.msra.mxu0 %v3347
    %3389 = vmatpush.xpose.msra.mxu0 %v3345
    %3390 = vmatpush.xpose.msra.mxu0 %v3343
    %3391 = vmatmul.f32.gmra.mxu0 %v3338
    %v3392 = vpop.f32.mrf.mxu0
    %v3393 = vadd.f32 %v1652, %v3392
    %3394 = vmatmul.f32.gmra.mxu0 %v3341
    %v3395 = vpop.f32.mrf.mxu0
    %v3396 = vadd.f32 %v1653, %v3395
    %3397 = vdwg.mxu0
    %3414 = vrot.lane.b32.xlu0 %v836, 96
    %v3415 = vpop.permute.xlu0 %3414
    %3416 = vrot.lane.b32.xlu0 %v837, 96
    %v3417 = vpop.permute.xlu0 %3416
    %3418 = vrot.lane.b32.xlu0 %v838, 96
    %v3419 = vpop.permute.xlu0 %3418
    %3420 = vrot.lane.b32.xlu0 %v839, 96
    %v3421 = vpop.permute.xlu0 %3420
    %3422 = vrot.lane.b32.xlu0 %v840, 96
    %v3423 = vpop.permute.xlu0 %3422
    %3424 = vrot.lane.b32.xlu0 %v841, 96
    %v3425 = vpop.permute.xlu0 %3424
    %3426 = vrot.lane.b32.xlu0 %v842, 96
    %v3427 = vpop.permute.xlu0 %3426
    %3428 = vrot.lane.b32.xlu0 %v843, 96
    %v3429 = vpop.permute.xlu0 %3428
    %3430 = vrot.lane.b32.xlu0 %v844, 96
    %v3431 = vpop.permute.xlu0 %3430
    %3432 = vrot.lane.b32.xlu0 %v845, 96
    %v3433 = vpop.permute.xlu0 %3432
    %3434 = vrot.lane.b32.xlu0 %v846, 96
    %v3435 = vpop.permute.xlu0 %3434
    %3436 = vrot.lane.b32.xlu0 %v847, 96
    %v3437 = vpop.permute.xlu0 %3436
    %3438 = vrot.lane.b32.xlu0 %v848, 96
    %v3439 = vpop.permute.xlu0 %3438
    %3440 = vrot.lane.b32.xlu0 %v849, 96
    %v3441 = vpop.permute.xlu0 %3440
    %3442 = vrot.lane.b32.xlu0 %v850, 96
    %v3443 = vpop.permute.xlu0 %3442
    %3444 = vrot.lane.b32.xlu0 %v851, 96
    %v3445 = vpop.permute.xlu0 %3444
    %v3447 = vsel %vm98, %v405, 0
    %v3450 = vsel %vm98, %v408, 0
    %v3452 = vsel %vm98, %v3415, 0
    %v3454 = vsel %vm98, %v3417, 0
    %v3456 = vsel %vm98, %v3419, 0
    %v3458 = vsel %vm98, %v3421, 0
    %v3460 = vsel %vm98, %v3423, 0
    %v3462 = vsel %vm98, %v3425, 0
    %v3464 = vsel %vm98, %v3427, 0
    %v3466 = vsel %vm98, %v3429, 0
    %v3468 = vsel %vm98, %v3431, 0
    %v3470 = vsel %vm98, %v3433, 0
    %v3472 = vsel %vm98, %v3435, 0
    %v3474 = vsel %vm98, %v3437, 0
    %v3476 = vsel %vm98, %v3439, 0
    %v3478 = vsel %vm98, %v3441, 0
    %v3480 = vsel %vm98, %v3443, 0
    %v3482 = vsel %vm98, %v3445, 0
    %3484 = vmatpush.xpose.msra.mxu0 %v3482
    %3485 = vmatpush.xpose.msra.mxu0 %v3480
    %3486 = vmatpush.xpose.msra.mxu0 %v3478
    %3487 = vmatpush.xpose.msra.mxu0 %v3476
    %3488 = vmatpush.xpose.msra.mxu0 %v3474
    %3489 = vmatpush.xpose.msra.mxu0 %v3472
    %3490 = vmatpush.xpose.msra.mxu0 %v3470
    %3491 = vmatpush.xpose.msra.mxu0 %v3468
    %3492 = vmatpush.xpose.msra.mxu0 %v3466
    %3493 = vmatpush.xpose.msra.mxu0 %v3464
    %3494 = vmatpush.xpose.msra.mxu0 %v3462
    %3495 = vmatpush.xpose.msra.mxu0 %v3460
    %3496 = vmatpush.xpose.msra.mxu0 %v3458
    %3497 = vmatpush.xpose.msra.mxu0 %v3456
    %3498 = vmatpush.xpose.msra.mxu0 %v3454
    %3499 = vmatpush.xpose.msra.mxu0 %v3452
    %3500 = vmatmul.f32.gmra.mxu0 %v3447
    %v3501 = vpop.f32.mrf.mxu0
    %v3502 = vadd.f32 %v1652, %v3501
    %3503 = vmatmul.f32.gmra.mxu0 %v3450
    %v3504 = vpop.f32.mrf.mxu0
    %v3505 = vadd.f32 %v1653, %v3504
    %3506 = vdwg.mxu0
    %3523 = vrot.lane.b32.xlu0 %v852, 96
    %v3524 = vpop.permute.xlu0 %3523
    %3525 = vrot.lane.b32.xlu0 %v853, 96
    %v3526 = vpop.permute.xlu0 %3525
    %3527 = vrot.lane.b32.xlu0 %v854, 96
    %v3528 = vpop.permute.xlu0 %3527
    %3529 = vrot.lane.b32.xlu0 %v855, 96
    %v3530 = vpop.permute.xlu0 %3529
    %3531 = vrot.lane.b32.xlu0 %v856, 96
    %v3532 = vpop.permute.xlu0 %3531
    %3533 = vrot.lane.b32.xlu0 %v857, 96
    %v3534 = vpop.permute.xlu0 %3533
    %3535 = vrot.lane.b32.xlu0 %v858, 96
    %v3536 = vpop.permute.xlu0 %3535
    %3537 = vrot.lane.b32.xlu0 %v859, 96
    %v3538 = vpop.permute.xlu0 %3537
    %3539 = vrot.lane.b32.xlu0 %v860, 96
    %v3540 = vpop.permute.xlu0 %3539
    %3541 = vrot.lane.b32.xlu0 %v861, 96
    %v3542 = vpop.permute.xlu0 %3541
    %3543 = vrot.lane.b32.xlu0 %v862, 96
    %v3544 = vpop.permute.xlu0 %3543
    %3545 = vrot.lane.b32.xlu0 %v863, 96
    %v3546 = vpop.permute.xlu0 %3545
    %3547 = vrot.lane.b32.xlu0 %v864, 96
    %v3548 = vpop.permute.xlu0 %3547
    %3549 = vrot.lane.b32.xlu0 %v865, 96
    %v3550 = vpop.permute.xlu0 %3549
    %3551 = vrot.lane.b32.xlu0 %v866, 96
    %v3552 = vpop.permute.xlu0 %3551
    %3553 = vrot.lane.b32.xlu0 %v867, 96
    %v3554 = vpop.permute.xlu0 %3553
    %v3556 = vsel %vm98, %v411, 0
    %v3559 = vsel %vm98, %v414, 0
    %v3561 = vsel %vm98, %v3524, 0
    %v3563 = vsel %vm98, %v3526, 0
    %v3565 = vsel %vm98, %v3528, 0
    %v3567 = vsel %vm98, %v3530, 0
    %v3569 = vsel %vm98, %v3532, 0
    %v3571 = vsel %vm98, %v3534, 0
    %v3573 = vsel %vm98, %v3536, 0
    %v3575 = vsel %vm98, %v3538, 0
    %v3577 = vsel %vm98, %v3540, 0
    %v3579 = vsel %vm98, %v3542, 0
    %v3581 = vsel %vm98, %v3544, 0
    %v3583 = vsel %vm98, %v3546, 0
    %v3585 = vsel %vm98, %v3548, 0
    %v3587 = vsel %vm98, %v3550, 0
    %v3589 = vsel %vm98, %v3552, 0
    %v3591 = vsel %vm98, %v3554, 0
    %3593 = vmatpush.xpose.msra.mxu0 %v3591
    %3594 = vmatpush.xpose.msra.mxu0 %v3589
    %3595 = vmatpush.xpose.msra.mxu0 %v3587
    %3596 = vmatpush.xpose.msra.mxu0 %v3585
    %3597 = vmatpush.xpose.msra.mxu0 %v3583
    %3598 = vmatpush.xpose.msra.mxu0 %v3581
    %3599 = vmatpush.xpose.msra.mxu0 %v3579
    %3600 = vmatpush.xpose.msra.mxu0 %v3577
    %3601 = vmatpush.xpose.msra.mxu0 %v3575
    %3602 = vmatpush.xpose.msra.mxu0 %v3573
    %3603 = vmatpush.xpose.msra.mxu0 %v3571
    %3604 = vmatpush.xpose.msra.mxu0 %v3569
    %3605 = vmatpush.xpose.msra.mxu0 %v3567
    %3606 = vmatpush.xpose.msra.mxu0 %v3565
    %3607 = vmatpush.xpose.msra.mxu0 %v3563
    %3608 = vmatpush.xpose.msra.mxu0 %v3561
    %3609 = vmatmul.f32.gmra.mxu0 %v3556
    %v3610 = vpop.f32.mrf.mxu0
    %v3611 = vadd.f32 %v1652, %v3610
    %3612 = vmatmul.f32.gmra.mxu0 %v3559
    %v3613 = vpop.f32.mrf.mxu0
    %v3614 = vadd.f32 %v1653, %v3613
    %3615 = vdwg.mxu0
    %3632 = vrot.lane.b32.xlu0 %v868, 96
    %v3633 = vpop.permute.xlu0 %3632
    %3634 = vrot.lane.b32.xlu0 %v869, 96
    %v3635 = vpop.permute.xlu0 %3634
    %3636 = vrot.lane.b32.xlu0 %v870, 96
    %v3637 = vpop.permute.xlu0 %3636
    %3638 = vrot.lane.b32.xlu0 %v871, 96
    %v3639 = vpop.permute.xlu0 %3638
    %3640 = vrot.lane.b32.xlu0 %v872, 96
    %v3641 = vpop.permute.xlu0 %3640
    %3642 = vrot.lane.b32.xlu0 %v873, 96
    %v3643 = vpop.permute.xlu0 %3642
    %3644 = vrot.lane.b32.xlu0 %v874, 96
    %v3645 = vpop.permute.xlu0 %3644
    %3646 = vrot.lane.b32.xlu0 %v875, 96
    %v3647 = vpop.permute.xlu0 %3646
    %3648 = vrot.lane.b32.xlu0 %v876, 96
    %v3649 = vpop.permute.xlu0 %3648
    %3650 = vrot.lane.b32.xlu0 %v877, 96
    %v3651 = vpop.permute.xlu0 %3650
    %3652 = vrot.lane.b32.xlu0 %v878, 96
    %v3653 = vpop.permute.xlu0 %3652
    %3654 = vrot.lane.b32.xlu0 %v879, 96
    %v3655 = vpop.permute.xlu0 %3654
    %3656 = vrot.lane.b32.xlu0 %v880, 96
    %v3657 = vpop.permute.xlu0 %3656
    %3658 = vrot.lane.b32.xlu0 %v881, 96
    %v3659 = vpop.permute.xlu0 %3658
    %3660 = vrot.lane.b32.xlu0 %v882, 96
    %v3661 = vpop.permute.xlu0 %3660
    %3662 = vrot.lane.b32.xlu0 %v883, 96
    %v3663 = vpop.permute.xlu0 %3662
    %v3665 = vsel %vm98, %v417, 0
    %v3668 = vsel %vm98, %v420, 0
    %v3670 = vsel %vm98, %v3633, 0
    %v3672 = vsel %vm98, %v3635, 0
    %v3674 = vsel %vm98, %v3637, 0
    %v3676 = vsel %vm98, %v3639, 0
    %v3678 = vsel %vm98, %v3641, 0
    %v3680 = vsel %vm98, %v3643, 0
    %v3682 = vsel %vm98, %v3645, 0
    %v3684 = vsel %vm98, %v3647, 0
    %v3686 = vsel %vm98, %v3649, 0
    %v3688 = vsel %vm98, %v3651, 0
    %v3690 = vsel %vm98, %v3653, 0
    %v3692 = vsel %vm98, %v3655, 0
    %v3694 = vsel %vm98, %v3657, 0
    %v3696 = vsel %vm98, %v3659, 0
    %v3698 = vsel %vm98, %v3661, 0
    %v3700 = vsel %vm98, %v3663, 0
    %3702 = vmatpush.xpose.msra.mxu0 %v3700
    %3703 = vmatpush.xpose.msra.mxu0 %v3698
    %3704 = vmatpush.xpose.msra.mxu0 %v3696
    %3705 = vmatpush.xpose.msra.mxu0 %v3694
    %3706 = vmatpush.xpose.msra.mxu0 %v3692
    %3707 = vmatpush.xpose.msra.mxu0 %v3690
    %3708 = vmatpush.xpose.msra.mxu0 %v3688
    %3709 = vmatpush.xpose.msra.mxu0 %v3686
    %3710 = vmatpush.xpose.msra.mxu0 %v3684
    %3711 = vmatpush.xpose.msra.mxu0 %v3682
    %3712 = vmatpush.xpose.msra.mxu0 %v3680
    %3713 = vmatpush.xpose.msra.mxu0 %v3678
    %3714 = vmatpush.xpose.msra.mxu0 %v3676
    %3715 = vmatpush.xpose.msra.mxu0 %v3674
    %3716 = vmatpush.xpose.msra.mxu0 %v3672
    %3717 = vmatpush.xpose.msra.mxu0 %v3670
    %3718 = vmatmul.f32.gmra.mxu0 %v3665
    %v3719 = vpop.f32.mrf.mxu0
    %v3720 = vadd.f32 %v1652, %v3719
    %3721 = vmatmul.f32.gmra.mxu0 %v3668
    %v3722 = vpop.f32.mrf.mxu0
    %v3723 = vadd.f32 %v1653, %v3722
    %3724 = vdwg.mxu0
    %3741 = vrot.lane.b32.xlu0 %v884, 96
    %v3742 = vpop.permute.xlu0 %3741
    %3743 = vrot.lane.b32.xlu0 %v885, 96
    %v3744 = vpop.permute.xlu0 %3743
    %3745 = vrot.lane.b32.xlu0 %v886, 96
    %v3746 = vpop.permute.xlu0 %3745
    %3747 = vrot.lane.b32.xlu0 %v887, 96
    %v3748 = vpop.permute.xlu0 %3747
    %3749 = vrot.lane.b32.xlu0 %v888, 96
    %v3750 = vpop.permute.xlu0 %3749
    %3751 = vrot.lane.b32.xlu0 %v889, 96
    %v3752 = vpop.permute.xlu0 %3751
    %3753 = vrot.lane.b32.xlu0 %v890, 96
    %v3754 = vpop.permute.xlu0 %3753
    %3755 = vrot.lane.b32.xlu0 %v891, 96
    %v3756 = vpop.permute.xlu0 %3755
    %3757 = vrot.lane.b32.xlu0 %v892, 96
    %v3758 = vpop.permute.xlu0 %3757
    %3759 = vrot.lane.b32.xlu0 %v893, 96
    %v3760 = vpop.permute.xlu0 %3759
    %3761 = vrot.lane.b32.xlu0 %v894, 96
    %v3762 = vpop.permute.xlu0 %3761
    %3763 = vrot.lane.b32.xlu0 %v895, 96
    %v3764 = vpop.permute.xlu0 %3763
    %3765 = vrot.lane.b32.xlu0 %v896, 96
    %v3766 = vpop.permute.xlu0 %3765
    %3767 = vrot.lane.b32.xlu0 %v897, 96
    %v3768 = vpop.permute.xlu0 %3767
    %3769 = vrot.lane.b32.xlu0 %v898, 96
    %v3770 = vpop.permute.xlu0 %3769
    %3771 = vrot.lane.b32.xlu0 %v899, 96
    %v3772 = vpop.permute.xlu0 %3771
    %v3774 = vsel %vm98, %v423, 0
    %v3777 = vsel %vm98, %v426, 0
    %v3779 = vsel %vm98, %v3742, 0
    %v3781 = vsel %vm98, %v3744, 0
    %v3783 = vsel %vm98, %v3746, 0
    %v3785 = vsel %vm98, %v3748, 0
    %v3787 = vsel %vm98, %v3750, 0
    %v3789 = vsel %vm98, %v3752, 0
    %v3791 = vsel %vm98, %v3754, 0
    %v3793 = vsel %vm98, %v3756, 0
    %v3795 = vsel %vm98, %v3758, 0
    %v3797 = vsel %vm98, %v3760, 0
    %v3799 = vsel %vm98, %v3762, 0
    %v3801 = vsel %vm98, %v3764, 0
    %v3803 = vsel %vm98, %v3766, 0
    %v3805 = vsel %vm98, %v3768, 0
    %v3807 = vsel %vm98, %v3770, 0
    %v3809 = vsel %vm98, %v3772, 0
    %3811 = vmatpush.xpose.msra.mxu0 %v3809
    %3812 = vmatpush.xpose.msra.mxu0 %v3807
    %3813 = vmatpush.xpose.msra.mxu0 %v3805
    %3814 = vmatpush.xpose.msra.mxu0 %v3803
    %3815 = vmatpush.xpose.msra.mxu0 %v3801
    %3816 = vmatpush.xpose.msra.mxu0 %v3799
    %3817 = vmatpush.xpose.msra.mxu0 %v3797
    %3818 = vmatpush.xpose.msra.mxu0 %v3795
    %3819 = vmatpush.xpose.msra.mxu0 %v3793
    %3820 = vmatpush.xpose.msra.mxu0 %v3791
    %3821 = vmatpush.xpose.msra.mxu0 %v3789
    %3822 = vmatpush.xpose.msra.mxu0 %v3787
    %3823 = vmatpush.xpose.msra.mxu0 %v3785
    %3824 = vmatpush.xpose.msra.mxu0 %v3783
    %3825 = vmatpush.xpose.msra.mxu0 %v3781
    %3826 = vmatpush.xpose.msra.mxu0 %v3779
    %3827 = vmatmul.f32.gmra.mxu0 %v3774
    %v3828 = vpop.f32.mrf.mxu0
    %v3829 = vadd.f32 %v1652, %v3828
    %3830 = vmatmul.f32.gmra.mxu0 %v3777
    %v3831 = vpop.f32.mrf.mxu0
    %v3832 = vadd.f32 %v1653, %v3831
    %3833 = vdwg.mxu0
    %3850 = vrot.lane.b32.xlu0 %v900, 96
    %v3851 = vpop.permute.xlu0 %3850
    %3852 = vrot.lane.b32.xlu0 %v901, 96
    %v3853 = vpop.permute.xlu0 %3852
    %3854 = vrot.lane.b32.xlu0 %v902, 96
    %v3855 = vpop.permute.xlu0 %3854
    %3856 = vrot.lane.b32.xlu0 %v903, 96
    %v3857 = vpop.permute.xlu0 %3856
    %3858 = vrot.lane.b32.xlu0 %v904, 96
    %v3859 = vpop.permute.xlu0 %3858
    %3860 = vrot.lane.b32.xlu0 %v905, 96
    %v3861 = vpop.permute.xlu0 %3860
    %3862 = vrot.lane.b32.xlu0 %v906, 96
    %v3863 = vpop.permute.xlu0 %3862
    %3864 = vrot.lane.b32.xlu0 %v907, 96
    %v3865 = vpop.permute.xlu0 %3864
    %3866 = vrot.lane.b32.xlu0 %v908, 96
    %v3867 = vpop.permute.xlu0 %3866
    %3868 = vrot.lane.b32.xlu0 %v909, 96
    %v3869 = vpop.permute.xlu0 %3868
    %3870 = vrot.lane.b32.xlu0 %v910, 96
    %v3871 = vpop.permute.xlu0 %3870
    %3872 = vrot.lane.b32.xlu0 %v911, 96
    %v3873 = vpop.permute.xlu0 %3872
    %3874 = vrot.lane.b32.xlu0 %v912, 96
    %v3875 = vpop.permute.xlu0 %3874
    %3876 = vrot.lane.b32.xlu0 %v913, 96
    %v3877 = vpop.permute.xlu0 %3876
    %3878 = vrot.lane.b32.xlu0 %v914, 96
    %v3879 = vpop.permute.xlu0 %3878
    %3880 = vrot.lane.b32.xlu0 %v915, 96
    %v3881 = vpop.permute.xlu0 %3880
    %v3883 = vsel %vm98, %v429, 0
    %v3886 = vsel %vm98, %v432, 0
    %v3888 = vsel %vm98, %v3851, 0
    %v3890 = vsel %vm98, %v3853, 0
    %v3892 = vsel %vm98, %v3855, 0
    %v3894 = vsel %vm98, %v3857, 0
    %v3896 = vsel %vm98, %v3859, 0
    %v3898 = vsel %vm98, %v3861, 0
    %v3900 = vsel %vm98, %v3863, 0
    %v3902 = vsel %vm98, %v3865, 0
    %v3904 = vsel %vm98, %v3867, 0
    %v3906 = vsel %vm98, %v3869, 0
    %v3908 = vsel %vm98, %v3871, 0
    %v3910 = vsel %vm98, %v3873, 0
    %v3912 = vsel %vm98, %v3875, 0
    %v3914 = vsel %vm98, %v3877, 0
    %v3916 = vsel %vm98, %v3879, 0
    %v3918 = vsel %vm98, %v3881, 0
    %3920 = vmatpush.xpose.msra.mxu0 %v3918
    %3921 = vmatpush.xpose.msra.mxu0 %v3916
    %3922 = vmatpush.xpose.msra.mxu0 %v3914
    %3923 = vmatpush.xpose.msra.mxu0 %v3912
    %3924 = vmatpush.xpose.msra.mxu0 %v3910
    %3925 = vmatpush.xpose.msra.mxu0 %v3908
    %3926 = vmatpush.xpose.msra.mxu0 %v3906
    %3927 = vmatpush.xpose.msra.mxu0 %v3904
    %3928 = vmatpush.xpose.msra.mxu0 %v3902
    %3929 = vmatpush.xpose.msra.mxu0 %v3900
    %3930 = vmatpush.xpose.msra.mxu0 %v3898
    %3931 = vmatpush.xpose.msra.mxu0 %v3896
    %3932 = vmatpush.xpose.msra.mxu0 %v3894
    %3933 = vmatpush.xpose.msra.mxu0 %v3892
    %3934 = vmatpush.xpose.msra.mxu0 %v3890
    %3935 = vmatpush.xpose.msra.mxu0 %v3888
    %3936 = vmatmul.f32.gmra.mxu0 %v3883
    %v3937 = vpop.f32.mrf.mxu0
    %v3938 = vadd.f32 %v1652, %v3937
    %3939 = vmatmul.f32.gmra.mxu0 %v3886
    %v3940 = vpop.f32.mrf.mxu0
    %v3941 = vadd.f32 %v1653, %v3940
    %3942 = vdwg.mxu0
    %3959 = vrot.lane.b32.xlu0 %v916, 96
    %v3960 = vpop.permute.xlu0 %3959
    %3961 = vrot.lane.b32.xlu0 %v917, 96
    %v3962 = vpop.permute.xlu0 %3961
    %3963 = vrot.lane.b32.xlu0 %v918, 96
    %v3964 = vpop.permute.xlu0 %3963
    %3965 = vrot.lane.b32.xlu0 %v919, 96
    %v3966 = vpop.permute.xlu0 %3965
    %3967 = vrot.lane.b32.xlu0 %v920, 96
    %v3968 = vpop.permute.xlu0 %3967
    %3969 = vrot.lane.b32.xlu0 %v921, 96
    %v3970 = vpop.permute.xlu0 %3969
    %3971 = vrot.lane.b32.xlu0 %v922, 96
    %v3972 = vpop.permute.xlu0 %3971
    %3973 = vrot.lane.b32.xlu0 %v923, 96
    %v3974 = vpop.permute.xlu0 %3973
    %3975 = vrot.lane.b32.xlu0 %v924, 96
    %v3976 = vpop.permute.xlu0 %3975
    %3977 = vrot.lane.b32.xlu0 %v925, 96
    %v3978 = vpop.permute.xlu0 %3977
    %3979 = vrot.lane.b32.xlu0 %v926, 96
    %v3980 = vpop.permute.xlu0 %3979
    %3981 = vrot.lane.b32.xlu0 %v927, 96
    %v3982 = vpop.permute.xlu0 %3981
    %3983 = vrot.lane.b32.xlu0 %v928, 96
    %v3984 = vpop.permute.xlu0 %3983
    %3985 = vrot.lane.b32.xlu0 %v929, 96
    %v3986 = vpop.permute.xlu0 %3985
    %3987 = vrot.lane.b32.xlu0 %v930, 96
    %v3988 = vpop.permute.xlu0 %3987
    %3989 = vrot.lane.b32.xlu0 %v931, 96
    %v3990 = vpop.permute.xlu0 %3989
    %v3992 = vsel %vm98, %v435, 0
    %v3995 = vsel %vm98, %v438, 0
    %v3997 = vsel %vm98, %v3960, 0
    %v3999 = vsel %vm98, %v3962, 0
    %v4001 = vsel %vm98, %v3964, 0
    %v4003 = vsel %vm98, %v3966, 0
    %v4005 = vsel %vm98, %v3968, 0
    %v4007 = vsel %vm98, %v3970, 0
    %v4009 = vsel %vm98, %v3972, 0
    %v4011 = vsel %vm98, %v3974, 0
    %v4013 = vsel %vm98, %v3976, 0
    %v4015 = vsel %vm98, %v3978, 0
    %v4017 = vsel %vm98, %v3980, 0
    %v4019 = vsel %vm98, %v3982, 0
    %v4021 = vsel %vm98, %v3984, 0
    %v4023 = vsel %vm98, %v3986, 0
    %v4025 = vsel %vm98, %v3988, 0
    %v4027 = vsel %vm98, %v3990, 0
    %4029 = vmatpush.xpose.msra.mxu0 %v4027
    %4030 = vmatpush.xpose.msra.mxu0 %v4025
    %4031 = vmatpush.xpose.msra.mxu0 %v4023
    %4032 = vmatpush.xpose.msra.mxu0 %v4021
    %4033 = vmatpush.xpose.msra.mxu0 %v4019
    %4034 = vmatpush.xpose.msra.mxu0 %v4017
    %4035 = vmatpush.xpose.msra.mxu0 %v4015
    %4036 = vmatpush.xpose.msra.mxu0 %v4013
    %4037 = vmatpush.xpose.msra.mxu0 %v4011
    %4038 = vmatpush.xpose.msra.mxu0 %v4009
    %4039 = vmatpush.xpose.msra.mxu0 %v4007
    %4040 = vmatpush.xpose.msra.mxu0 %v4005
    %4041 = vmatpush.xpose.msra.mxu0 %v4003
    %4042 = vmatpush.xpose.msra.mxu0 %v4001
    %4043 = vmatpush.xpose.msra.mxu0 %v3999
    %4044 = vmatpush.xpose.msra.mxu0 %v3997
    %4045 = vmatmul.f32.gmra.mxu0 %v3992
    %v4046 = vpop.f32.mrf.mxu0
    %v4047 = vadd.f32 %v1652, %v4046
    %4048 = vmatmul.f32.gmra.mxu0 %v3995
    %v4049 = vpop.f32.mrf.mxu0
    %v4050 = vadd.f32 %v1653, %v4049
    %4051 = vdwg.mxu0
    %4068 = vrot.lane.b32.xlu0 %v932, 96
    %v4069 = vpop.permute.xlu0 %4068
    %4070 = vrot.lane.b32.xlu0 %v933, 96
    %v4071 = vpop.permute.xlu0 %4070
    %4072 = vrot.lane.b32.xlu0 %v934, 96
    %v4073 = vpop.permute.xlu0 %4072
    %4074 = vrot.lane.b32.xlu0 %v935, 96
    %v4075 = vpop.permute.xlu0 %4074
    %4076 = vrot.lane.b32.xlu0 %v936, 96
    %v4077 = vpop.permute.xlu0 %4076
    %4078 = vrot.lane.b32.xlu0 %v937, 96
    %v4079 = vpop.permute.xlu0 %4078
    %4080 = vrot.lane.b32.xlu0 %v938, 96
    %v4081 = vpop.permute.xlu0 %4080
    %4082 = vrot.lane.b32.xlu0 %v939, 96
    %v4083 = vpop.permute.xlu0 %4082
    %4084 = vrot.lane.b32.xlu0 %v940, 96
    %v4085 = vpop.permute.xlu0 %4084
    %4086 = vrot.lane.b32.xlu0 %v941, 96
    %v4087 = vpop.permute.xlu0 %4086
    %4088 = vrot.lane.b32.xlu0 %v942, 96
    %v4089 = vpop.permute.xlu0 %4088
    %4090 = vrot.lane.b32.xlu0 %v943, 96
    %v4091 = vpop.permute.xlu0 %4090
    %4092 = vrot.lane.b32.xlu0 %v944, 96
    %v4093 = vpop.permute.xlu0 %4092
    %4094 = vrot.lane.b32.xlu0 %v945, 96
    %v4095 = vpop.permute.xlu0 %4094
    %4096 = vrot.lane.b32.xlu0 %v946, 96
    %v4097 = vpop.permute.xlu0 %4096
    %4098 = vrot.lane.b32.xlu0 %v947, 96
    %v4099 = vpop.permute.xlu0 %4098
    %v4101 = vsel %vm98, %v441, 0
    %v4104 = vsel %vm98, %v444, 0
    %v4106 = vsel %vm98, %v4069, 0
    %v4108 = vsel %vm98, %v4071, 0
    %v4110 = vsel %vm98, %v4073, 0
    %v4112 = vsel %vm98, %v4075, 0
    %v4114 = vsel %vm98, %v4077, 0
    %v4116 = vsel %vm98, %v4079, 0
    %v4118 = vsel %vm98, %v4081, 0
    %v4120 = vsel %vm98, %v4083, 0
    %v4122 = vsel %vm98, %v4085, 0
    %v4124 = vsel %vm98, %v4087, 0
    %v4126 = vsel %vm98, %v4089, 0
    %v4128 = vsel %vm98, %v4091, 0
    %v4130 = vsel %vm98, %v4093, 0
    %v4132 = vsel %vm98, %v4095, 0
    %v4134 = vsel %vm98, %v4097, 0
    %v4136 = vsel %vm98, %v4099, 0
    %4138 = vmatpush.xpose.msra.mxu0 %v4136
    %4139 = vmatpush.xpose.msra.mxu0 %v4134
    %4140 = vmatpush.xpose.msra.mxu0 %v4132
    %4141 = vmatpush.xpose.msra.mxu0 %v4130
    %4142 = vmatpush.xpose.msra.mxu0 %v4128
    %4143 = vmatpush.xpose.msra.mxu0 %v4126
    %4144 = vmatpush.xpose.msra.mxu0 %v4124
    %4145 = vmatpush.xpose.msra.mxu0 %v4122
    %4146 = vmatpush.xpose.msra.mxu0 %v4120
    %4147 = vmatpush.xpose.msra.mxu0 %v4118
    %4148 = vmatpush.xpose.msra.mxu0 %v4116
    %4149 = vmatpush.xpose.msra.mxu0 %v4114
    %4150 = vmatpush.xpose.msra.mxu0 %v4112
    %4151 = vmatpush.xpose.msra.mxu0 %v4110
    %4152 = vmatpush.xpose.msra.mxu0 %v4108
    %4153 = vmatpush.xpose.msra.mxu0 %v4106
    %4154 = vmatmul.f32.gmra.mxu0 %v4101
    %v4155 = vpop.f32.mrf.mxu0
    %v4156 = vadd.f32 %v1652, %v4155
    %4157 = vmatmul.f32.gmra.mxu0 %v4104
    %v4158 = vpop.f32.mrf.mxu0
    %v4159 = vadd.f32 %v1653, %v4158
    %4160 = vdwg.mxu0
    %4177 = vrot.lane.b32.xlu0 %v948, 96
    %v4178 = vpop.permute.xlu0 %4177
    %4179 = vrot.lane.b32.xlu0 %v949, 96
    %v4180 = vpop.permute.xlu0 %4179
    %4181 = vrot.lane.b32.xlu0 %v950, 96
    %v4182 = vpop.permute.xlu0 %4181
    %4183 = vrot.lane.b32.xlu0 %v951, 96
    %v4184 = vpop.permute.xlu0 %4183
    %4185 = vrot.lane.b32.xlu0 %v952, 96
    %v4186 = vpop.permute.xlu0 %4185
    %4187 = vrot.lane.b32.xlu0 %v953, 96
    %v4188 = vpop.permute.xlu0 %4187
    %4189 = vrot.lane.b32.xlu0 %v954, 96
    %v4190 = vpop.permute.xlu0 %4189
    %4191 = vrot.lane.b32.xlu0 %v955, 96
    %v4192 = vpop.permute.xlu0 %4191
    %4193 = vrot.lane.b32.xlu0 %v956, 96
    %v4194 = vpop.permute.xlu0 %4193
    %4195 = vrot.lane.b32.xlu0 %v957, 96
    %v4196 = vpop.permute.xlu0 %4195
    %4197 = vrot.lane.b32.xlu0 %v958, 96
    %v4198 = vpop.permute.xlu0 %4197
    %4199 = vrot.lane.b32.xlu0 %v959, 96
    %v4200 = vpop.permute.xlu0 %4199
    %4201 = vrot.lane.b32.xlu0 %v960, 96
    %v4202 = vpop.permute.xlu0 %4201
    %4203 = vrot.lane.b32.xlu0 %v961, 96
    %v4204 = vpop.permute.xlu0 %4203
    %4205 = vrot.lane.b32.xlu0 %v962, 96
    %v4206 = vpop.permute.xlu0 %4205
    %4207 = vrot.lane.b32.xlu0 %v963, 96
    %v4208 = vpop.permute.xlu0 %4207
    %v4210 = vsel %vm98, %v447, 0
    %v4213 = vsel %vm98, %v450, 0
    %v4215 = vsel %vm98, %v4178, 0
    %v4217 = vsel %vm98, %v4180, 0
    %v4219 = vsel %vm98, %v4182, 0
    %v4221 = vsel %vm98, %v4184, 0
    %v4223 = vsel %vm98, %v4186, 0
    %v4225 = vsel %vm98, %v4188, 0
    %v4227 = vsel %vm98, %v4190, 0
    %v4229 = vsel %vm98, %v4192, 0
    %v4231 = vsel %vm98, %v4194, 0
    %v4233 = vsel %vm98, %v4196, 0
    %v4235 = vsel %vm98, %v4198, 0
    %v4237 = vsel %vm98, %v4200, 0
    %v4239 = vsel %vm98, %v4202, 0
    %v4241 = vsel %vm98, %v4204, 0
    %v4243 = vsel %vm98, %v4206, 0
    %v4245 = vsel %vm98, %v4208, 0
    %4247 = vmatpush.xpose.msra.mxu0 %v4245
    %4248 = vmatpush.xpose.msra.mxu0 %v4243
    %4249 = vmatpush.xpose.msra.mxu0 %v4241
    %4250 = vmatpush.xpose.msra.mxu0 %v4239
    %4251 = vmatpush.xpose.msra.mxu0 %v4237
    %4252 = vmatpush.xpose.msra.mxu0 %v4235
    %4253 = vmatpush.xpose.msra.mxu0 %v4233
    %4254 = vmatpush.xpose.msra.mxu0 %v4231
    %4255 = vmatpush.xpose.msra.mxu0 %v4229
    %4256 = vmatpush.xpose.msra.mxu0 %v4227
    %4257 = vmatpush.xpose.msra.mxu0 %v4225
    %4258 = vmatpush.xpose.msra.mxu0 %v4223
    %4259 = vmatpush.xpose.msra.mxu0 %v4221
    %4260 = vmatpush.xpose.msra.mxu0 %v4219
    %4261 = vmatpush.xpose.msra.mxu0 %v4217
    %4262 = vmatpush.xpose.msra.mxu0 %v4215
    %4263 = vmatmul.f32.gmra.mxu0 %v4210
    %v4264 = vpop.f32.mrf.mxu0
    %v4265 = vadd.f32 %v1652, %v4264
    %4266 = vmatmul.f32.gmra.mxu0 %v4213
    %v4267 = vpop.f32.mrf.mxu0
    %v4268 = vadd.f32 %v1653, %v4267
    %4269 = vdwg.mxu0
    %4286 = vrot.lane.b32.xlu0 %v964, 96
    %v4287 = vpop.permute.xlu0 %4286
    %4288 = vrot.lane.b32.xlu0 %v965, 96
    %v4289 = vpop.permute.xlu0 %4288
    %4290 = vrot.lane.b32.xlu0 %v966, 96
    %v4291 = vpop.permute.xlu0 %4290
    %4292 = vrot.lane.b32.xlu0 %v967, 96
    %v4293 = vpop.permute.xlu0 %4292
    %4294 = vrot.lane.b32.xlu0 %v968, 96
    %v4295 = vpop.permute.xlu0 %4294
    %4296 = vrot.lane.b32.xlu0 %v969, 96
    %v4297 = vpop.permute.xlu0 %4296
    %4298 = vrot.lane.b32.xlu0 %v970, 96
    %v4299 = vpop.permute.xlu0 %4298
    %4300 = vrot.lane.b32.xlu0 %v971, 96
    %v4301 = vpop.permute.xlu0 %4300
    %4302 = vrot.lane.b32.xlu0 %v972, 96
    %v4303 = vpop.permute.xlu0 %4302
    %4304 = vrot.lane.b32.xlu0 %v973, 96
    %v4305 = vpop.permute.xlu0 %4304
    %4306 = vrot.lane.b32.xlu0 %v974, 96
    %v4307 = vpop.permute.xlu0 %4306
    %4308 = vrot.lane.b32.xlu0 %v975, 96
    %v4309 = vpop.permute.xlu0 %4308
    %4310 = vrot.lane.b32.xlu0 %v976, 96
    %v4311 = vpop.permute.xlu0 %4310
    %4312 = vrot.lane.b32.xlu0 %v977, 96
    %v4313 = vpop.permute.xlu0 %4312
    %4314 = vrot.lane.b32.xlu0 %v978, 96
    %v4315 = vpop.permute.xlu0 %4314
    %4316 = vrot.lane.b32.xlu0 %v979, 96
    %v4317 = vpop.permute.xlu0 %4316
    %v4319 = vsel %vm98, %v453, 0
    %v4322 = vsel %vm98, %v456, 0
    %v4324 = vsel %vm98, %v4287, 0
    %v4326 = vsel %vm98, %v4289, 0
    %v4328 = vsel %vm98, %v4291, 0
    %v4330 = vsel %vm98, %v4293, 0
    %v4332 = vsel %vm98, %v4295, 0
    %v4334 = vsel %vm98, %v4297, 0
    %v4336 = vsel %vm98, %v4299, 0
    %v4338 = vsel %vm98, %v4301, 0
    %v4340 = vsel %vm98, %v4303, 0
    %v4342 = vsel %vm98, %v4305, 0
    %v4344 = vsel %vm98, %v4307, 0
    %v4346 = vsel %vm98, %v4309, 0
    %v4348 = vsel %vm98, %v4311, 0
    %v4350 = vsel %vm98, %v4313, 0
    %v4352 = vsel %vm98, %v4315, 0
    %v4354 = vsel %vm98, %v4317, 0
    %4356 = vmatpush.xpose.msra.mxu0 %v4354
    %4357 = vmatpush.xpose.msra.mxu0 %v4352
    %4358 = vmatpush.xpose.msra.mxu0 %v4350
    %4359 = vmatpush.xpose.msra.mxu0 %v4348
    %4360 = vmatpush.xpose.msra.mxu0 %v4346
    %4361 = vmatpush.xpose.msra.mxu0 %v4344
    %4362 = vmatpush.xpose.msra.mxu0 %v4342
    %4363 = vmatpush.xpose.msra.mxu0 %v4340
    %4364 = vmatpush.xpose.msra.mxu0 %v4338
    %4365 = vmatpush.xpose.msra.mxu0 %v4336
    %4366 = vmatpush.xpose.msra.mxu0 %v4334
    %4367 = vmatpush.xpose.msra.mxu0 %v4332
    %4368 = vmatpush.xpose.msra.mxu0 %v4330
    %4369 = vmatpush.xpose.msra.mxu0 %v4328
    %4370 = vmatpush.xpose.msra.mxu0 %v4326
    %4371 = vmatpush.xpose.msra.mxu0 %v4324
    %4372 = vmatmul.f32.gmra.mxu0 %v4319
    %v4373 = vpop.f32.mrf.mxu0
    %v4374 = vadd.f32 %v1652, %v4373
    %4375 = vmatmul.f32.gmra.mxu0 %v4322
    %v4376 = vpop.f32.mrf.mxu0
    %v4377 = vadd.f32 %v1653, %v4376
    %4378 = vdwg.mxu0
    %4395 = vrot.lane.b32.xlu0 %v980, 96
    %v4396 = vpop.permute.xlu0 %4395
    %4397 = vrot.lane.b32.xlu0 %v981, 96
    %v4398 = vpop.permute.xlu0 %4397
    %4399 = vrot.lane.b32.xlu0 %v982, 96
    %v4400 = vpop.permute.xlu0 %4399
    %4401 = vrot.lane.b32.xlu0 %v983, 96
    %v4402 = vpop.permute.xlu0 %4401
    %4403 = vrot.lane.b32.xlu0 %v984, 96
    %v4404 = vpop.permute.xlu0 %4403
    %4405 = vrot.lane.b32.xlu0 %v985, 96
    %v4406 = vpop.permute.xlu0 %4405
    %4407 = vrot.lane.b32.xlu0 %v986, 96
    %v4408 = vpop.permute.xlu0 %4407
    %4409 = vrot.lane.b32.xlu0 %v987, 96
    %v4410 = vpop.permute.xlu0 %4409
    %4411 = vrot.lane.b32.xlu0 %v988, 96
    %v4412 = vpop.permute.xlu0 %4411
    %4413 = vrot.lane.b32.xlu0 %v989, 96
    %v4414 = vpop.permute.xlu0 %4413
    %4415 = vrot.lane.b32.xlu0 %v990, 96
    %v4416 = vpop.permute.xlu0 %4415
    %4417 = vrot.lane.b32.xlu0 %v991, 96
    %v4418 = vpop.permute.xlu0 %4417
    %4419 = vrot.lane.b32.xlu0 %v992, 96
    %v4420 = vpop.permute.xlu0 %4419
    %4421 = vrot.lane.b32.xlu0 %v993, 96
    %v4422 = vpop.permute.xlu0 %4421
    %4423 = vrot.lane.b32.xlu0 %v994, 96
    %v4424 = vpop.permute.xlu0 %4423
    %4425 = vrot.lane.b32.xlu0 %v995, 96
    %v4426 = vpop.permute.xlu0 %4425
    %v4428 = vsel %vm98, %v459, 0
    %v4431 = vsel %vm98, %v462, 0
    %v4433 = vsel %vm98, %v4396, 0
    %v4435 = vsel %vm98, %v4398, 0
    %v4437 = vsel %vm98, %v4400, 0
    %v4439 = vsel %vm98, %v4402, 0
    %v4441 = vsel %vm98, %v4404, 0
    %v4443 = vsel %vm98, %v4406, 0
    %v4445 = vsel %vm98, %v4408, 0
    %v4447 = vsel %vm98, %v4410, 0
    %v4449 = vsel %vm98, %v4412, 0
    %v4451 = vsel %vm98, %v4414, 0
    %v4453 = vsel %vm98, %v4416, 0
    %v4455 = vsel %vm98, %v4418, 0
    %v4457 = vsel %vm98, %v4420, 0
    %v4459 = vsel %vm98, %v4422, 0
    %v4461 = vsel %vm98, %v4424, 0
    %v4463 = vsel %vm98, %v4426, 0
    %4465 = vmatpush.xpose.msra.mxu0 %v4463
    %4466 = vmatpush.xpose.msra.mxu0 %v4461
    %4467 = vmatpush.xpose.msra.mxu0 %v4459
    %4468 = vmatpush.xpose.msra.mxu0 %v4457
    %4469 = vmatpush.xpose.msra.mxu0 %v4455
    %4470 = vmatpush.xpose.msra.mxu0 %v4453
    %4471 = vmatpush.xpose.msra.mxu0 %v4451
    %4472 = vmatpush.xpose.msra.mxu0 %v4449
    %4473 = vmatpush.xpose.msra.mxu0 %v4447
    %4474 = vmatpush.xpose.msra.mxu0 %v4445
    %4475 = vmatpush.xpose.msra.mxu0 %v4443
    %4476 = vmatpush.xpose.msra.mxu0 %v4441
    %4477 = vmatpush.xpose.msra.mxu0 %v4439
    %4478 = vmatpush.xpose.msra.mxu0 %v4437
    %4479 = vmatpush.xpose.msra.mxu0 %v4435
    %4480 = vmatpush.xpose.msra.mxu0 %v4433
    %4481 = vmatmul.f32.gmra.mxu0 %v4428
    %v4482 = vpop.f32.mrf.mxu0
    %v4483 = vadd.f32 %v1652, %v4482
    %4484 = vmatmul.f32.gmra.mxu0 %v4431
    %v4485 = vpop.f32.mrf.mxu0
    %v4486 = vadd.f32 %v1653, %v4485
    %4487 = vdwg.mxu0
    %4504 = vrot.lane.b32.xlu0 %v996, 96
    %v4505 = vpop.permute.xlu0 %4504
    %4506 = vrot.lane.b32.xlu0 %v997, 96
    %v4507 = vpop.permute.xlu0 %4506
    %4508 = vrot.lane.b32.xlu0 %v998, 96
    %v4509 = vpop.permute.xlu0 %4508
    %4510 = vrot.lane.b32.xlu0 %v999, 96
    %v4511 = vpop.permute.xlu0 %4510
    %4512 = vrot.lane.b32.xlu0 %v1000, 96
    %v4513 = vpop.permute.xlu0 %4512
    %4514 = vrot.lane.b32.xlu0 %v1001, 96
    %v4515 = vpop.permute.xlu0 %4514
    %4516 = vrot.lane.b32.xlu0 %v1002, 96
    %v4517 = vpop.permute.xlu0 %4516
    %4518 = vrot.lane.b32.xlu0 %v1003, 96
    %v4519 = vpop.permute.xlu0 %4518
    %4520 = vrot.lane.b32.xlu0 %v1004, 96
    %v4521 = vpop.permute.xlu0 %4520
    %4522 = vrot.lane.b32.xlu0 %v1005, 96
    %v4523 = vpop.permute.xlu0 %4522
    %4524 = vrot.lane.b32.xlu0 %v1006, 96
    %v4525 = vpop.permute.xlu0 %4524
    %4526 = vrot.lane.b32.xlu0 %v1007, 96
    %v4527 = vpop.permute.xlu0 %4526
    %4528 = vrot.lane.b32.xlu0 %v1008, 96
    %v4529 = vpop.permute.xlu0 %4528
    %4530 = vrot.lane.b32.xlu0 %v1009, 96
    %v4531 = vpop.permute.xlu0 %4530
    %4532 = vrot.lane.b32.xlu0 %v1010, 96
    %v4533 = vpop.permute.xlu0 %4532
    %4534 = vrot.lane.b32.xlu0 %v1011, 96
    %v4535 = vpop.permute.xlu0 %4534
    %v4537 = vsel %vm98, %v465, 0
    %v4540 = vsel %vm98, %v468, 0
    %v4542 = vsel %vm98, %v4505, 0
    %v4544 = vsel %vm98, %v4507, 0
    %v4546 = vsel %vm98, %v4509, 0
    %v4548 = vsel %vm98, %v4511, 0
    %v4550 = vsel %vm98, %v4513, 0
    %v4552 = vsel %vm98, %v4515, 0
    %v4554 = vsel %vm98, %v4517, 0
    %v4556 = vsel %vm98, %v4519, 0
    %v4558 = vsel %vm98, %v4521, 0
    %v4560 = vsel %vm98, %v4523, 0
    %v4562 = vsel %vm98, %v4525, 0
    %v4564 = vsel %vm98, %v4527, 0
    %v4566 = vsel %vm98, %v4529, 0
    %v4568 = vsel %vm98, %v4531, 0
    %v4570 = vsel %vm98, %v4533, 0
    %v4572 = vsel %vm98, %v4535, 0
    %4574 = vmatpush.xpose.msra.mxu0 %v4572
    %4575 = vmatpush.xpose.msra.mxu0 %v4570
    %4576 = vmatpush.xpose.msra.mxu0 %v4568
    %4577 = vmatpush.xpose.msra.mxu0 %v4566
    %4578 = vmatpush.xpose.msra.mxu0 %v4564
    %4579 = vmatpush.xpose.msra.mxu0 %v4562
    %4580 = vmatpush.xpose.msra.mxu0 %v4560
    %4581 = vmatpush.xpose.msra.mxu0 %v4558
    %4582 = vmatpush.xpose.msra.mxu0 %v4556
    %4583 = vmatpush.xpose.msra.mxu0 %v4554
    %4584 = vmatpush.xpose.msra.mxu0 %v4552
    %4585 = vmatpush.xpose.msra.mxu0 %v4550
    %4586 = vmatpush.xpose.msra.mxu0 %v4548
    %4587 = vmatpush.xpose.msra.mxu0 %v4546
    %4588 = vmatpush.xpose.msra.mxu0 %v4544
    %4589 = vmatpush.xpose.msra.mxu0 %v4542
    %4590 = vmatmul.f32.gmra.mxu0 %v4537
    %v4591 = vpop.f32.mrf.mxu0
    %v4592 = vadd.f32 %v1652, %v4591
    %4593 = vmatmul.f32.gmra.mxu0 %v4540
    %v4594 = vpop.f32.mrf.mxu0
    %v4595 = vadd.f32 %v1653, %v4594
    %4596 = vdwg.mxu0
    %4613 = vrot.lane.b32.xlu0 %v1012, 96
    %v4614 = vpop.permute.xlu0 %4613
    %4615 = vrot.lane.b32.xlu0 %v1013, 96
    %v4616 = vpop.permute.xlu0 %4615
    %4617 = vrot.lane.b32.xlu0 %v1014, 96
    %v4618 = vpop.permute.xlu0 %4617
    %4619 = vrot.lane.b32.xlu0 %v1015, 96
    %v4620 = vpop.permute.xlu0 %4619
    %4621 = vrot.lane.b32.xlu0 %v1016, 96
    %v4622 = vpop.permute.xlu0 %4621
    %4623 = vrot.lane.b32.xlu0 %v1017, 96
    %v4624 = vpop.permute.xlu0 %4623
    %4625 = vrot.lane.b32.xlu0 %v1018, 96
    %v4626 = vpop.permute.xlu0 %4625
    %4627 = vrot.lane.b32.xlu0 %v1019, 96
    %v4628 = vpop.permute.xlu0 %4627
    %4629 = vrot.lane.b32.xlu0 %v1020, 96
    %v4630 = vpop.permute.xlu0 %4629
    %4631 = vrot.lane.b32.xlu0 %v1021, 96
    %v4632 = vpop.permute.xlu0 %4631
    %4633 = vrot.lane.b32.xlu0 %v1022, 96
    %v4634 = vpop.permute.xlu0 %4633
    %4635 = vrot.lane.b32.xlu0 %v1023, 96
    %v4636 = vpop.permute.xlu0 %4635
    %4637 = vrot.lane.b32.xlu0 %v1024, 96
    %v4638 = vpop.permute.xlu0 %4637
    %4639 = vrot.lane.b32.xlu0 %v1025, 96
    %v4640 = vpop.permute.xlu0 %4639
    %4641 = vrot.lane.b32.xlu0 %v1026, 96
    %v4642 = vpop.permute.xlu0 %4641
    %4643 = vrot.lane.b32.xlu0 %v1027, 96
    %v4644 = vpop.permute.xlu0 %4643
    %v4646 = vsel %vm98, %v471, 0
    %v4649 = vsel %vm98, %v474, 0
    %v4651 = vsel %vm98, %v4614, 0
    %v4653 = vsel %vm98, %v4616, 0
    %v4655 = vsel %vm98, %v4618, 0
    %v4657 = vsel %vm98, %v4620, 0
    %v4659 = vsel %vm98, %v4622, 0
    %v4661 = vsel %vm98, %v4624, 0
    %v4663 = vsel %vm98, %v4626, 0
    %v4665 = vsel %vm98, %v4628, 0
    %v4667 = vsel %vm98, %v4630, 0
    %v4669 = vsel %vm98, %v4632, 0
    %v4671 = vsel %vm98, %v4634, 0
    %v4673 = vsel %vm98, %v4636, 0
    %v4675 = vsel %vm98, %v4638, 0
    %v4677 = vsel %vm98, %v4640, 0
    %v4679 = vsel %vm98, %v4642, 0
    %v4681 = vsel %vm98, %v4644, 0
    %4683 = vmatpush.xpose.msra.mxu0 %v4681
    %4684 = vmatpush.xpose.msra.mxu0 %v4679
    %4685 = vmatpush.xpose.msra.mxu0 %v4677
    %4686 = vmatpush.xpose.msra.mxu0 %v4675
    %4687 = vmatpush.xpose.msra.mxu0 %v4673
    %4688 = vmatpush.xpose.msra.mxu0 %v4671
    %4689 = vmatpush.xpose.msra.mxu0 %v4669
    %4690 = vmatpush.xpose.msra.mxu0 %v4667
    %4691 = vmatpush.xpose.msra.mxu0 %v4665
    %4692 = vmatpush.xpose.msra.mxu0 %v4663
    %4693 = vmatpush.xpose.msra.mxu0 %v4661
    %4694 = vmatpush.xpose.msra.mxu0 %v4659
    %4695 = vmatpush.xpose.msra.mxu0 %v4657
    %4696 = vmatpush.xpose.msra.mxu0 %v4655
    %4697 = vmatpush.xpose.msra.mxu0 %v4653
    %4698 = vmatpush.xpose.msra.mxu0 %v4651
    %4699 = vmatmul.f32.gmra.mxu0 %v4646
    %v4700 = vpop.f32.mrf.mxu0
    %v4701 = vadd.f32 %v1652, %v4700
    %4702 = vmatmul.f32.gmra.mxu0 %v4649
    %v4703 = vpop.f32.mrf.mxu0
    %v4704 = vadd.f32 %v1653, %v4703
    %4705 = vdwg.mxu0
    %4722 = vrot.lane.b32.xlu0 %v1028, 96
    %v4723 = vpop.permute.xlu0 %4722
    %4724 = vrot.lane.b32.xlu0 %v1029, 96
    %v4725 = vpop.permute.xlu0 %4724
    %4726 = vrot.lane.b32.xlu0 %v1030, 96
    %v4727 = vpop.permute.xlu0 %4726
    %4728 = vrot.lane.b32.xlu0 %v1031, 96
    %v4729 = vpop.permute.xlu0 %4728
    %4730 = vrot.lane.b32.xlu0 %v1032, 96
    %v4731 = vpop.permute.xlu0 %4730
    %4732 = vrot.lane.b32.xlu0 %v1033, 96
    %v4733 = vpop.permute.xlu0 %4732
    %4734 = vrot.lane.b32.xlu0 %v1034, 96
    %v4735 = vpop.permute.xlu0 %4734
    %4736 = vrot.lane.b32.xlu0 %v1035, 96
    %v4737 = vpop.permute.xlu0 %4736
    %4738 = vrot.lane.b32.xlu0 %v1036, 96
    %v4739 = vpop.permute.xlu0 %4738
    %4740 = vrot.lane.b32.xlu0 %v1037, 96
    %v4741 = vpop.permute.xlu0 %4740
    %4742 = vrot.lane.b32.xlu0 %v1038, 96
    %v4743 = vpop.permute.xlu0 %4742
    %4744 = vrot.lane.b32.xlu0 %v1039, 96
    %v4745 = vpop.permute.xlu0 %4744
    %4746 = vrot.lane.b32.xlu0 %v1040, 96
    %v4747 = vpop.permute.xlu0 %4746
    %4748 = vrot.lane.b32.xlu0 %v1041, 96
    %v4749 = vpop.permute.xlu0 %4748
    %4750 = vrot.lane.b32.xlu0 %v1042, 96
    %v4751 = vpop.permute.xlu0 %4750
    %4752 = vrot.lane.b32.xlu0 %v1043, 96
    %v4753 = vpop.permute.xlu0 %4752
    %v4755 = vsel %vm98, %v477, 0
    %v4758 = vsel %vm98, %v480, 0
    %v4760 = vsel %vm98, %v4723, 0
    %v4762 = vsel %vm98, %v4725, 0
    %v4764 = vsel %vm98, %v4727, 0
    %v4766 = vsel %vm98, %v4729, 0
    %v4768 = vsel %vm98, %v4731, 0
    %v4770 = vsel %vm98, %v4733, 0
    %v4772 = vsel %vm98, %v4735, 0
    %v4774 = vsel %vm98, %v4737, 0
    %v4776 = vsel %vm98, %v4739, 0
    %v4778 = vsel %vm98, %v4741, 0
    %v4780 = vsel %vm98, %v4743, 0
    %v4782 = vsel %vm98, %v4745, 0
    %v4784 = vsel %vm98, %v4747, 0
    %v4786 = vsel %vm98, %v4749, 0
    %v4788 = vsel %vm98, %v4751, 0
    %v4790 = vsel %vm98, %v4753, 0
    %4792 = vmatpush.xpose.msra.mxu0 %v4790
    %4793 = vmatpush.xpose.msra.mxu0 %v4788
    %4794 = vmatpush.xpose.msra.mxu0 %v4786
    %4795 = vmatpush.xpose.msra.mxu0 %v4784
    %4796 = vmatpush.xpose.msra.mxu0 %v4782
    %4797 = vmatpush.xpose.msra.mxu0 %v4780
    %4798 = vmatpush.xpose.msra.mxu0 %v4778
    %4799 = vmatpush.xpose.msra.mxu0 %v4776
    %4800 = vmatpush.xpose.msra.mxu0 %v4774
    %4801 = vmatpush.xpose.msra.mxu0 %v4772
    %4802 = vmatpush.xpose.msra.mxu0 %v4770
    %4803 = vmatpush.xpose.msra.mxu0 %v4768
    %4804 = vmatpush.xpose.msra.mxu0 %v4766
    %4805 = vmatpush.xpose.msra.mxu0 %v4764
    %4806 = vmatpush.xpose.msra.mxu0 %v4762
    %4807 = vmatpush.xpose.msra.mxu0 %v4760
    %4808 = vmatmul.f32.gmra.mxu0 %v4755
    %v4809 = vpop.f32.mrf.mxu0
    %v4810 = vadd.f32 %v1652, %v4809
    %4811 = vmatmul.f32.gmra.mxu0 %v4758
    %v4812 = vpop.f32.mrf.mxu0
    %v4813 = vadd.f32 %v1653, %v4812
    %4814 = vdwg.mxu0
    %4831 = vrot.lane.b32.xlu0 %v1044, 96
    %v4832 = vpop.permute.xlu0 %4831
    %4833 = vrot.lane.b32.xlu0 %v1045, 96
    %v4834 = vpop.permute.xlu0 %4833
    %4835 = vrot.lane.b32.xlu0 %v1046, 96
    %v4836 = vpop.permute.xlu0 %4835
    %4837 = vrot.lane.b32.xlu0 %v1047, 96
    %v4838 = vpop.permute.xlu0 %4837
    %4839 = vrot.lane.b32.xlu0 %v1048, 96
    %v4840 = vpop.permute.xlu0 %4839
    %4841 = vrot.lane.b32.xlu0 %v1049, 96
    %v4842 = vpop.permute.xlu0 %4841
    %4843 = vrot.lane.b32.xlu0 %v1050, 96
    %v4844 = vpop.permute.xlu0 %4843
    %4845 = vrot.lane.b32.xlu0 %v1051, 96
    %v4846 = vpop.permute.xlu0 %4845
    %4847 = vrot.lane.b32.xlu0 %v1052, 96
    %v4848 = vpop.permute.xlu0 %4847
    %4849 = vrot.lane.b32.xlu0 %v1053, 96
    %v4850 = vpop.permute.xlu0 %4849
    %4851 = vrot.lane.b32.xlu0 %v1054, 96
    %v4852 = vpop.permute.xlu0 %4851
    %4853 = vrot.lane.b32.xlu0 %v1055, 96
    %v4854 = vpop.permute.xlu0 %4853
    %4855 = vrot.lane.b32.xlu0 %v1056, 96
    %v4856 = vpop.permute.xlu0 %4855
    %4857 = vrot.lane.b32.xlu0 %v1057, 96
    %v4858 = vpop.permute.xlu0 %4857
    %4859 = vrot.lane.b32.xlu0 %v1058, 96
    %v4860 = vpop.permute.xlu0 %4859
    %4861 = vrot.lane.b32.xlu0 %v1059, 96
    %v4862 = vpop.permute.xlu0 %4861
    %v4864 = vsel %vm98, %v483, 0
    %v4867 = vsel %vm98, %v486, 0
    %v4869 = vsel %vm98, %v4832, 0
    %v4871 = vsel %vm98, %v4834, 0
    %v4873 = vsel %vm98, %v4836, 0
    %v4875 = vsel %vm98, %v4838, 0
    %v4877 = vsel %vm98, %v4840, 0
    %v4879 = vsel %vm98, %v4842, 0
    %v4881 = vsel %vm98, %v4844, 0
    %v4883 = vsel %vm98, %v4846, 0
    %v4885 = vsel %vm98, %v4848, 0
    %v4887 = vsel %vm98, %v4850, 0
    %v4889 = vsel %vm98, %v4852, 0
    %v4891 = vsel %vm98, %v4854, 0
    %v4893 = vsel %vm98, %v4856, 0
    %v4895 = vsel %vm98, %v4858, 0
    %v4897 = vsel %vm98, %v4860, 0
    %v4899 = vsel %vm98, %v4862, 0
    %4901 = vmatpush.xpose.msra.mxu0 %v4899
    %4902 = vmatpush.xpose.msra.mxu0 %v4897
    %4903 = vmatpush.xpose.msra.mxu0 %v4895
    %4904 = vmatpush.xpose.msra.mxu0 %v4893
    %4905 = vmatpush.xpose.msra.mxu0 %v4891
    %4906 = vmatpush.xpose.msra.mxu0 %v4889
    %4907 = vmatpush.xpose.msra.mxu0 %v4887
    %4908 = vmatpush.xpose.msra.mxu0 %v4885
    %4909 = vmatpush.xpose.msra.mxu0 %v4883
    %4910 = vmatpush.xpose.msra.mxu0 %v4881
    %4911 = vmatpush.xpose.msra.mxu0 %v4879
    %4912 = vmatpush.xpose.msra.mxu0 %v4877
    %4913 = vmatpush.xpose.msra.mxu0 %v4875
    %4914 = vmatpush.xpose.msra.mxu0 %v4873
    %4915 = vmatpush.xpose.msra.mxu0 %v4871
    %4916 = vmatpush.xpose.msra.mxu0 %v4869
    %4917 = vmatmul.f32.gmra.mxu0 %v4864
    %v4918 = vpop.f32.mrf.mxu0
    %v4919 = vadd.f32 %v1652, %v4918
    %4920 = vmatmul.f32.gmra.mxu0 %v4867
    %v4921 = vpop.f32.mrf.mxu0
    %v4922 = vadd.f32 %v1653, %v4921
    %4923 = vdwg.mxu0
    %4940 = vrot.lane.b32.xlu0 %v1060, 96
    %v4941 = vpop.permute.xlu0 %4940
    %4942 = vrot.lane.b32.xlu0 %v1061, 96
    %v4943 = vpop.permute.xlu0 %4942
    %4944 = vrot.lane.b32.xlu0 %v1062, 96
    %v4945 = vpop.permute.xlu0 %4944
    %4946 = vrot.lane.b32.xlu0 %v1063, 96
    %v4947 = vpop.permute.xlu0 %4946
    %4948 = vrot.lane.b32.xlu0 %v1064, 96
    %v4949 = vpop.permute.xlu0 %4948
    %4950 = vrot.lane.b32.xlu0 %v1065, 96
    %v4951 = vpop.permute.xlu0 %4950
    %4952 = vrot.lane.b32.xlu0 %v1066, 96
    %v4953 = vpop.permute.xlu0 %4952
    %4954 = vrot.lane.b32.xlu0 %v1067, 96
    %v4955 = vpop.permute.xlu0 %4954
    %4956 = vrot.lane.b32.xlu0 %v1068, 96
    %v4957 = vpop.permute.xlu0 %4956
    %4958 = vrot.lane.b32.xlu0 %v1069, 96
    %v4959 = vpop.permute.xlu0 %4958
    %4960 = vrot.lane.b32.xlu0 %v1070, 96
    %v4961 = vpop.permute.xlu0 %4960
    %4962 = vrot.lane.b32.xlu0 %v1071, 96
    %v4963 = vpop.permute.xlu0 %4962
    %4964 = vrot.lane.b32.xlu0 %v1072, 96
    %v4965 = vpop.permute.xlu0 %4964
    %4966 = vrot.lane.b32.xlu0 %v1073, 96
    %v4967 = vpop.permute.xlu0 %4966
    %4968 = vrot.lane.b32.xlu0 %v1074, 96
    %v4969 = vpop.permute.xlu0 %4968
    %4970 = vrot.lane.b32.xlu0 %v1075, 96
    %v4971 = vpop.permute.xlu0 %4970
    %v4973 = vsel %vm98, %v489, 0
    %v4976 = vsel %vm98, %v492, 0
    %v4978 = vsel %vm98, %v4941, 0
    %v4980 = vsel %vm98, %v4943, 0
    %v4982 = vsel %vm98, %v4945, 0
    %v4984 = vsel %vm98, %v4947, 0
    %v4986 = vsel %vm98, %v4949, 0
    %v4988 = vsel %vm98, %v4951, 0
    %v4990 = vsel %vm98, %v4953, 0
    %v4992 = vsel %vm98, %v4955, 0
    %v4994 = vsel %vm98, %v4957, 0
    %v4996 = vsel %vm98, %v4959, 0
    %v4998 = vsel %vm98, %v4961, 0
    %v5000 = vsel %vm98, %v4963, 0
    %v5002 = vsel %vm98, %v4965, 0
    %v5004 = vsel %vm98, %v4967, 0
    %v5006 = vsel %vm98, %v4969, 0
    %v5008 = vsel %vm98, %v4971, 0
    %5010 = vmatpush.xpose.msra.mxu0 %v5008
    %5011 = vmatpush.xpose.msra.mxu0 %v5006
    %5012 = vmatpush.xpose.msra.mxu0 %v5004
    %5013 = vmatpush.xpose.msra.mxu0 %v5002
    %5014 = vmatpush.xpose.msra.mxu0 %v5000
    %5015 = vmatpush.xpose.msra.mxu0 %v4998
    %5016 = vmatpush.xpose.msra.mxu0 %v4996
    %5017 = vmatpush.xpose.msra.mxu0 %v4994
    %5018 = vmatpush.xpose.msra.mxu0 %v4992
    %5019 = vmatpush.xpose.msra.mxu0 %v4990
    %5020 = vmatpush.xpose.msra.mxu0 %v4988
    %5021 = vmatpush.xpose.msra.mxu0 %v4986
    %5022 = vmatpush.xpose.msra.mxu0 %v4984
    %5023 = vmatpush.xpose.msra.mxu0 %v4982
    %5024 = vmatpush.xpose.msra.mxu0 %v4980
    %5025 = vmatpush.xpose.msra.mxu0 %v4978
    %5026 = vmatmul.f32.gmra.mxu0 %v4973
    %v5027 = vpop.f32.mrf.mxu0
    %v5028 = vadd.f32 %v1652, %v5027
    %5029 = vmatmul.f32.gmra.mxu0 %v4976
    %v5030 = vpop.f32.mrf.mxu0
    %v5031 = vadd.f32 %v1653, %v5030
    %5032 = vdwg.mxu0
    %5049 = vrot.lane.b32.xlu0 %v1076, 96
    %v5050 = vpop.permute.xlu0 %5049
    %5051 = vrot.lane.b32.xlu0 %v1077, 96
    %v5052 = vpop.permute.xlu0 %5051
    %5053 = vrot.lane.b32.xlu0 %v1078, 96
    %v5054 = vpop.permute.xlu0 %5053
    %5055 = vrot.lane.b32.xlu0 %v1079, 96
    %v5056 = vpop.permute.xlu0 %5055
    %5057 = vrot.lane.b32.xlu0 %v1080, 96
    %v5058 = vpop.permute.xlu0 %5057
    %5059 = vrot.lane.b32.xlu0 %v1081, 96
    %v5060 = vpop.permute.xlu0 %5059
    %5061 = vrot.lane.b32.xlu0 %v1082, 96
    %v5062 = vpop.permute.xlu0 %5061
    %5063 = vrot.lane.b32.xlu0 %v1083, 96
    %v5064 = vpop.permute.xlu0 %5063
    %5065 = vrot.lane.b32.xlu0 %v1084, 96
    %v5066 = vpop.permute.xlu0 %5065
    %5067 = vrot.lane.b32.xlu0 %v1085, 96
    %v5068 = vpop.permute.xlu0 %5067
    %5069 = vrot.lane.b32.xlu0 %v1086, 96
    %v5070 = vpop.permute.xlu0 %5069
    %5071 = vrot.lane.b32.xlu0 %v1087, 96
    %v5072 = vpop.permute.xlu0 %5071
    %5073 = vrot.lane.b32.xlu0 %v1088, 96
    %v5074 = vpop.permute.xlu0 %5073
    %5075 = vrot.lane.b32.xlu0 %v1089, 96
    %v5076 = vpop.permute.xlu0 %5075
    %5077 = vrot.lane.b32.xlu0 %v1090, 96
    %v5078 = vpop.permute.xlu0 %5077
    %5079 = vrot.lane.b32.xlu0 %v1091, 96
    %v5080 = vpop.permute.xlu0 %5079
    %v5082 = vsel %vm98, %v495, 0
    %v5085 = vsel %vm98, %v498, 0
    %v5087 = vsel %vm98, %v5050, 0
    %v5089 = vsel %vm98, %v5052, 0
    %v5091 = vsel %vm98, %v5054, 0
    %v5093 = vsel %vm98, %v5056, 0
    %v5095 = vsel %vm98, %v5058, 0
    %v5097 = vsel %vm98, %v5060, 0
    %v5099 = vsel %vm98, %v5062, 0
    %v5101 = vsel %vm98, %v5064, 0
    %v5103 = vsel %vm98, %v5066, 0
    %v5105 = vsel %vm98, %v5068, 0
    %v5107 = vsel %vm98, %v5070, 0
    %v5109 = vsel %vm98, %v5072, 0
    %v5111 = vsel %vm98, %v5074, 0
    %v5113 = vsel %vm98, %v5076, 0
    %v5115 = vsel %vm98, %v5078, 0
    %v5117 = vsel %vm98, %v5080, 0
    %5119 = vmatpush.xpose.msra.mxu0 %v5117
    %5120 = vmatpush.xpose.msra.mxu0 %v5115
    %5121 = vmatpush.xpose.msra.mxu0 %v5113
    %5122 = vmatpush.xpose.msra.mxu0 %v5111
    %5123 = vmatpush.xpose.msra.mxu0 %v5109
    %5124 = vmatpush.xpose.msra.mxu0 %v5107
    %5125 = vmatpush.xpose.msra.mxu0 %v5105
    %5126 = vmatpush.xpose.msra.mxu0 %v5103
    %5127 = vmatpush.xpose.msra.mxu0 %v5101
    %5128 = vmatpush.xpose.msra.mxu0 %v5099
    %5129 = vmatpush.xpose.msra.mxu0 %v5097
    %5130 = vmatpush.xpose.msra.mxu0 %v5095
    %5131 = vmatpush.xpose.msra.mxu0 %v5093
    %5132 = vmatpush.xpose.msra.mxu0 %v5091
    %5133 = vmatpush.xpose.msra.mxu0 %v5089
    %5134 = vmatpush.xpose.msra.mxu0 %v5087
    %5135 = vmatmul.f32.gmra.mxu0 %v5082
    %v5136 = vpop.f32.mrf.mxu0
    %v5137 = vadd.f32 %v1652, %v5136
    %5138 = vmatmul.f32.gmra.mxu0 %v5085
    %v5139 = vpop.f32.mrf.mxu0
    %v5140 = vadd.f32 %v1653, %v5139
    %5141 = vdwg.mxu0
    %5142 = vmax.xlane.f32.xlu0 %v1758
    %v5143 = vpop.xlane.xlu0 %5142
    %5144 = vmax.xlane.f32.xlu0 %v1761
    %v5145 = vpop.xlane.xlu0 %5144
    %5146 = vmax.xlane.f32.xlu0 %v1867
    %v5147 = vpop.xlane.xlu0 %5146
    %5148 = vmax.xlane.f32.xlu0 %v1870
    %v5149 = vpop.xlane.xlu0 %5148
    %5150 = vmax.xlane.f32.xlu0 %v1976
    %v5151 = vpop.xlane.xlu0 %5150
    %5152 = vmax.xlane.f32.xlu0 %v1979
    %v5153 = vpop.xlane.xlu0 %5152
    %5154 = vmax.xlane.f32.xlu0 %v2085
    %v5155 = vpop.xlane.xlu0 %5154
    %5156 = vmax.xlane.f32.xlu0 %v2088
    %v5157 = vpop.xlane.xlu0 %5156
    %5158 = vmax.xlane.f32.xlu0 %v2194
    %v5159 = vpop.xlane.xlu0 %5158
    %5160 = vmax.xlane.f32.xlu0 %v2197
    %v5161 = vpop.xlane.xlu0 %5160
    %5162 = vmax.xlane.f32.xlu0 %v2303
    %v5163 = vpop.xlane.xlu0 %5162
    %5164 = vmax.xlane.f32.xlu0 %v2306
    %v5165 = vpop.xlane.xlu0 %5164
    %5166 = vmax.xlane.f32.xlu0 %v2412
    %v5167 = vpop.xlane.xlu0 %5166
    %5168 = vmax.xlane.f32.xlu0 %v2415
    %v5169 = vpop.xlane.xlu0 %5168
    %5170 = vmax.xlane.f32.xlu0 %v2521
    %v5171 = vpop.xlane.xlu0 %5170
    %5172 = vmax.xlane.f32.xlu0 %v2524
    %v5173 = vpop.xlane.xlu0 %5172
    %5174 = vmax.xlane.f32.xlu0 %v2630
    %v5175 = vpop.xlane.xlu0 %5174
    %5176 = vmax.xlane.f32.xlu0 %v2633
    %v5177 = vpop.xlane.xlu0 %5176
    %5178 = vmax.xlane.f32.xlu0 %v2739
    %v5179 = vpop.xlane.xlu0 %5178
    %5180 = vmax.xlane.f32.xlu0 %v2742
    %v5181 = vpop.xlane.xlu0 %5180
    %5182 = vmax.xlane.f32.xlu0 %v2848
    %v5183 = vpop.xlane.xlu0 %5182
    %5184 = vmax.xlane.f32.xlu0 %v2851
    %v5185 = vpop.xlane.xlu0 %5184
    %5186 = vmax.xlane.f32.xlu0 %v2957
    %v5187 = vpop.xlane.xlu0 %5186
    %5188 = vmax.xlane.f32.xlu0 %v2960
    %v5189 = vpop.xlane.xlu0 %5188
    %5190 = vmax.xlane.f32.xlu0 %v3066
    %v5191 = vpop.xlane.xlu0 %5190
    %5192 = vmax.xlane.f32.xlu0 %v3069
    %v5193 = vpop.xlane.xlu0 %5192
    %5194 = vmax.xlane.f32.xlu0 %v3175
    %v5195 = vpop.xlane.xlu0 %5194
    %5196 = vmax.xlane.f32.xlu0 %v3178
    %v5197 = vpop.xlane.xlu0 %5196
    %5198 = vmax.xlane.f32.xlu0 %v3284
    %v5199 = vpop.xlane.xlu0 %5198
    %5200 = vmax.xlane.f32.xlu0 %v3287
    %v5201 = vpop.xlane.xlu0 %5200
    %5202 = vmax.xlane.f32.xlu0 %v3393
    %v5203 = vpop.xlane.xlu0 %5202
    %5204 = vmax.xlane.f32.xlu0 %v3396
    %v5205 = vpop.xlane.xlu0 %5204
    %5206 = vmax.xlane.f32.xlu0 %v3502
    %v5207 = vpop.xlane.xlu0 %5206
    %5208 = vmax.xlane.f32.xlu0 %v3505
    %v5209 = vpop.xlane.xlu0 %5208
    %5210 = vmax.xlane.f32.xlu0 %v3611
    %v5211 = vpop.xlane.xlu0 %5210
    %5212 = vmax.xlane.f32.xlu0 %v3614
    %v5213 = vpop.xlane.xlu0 %5212
    %5214 = vmax.xlane.f32.xlu0 %v3720
    %v5215 = vpop.xlane.xlu0 %5214
    %5216 = vmax.xlane.f32.xlu0 %v3723
    %v5217 = vpop.xlane.xlu0 %5216
    %5218 = vmax.xlane.f32.xlu0 %v3829
    %v5219 = vpop.xlane.xlu0 %5218
    %5220 = vmax.xlane.f32.xlu0 %v3832
    %v5221 = vpop.xlane.xlu0 %5220
    %5222 = vmax.xlane.f32.xlu0 %v3938
    %v5223 = vpop.xlane.xlu0 %5222
    %5224 = vmax.xlane.f32.xlu0 %v3941
    %v5225 = vpop.xlane.xlu0 %5224
    %5226 = vmax.xlane.f32.xlu0 %v4047
    %v5227 = vpop.xlane.xlu0 %5226
    %5228 = vmax.xlane.f32.xlu0 %v4050
    %v5229 = vpop.xlane.xlu0 %5228
    %5230 = vmax.xlane.f32.xlu0 %v4156
    %v5231 = vpop.xlane.xlu0 %5230
    %5232 = vmax.xlane.f32.xlu0 %v4159
    %v5233 = vpop.xlane.xlu0 %5232
    %5234 = vmax.xlane.f32.xlu0 %v4265
    %v5235 = vpop.xlane.xlu0 %5234
    %5236 = vmax.xlane.f32.xlu0 %v4268
    %v5237 = vpop.xlane.xlu0 %5236
    %5238 = vmax.xlane.f32.xlu0 %v4374
    %v5239 = vpop.xlane.xlu0 %5238
    %5240 = vmax.xlane.f32.xlu0 %v4377
    %v5241 = vpop.xlane.xlu0 %5240
    %5242 = vmax.xlane.f32.xlu0 %v4483
    %v5243 = vpop.xlane.xlu0 %5242
    %5244 = vmax.xlane.f32.xlu0 %v4486
    %v5245 = vpop.xlane.xlu0 %5244
    %5246 = vmax.xlane.f32.xlu0 %v4592
    %v5247 = vpop.xlane.xlu0 %5246
    %5248 = vmax.xlane.f32.xlu0 %v4595
    %v5249 = vpop.xlane.xlu0 %5248
    %5250 = vmax.xlane.f32.xlu0 %v4701
    %v5251 = vpop.xlane.xlu0 %5250
    %5252 = vmax.xlane.f32.xlu0 %v4704
    %v5253 = vpop.xlane.xlu0 %5252
    %5254 = vmax.xlane.f32.xlu0 %v4810
    %v5255 = vpop.xlane.xlu0 %5254
    %5256 = vmax.xlane.f32.xlu0 %v4813
    %v5257 = vpop.xlane.xlu0 %5256
    %5258 = vmax.xlane.f32.xlu0 %v4919
    %v5259 = vpop.xlane.xlu0 %5258
    %5260 = vmax.xlane.f32.xlu0 %v4922
    %v5261 = vpop.xlane.xlu0 %5260
    %5262 = vmax.xlane.f32.xlu0 %v5028
    %v5263 = vpop.xlane.xlu0 %5262
    %5264 = vmax.xlane.f32.xlu0 %v5031
    %v5265 = vpop.xlane.xlu0 %5264
    %5266 = vmax.xlane.f32.xlu0 %v5137
    %v5267 = vpop.xlane.xlu0 %5266
    %5268 = vmax.xlane.f32.xlu0 %v5140
    %v5269 = vpop.xlane.xlu0 %5268
    %v5270 = vsub.f32 %v1758, %v5143
    %v5271 = vsub.f32 %v1761, %v5145
    %v5272 = vsub.f32 %v1867, %v5147
    %v5273 = vsub.f32 %v1870, %v5149
    %v5274 = vsub.f32 %v1976, %v5151
    %v5275 = vsub.f32 %v1979, %v5153
    %v5276 = vsub.f32 %v2085, %v5155
    %v5277 = vsub.f32 %v2088, %v5157
    %v5278 = vsub.f32 %v2194, %v5159
    %v5279 = vsub.f32 %v2197, %v5161
    %v5280 = vsub.f32 %v2303, %v5163
    %v5281 = vsub.f32 %v2306, %v5165
    %v5282 = vsub.f32 %v2412, %v5167
    %v5283 = vsub.f32 %v2415, %v5169
    %v5284 = vsub.f32 %v2521, %v5171
    %v5285 = vsub.f32 %v2524, %v5173
    %v5286 = vsub.f32 %v2630, %v5175
    %v5287 = vsub.f32 %v2633, %v5177
    %v5288 = vsub.f32 %v2739, %v5179
    %v5289 = vsub.f32 %v2742, %v5181
    %v5290 = vsub.f32 %v2848, %v5183
    %v5291 = vsub.f32 %v2851, %v5185
    %v5292 = vsub.f32 %v2957, %v5187
    %v5293 = vsub.f32 %v2960, %v5189
    %v5294 = vsub.f32 %v3066, %v5191
    %v5295 = vsub.f32 %v3069, %v5193
    %v5296 = vsub.f32 %v3175, %v5195
    %v5297 = vsub.f32 %v3178, %v5197
    %v5298 = vsub.f32 %v3284, %v5199
    %v5299 = vsub.f32 %v3287, %v5201
    %v5300 = vsub.f32 %v3393, %v5203
    %v5301 = vsub.f32 %v3396, %v5205
    %v5302 = vsub.f32 %v3502, %v5207
    %v5303 = vsub.f32 %v3505, %v5209
    %v5304 = vsub.f32 %v3611, %v5211
    %v5305 = vsub.f32 %v3614, %v5213
    %v5306 = vsub.f32 %v3720, %v5215
    %v5307 = vsub.f32 %v3723, %v5217
    %v5308 = vsub.f32 %v3829, %v5219
    %v5309 = vsub.f32 %v3832, %v5221
    %v5310 = vsub.f32 %v3938, %v5223
    %v5311 = vsub.f32 %v3941, %v5225
    %v5312 = vsub.f32 %v4047, %v5227
    %v5313 = vsub.f32 %v4050, %v5229
    %v5314 = vsub.f32 %v4156, %v5231
    %v5315 = vsub.f32 %v4159, %v5233
    %v5316 = vsub.f32 %v4265, %v5235
    %v5317 = vsub.f32 %v4268, %v5237
    %v5318 = vsub.f32 %v4374, %v5239
    %v5319 = vsub.f32 %v4377, %v5241
    %v5320 = vsub.f32 %v4483, %v5243
    %v5321 = vsub.f32 %v4486, %v5245
    %v5322 = vsub.f32 %v4592, %v5247
    %v5323 = vsub.f32 %v4595, %v5249
    %v5324 = vsub.f32 %v4701, %v5251
    %v5325 = vsub.f32 %v4704, %v5253
    %v5326 = vsub.f32 %v4810, %v5255
    %v5327 = vsub.f32 %v4813, %v5257
    %v5328 = vsub.f32 %v4919, %v5259
    %v5329 = vsub.f32 %v4922, %v5261
    %v5330 = vsub.f32 %v5028, %v5263
    %v5331 = vsub.f32 %v5031, %v5265
    %v5332 = vsub.f32 %v5137, %v5267
    %v5333 = vsub.f32 %v5140, %v5269
    %v5334 = vmul.f32 %v5270, 1.442695
    %v5335 = vpow.pop %v5334
    %v5336 = vmul.f32 %v5271, 1.442695
    %v5337 = vpow.pop %v5336
    %v5338 = vmul.f32 %v5272, 1.442695
    %v5339 = vpow.pop %v5338
    %v5340 = vmul.f32 %v5273, 1.442695
    %v5341 = vpow.pop %v5340
    %v5342 = vmul.f32 %v5274, 1.442695
    %v5343 = vpow.pop %v5342
    %v5344 = vmul.f32 %v5275, 1.442695
    %v5345 = vpow.pop %v5344
    %v5346 = vmul.f32 %v5276, 1.442695
    %v5347 = vpow.pop %v5346
    %v5348 = vmul.f32 %v5277, 1.442695
    %v5349 = vpow.pop %v5348
    %v5350 = vmul.f32 %v5278, 1.442695
    %v5351 = vpow.pop %v5350
    %v5352 = vmul.f32 %v5279, 1.442695
    %v5353 = vpow.pop %v5352
    %v5354 = vmul.f32 %v5280, 1.442695
    %v5355 = vpow.pop %v5354
    %v5356 = vmul.f32 %v5281, 1.442695
    %v5357 = vpow.pop %v5356
    %v5358 = vmul.f32 %v5282, 1.442695
    %v5359 = vpow.pop %v5358
    %v5360 = vmul.f32 %v5283, 1.442695
    %v5361 = vpow.pop %v5360
    %v5362 = vmul.f32 %v5284, 1.442695
    %v5363 = vpow.pop %v5362
    %v5364 = vmul.f32 %v5285, 1.442695
    %v5365 = vpow.pop %v5364
    %v5366 = vmul.f32 %v5286, 1.442695
    %v5367 = vpow.pop %v5366
    %v5368 = vmul.f32 %v5287, 1.442695
    %v5369 = vpow.pop %v5368
    %v5370 = vmul.f32 %v5288, 1.442695
    %v5371 = vpow.pop %v5370
    %v5372 = vmul.f32 %v5289, 1.442695
    %v5373 = vpow.pop %v5372
    %v5374 = vmul.f32 %v5290, 1.442695
    %v5375 = vpow.pop %v5374
    %v5376 = vmul.f32 %v5291, 1.442695
    %v5377 = vpow.pop %v5376
    %v5378 = vmul.f32 %v5292, 1.442695
    %v5379 = vpow.pop %v5378
    %v5380 = vmul.f32 %v5293, 1.442695
    %v5381 = vpow.pop %v5380
    %v5382 = vmul.f32 %v5294, 1.442695
    %v5383 = vpow.pop %v5382
    %v5384 = vmul.f32 %v5295, 1.442695
    %v5385 = vpow.pop %v5384
    %v5386 = vmul.f32 %v5296, 1.442695
    %v5387 = vpow.pop %v5386
    %v5388 = vmul.f32 %v5297, 1.442695
    %v5389 = vpow.pop %v5388
    %v5390 = vmul.f32 %v5298, 1.442695
    %v5391 = vpow.pop %v5390
    %v5392 = vmul.f32 %v5299, 1.442695
    %v5393 = vpow.pop %v5392
    %v5394 = vmul.f32 %v5300, 1.442695
    %v5395 = vpow.pop %v5394
    %v5396 = vmul.f32 %v5301, 1.442695
    %v5397 = vpow.pop %v5396
    %v5398 = vmul.f32 %v5302, 1.442695
    %v5399 = vpow.pop %v5398
    %v5400 = vmul.f32 %v5303, 1.442695
    %v5401 = vpow.pop %v5400
    %v5402 = vmul.f32 %v5304, 1.442695
    %v5403 = vpow.pop %v5402
    %v5404 = vmul.f32 %v5305, 1.442695
    %v5405 = vpow.pop %v5404
    %v5406 = vmul.f32 %v5306, 1.442695
    %v5407 = vpow.pop %v5406
    %v5408 = vmul.f32 %v5307, 1.442695
    %v5409 = vpow.pop %v5408
    %v5410 = vmul.f32 %v5308, 1.442695
    %v5411 = vpow.pop %v5410
    %v5412 = vmul.f32 %v5309, 1.442695
    %v5413 = vpow.pop %v5412
    %v5414 = vmul.f32 %v5310, 1.442695
    %v5415 = vpow.pop %v5414
    %v5416 = vmul.f32 %v5311, 1.442695
    %v5417 = vpow.pop %v5416
    %v5418 = vmul.f32 %v5312, 1.442695
    %v5419 = vpow.pop %v5418
    %v5420 = vmul.f32 %v5313, 1.442695
    %v5421 = vpow.pop %v5420
    %v5422 = vmul.f32 %v5314, 1.442695
    %v5423 = vpow.pop %v5422
    %v5424 = vmul.f32 %v5315, 1.442695
    %v5425 = vpow.pop %v5424
    %v5426 = vmul.f32 %v5316, 1.442695
    %v5427 = vpow.pop %v5426
    %v5428 = vmul.f32 %v5317, 1.442695
    %v5429 = vpow.pop %v5428
    %v5430 = vmul.f32 %v5318, 1.442695
    %v5431 = vpow.pop %v5430
    %v5432 = vmul.f32 %v5319, 1.442695
    %v5433 = vpow.pop %v5432
    %v5434 = vmul.f32 %v5320, 1.442695
    %v5435 = vpow.pop %v5434
    %v5436 = vmul.f32 %v5321, 1.442695
    %v5437 = vpow.pop %v5436
    %v5438 = vmul.f32 %v5322, 1.442695
    %v5439 = vpow.pop %v5438
    %v5440 = vmul.f32 %v5323, 1.442695
    %v5441 = vpow.pop %v5440
    %v5442 = vmul.f32 %v5324, 1.442695
    %v5443 = vpow.pop %v5442
    %v5444 = vmul.f32 %v5325, 1.442695
    %v5445 = vpow.pop %v5444
    %v5446 = vmul.f32 %v5326, 1.442695
    %v5447 = vpow.pop %v5446
    %v5448 = vmul.f32 %v5327, 1.442695
    %v5449 = vpow.pop %v5448
    %v5450 = vmul.f32 %v5328, 1.442695
    %v5451 = vpow.pop %v5450
    %v5452 = vmul.f32 %v5329, 1.442695
    %v5453 = vpow.pop %v5452
    %v5454 = vmul.f32 %v5330, 1.442695
    %v5455 = vpow.pop %v5454
    %v5456 = vmul.f32 %v5331, 1.442695
    %v5457 = vpow.pop %v5456
    %v5458 = vmul.f32 %v5332, 1.442695
    %v5459 = vpow.pop %v5458
    %v5460 = vmul.f32 %v5333, 1.442695
    %v5461 = vpow.pop %v5460
    %v5462 = vld [vmem:[%s6] sm:$0xff]
    %v5463 = vld [vmem:[%s6 + $0x8] sm:$0xff]
    %v5464 = vld [vmem:[%s6 + $0x10] sm:$0xff]
    %v5465 = vld [vmem:[%s6 + $0x18] sm:$0xff]
    %v5466 = vld [vmem:[%s6 + $0x20] sm:$0xff]
    %v5467 = vld [vmem:[%s6 + $0x28] sm:$0xff]
    %v5468 = vld [vmem:[%s6 + $0x30] sm:$0xff]
    %v5469 = vld [vmem:[%s6 + $0x38] sm:$0xff]
    %v5470 = vld [vmem:[%s6 + $0x40] sm:$0xff]
    %v5471 = vld [vmem:[%s6 + $0x48] sm:$0xff]
    %v5472 = vld [vmem:[%s6 + $0x50] sm:$0xff]
    %v5473 = vld [vmem:[%s6 + $0x58] sm:$0xff]
    %v5474 = vld [vmem:[%s6 + $0x60] sm:$0xff]
    %v5475 = vld [vmem:[%s6 + $0x68] sm:$0xff]
    %v5476 = vld [vmem:[%s6 + $0x70] sm:$0xff]
    %v5477 = vld [vmem:[%s6 + $0x78] sm:$0xff]
    %5478 = vmatpush.msra.mxu0 %v5477
    %5479 = vmatpush.msra.mxu0 %v5476
    %5480 = vmatpush.msra.mxu0 %v5475
    %5481 = vmatpush.msra.mxu0 %v5474
    %5482 = vmatpush.msra.mxu0 %v5473
    %5483 = vmatpush.msra.mxu0 %v5472
    %5484 = vmatpush.msra.mxu0 %v5471
    %5485 = vmatpush.msra.mxu0 %v5470
    %5486 = vmatpush.msra.mxu0 %v5469
    %5487 = vmatpush.msra.mxu0 %v5468
    %5488 = vmatpush.msra.mxu0 %v5467
    %5489 = vmatpush.msra.mxu0 %v5466
    %5490 = vmatpush.msra.mxu0 %v5465
    %5491 = vmatpush.msra.mxu0 %v5464
    %5492 = vmatpush.msra.mxu0 %v5463
    %5493 = vmatpush.msra.mxu0 %v5462
    %5494 = vmatmul.f32.gmra.mxu0 %v5335
    %v5495 = vpop.f32.mrf.mxu0
    %v5496 = vadd.f32 0.0, %v5495
    %5497 = vmatmul.f32.gmra.mxu0 %v5337
    %v5498 = vpop.f32.mrf.mxu0
    %v5499 = vadd.f32 0.0, %v5498
    %5500 = vmatmul.f32.gmra.mxu0 %v5339
    %v5501 = vpop.f32.mrf.mxu0
    %v5502 = vadd.f32 0.0, %v5501
    %5503 = vmatmul.f32.gmra.mxu0 %v5341
    %v5504 = vpop.f32.mrf.mxu0
    %v5505 = vadd.f32 0.0, %v5504
    %5506 = vmatmul.f32.gmra.mxu0 %v5343
    %v5507 = vpop.f32.mrf.mxu0
    %v5508 = vadd.f32 0.0, %v5507
    %5509 = vmatmul.f32.gmra.mxu0 %v5345
    %v5510 = vpop.f32.mrf.mxu0
    %v5511 = vadd.f32 0.0, %v5510
    %5512 = vmatmul.f32.gmra.mxu0 %v5347
    %v5513 = vpop.f32.mrf.mxu0
    %v5514 = vadd.f32 0.0, %v5513
    %5515 = vmatmul.f32.gmra.mxu0 %v5349
    %v5516 = vpop.f32.mrf.mxu0
    %v5517 = vadd.f32 0.0, %v5516
    %5518 = vmatmul.f32.gmra.mxu0 %v5351
    %v5519 = vpop.f32.mrf.mxu0
    %v5520 = vadd.f32 0.0, %v5519
    %5521 = vmatmul.f32.gmra.mxu0 %v5353
    %v5522 = vpop.f32.mrf.mxu0
    %v5523 = vadd.f32 0.0, %v5522
    %5524 = vmatmul.f32.gmra.mxu0 %v5355
    %v5525 = vpop.f32.mrf.mxu0
    %v5526 = vadd.f32 0.0, %v5525
    %5527 = vmatmul.f32.gmra.mxu0 %v5357
    %v5528 = vpop.f32.mrf.mxu0
    %v5529 = vadd.f32 0.0, %v5528
    %5530 = vmatmul.f32.gmra.mxu0 %v5359
    %v5531 = vpop.f32.mrf.mxu0
    %v5532 = vadd.f32 0.0, %v5531
    %5533 = vmatmul.f32.gmra.mxu0 %v5361
    %v5534 = vpop.f32.mrf.mxu0
    %v5535 = vadd.f32 0.0, %v5534
    %5536 = vmatmul.f32.gmra.mxu0 %v5363
    %v5537 = vpop.f32.mrf.mxu0
    %v5538 = vadd.f32 0.0, %v5537
    %5539 = vmatmul.f32.gmra.mxu0 %v5365
    %v5540 = vpop.f32.mrf.mxu0
    %v5541 = vadd.f32 0.0, %v5540
    %5542 = vmatmul.f32.gmra.mxu0 %v5367
    %v5543 = vpop.f32.mrf.mxu0
    %v5544 = vadd.f32 0.0, %v5543
    %5545 = vmatmul.f32.gmra.mxu0 %v5369
    %v5546 = vpop.f32.mrf.mxu0
    %v5547 = vadd.f32 0.0, %v5546
    %5548 = vmatmul.f32.gmra.mxu0 %v5371
    %v5549 = vpop.f32.mrf.mxu0
    %v5550 = vadd.f32 0.0, %v5549
    %5551 = vmatmul.f32.gmra.mxu0 %v5373
    %v5552 = vpop.f32.mrf.mxu0
    %v5553 = vadd.f32 0.0, %v5552
    %5554 = vmatmul.f32.gmra.mxu0 %v5375
    %v5555 = vpop.f32.mrf.mxu0
    %v5556 = vadd.f32 0.0, %v5555
    %5557 = vmatmul.f32.gmra.mxu0 %v5377
    %v5558 = vpop.f32.mrf.mxu0
    %v5559 = vadd.f32 0.0, %v5558
    %5560 = vmatmul.f32.gmra.mxu0 %v5379
    %v5561 = vpop.f32.mrf.mxu0
    %v5562 = vadd.f32 0.0, %v5561
    %5563 = vmatmul.f32.gmra.mxu0 %v5381
    %v5564 = vpop.f32.mrf.mxu0
    %v5565 = vadd.f32 0.0, %v5564
    %5566 = vmatmul.f32.gmra.mxu0 %v5383
    %v5567 = vpop.f32.mrf.mxu0
    %v5568 = vadd.f32 0.0, %v5567
    %5569 = vmatmul.f32.gmra.mxu0 %v5385
    %v5570 = vpop.f32.mrf.mxu0
    %v5571 = vadd.f32 0.0, %v5570
    %5572 = vmatmul.f32.gmra.mxu0 %v5387
    %v5573 = vpop.f32.mrf.mxu0
    %v5574 = vadd.f32 0.0, %v5573
    %5575 = vmatmul.f32.gmra.mxu0 %v5389
    %v5576 = vpop.f32.mrf.mxu0
    %v5577 = vadd.f32 0.0, %v5576
    %5578 = vmatmul.f32.gmra.mxu0 %v5391
    %v5579 = vpop.f32.mrf.mxu0
    %v5580 = vadd.f32 0.0, %v5579
    %5581 = vmatmul.f32.gmra.mxu0 %v5393
    %v5582 = vpop.f32.mrf.mxu0
    %v5583 = vadd.f32 0.0, %v5582
    %5584 = vmatmul.f32.gmra.mxu0 %v5395
    %v5585 = vpop.f32.mrf.mxu0
    %v5586 = vadd.f32 0.0, %v5585
    %5587 = vmatmul.f32.gmra.mxu0 %v5397
    %v5588 = vpop.f32.mrf.mxu0
    %v5589 = vadd.f32 0.0, %v5588
    %5590 = vmatmul.f32.gmra.mxu0 %v5399
    %v5591 = vpop.f32.mrf.mxu0
    %v5592 = vadd.f32 0.0, %v5591
    %5593 = vmatmul.f32.gmra.mxu0 %v5401
    %v5594 = vpop.f32.mrf.mxu0
    %v5595 = vadd.f32 0.0, %v5594
    %5596 = vmatmul.f32.gmra.mxu0 %v5403
    %v5597 = vpop.f32.mrf.mxu0
    %v5598 = vadd.f32 0.0, %v5597
    %5599 = vmatmul.f32.gmra.mxu0 %v5405
    %v5600 = vpop.f32.mrf.mxu0
    %v5601 = vadd.f32 0.0, %v5600
    %5602 = vmatmul.f32.gmra.mxu0 %v5407
    %v5603 = vpop.f32.mrf.mxu0
    %v5604 = vadd.f32 0.0, %v5603
    %5605 = vmatmul.f32.gmra.mxu0 %v5409
    %v5606 = vpop.f32.mrf.mxu0
    %v5607 = vadd.f32 0.0, %v5606
    %5608 = vmatmul.f32.gmra.mxu0 %v5411
    %v5609 = vpop.f32.mrf.mxu0
    %v5610 = vadd.f32 0.0, %v5609
    %5611 = vmatmul.f32.gmra.mxu0 %v5413
    %v5612 = vpop.f32.mrf.mxu0
    %v5613 = vadd.f32 0.0, %v5612
    %5614 = vmatmul.f32.gmra.mxu0 %v5415
    %v5615 = vpop.f32.mrf.mxu0
    %v5616 = vadd.f32 0.0, %v5615
    %5617 = vmatmul.f32.gmra.mxu0 %v5417
    %v5618 = vpop.f32.mrf.mxu0
    %v5619 = vadd.f32 0.0, %v5618
    %5620 = vmatmul.f32.gmra.mxu0 %v5419
    %v5621 = vpop.f32.mrf.mxu0
    %v5622 = vadd.f32 0.0, %v5621
    %5623 = vmatmul.f32.gmra.mxu0 %v5421
    %v5624 = vpop.f32.mrf.mxu0
    %v5625 = vadd.f32 0.0, %v5624
    %5626 = vmatmul.f32.gmra.mxu0 %v5423
    %v5627 = vpop.f32.mrf.mxu0
    %v5628 = vadd.f32 0.0, %v5627
    %5629 = vmatmul.f32.gmra.mxu0 %v5425
    %v5630 = vpop.f32.mrf.mxu0
    %v5631 = vadd.f32 0.0, %v5630
    %5632 = vmatmul.f32.gmra.mxu0 %v5427
    %v5633 = vpop.f32.mrf.mxu0
    %v5634 = vadd.f32 0.0, %v5633
    %5635 = vmatmul.f32.gmra.mxu0 %v5429
    %v5636 = vpop.f32.mrf.mxu0
    %v5637 = vadd.f32 0.0, %v5636
    %5638 = vmatmul.f32.gmra.mxu0 %v5431
    %v5639 = vpop.f32.mrf.mxu0
    %v5640 = vadd.f32 0.0, %v5639
    %5641 = vmatmul.f32.gmra.mxu0 %v5433
    %v5642 = vpop.f32.mrf.mxu0
    %v5643 = vadd.f32 0.0, %v5642
    %5644 = vmatmul.f32.gmra.mxu0 %v5435
    %v5645 = vpop.f32.mrf.mxu0
    %v5646 = vadd.f32 0.0, %v5645
    %5647 = vmatmul.f32.gmra.mxu0 %v5437
    %v5648 = vpop.f32.mrf.mxu0
    %v5649 = vadd.f32 0.0, %v5648
    %5650 = vmatmul.f32.gmra.mxu0 %v5439
    %v5651 = vpop.f32.mrf.mxu0
    %v5652 = vadd.f32 0.0, %v5651
    %5653 = vmatmul.f32.gmra.mxu0 %v5441
    %v5654 = vpop.f32.mrf.mxu0
    %v5655 = vadd.f32 0.0, %v5654
    %5656 = vmatmul.f32.gmra.mxu0 %v5443
    %v5657 = vpop.f32.mrf.mxu0
    %v5658 = vadd.f32 0.0, %v5657
    %5659 = vmatmul.f32.gmra.mxu0 %v5445
    %v5660 = vpop.f32.mrf.mxu0
    %v5661 = vadd.f32 0.0, %v5660
    %5662 = vmatmul.f32.gmra.mxu0 %v5447
    %v5663 = vpop.f32.mrf.mxu0
    %v5664 = vadd.f32 0.0, %v5663
    %5665 = vmatmul.f32.gmra.mxu0 %v5449
    %v5666 = vpop.f32.mrf.mxu0
    %v5667 = vadd.f32 0.0, %v5666
    %5668 = vmatmul.f32.gmra.mxu0 %v5451
    %v5669 = vpop.f32.mrf.mxu0
    %v5670 = vadd.f32 0.0, %v5669
    %5671 = vmatmul.f32.gmra.mxu0 %v5453
    %v5672 = vpop.f32.mrf.mxu0
    %v5673 = vadd.f32 0.0, %v5672
    %5674 = vmatmul.f32.gmra.mxu0 %v5455
    %v5675 = vpop.f32.mrf.mxu0
    %v5676 = vadd.f32 0.0, %v5675
    %5677 = vmatmul.f32.gmra.mxu0 %v5457
    %v5678 = vpop.f32.mrf.mxu0
    %v5679 = vadd.f32 0.0, %v5678
    %5680 = vmatmul.f32.gmra.mxu0 %v5459
    %v5681 = vpop.f32.mrf.mxu0
    %v5682 = vadd.f32 0.0, %v5681
    %5683 = vmatmul.f32.gmra.mxu0 %v5461
    %v5684 = vpop.f32.mrf.mxu0
    %v5685 = vadd.f32 0.0, %v5684
    %5686 = vdwg.mxu0
    %v5687 = vrcp.pop %v5496
    %v5688 = vmul.f32 %v5496, %v5687
    %v5689 = vsub.f32 1.0, %v5688
    %v5690 = vmul.f32 %v5687, %v5689
    %v5691 = vadd.f32 %v5687, %v5690
    %vm5692 = vweird.f32 %v5496
    %vm5693 = vweird.f32 %v5687
    %vm5694 = vmor %vm5692, %vm5693
    %v5695 = vsel %vm5694, %v5687, %v5691
    %v5696 = vand.u32 2147483647, %v5496
    %vm5697 = vcmp.eq.f32.partialorder %v5696, 8.507059e+37
    %v5698 = vand.u32 %v5496, 2147483648
    %v5699 = vor.u32 1.1754944e-38, %v5698
    %v5700 = vsel %vm5697, %v5699, %v5695
    %v5701 = vmul.f32 1.0, %v5700
    %v5702 = vrcp.pop %v5499
    %v5703 = vmul.f32 %v5499, %v5702
    %v5704 = vsub.f32 1.0, %v5703
    %v5705 = vmul.f32 %v5702, %v5704
    %v5706 = vadd.f32 %v5702, %v5705
    %vm5707 = vweird.f32 %v5499
    %vm5708 = vweird.f32 %v5702
    %vm5709 = vmor %vm5707, %vm5708
    %v5710 = vsel %vm5709, %v5702, %v5706
    %v5711 = vand.u32 2147483647, %v5499
    %vm5712 = vcmp.eq.f32.partialorder %v5711, 8.507059e+37
    %v5713 = vand.u32 %v5499, 2147483648
    %v5714 = vor.u32 1.1754944e-38, %v5713
    %v5715 = vsel %vm5712, %v5714, %v5710
    %v5716 = vmul.f32 1.0, %v5715
    %v5717 = vrcp.pop %v5502
    %v5718 = vmul.f32 %v5502, %v5717
    %v5719 = vsub.f32 1.0, %v5718
    %v5720 = vmul.f32 %v5717, %v5719
    %v5721 = vadd.f32 %v5717, %v5720
    %vm5722 = vweird.f32 %v5502
    %vm5723 = vweird.f32 %v5717
    %vm5724 = vmor %vm5722, %vm5723
    %v5725 = vsel %vm5724, %v5717, %v5721
    %v5726 = vand.u32 2147483647, %v5502
    %vm5727 = vcmp.eq.f32.partialorder %v5726, 8.507059e+37
    %v5728 = vand.u32 %v5502, 2147483648
    %v5729 = vor.u32 1.1754944e-38, %v5728
    %v5730 = vsel %vm5727, %v5729, %v5725
    %v5731 = vmul.f32 1.0, %v5730
    %v5732 = vrcp.pop %v5505
    %v5733 = vmul.f32 %v5505, %v5732
    %v5734 = vsub.f32 1.0, %v5733
    %v5735 = vmul.f32 %v5732, %v5734
    %v5736 = vadd.f32 %v5732, %v5735
    %vm5737 = vweird.f32 %v5505
    %vm5738 = vweird.f32 %v5732
    %vm5739 = vmor %vm5737, %vm5738
    %v5740 = vsel %vm5739, %v5732, %v5736
    %v5741 = vand.u32 2147483647, %v5505
    %vm5742 = vcmp.eq.f32.partialorder %v5741, 8.507059e+37
    %v5743 = vand.u32 %v5505, 2147483648
    %v5744 = vor.u32 1.1754944e-38, %v5743
    %v5745 = vsel %vm5742, %v5744, %v5740
    %v5746 = vmul.f32 1.0, %v5745
    %v5747 = vrcp.pop %v5508
    %v5748 = vmul.f32 %v5508, %v5747
    %v5749 = vsub.f32 1.0, %v5748
    %v5750 = vmul.f32 %v5747, %v5749
    %v5751 = vadd.f32 %v5747, %v5750
    %vm5752 = vweird.f32 %v5508
    %vm5753 = vweird.f32 %v5747
    %vm5754 = vmor %vm5752, %vm5753
    %v5755 = vsel %vm5754, %v5747, %v5751
    %v5756 = vand.u32 2147483647, %v5508
    %vm5757 = vcmp.eq.f32.partialorder %v5756, 8.507059e+37
    %v5758 = vand.u32 %v5508, 2147483648
    %v5759 = vor.u32 1.1754944e-38, %v5758
    %v5760 = vsel %vm5757, %v5759, %v5755
    %v5761 = vmul.f32 1.0, %v5760
    %v5762 = vrcp.pop %v5511
    %v5763 = vmul.f32 %v5511, %v5762
    %v5764 = vsub.f32 1.0, %v5763
    %v5765 = vmul.f32 %v5762, %v5764
    %v5766 = vadd.f32 %v5762, %v5765
    %vm5767 = vweird.f32 %v5511
    %vm5768 = vweird.f32 %v5762
    %vm5769 = vmor %vm5767, %vm5768
    %v5770 = vsel %vm5769, %v5762, %v5766
    %v5771 = vand.u32 2147483647, %v5511
    %vm5772 = vcmp.eq.f32.partialorder %v5771, 8.507059e+37
    %v5773 = vand.u32 %v5511, 2147483648
    %v5774 = vor.u32 1.1754944e-38, %v5773
    %v5775 = vsel %vm5772, %v5774, %v5770
    %v5776 = vmul.f32 1.0, %v5775
    %v5777 = vrcp.pop %v5514
    %v5778 = vmul.f32 %v5514, %v5777
    %v5779 = vsub.f32 1.0, %v5778
    %v5780 = vmul.f32 %v5777, %v5779
    %v5781 = vadd.f32 %v5777, %v5780
    %vm5782 = vweird.f32 %v5514
    %vm5783 = vweird.f32 %v5777
    %vm5784 = vmor %vm5782, %vm5783
    %v5785 = vsel %vm5784, %v5777, %v5781
    %v5786 = vand.u32 2147483647, %v5514
    %vm5787 = vcmp.eq.f32.partialorder %v5786, 8.507059e+37
    %v5788 = vand.u32 %v5514, 2147483648
    %v5789 = vor.u32 1.1754944e-38, %v5788
    %v5790 = vsel %vm5787, %v5789, %v5785
    %v5791 = vmul.f32 1.0, %v5790
    %v5792 = vrcp.pop %v5517
    %v5793 = vmul.f32 %v5517, %v5792
    %v5794 = vsub.f32 1.0, %v5793
    %v5795 = vmul.f32 %v5792, %v5794
    %v5796 = vadd.f32 %v5792, %v5795
    %vm5797 = vweird.f32 %v5517
    %vm5798 = vweird.f32 %v5792
    %vm5799 = vmor %vm5797, %vm5798
    %v5800 = vsel %vm5799, %v5792, %v5796
    %v5801 = vand.u32 2147483647, %v5517
    %vm5802 = vcmp.eq.f32.partialorder %v5801, 8.507059e+37
    %v5803 = vand.u32 %v5517, 2147483648
    %v5804 = vor.u32 1.1754944e-38, %v5803
    %v5805 = vsel %vm5802, %v5804, %v5800
    %v5806 = vmul.f32 1.0, %v5805
    %v5807 = vrcp.pop %v5520
    %v5808 = vmul.f32 %v5520, %v5807
    %v5809 = vsub.f32 1.0, %v5808
    %v5810 = vmul.f32 %v5807, %v5809
    %v5811 = vadd.f32 %v5807, %v5810
    %vm5812 = vweird.f32 %v5520
    %vm5813 = vweird.f32 %v5807
    %vm5814 = vmor %vm5812, %vm5813
    %v5815 = vsel %vm5814, %v5807, %v5811
    %v5816 = vand.u32 2147483647, %v5520
    %vm5817 = vcmp.eq.f32.partialorder %v5816, 8.507059e+37
    %v5818 = vand.u32 %v5520, 2147483648
    %v5819 = vor.u32 1.1754944e-38, %v5818
    %v5820 = vsel %vm5817, %v5819, %v5815
    %v5821 = vmul.f32 1.0, %v5820
    %v5822 = vrcp.pop %v5523
    %v5823 = vmul.f32 %v5523, %v5822
    %v5824 = vsub.f32 1.0, %v5823
    %v5825 = vmul.f32 %v5822, %v5824
    %v5826 = vadd.f32 %v5822, %v5825
    %vm5827 = vweird.f32 %v5523
    %vm5828 = vweird.f32 %v5822
    %vm5829 = vmor %vm5827, %vm5828
    %v5830 = vsel %vm5829, %v5822, %v5826
    %v5831 = vand.u32 2147483647, %v5523
    %vm5832 = vcmp.eq.f32.partialorder %v5831, 8.507059e+37
    %v5833 = vand.u32 %v5523, 2147483648
    %v5834 = vor.u32 1.1754944e-38, %v5833
    %v5835 = vsel %vm5832, %v5834, %v5830
    %v5836 = vmul.f32 1.0, %v5835
    %v5837 = vrcp.pop %v5526
    %v5838 = vmul.f32 %v5526, %v5837
    %v5839 = vsub.f32 1.0, %v5838
    %v5840 = vmul.f32 %v5837, %v5839
    %v5841 = vadd.f32 %v5837, %v5840
    %vm5842 = vweird.f32 %v5526
    %vm5843 = vweird.f32 %v5837
    %vm5844 = vmor %vm5842, %vm5843
    %v5845 = vsel %vm5844, %v5837, %v5841
    %v5846 = vand.u32 2147483647, %v5526
    %vm5847 = vcmp.eq.f32.partialorder %v5846, 8.507059e+37
    %v5848 = vand.u32 %v5526, 2147483648
    %v5849 = vor.u32 1.1754944e-38, %v5848
    %v5850 = vsel %vm5847, %v5849, %v5845
    %v5851 = vmul.f32 1.0, %v5850
    %v5852 = vrcp.pop %v5529
    %v5853 = vmul.f32 %v5529, %v5852
    %v5854 = vsub.f32 1.0, %v5853
    %v5855 = vmul.f32 %v5852, %v5854
    %v5856 = vadd.f32 %v5852, %v5855
    %vm5857 = vweird.f32 %v5529
    %vm5858 = vweird.f32 %v5852
    %vm5859 = vmor %vm5857, %vm5858
    %v5860 = vsel %vm5859, %v5852, %v5856
    %v5861 = vand.u32 2147483647, %v5529
    %vm5862 = vcmp.eq.f32.partialorder %v5861, 8.507059e+37
    %v5863 = vand.u32 %v5529, 2147483648
    %v5864 = vor.u32 1.1754944e-38, %v5863
    %v5865 = vsel %vm5862, %v5864, %v5860
    %v5866 = vmul.f32 1.0, %v5865
    %v5867 = vrcp.pop %v5532
    %v5868 = vmul.f32 %v5532, %v5867
    %v5869 = vsub.f32 1.0, %v5868
    %v5870 = vmul.f32 %v5867, %v5869
    %v5871 = vadd.f32 %v5867, %v5870
    %vm5872 = vweird.f32 %v5532
    %vm5873 = vweird.f32 %v5867
    %vm5874 = vmor %vm5872, %vm5873
    %v5875 = vsel %vm5874, %v5867, %v5871
    %v5876 = vand.u32 2147483647, %v5532
    %vm5877 = vcmp.eq.f32.partialorder %v5876, 8.507059e+37
    %v5878 = vand.u32 %v5532, 2147483648
    %v5879 = vor.u32 1.1754944e-38, %v5878
    %v5880 = vsel %vm5877, %v5879, %v5875
    %v5881 = vmul.f32 1.0, %v5880
    %v5882 = vrcp.pop %v5535
    %v5883 = vmul.f32 %v5535, %v5882
    %v5884 = vsub.f32 1.0, %v5883
    %v5885 = vmul.f32 %v5882, %v5884
    %v5886 = vadd.f32 %v5882, %v5885
    %vm5887 = vweird.f32 %v5535
    %vm5888 = vweird.f32 %v5882
    %vm5889 = vmor %vm5887, %vm5888
    %v5890 = vsel %vm5889, %v5882, %v5886
    %v5891 = vand.u32 2147483647, %v5535
    %vm5892 = vcmp.eq.f32.partialorder %v5891, 8.507059e+37
    %v5893 = vand.u32 %v5535, 2147483648
    %v5894 = vor.u32 1.1754944e-38, %v5893
    %v5895 = vsel %vm5892, %v5894, %v5890
    %v5896 = vmul.f32 1.0, %v5895
    %v5897 = vrcp.pop %v5538
    %v5898 = vmul.f32 %v5538, %v5897
    %v5899 = vsub.f32 1.0, %v5898
    %v5900 = vmul.f32 %v5897, %v5899
    %v5901 = vadd.f32 %v5897, %v5900
    %vm5902 = vweird.f32 %v5538
    %vm5903 = vweird.f32 %v5897
    %vm5904 = vmor %vm5902, %vm5903
    %v5905 = vsel %vm5904, %v5897, %v5901
    %v5906 = vand.u32 2147483647, %v5538
    %vm5907 = vcmp.eq.f32.partialorder %v5906, 8.507059e+37
    %v5908 = vand.u32 %v5538, 2147483648
    %v5909 = vor.u32 1.1754944e-38, %v5908
    %v5910 = vsel %vm5907, %v5909, %v5905
    %v5911 = vmul.f32 1.0, %v5910
    %v5912 = vrcp.pop %v5541
    %v5913 = vmul.f32 %v5541, %v5912
    %v5914 = vsub.f32 1.0, %v5913
    %v5915 = vmul.f32 %v5912, %v5914
    %v5916 = vadd.f32 %v5912, %v5915
    %vm5917 = vweird.f32 %v5541
    %vm5918 = vweird.f32 %v5912
    %vm5919 = vmor %vm5917, %vm5918
    %v5920 = vsel %vm5919, %v5912, %v5916
    %v5921 = vand.u32 2147483647, %v5541
    %vm5922 = vcmp.eq.f32.partialorder %v5921, 8.507059e+37
    %v5923 = vand.u32 %v5541, 2147483648
    %v5924 = vor.u32 1.1754944e-38, %v5923
    %v5925 = vsel %vm5922, %v5924, %v5920
    %v5926 = vmul.f32 1.0, %v5925
    %v5927 = vrcp.pop %v5544
    %v5928 = vmul.f32 %v5544, %v5927
    %v5929 = vsub.f32 1.0, %v5928
    %v5930 = vmul.f32 %v5927, %v5929
    %v5931 = vadd.f32 %v5927, %v5930
    %vm5932 = vweird.f32 %v5544
    %vm5933 = vweird.f32 %v5927
    %vm5934 = vmor %vm5932, %vm5933
    %v5935 = vsel %vm5934, %v5927, %v5931
    %v5936 = vand.u32 2147483647, %v5544
    %vm5937 = vcmp.eq.f32.partialorder %v5936, 8.507059e+37
    %v5938 = vand.u32 %v5544, 2147483648
    %v5939 = vor.u32 1.1754944e-38, %v5938
    %v5940 = vsel %vm5937, %v5939, %v5935
    %v5941 = vmul.f32 1.0, %v5940
    %v5942 = vrcp.pop %v5547
    %v5943 = vmul.f32 %v5547, %v5942
    %v5944 = vsub.f32 1.0, %v5943
    %v5945 = vmul.f32 %v5942, %v5944
    %v5946 = vadd.f32 %v5942, %v5945
    %vm5947 = vweird.f32 %v5547
    %vm5948 = vweird.f32 %v5942
    %vm5949 = vmor %vm5947, %vm5948
    %v5950 = vsel %vm5949, %v5942, %v5946
    %v5951 = vand.u32 2147483647, %v5547
    %vm5952 = vcmp.eq.f32.partialorder %v5951, 8.507059e+37
    %v5953 = vand.u32 %v5547, 2147483648
    %v5954 = vor.u32 1.1754944e-38, %v5953
    %v5955 = vsel %vm5952, %v5954, %v5950
    %v5956 = vmul.f32 1.0, %v5955
    %v5957 = vrcp.pop %v5550
    %v5958 = vmul.f32 %v5550, %v5957
    %v5959 = vsub.f32 1.0, %v5958
    %v5960 = vmul.f32 %v5957, %v5959
    %v5961 = vadd.f32 %v5957, %v5960
    %vm5962 = vweird.f32 %v5550
    %vm5963 = vweird.f32 %v5957
    %vm5964 = vmor %vm5962, %vm5963
    %v5965 = vsel %vm5964, %v5957, %v5961
    %v5966 = vand.u32 2147483647, %v5550
    %vm5967 = vcmp.eq.f32.partialorder %v5966, 8.507059e+37
    %v5968 = vand.u32 %v5550, 2147483648
    %v5969 = vor.u32 1.1754944e-38, %v5968
    %v5970 = vsel %vm5967, %v5969, %v5965
    %v5971 = vmul.f32 1.0, %v5970
    %v5972 = vrcp.pop %v5553
    %v5973 = vmul.f32 %v5553, %v5972
    %v5974 = vsub.f32 1.0, %v5973
    %v5975 = vmul.f32 %v5972, %v5974
    %v5976 = vadd.f32 %v5972, %v5975
    %vm5977 = vweird.f32 %v5553
    %vm5978 = vweird.f32 %v5972
    %vm5979 = vmor %vm5977, %vm5978
    %v5980 = vsel %vm5979, %v5972, %v5976
    %v5981 = vand.u32 2147483647, %v5553
    %vm5982 = vcmp.eq.f32.partialorder %v5981, 8.507059e+37
    %v5983 = vand.u32 %v5553, 2147483648
    %v5984 = vor.u32 1.1754944e-38, %v5983
    %v5985 = vsel %vm5982, %v5984, %v5980
    %v5986 = vmul.f32 1.0, %v5985
    %v5987 = vrcp.pop %v5556
    %v5988 = vmul.f32 %v5556, %v5987
    %v5989 = vsub.f32 1.0, %v5988
    %v5990 = vmul.f32 %v5987, %v5989
    %v5991 = vadd.f32 %v5987, %v5990
    %vm5992 = vweird.f32 %v5556
    %vm5993 = vweird.f32 %v5987
    %vm5994 = vmor %vm5992, %vm5993
    %v5995 = vsel %vm5994, %v5987, %v5991
    %v5996 = vand.u32 2147483647, %v5556
    %vm5997 = vcmp.eq.f32.partialorder %v5996, 8.507059e+37
    %v5998 = vand.u32 %v5556, 2147483648
    %v5999 = vor.u32 1.1754944e-38, %v5998
    %v6000 = vsel %vm5997, %v5999, %v5995
    %v6001 = vmul.f32 1.0, %v6000
    %v6002 = vrcp.pop %v5559
    %v6003 = vmul.f32 %v5559, %v6002
    %v6004 = vsub.f32 1.0, %v6003
    %v6005 = vmul.f32 %v6002, %v6004
    %v6006 = vadd.f32 %v6002, %v6005
    %vm6007 = vweird.f32 %v5559
    %vm6008 = vweird.f32 %v6002
    %vm6009 = vmor %vm6007, %vm6008
    %v6010 = vsel %vm6009, %v6002, %v6006
    %v6011 = vand.u32 2147483647, %v5559
    %vm6012 = vcmp.eq.f32.partialorder %v6011, 8.507059e+37
    %v6013 = vand.u32 %v5559, 2147483648
    %v6014 = vor.u32 1.1754944e-38, %v6013
    %v6015 = vsel %vm6012, %v6014, %v6010
    %v6016 = vmul.f32 1.0, %v6015
    %v6017 = vrcp.pop %v5562
    %v6018 = vmul.f32 %v5562, %v6017
    %v6019 = vsub.f32 1.0, %v6018
    %v6020 = vmul.f32 %v6017, %v6019
    %v6021 = vadd.f32 %v6017, %v6020
    %vm6022 = vweird.f32 %v5562
    %vm6023 = vweird.f32 %v6017
    %vm6024 = vmor %vm6022, %vm6023
    %v6025 = vsel %vm6024, %v6017, %v6021
    %v6026 = vand.u32 2147483647, %v5562
    %vm6027 = vcmp.eq.f32.partialorder %v6026, 8.507059e+37
    %v6028 = vand.u32 %v5562, 2147483648
    %v6029 = vor.u32 1.1754944e-38, %v6028
    %v6030 = vsel %vm6027, %v6029, %v6025
    %v6031 = vmul.f32 1.0, %v6030
    %v6032 = vrcp.pop %v5565
    %v6033 = vmul.f32 %v5565, %v6032
    %v6034 = vsub.f32 1.0, %v6033
    %v6035 = vmul.f32 %v6032, %v6034
    %v6036 = vadd.f32 %v6032, %v6035
    %vm6037 = vweird.f32 %v5565
    %vm6038 = vweird.f32 %v6032
    %vm6039 = vmor %vm6037, %vm6038
    %v6040 = vsel %vm6039, %v6032, %v6036
    %v6041 = vand.u32 2147483647, %v5565
    %vm6042 = vcmp.eq.f32.partialorder %v6041, 8.507059e+37
    %v6043 = vand.u32 %v5565, 2147483648
    %v6044 = vor.u32 1.1754944e-38, %v6043
    %v6045 = vsel %vm6042, %v6044, %v6040
    %v6046 = vmul.f32 1.0, %v6045
    %v6047 = vrcp.pop %v5568
    %v6048 = vmul.f32 %v5568, %v6047
    %v6049 = vsub.f32 1.0, %v6048
    %v6050 = vmul.f32 %v6047, %v6049
    %v6051 = vadd.f32 %v6047, %v6050
    %vm6052 = vweird.f32 %v5568
    %vm6053 = vweird.f32 %v6047
    %vm6054 = vmor %vm6052, %vm6053
    %v6055 = vsel %vm6054, %v6047, %v6051
    %v6056 = vand.u32 2147483647, %v5568
    %vm6057 = vcmp.eq.f32.partialorder %v6056, 8.507059e+37
    %v6058 = vand.u32 %v5568, 2147483648
    %v6059 = vor.u32 1.1754944e-38, %v6058
    %v6060 = vsel %vm6057, %v6059, %v6055
    %v6061 = vmul.f32 1.0, %v6060
    %v6062 = vrcp.pop %v5571
    %v6063 = vmul.f32 %v5571, %v6062
    %v6064 = vsub.f32 1.0, %v6063
    %v6065 = vmul.f32 %v6062, %v6064
    %v6066 = vadd.f32 %v6062, %v6065
    %vm6067 = vweird.f32 %v5571
    %vm6068 = vweird.f32 %v6062
    %vm6069 = vmor %vm6067, %vm6068
    %v6070 = vsel %vm6069, %v6062, %v6066
    %v6071 = vand.u32 2147483647, %v5571
    %vm6072 = vcmp.eq.f32.partialorder %v6071, 8.507059e+37
    %v6073 = vand.u32 %v5571, 2147483648
    %v6074 = vor.u32 1.1754944e-38, %v6073
    %v6075 = vsel %vm6072, %v6074, %v6070
    %v6076 = vmul.f32 1.0, %v6075
    %v6077 = vrcp.pop %v5574
    %v6078 = vmul.f32 %v5574, %v6077
    %v6079 = vsub.f32 1.0, %v6078
    %v6080 = vmul.f32 %v6077, %v6079
    %v6081 = vadd.f32 %v6077, %v6080
    %vm6082 = vweird.f32 %v5574
    %vm6083 = vweird.f32 %v6077
    %vm6084 = vmor %vm6082, %vm6083
    %v6085 = vsel %vm6084, %v6077, %v6081
    %v6086 = vand.u32 2147483647, %v5574
    %vm6087 = vcmp.eq.f32.partialorder %v6086, 8.507059e+37
    %v6088 = vand.u32 %v5574, 2147483648
    %v6089 = vor.u32 1.1754944e-38, %v6088
    %v6090 = vsel %vm6087, %v6089, %v6085
    %v6091 = vmul.f32 1.0, %v6090
    %v6092 = vrcp.pop %v5577
    %v6093 = vmul.f32 %v5577, %v6092
    %v6094 = vsub.f32 1.0, %v6093
    %v6095 = vmul.f32 %v6092, %v6094
    %v6096 = vadd.f32 %v6092, %v6095
    %vm6097 = vweird.f32 %v5577
    %vm6098 = vweird.f32 %v6092
    %vm6099 = vmor %vm6097, %vm6098
    %v6100 = vsel %vm6099, %v6092, %v6096
    %v6101 = vand.u32 2147483647, %v5577
    %vm6102 = vcmp.eq.f32.partialorder %v6101, 8.507059e+37
    %v6103 = vand.u32 %v5577, 2147483648
    %v6104 = vor.u32 1.1754944e-38, %v6103
    %v6105 = vsel %vm6102, %v6104, %v6100
    %v6106 = vmul.f32 1.0, %v6105
    %v6107 = vrcp.pop %v5580
    %v6108 = vmul.f32 %v5580, %v6107
    %v6109 = vsub.f32 1.0, %v6108
    %v6110 = vmul.f32 %v6107, %v6109
    %v6111 = vadd.f32 %v6107, %v6110
    %vm6112 = vweird.f32 %v5580
    %vm6113 = vweird.f32 %v6107
    %vm6114 = vmor %vm6112, %vm6113
    %v6115 = vsel %vm6114, %v6107, %v6111
    %v6116 = vand.u32 2147483647, %v5580
    %vm6117 = vcmp.eq.f32.partialorder %v6116, 8.507059e+37
    %v6118 = vand.u32 %v5580, 2147483648
    %v6119 = vor.u32 1.1754944e-38, %v6118
    %v6120 = vsel %vm6117, %v6119, %v6115
    %v6121 = vmul.f32 1.0, %v6120
    %v6122 = vrcp.pop %v5583
    %v6123 = vmul.f32 %v5583, %v6122
    %v6124 = vsub.f32 1.0, %v6123
    %v6125 = vmul.f32 %v6122, %v6124
    %v6126 = vadd.f32 %v6122, %v6125
    %vm6127 = vweird.f32 %v5583
    %vm6128 = vweird.f32 %v6122
    %vm6129 = vmor %vm6127, %vm6128
    %v6130 = vsel %vm6129, %v6122, %v6126
    %v6131 = vand.u32 2147483647, %v5583
    %vm6132 = vcmp.eq.f32.partialorder %v6131, 8.507059e+37
    %v6133 = vand.u32 %v5583, 2147483648
    %v6134 = vor.u32 1.1754944e-38, %v6133
    %v6135 = vsel %vm6132, %v6134, %v6130
    %v6136 = vmul.f32 1.0, %v6135
    %v6137 = vrcp.pop %v5586
    %v6138 = vmul.f32 %v5586, %v6137
    %v6139 = vsub.f32 1.0, %v6138
    %v6140 = vmul.f32 %v6137, %v6139
    %v6141 = vadd.f32 %v6137, %v6140
    %vm6142 = vweird.f32 %v5586
    %vm6143 = vweird.f32 %v6137
    %vm6144 = vmor %vm6142, %vm6143
    %v6145 = vsel %vm6144, %v6137, %v6141
    %v6146 = vand.u32 2147483647, %v5586
    %vm6147 = vcmp.eq.f32.partialorder %v6146, 8.507059e+37
    %v6148 = vand.u32 %v5586, 2147483648
    %v6149 = vor.u32 1.1754944e-38, %v6148
    %v6150 = vsel %vm6147, %v6149, %v6145
    %v6151 = vmul.f32 1.0, %v6150
    %v6152 = vrcp.pop %v5589
    %v6153 = vmul.f32 %v5589, %v6152
    %v6154 = vsub.f32 1.0, %v6153
    %v6155 = vmul.f32 %v6152, %v6154
    %v6156 = vadd.f32 %v6152, %v6155
    %vm6157 = vweird.f32 %v5589
    %vm6158 = vweird.f32 %v6152
    %vm6159 = vmor %vm6157, %vm6158
    %v6160 = vsel %vm6159, %v6152, %v6156
    %v6161 = vand.u32 2147483647, %v5589
    %vm6162 = vcmp.eq.f32.partialorder %v6161, 8.507059e+37
    %v6163 = vand.u32 %v5589, 2147483648
    %v6164 = vor.u32 1.1754944e-38, %v6163
    %v6165 = vsel %vm6162, %v6164, %v6160
    %v6166 = vmul.f32 1.0, %v6165
    %v6167 = vrcp.pop %v5592
    %v6168 = vmul.f32 %v5592, %v6167
    %v6169 = vsub.f32 1.0, %v6168
    %v6170 = vmul.f32 %v6167, %v6169
    %v6171 = vadd.f32 %v6167, %v6170
    %vm6172 = vweird.f32 %v5592
    %vm6173 = vweird.f32 %v6167
    %vm6174 = vmor %vm6172, %vm6173
    %v6175 = vsel %vm6174, %v6167, %v6171
    %v6176 = vand.u32 2147483647, %v5592
    %vm6177 = vcmp.eq.f32.partialorder %v6176, 8.507059e+37
    %v6178 = vand.u32 %v5592, 2147483648
    %v6179 = vor.u32 1.1754944e-38, %v6178
    %v6180 = vsel %vm6177, %v6179, %v6175
    %v6181 = vmul.f32 1.0, %v6180
    %v6182 = vrcp.pop %v5595
    %v6183 = vmul.f32 %v5595, %v6182
    %v6184 = vsub.f32 1.0, %v6183
    %v6185 = vmul.f32 %v6182, %v6184
    %v6186 = vadd.f32 %v6182, %v6185
    %vm6187 = vweird.f32 %v5595
    %vm6188 = vweird.f32 %v6182
    %vm6189 = vmor %vm6187, %vm6188
    %v6190 = vsel %vm6189, %v6182, %v6186
    %v6191 = vand.u32 2147483647, %v5595
    %vm6192 = vcmp.eq.f32.partialorder %v6191, 8.507059e+37
    %v6193 = vand.u32 %v5595, 2147483648
    %v6194 = vor.u32 1.1754944e-38, %v6193
    %v6195 = vsel %vm6192, %v6194, %v6190
    %v6196 = vmul.f32 1.0, %v6195
    %v6197 = vrcp.pop %v5598
    %v6198 = vmul.f32 %v5598, %v6197
    %v6199 = vsub.f32 1.0, %v6198
    %v6200 = vmul.f32 %v6197, %v6199
    %v6201 = vadd.f32 %v6197, %v6200
    %vm6202 = vweird.f32 %v5598
    %vm6203 = vweird.f32 %v6197
    %vm6204 = vmor %vm6202, %vm6203
    %v6205 = vsel %vm6204, %v6197, %v6201
    %v6206 = vand.u32 2147483647, %v5598
    %vm6207 = vcmp.eq.f32.partialorder %v6206, 8.507059e+37
    %v6208 = vand.u32 %v5598, 2147483648
    %v6209 = vor.u32 1.1754944e-38, %v6208
    %v6210 = vsel %vm6207, %v6209, %v6205
    %v6211 = vmul.f32 1.0, %v6210
    %v6212 = vrcp.pop %v5601
    %v6213 = vmul.f32 %v5601, %v6212
    %v6214 = vsub.f32 1.0, %v6213
    %v6215 = vmul.f32 %v6212, %v6214
    %v6216 = vadd.f32 %v6212, %v6215
    %vm6217 = vweird.f32 %v5601
    %vm6218 = vweird.f32 %v6212
    %vm6219 = vmor %vm6217, %vm6218
    %v6220 = vsel %vm6219, %v6212, %v6216
    %v6221 = vand.u32 2147483647, %v5601
    %vm6222 = vcmp.eq.f32.partialorder %v6221, 8.507059e+37
    %v6223 = vand.u32 %v5601, 2147483648
    %v6224 = vor.u32 1.1754944e-38, %v6223
    %v6225 = vsel %vm6222, %v6224, %v6220
    %v6226 = vmul.f32 1.0, %v6225
    %v6227 = vrcp.pop %v5604
    %v6228 = vmul.f32 %v5604, %v6227
    %v6229 = vsub.f32 1.0, %v6228
    %v6230 = vmul.f32 %v6227, %v6229
    %v6231 = vadd.f32 %v6227, %v6230
    %vm6232 = vweird.f32 %v5604
    %vm6233 = vweird.f32 %v6227
    %vm6234 = vmor %vm6232, %vm6233
    %v6235 = vsel %vm6234, %v6227, %v6231
    %v6236 = vand.u32 2147483647, %v5604
    %vm6237 = vcmp.eq.f32.partialorder %v6236, 8.507059e+37
    %v6238 = vand.u32 %v5604, 2147483648
    %v6239 = vor.u32 1.1754944e-38, %v6238
    %v6240 = vsel %vm6237, %v6239, %v6235
    %v6241 = vmul.f32 1.0, %v6240
    %v6242 = vrcp.pop %v5607
    %v6243 = vmul.f32 %v5607, %v6242
    %v6244 = vsub.f32 1.0, %v6243
    %v6245 = vmul.f32 %v6242, %v6244
    %v6246 = vadd.f32 %v6242, %v6245
    %vm6247 = vweird.f32 %v5607
    %vm6248 = vweird.f32 %v6242
    %vm6249 = vmor %vm6247, %vm6248
    %v6250 = vsel %vm6249, %v6242, %v6246
    %v6251 = vand.u32 2147483647, %v5607
    %vm6252 = vcmp.eq.f32.partialorder %v6251, 8.507059e+37
    %v6253 = vand.u32 %v5607, 2147483648
    %v6254 = vor.u32 1.1754944e-38, %v6253
    %v6255 = vsel %vm6252, %v6254, %v6250
    %v6256 = vmul.f32 1.0, %v6255
    %v6257 = vrcp.pop %v5610
    %v6258 = vmul.f32 %v5610, %v6257
    %v6259 = vsub.f32 1.0, %v6258
    %v6260 = vmul.f32 %v6257, %v6259
    %v6261 = vadd.f32 %v6257, %v6260
    %vm6262 = vweird.f32 %v5610
    %vm6263 = vweird.f32 %v6257
    %vm6264 = vmor %vm6262, %vm6263
    %v6265 = vsel %vm6264, %v6257, %v6261
    %v6266 = vand.u32 2147483647, %v5610
    %vm6267 = vcmp.eq.f32.partialorder %v6266, 8.507059e+37
    %v6268 = vand.u32 %v5610, 2147483648
    %v6269 = vor.u32 1.1754944e-38, %v6268
    %v6270 = vsel %vm6267, %v6269, %v6265
    %v6271 = vmul.f32 1.0, %v6270
    %v6272 = vrcp.pop %v5613
    %v6273 = vmul.f32 %v5613, %v6272
    %v6274 = vsub.f32 1.0, %v6273
    %v6275 = vmul.f32 %v6272, %v6274
    %v6276 = vadd.f32 %v6272, %v6275
    %vm6277 = vweird.f32 %v5613
    %vm6278 = vweird.f32 %v6272
    %vm6279 = vmor %vm6277, %vm6278
    %v6280 = vsel %vm6279, %v6272, %v6276
    %v6281 = vand.u32 2147483647, %v5613
    %vm6282 = vcmp.eq.f32.partialorder %v6281, 8.507059e+37
    %v6283 = vand.u32 %v5613, 2147483648
    %v6284 = vor.u32 1.1754944e-38, %v6283
    %v6285 = vsel %vm6282, %v6284, %v6280
    %v6286 = vmul.f32 1.0, %v6285
    %v6287 = vrcp.pop %v5616
    %v6288 = vmul.f32 %v5616, %v6287
    %v6289 = vsub.f32 1.0, %v6288
    %v6290 = vmul.f32 %v6287, %v6289
    %v6291 = vadd.f32 %v6287, %v6290
    %vm6292 = vweird.f32 %v5616
    %vm6293 = vweird.f32 %v6287
    %vm6294 = vmor %vm6292, %vm6293
    %v6295 = vsel %vm6294, %v6287, %v6291
    %v6296 = vand.u32 2147483647, %v5616
    %vm6297 = vcmp.eq.f32.partialorder %v6296, 8.507059e+37
    %v6298 = vand.u32 %v5616, 2147483648
    %v6299 = vor.u32 1.1754944e-38, %v6298
    %v6300 = vsel %vm6297, %v6299, %v6295
    %v6301 = vmul.f32 1.0, %v6300
    %v6302 = vrcp.pop %v5619
    %v6303 = vmul.f32 %v5619, %v6302
    %v6304 = vsub.f32 1.0, %v6303
    %v6305 = vmul.f32 %v6302, %v6304
    %v6306 = vadd.f32 %v6302, %v6305
    %vm6307 = vweird.f32 %v5619
    %vm6308 = vweird.f32 %v6302
    %vm6309 = vmor %vm6307, %vm6308
    %v6310 = vsel %vm6309, %v6302, %v6306
    %v6311 = vand.u32 2147483647, %v5619
    %vm6312 = vcmp.eq.f32.partialorder %v6311, 8.507059e+37
    %v6313 = vand.u32 %v5619, 2147483648
    %v6314 = vor.u32 1.1754944e-38, %v6313
    %v6315 = vsel %vm6312, %v6314, %v6310
    %v6316 = vmul.f32 1.0, %v6315
    %v6317 = vrcp.pop %v5622
    %v6318 = vmul.f32 %v5622, %v6317
    %v6319 = vsub.f32 1.0, %v6318
    %v6320 = vmul.f32 %v6317, %v6319
    %v6321 = vadd.f32 %v6317, %v6320
    %vm6322 = vweird.f32 %v5622
    %vm6323 = vweird.f32 %v6317
    %vm6324 = vmor %vm6322, %vm6323
    %v6325 = vsel %vm6324, %v6317, %v6321
    %v6326 = vand.u32 2147483647, %v5622
    %vm6327 = vcmp.eq.f32.partialorder %v6326, 8.507059e+37
    %v6328 = vand.u32 %v5622, 2147483648
    %v6329 = vor.u32 1.1754944e-38, %v6328
    %v6330 = vsel %vm6327, %v6329, %v6325
    %v6331 = vmul.f32 1.0, %v6330
    %v6332 = vrcp.pop %v5625
    %v6333 = vmul.f32 %v5625, %v6332
    %v6334 = vsub.f32 1.0, %v6333
    %v6335 = vmul.f32 %v6332, %v6334
    %v6336 = vadd.f32 %v6332, %v6335
    %vm6337 = vweird.f32 %v5625
    %vm6338 = vweird.f32 %v6332
    %vm6339 = vmor %vm6337, %vm6338
    %v6340 = vsel %vm6339, %v6332, %v6336
    %v6341 = vand.u32 2147483647, %v5625
    %vm6342 = vcmp.eq.f32.partialorder %v6341, 8.507059e+37
    %v6343 = vand.u32 %v5625, 2147483648
    %v6344 = vor.u32 1.1754944e-38, %v6343
    %v6345 = vsel %vm6342, %v6344, %v6340
    %v6346 = vmul.f32 1.0, %v6345
    %v6347 = vrcp.pop %v5628
    %v6348 = vmul.f32 %v5628, %v6347
    %v6349 = vsub.f32 1.0, %v6348
    %v6350 = vmul.f32 %v6347, %v6349
    %v6351 = vadd.f32 %v6347, %v6350
    %vm6352 = vweird.f32 %v5628
    %vm6353 = vweird.f32 %v6347
    %vm6354 = vmor %vm6352, %vm6353
    %v6355 = vsel %vm6354, %v6347, %v6351
    %v6356 = vand.u32 2147483647, %v5628
    %vm6357 = vcmp.eq.f32.partialorder %v6356, 8.507059e+37
    %v6358 = vand.u32 %v5628, 2147483648
    %v6359 = vor.u32 1.1754944e-38, %v6358
    %v6360 = vsel %vm6357, %v6359, %v6355
    %v6361 = vmul.f32 1.0, %v6360
    %v6362 = vrcp.pop %v5631
    %v6363 = vmul.f32 %v5631, %v6362
    %v6364 = vsub.f32 1.0, %v6363
    %v6365 = vmul.f32 %v6362, %v6364
    %v6366 = vadd.f32 %v6362, %v6365
    %vm6367 = vweird.f32 %v5631
    %vm6368 = vweird.f32 %v6362
    %vm6369 = vmor %vm6367, %vm6368
    %v6370 = vsel %vm6369, %v6362, %v6366
    %v6371 = vand.u32 2147483647, %v5631
    %vm6372 = vcmp.eq.f32.partialorder %v6371, 8.507059e+37
    %v6373 = vand.u32 %v5631, 2147483648
    %v6374 = vor.u32 1.1754944e-38, %v6373
    %v6375 = vsel %vm6372, %v6374, %v6370
    %v6376 = vmul.f32 1.0, %v6375
    %v6377 = vrcp.pop %v5634
    %v6378 = vmul.f32 %v5634, %v6377
    %v6379 = vsub.f32 1.0, %v6378
    %v6380 = vmul.f32 %v6377, %v6379
    %v6381 = vadd.f32 %v6377, %v6380
    %vm6382 = vweird.f32 %v5634
    %vm6383 = vweird.f32 %v6377
    %vm6384 = vmor %vm6382, %vm6383
    %v6385 = vsel %vm6384, %v6377, %v6381
    %v6386 = vand.u32 2147483647, %v5634
    %vm6387 = vcmp.eq.f32.partialorder %v6386, 8.507059e+37
    %v6388 = vand.u32 %v5634, 2147483648
    %v6389 = vor.u32 1.1754944e-38, %v6388
    %v6390 = vsel %vm6387, %v6389, %v6385
    %v6391 = vmul.f32 1.0, %v6390
    %v6392 = vrcp.pop %v5637
    %v6393 = vmul.f32 %v5637, %v6392
    %v6394 = vsub.f32 1.0, %v6393
    %v6395 = vmul.f32 %v6392, %v6394
    %v6396 = vadd.f32 %v6392, %v6395
    %vm6397 = vweird.f32 %v5637
    %vm6398 = vweird.f32 %v6392
    %vm6399 = vmor %vm6397, %vm6398
    %v6400 = vsel %vm6399, %v6392, %v6396
    %v6401 = vand.u32 2147483647, %v5637
    %vm6402 = vcmp.eq.f32.partialorder %v6401, 8.507059e+37
    %v6403 = vand.u32 %v5637, 2147483648
    %v6404 = vor.u32 1.1754944e-38, %v6403
    %v6405 = vsel %vm6402, %v6404, %v6400
    %v6406 = vmul.f32 1.0, %v6405
    %v6407 = vrcp.pop %v5640
    %v6408 = vmul.f32 %v5640, %v6407
    %v6409 = vsub.f32 1.0, %v6408
    %v6410 = vmul.f32 %v6407, %v6409
    %v6411 = vadd.f32 %v6407, %v6410
    %vm6412 = vweird.f32 %v5640
    %vm6413 = vweird.f32 %v6407
    %vm6414 = vmor %vm6412, %vm6413
    %v6415 = vsel %vm6414, %v6407, %v6411
    %v6416 = vand.u32 2147483647, %v5640
    %vm6417 = vcmp.eq.f32.partialorder %v6416, 8.507059e+37
    %v6418 = vand.u32 %v5640, 2147483648
    %v6419 = vor.u32 1.1754944e-38, %v6418
    %v6420 = vsel %vm6417, %v6419, %v6415
    %v6421 = vmul.f32 1.0, %v6420
    %v6422 = vrcp.pop %v5643
    %v6423 = vmul.f32 %v5643, %v6422
    %v6424 = vsub.f32 1.0, %v6423
    %v6425 = vmul.f32 %v6422, %v6424
    %v6426 = vadd.f32 %v6422, %v6425
    %vm6427 = vweird.f32 %v5643
    %vm6428 = vweird.f32 %v6422
    %vm6429 = vmor %vm6427, %vm6428
    %v6430 = vsel %vm6429, %v6422, %v6426
    %v6431 = vand.u32 2147483647, %v5643
    %vm6432 = vcmp.eq.f32.partialorder %v6431, 8.507059e+37
    %v6433 = vand.u32 %v5643, 2147483648
    %v6434 = vor.u32 1.1754944e-38, %v6433
    %v6435 = vsel %vm6432, %v6434, %v6430
    %v6436 = vmul.f32 1.0, %v6435
    %v6437 = vrcp.pop %v5646
    %v6438 = vmul.f32 %v5646, %v6437
    %v6439 = vsub.f32 1.0, %v6438
    %v6440 = vmul.f32 %v6437, %v6439
    %v6441 = vadd.f32 %v6437, %v6440
    %vm6442 = vweird.f32 %v5646
    %vm6443 = vweird.f32 %v6437
    %vm6444 = vmor %vm6442, %vm6443
    %v6445 = vsel %vm6444, %v6437, %v6441
    %v6446 = vand.u32 2147483647, %v5646
    %vm6447 = vcmp.eq.f32.partialorder %v6446, 8.507059e+37
    %v6448 = vand.u32 %v5646, 2147483648
    %v6449 = vor.u32 1.1754944e-38, %v6448
    %v6450 = vsel %vm6447, %v6449, %v6445
    %v6451 = vmul.f32 1.0, %v6450
    %v6452 = vrcp.pop %v5649
    %v6453 = vmul.f32 %v5649, %v6452
    %v6454 = vsub.f32 1.0, %v6453
    %v6455 = vmul.f32 %v6452, %v6454
    %v6456 = vadd.f32 %v6452, %v6455
    %vm6457 = vweird.f32 %v5649
    %vm6458 = vweird.f32 %v6452
    %vm6459 = vmor %vm6457, %vm6458
    %v6460 = vsel %vm6459, %v6452, %v6456
    %v6461 = vand.u32 2147483647, %v5649
    %vm6462 = vcmp.eq.f32.partialorder %v6461, 8.507059e+37
    %v6463 = vand.u32 %v5649, 2147483648
    %v6464 = vor.u32 1.1754944e-38, %v6463
    %v6465 = vsel %vm6462, %v6464, %v6460
    %v6466 = vmul.f32 1.0, %v6465
    %v6467 = vrcp.pop %v5652
    %v6468 = vmul.f32 %v5652, %v6467
    %v6469 = vsub.f32 1.0, %v6468
    %v6470 = vmul.f32 %v6467, %v6469
    %v6471 = vadd.f32 %v6467, %v6470
    %vm6472 = vweird.f32 %v5652
    %vm6473 = vweird.f32 %v6467
    %vm6474 = vmor %vm6472, %vm6473
    %v6475 = vsel %vm6474, %v6467, %v6471
    %v6476 = vand.u32 2147483647, %v5652
    %vm6477 = vcmp.eq.f32.partialorder %v6476, 8.507059e+37
    %v6478 = vand.u32 %v5652, 2147483648
    %v6479 = vor.u32 1.1754944e-38, %v6478
    %v6480 = vsel %vm6477, %v6479, %v6475
    %v6481 = vmul.f32 1.0, %v6480
    %v6482 = vrcp.pop %v5655
    %v6483 = vmul.f32 %v5655, %v6482
    %v6484 = vsub.f32 1.0, %v6483
    %v6485 = vmul.f32 %v6482, %v6484
    %v6486 = vadd.f32 %v6482, %v6485
    %vm6487 = vweird.f32 %v5655
    %vm6488 = vweird.f32 %v6482
    %vm6489 = vmor %vm6487, %vm6488
    %v6490 = vsel %vm6489, %v6482, %v6486
    %v6491 = vand.u32 2147483647, %v5655
    %vm6492 = vcmp.eq.f32.partialorder %v6491, 8.507059e+37
    %v6493 = vand.u32 %v5655, 2147483648
    %v6494 = vor.u32 1.1754944e-38, %v6493
    %v6495 = vsel %vm6492, %v6494, %v6490
    %v6496 = vmul.f32 1.0, %v6495
    %v6497 = vrcp.pop %v5658
    %v6498 = vmul.f32 %v5658, %v6497
    %v6499 = vsub.f32 1.0, %v6498
    %v6500 = vmul.f32 %v6497, %v6499
    %v6501 = vadd.f32 %v6497, %v6500
    %vm6502 = vweird.f32 %v5658
    %vm6503 = vweird.f32 %v6497
    %vm6504 = vmor %vm6502, %vm6503
    %v6505 = vsel %vm6504, %v6497, %v6501
    %v6506 = vand.u32 2147483647, %v5658
    %vm6507 = vcmp.eq.f32.partialorder %v6506, 8.507059e+37
    %v6508 = vand.u32 %v5658, 2147483648
    %v6509 = vor.u32 1.1754944e-38, %v6508
    %v6510 = vsel %vm6507, %v6509, %v6505
    %v6511 = vmul.f32 1.0, %v6510
    %v6512 = vrcp.pop %v5661
    %v6513 = vmul.f32 %v5661, %v6512
    %v6514 = vsub.f32 1.0, %v6513
    %v6515 = vmul.f32 %v6512, %v6514
    %v6516 = vadd.f32 %v6512, %v6515
    %vm6517 = vweird.f32 %v5661
    %vm6518 = vweird.f32 %v6512
    %vm6519 = vmor %vm6517, %vm6518
    %v6520 = vsel %vm6519, %v6512, %v6516
    %v6521 = vand.u32 2147483647, %v5661
    %vm6522 = vcmp.eq.f32.partialorder %v6521, 8.507059e+37
    %v6523 = vand.u32 %v5661, 2147483648
    %v6524 = vor.u32 1.1754944e-38, %v6523
    %v6525 = vsel %vm6522, %v6524, %v6520
    %v6526 = vmul.f32 1.0, %v6525
    %v6527 = vrcp.pop %v5664
    %v6528 = vmul.f32 %v5664, %v6527
    %v6529 = vsub.f32 1.0, %v6528
    %v6530 = vmul.f32 %v6527, %v6529
    %v6531 = vadd.f32 %v6527, %v6530
    %vm6532 = vweird.f32 %v5664
    %vm6533 = vweird.f32 %v6527
    %vm6534 = vmor %vm6532, %vm6533
    %v6535 = vsel %vm6534, %v6527, %v6531
    %v6536 = vand.u32 2147483647, %v5664
    %vm6537 = vcmp.eq.f32.partialorder %v6536, 8.507059e+37
    %v6538 = vand.u32 %v5664, 2147483648
    %v6539 = vor.u32 1.1754944e-38, %v6538
    %v6540 = vsel %vm6537, %v6539, %v6535
    %v6541 = vmul.f32 1.0, %v6540
    %v6542 = vrcp.pop %v5667
    %v6543 = vmul.f32 %v5667, %v6542
    %v6544 = vsub.f32 1.0, %v6543
    %v6545 = vmul.f32 %v6542, %v6544
    %v6546 = vadd.f32 %v6542, %v6545
    %vm6547 = vweird.f32 %v5667
    %vm6548 = vweird.f32 %v6542
    %vm6549 = vmor %vm6547, %vm6548
    %v6550 = vsel %vm6549, %v6542, %v6546
    %v6551 = vand.u32 2147483647, %v5667
    %vm6552 = vcmp.eq.f32.partialorder %v6551, 8.507059e+37
    %v6553 = vand.u32 %v5667, 2147483648
    %v6554 = vor.u32 1.1754944e-38, %v6553
    %v6555 = vsel %vm6552, %v6554, %v6550
    %v6556 = vmul.f32 1.0, %v6555
    %v6557 = vrcp.pop %v5670
    %v6558 = vmul.f32 %v5670, %v6557
    %v6559 = vsub.f32 1.0, %v6558
    %v6560 = vmul.f32 %v6557, %v6559
    %v6561 = vadd.f32 %v6557, %v6560
    %vm6562 = vweird.f32 %v5670
    %vm6563 = vweird.f32 %v6557
    %vm6564 = vmor %vm6562, %vm6563
    %v6565 = vsel %vm6564, %v6557, %v6561
    %v6566 = vand.u32 2147483647, %v5670
    %vm6567 = vcmp.eq.f32.partialorder %v6566, 8.507059e+37
    %v6568 = vand.u32 %v5670, 2147483648
    %v6569 = vor.u32 1.1754944e-38, %v6568
    %v6570 = vsel %vm6567, %v6569, %v6565
    %v6571 = vmul.f32 1.0, %v6570
    %v6572 = vrcp.pop %v5673
    %v6573 = vmul.f32 %v5673, %v6572
    %v6574 = vsub.f32 1.0, %v6573
    %v6575 = vmul.f32 %v6572, %v6574
    %v6576 = vadd.f32 %v6572, %v6575
    %vm6577 = vweird.f32 %v5673
    %vm6578 = vweird.f32 %v6572
    %vm6579 = vmor %vm6577, %vm6578
    %v6580 = vsel %vm6579, %v6572, %v6576
    %v6581 = vand.u32 2147483647, %v5673
    %vm6582 = vcmp.eq.f32.partialorder %v6581, 8.507059e+37
    %v6583 = vand.u32 %v5673, 2147483648
    %v6584 = vor.u32 1.1754944e-38, %v6583
    %v6585 = vsel %vm6582, %v6584, %v6580
    %v6586 = vmul.f32 1.0, %v6585
    %v6587 = vrcp.pop %v5676
    %v6588 = vmul.f32 %v5676, %v6587
    %v6589 = vsub.f32 1.0, %v6588
    %v6590 = vmul.f32 %v6587, %v6589
    %v6591 = vadd.f32 %v6587, %v6590
    %vm6592 = vweird.f32 %v5676
    %vm6593 = vweird.f32 %v6587
    %vm6594 = vmor %vm6592, %vm6593
    %v6595 = vsel %vm6594, %v6587, %v6591
    %v6596 = vand.u32 2147483647, %v5676
    %vm6597 = vcmp.eq.f32.partialorder %v6596, 8.507059e+37
    %v6598 = vand.u32 %v5676, 2147483648
    %v6599 = vor.u32 1.1754944e-38, %v6598
    %v6600 = vsel %vm6597, %v6599, %v6595
    %v6601 = vmul.f32 1.0, %v6600
    %v6602 = vrcp.pop %v5679
    %v6603 = vmul.f32 %v5679, %v6602
    %v6604 = vsub.f32 1.0, %v6603
    %v6605 = vmul.f32 %v6602, %v6604
    %v6606 = vadd.f32 %v6602, %v6605
    %vm6607 = vweird.f32 %v5679
    %vm6608 = vweird.f32 %v6602
    %vm6609 = vmor %vm6607, %vm6608
    %v6610 = vsel %vm6609, %v6602, %v6606
    %v6611 = vand.u32 2147483647, %v5679
    %vm6612 = vcmp.eq.f32.partialorder %v6611, 8.507059e+37
    %v6613 = vand.u32 %v5679, 2147483648
    %v6614 = vor.u32 1.1754944e-38, %v6613
    %v6615 = vsel %vm6612, %v6614, %v6610
    %v6616 = vmul.f32 1.0, %v6615
    %v6617 = vrcp.pop %v5682
    %v6618 = vmul.f32 %v5682, %v6617
    %v6619 = vsub.f32 1.0, %v6618
    %v6620 = vmul.f32 %v6617, %v6619
    %v6621 = vadd.f32 %v6617, %v6620
    %vm6622 = vweird.f32 %v5682
    %vm6623 = vweird.f32 %v6617
    %vm6624 = vmor %vm6622, %vm6623
    %v6625 = vsel %vm6624, %v6617, %v6621
    %v6626 = vand.u32 2147483647, %v5682
    %vm6627 = vcmp.eq.f32.partialorder %v6626, 8.507059e+37
    %v6628 = vand.u32 %v5682, 2147483648
    %v6629 = vor.u32 1.1754944e-38, %v6628
    %v6630 = vsel %vm6627, %v6629, %v6625
    %v6631 = vmul.f32 1.0, %v6630
    %v6632 = vrcp.pop %v5685
    %v6633 = vmul.f32 %v5685, %v6632
    %v6634 = vsub.f32 1.0, %v6633
    %v6635 = vmul.f32 %v6632, %v6634
    %v6636 = vadd.f32 %v6632, %v6635
    %vm6637 = vweird.f32 %v5685
    %vm6638 = vweird.f32 %v6632
    %vm6639 = vmor %vm6637, %vm6638
    %v6640 = vsel %vm6639, %v6632, %v6636
    %v6641 = vand.u32 2147483647, %v5685
    %vm6642 = vcmp.eq.f32.partialorder %v6641, 8.507059e+37
    %v6643 = vand.u32 %v5685, 2147483648
    %v6644 = vor.u32 1.1754944e-38, %v6643
    %v6645 = vsel %vm6642, %v6644, %v6640
    %v6646 = vmul.f32 1.0, %v6645
    %6663 = vrot.lane.b32.xlu0 %v1140, 64
    %v6664 = vpop.permute.xlu0 %6663
    %6665 = vrot.lane.b32.xlu0 %v1141, 64
    %v6666 = vpop.permute.xlu0 %6665
    %6667 = vrot.lane.b32.xlu0 %v1142, 64
    %v6668 = vpop.permute.xlu0 %6667
    %6669 = vrot.lane.b32.xlu0 %v1143, 64
    %v6670 = vpop.permute.xlu0 %6669
    %6671 = vrot.lane.b32.xlu0 %v1144, 64
    %v6672 = vpop.permute.xlu0 %6671
    %6673 = vrot.lane.b32.xlu0 %v1145, 64
    %v6674 = vpop.permute.xlu0 %6673
    %6675 = vrot.lane.b32.xlu0 %v1146, 64
    %v6676 = vpop.permute.xlu0 %6675
    %6677 = vrot.lane.b32.xlu0 %v1147, 64
    %v6678 = vpop.permute.xlu0 %6677
    %6679 = vrot.lane.b32.xlu0 %v1148, 64
    %v6680 = vpop.permute.xlu0 %6679
    %6681 = vrot.lane.b32.xlu0 %v1149, 64
    %v6682 = vpop.permute.xlu0 %6681
    %6683 = vrot.lane.b32.xlu0 %v1150, 64
    %v6684 = vpop.permute.xlu0 %6683
    %6685 = vrot.lane.b32.xlu0 %v1151, 64
    %v6686 = vpop.permute.xlu0 %6685
    %6687 = vrot.lane.b32.xlu0 %v1152, 64
    %v6688 = vpop.permute.xlu0 %6687
    %6689 = vrot.lane.b32.xlu0 %v1153, 64
    %v6690 = vpop.permute.xlu0 %6689
    %6691 = vrot.lane.b32.xlu0 %v1154, 64
    %v6692 = vpop.permute.xlu0 %6691
    %6693 = vrot.lane.b32.xlu0 %v1155, 64
    %v6694 = vpop.permute.xlu0 %6693
    %6711 = vmatpush.msra.mxu0 %v6694
    %6712 = vmatpush.msra.mxu0 %v6692
    %6713 = vmatpush.msra.mxu0 %v6690
    %6714 = vmatpush.msra.mxu0 %v6688
    %6715 = vmatpush.msra.mxu0 %v6686
    %6716 = vmatpush.msra.mxu0 %v6684
    %6717 = vmatpush.msra.mxu0 %v6682
    %6718 = vmatpush.msra.mxu0 %v6680
    %6719 = vmatpush.msra.mxu0 %v6678
    %6720 = vmatpush.msra.mxu0 %v6676
    %6721 = vmatpush.msra.mxu0 %v6674
    %6722 = vmatpush.msra.mxu0 %v6672
    %6723 = vmatpush.msra.mxu0 %v6670
    %6724 = vmatpush.msra.mxu0 %v6668
    %6725 = vmatpush.msra.mxu0 %v6666
    %6726 = vmatpush.msra.mxu0 %v6664
    %6727 = vmatmul.f32.gmra.mxu0 %v5335
    %v6728 = vpop.f32.mrf.mxu0
    %v6729 = vadd.f32 0.0, %v6728
    %6730 = vmatmul.f32.gmra.mxu0 %v5337
    %v6731 = vpop.f32.mrf.mxu0
    %v6732 = vadd.f32 0.0, %v6731
    %6733 = vdwg.mxu0
    %6750 = vrot.lane.b32.xlu0 %v1156, 64
    %v6751 = vpop.permute.xlu0 %6750
    %6752 = vrot.lane.b32.xlu0 %v1157, 64
    %v6753 = vpop.permute.xlu0 %6752
    %6754 = vrot.lane.b32.xlu0 %v1158, 64
    %v6755 = vpop.permute.xlu0 %6754
    %6756 = vrot.lane.b32.xlu0 %v1159, 64
    %v6757 = vpop.permute.xlu0 %6756
    %6758 = vrot.lane.b32.xlu0 %v1160, 64
    %v6759 = vpop.permute.xlu0 %6758
    %6760 = vrot.lane.b32.xlu0 %v1161, 64
    %v6761 = vpop.permute.xlu0 %6760
    %6762 = vrot.lane.b32.xlu0 %v1162, 64
    %v6763 = vpop.permute.xlu0 %6762
    %6764 = vrot.lane.b32.xlu0 %v1163, 64
    %v6765 = vpop.permute.xlu0 %6764
    %6766 = vrot.lane.b32.xlu0 %v1164, 64
    %v6767 = vpop.permute.xlu0 %6766
    %6768 = vrot.lane.b32.xlu0 %v1165, 64
    %v6769 = vpop.permute.xlu0 %6768
    %6770 = vrot.lane.b32.xlu0 %v1166, 64
    %v6771 = vpop.permute.xlu0 %6770
    %6772 = vrot.lane.b32.xlu0 %v1167, 64
    %v6773 = vpop.permute.xlu0 %6772
    %6774 = vrot.lane.b32.xlu0 %v1168, 64
    %v6775 = vpop.permute.xlu0 %6774
    %6776 = vrot.lane.b32.xlu0 %v1169, 64
    %v6777 = vpop.permute.xlu0 %6776
    %6778 = vrot.lane.b32.xlu0 %v1170, 64
    %v6779 = vpop.permute.xlu0 %6778
    %6780 = vrot.lane.b32.xlu0 %v1171, 64
    %v6781 = vpop.permute.xlu0 %6780
    %6798 = vmatpush.msra.mxu0 %v6781
    %6799 = vmatpush.msra.mxu0 %v6779
    %6800 = vmatpush.msra.mxu0 %v6777
    %6801 = vmatpush.msra.mxu0 %v6775
    %6802 = vmatpush.msra.mxu0 %v6773
    %6803 = vmatpush.msra.mxu0 %v6771
    %6804 = vmatpush.msra.mxu0 %v6769
    %6805 = vmatpush.msra.mxu0 %v6767
    %6806 = vmatpush.msra.mxu0 %v6765
    %6807 = vmatpush.msra.mxu0 %v6763
    %6808 = vmatpush.msra.mxu0 %v6761
    %6809 = vmatpush.msra.mxu0 %v6759
    %6810 = vmatpush.msra.mxu0 %v6757
    %6811 = vmatpush.msra.mxu0 %v6755
    %6812 = vmatpush.msra.mxu0 %v6753
    %6813 = vmatpush.msra.mxu0 %v6751
    %6814 = vmatmul.f32.gmra.mxu0 %v5339
    %v6815 = vpop.f32.mrf.mxu0
    %v6816 = vadd.f32 0.0, %v6815
    %6817 = vmatmul.f32.gmra.mxu0 %v5341
    %v6818 = vpop.f32.mrf.mxu0
    %v6819 = vadd.f32 0.0, %v6818
    %6820 = vdwg.mxu0
    %6837 = vrot.lane.b32.xlu0 %v1172, 64
    %v6838 = vpop.permute.xlu0 %6837
    %6839 = vrot.lane.b32.xlu0 %v1173, 64
    %v6840 = vpop.permute.xlu0 %6839
    %6841 = vrot.lane.b32.xlu0 %v1174, 64
    %v6842 = vpop.permute.xlu0 %6841
    %6843 = vrot.lane.b32.xlu0 %v1175, 64
    %v6844 = vpop.permute.xlu0 %6843
    %6845 = vrot.lane.b32.xlu0 %v1176, 64
    %v6846 = vpop.permute.xlu0 %6845
    %6847 = vrot.lane.b32.xlu0 %v1177, 64
    %v6848 = vpop.permute.xlu0 %6847
    %6849 = vrot.lane.b32.xlu0 %v1178, 64
    %v6850 = vpop.permute.xlu0 %6849
    %6851 = vrot.lane.b32.xlu0 %v1179, 64
    %v6852 = vpop.permute.xlu0 %6851
    %6853 = vrot.lane.b32.xlu0 %v1180, 64
    %v6854 = vpop.permute.xlu0 %6853
    %6855 = vrot.lane.b32.xlu0 %v1181, 64
    %v6856 = vpop.permute.xlu0 %6855
    %6857 = vrot.lane.b32.xlu0 %v1182, 64
    %v6858 = vpop.permute.xlu0 %6857
    %6859 = vrot.lane.b32.xlu0 %v1183, 64
    %v6860 = vpop.permute.xlu0 %6859
    %6861 = vrot.lane.b32.xlu0 %v1184, 64
    %v6862 = vpop.permute.xlu0 %6861
    %6863 = vrot.lane.b32.xlu0 %v1185, 64
    %v6864 = vpop.permute.xlu0 %6863
    %6865 = vrot.lane.b32.xlu0 %v1186, 64
    %v6866 = vpop.permute.xlu0 %6865
    %6867 = vrot.lane.b32.xlu0 %v1187, 64
    %v6868 = vpop.permute.xlu0 %6867
    %6885 = vmatpush.msra.mxu0 %v6868
    %6886 = vmatpush.msra.mxu0 %v6866
    %6887 = vmatpush.msra.mxu0 %v6864
    %6888 = vmatpush.msra.mxu0 %v6862
    %6889 = vmatpush.msra.mxu0 %v6860
    %6890 = vmatpush.msra.mxu0 %v6858
    %6891 = vmatpush.msra.mxu0 %v6856
    %6892 = vmatpush.msra.mxu0 %v6854
    %6893 = vmatpush.msra.mxu0 %v6852
    %6894 = vmatpush.msra.mxu0 %v6850
    %6895 = vmatpush.msra.mxu0 %v6848
    %6896 = vmatpush.msra.mxu0 %v6846
    %6897 = vmatpush.msra.mxu0 %v6844
    %6898 = vmatpush.msra.mxu0 %v6842
    %6899 = vmatpush.msra.mxu0 %v6840
    %6900 = vmatpush.msra.mxu0 %v6838
    %6901 = vmatmul.f32.gmra.mxu0 %v5343
    %v6902 = vpop.f32.mrf.mxu0
    %v6903 = vadd.f32 0.0, %v6902
    %6904 = vmatmul.f32.gmra.mxu0 %v5345
    %v6905 = vpop.f32.mrf.mxu0
    %v6906 = vadd.f32 0.0, %v6905
    %6907 = vdwg.mxu0
    %6924 = vrot.lane.b32.xlu0 %v1188, 64
    %v6925 = vpop.permute.xlu0 %6924
    %6926 = vrot.lane.b32.xlu0 %v1189, 64
    %v6927 = vpop.permute.xlu0 %6926
    %6928 = vrot.lane.b32.xlu0 %v1190, 64
    %v6929 = vpop.permute.xlu0 %6928
    %6930 = vrot.lane.b32.xlu0 %v1191, 64
    %v6931 = vpop.permute.xlu0 %6930
    %6932 = vrot.lane.b32.xlu0 %v1192, 64
    %v6933 = vpop.permute.xlu0 %6932
    %6934 = vrot.lane.b32.xlu0 %v1193, 64
    %v6935 = vpop.permute.xlu0 %6934
    %6936 = vrot.lane.b32.xlu0 %v1194, 64
    %v6937 = vpop.permute.xlu0 %6936
    %6938 = vrot.lane.b32.xlu0 %v1195, 64
    %v6939 = vpop.permute.xlu0 %6938
    %6940 = vrot.lane.b32.xlu0 %v1196, 64
    %v6941 = vpop.permute.xlu0 %6940
    %6942 = vrot.lane.b32.xlu0 %v1197, 64
    %v6943 = vpop.permute.xlu0 %6942
    %6944 = vrot.lane.b32.xlu0 %v1198, 64
    %v6945 = vpop.permute.xlu0 %6944
    %6946 = vrot.lane.b32.xlu0 %v1199, 64
    %v6947 = vpop.permute.xlu0 %6946
    %6948 = vrot.lane.b32.xlu0 %v1200, 64
    %v6949 = vpop.permute.xlu0 %6948
    %6950 = vrot.lane.b32.xlu0 %v1201, 64
    %v6951 = vpop.permute.xlu0 %6950
    %6952 = vrot.lane.b32.xlu0 %v1202, 64
    %v6953 = vpop.permute.xlu0 %6952
    %6954 = vrot.lane.b32.xlu0 %v1203, 64
    %v6955 = vpop.permute.xlu0 %6954
    %6972 = vmatpush.msra.mxu0 %v6955
    %6973 = vmatpush.msra.mxu0 %v6953
    %6974 = vmatpush.msra.mxu0 %v6951
    %6975 = vmatpush.msra.mxu0 %v6949
    %6976 = vmatpush.msra.mxu0 %v6947
    %6977 = vmatpush.msra.mxu0 %v6945
    %6978 = vmatpush.msra.mxu0 %v6943
    %6979 = vmatpush.msra.mxu0 %v6941
    %6980 = vmatpush.msra.mxu0 %v6939
    %6981 = vmatpush.msra.mxu0 %v6937
    %6982 = vmatpush.msra.mxu0 %v6935
    %6983 = vmatpush.msra.mxu0 %v6933
    %6984 = vmatpush.msra.mxu0 %v6931
    %6985 = vmatpush.msra.mxu0 %v6929
    %6986 = vmatpush.msra.mxu0 %v6927
    %6987 = vmatpush.msra.mxu0 %v6925
    %6988 = vmatmul.f32.gmra.mxu0 %v5347
    %v6989 = vpop.f32.mrf.mxu0
    %v6990 = vadd.f32 0.0, %v6989
    %6991 = vmatmul.f32.gmra.mxu0 %v5349
    %v6992 = vpop.f32.mrf.mxu0
    %v6993 = vadd.f32 0.0, %v6992
    %6994 = vdwg.mxu0
    %7011 = vrot.lane.b32.xlu0 %v1204, 64
    %v7012 = vpop.permute.xlu0 %7011
    %7013 = vrot.lane.b32.xlu0 %v1205, 64
    %v7014 = vpop.permute.xlu0 %7013
    %7015 = vrot.lane.b32.xlu0 %v1206, 64
    %v7016 = vpop.permute.xlu0 %7015
    %7017 = vrot.lane.b32.xlu0 %v1207, 64
    %v7018 = vpop.permute.xlu0 %7017
    %7019 = vrot.lane.b32.xlu0 %v1208, 64
    %v7020 = vpop.permute.xlu0 %7019
    %7021 = vrot.lane.b32.xlu0 %v1209, 64
    %v7022 = vpop.permute.xlu0 %7021
    %7023 = vrot.lane.b32.xlu0 %v1210, 64
    %v7024 = vpop.permute.xlu0 %7023
    %7025 = vrot.lane.b32.xlu0 %v1211, 64
    %v7026 = vpop.permute.xlu0 %7025
    %7027 = vrot.lane.b32.xlu0 %v1212, 64
    %v7028 = vpop.permute.xlu0 %7027
    %7029 = vrot.lane.b32.xlu0 %v1213, 64
    %v7030 = vpop.permute.xlu0 %7029
    %7031 = vrot.lane.b32.xlu0 %v1214, 64
    %v7032 = vpop.permute.xlu0 %7031
    %7033 = vrot.lane.b32.xlu0 %v1215, 64
    %v7034 = vpop.permute.xlu0 %7033
    %7035 = vrot.lane.b32.xlu0 %v1216, 64
    %v7036 = vpop.permute.xlu0 %7035
    %7037 = vrot.lane.b32.xlu0 %v1217, 64
    %v7038 = vpop.permute.xlu0 %7037
    %7039 = vrot.lane.b32.xlu0 %v1218, 64
    %v7040 = vpop.permute.xlu0 %7039
    %7041 = vrot.lane.b32.xlu0 %v1219, 64
    %v7042 = vpop.permute.xlu0 %7041
    %7059 = vmatpush.msra.mxu0 %v7042
    %7060 = vmatpush.msra.mxu0 %v7040
    %7061 = vmatpush.msra.mxu0 %v7038
    %7062 = vmatpush.msra.mxu0 %v7036
    %7063 = vmatpush.msra.mxu0 %v7034
    %7064 = vmatpush.msra.mxu0 %v7032
    %7065 = vmatpush.msra.mxu0 %v7030
    %7066 = vmatpush.msra.mxu0 %v7028
    %7067 = vmatpush.msra.mxu0 %v7026
    %7068 = vmatpush.msra.mxu0 %v7024
    %7069 = vmatpush.msra.mxu0 %v7022
    %7070 = vmatpush.msra.mxu0 %v7020
    %7071 = vmatpush.msra.mxu0 %v7018
    %7072 = vmatpush.msra.mxu0 %v7016
    %7073 = vmatpush.msra.mxu0 %v7014
    %7074 = vmatpush.msra.mxu0 %v7012
    %7075 = vmatmul.f32.gmra.mxu0 %v5351
    %v7076 = vpop.f32.mrf.mxu0
    %v7077 = vadd.f32 0.0, %v7076
    %7078 = vmatmul.f32.gmra.mxu0 %v5353
    %v7079 = vpop.f32.mrf.mxu0
    %v7080 = vadd.f32 0.0, %v7079
    %7081 = vdwg.mxu0
    %7098 = vrot.lane.b32.xlu0 %v1220, 64
    %v7099 = vpop.permute.xlu0 %7098
    %7100 = vrot.lane.b32.xlu0 %v1221, 64
    %v7101 = vpop.permute.xlu0 %7100
    %7102 = vrot.lane.b32.xlu0 %v1222, 64
    %v7103 = vpop.permute.xlu0 %7102
    %7104 = vrot.lane.b32.xlu0 %v1223, 64
    %v7105 = vpop.permute.xlu0 %7104
    %7106 = vrot.lane.b32.xlu0 %v1224, 64
    %v7107 = vpop.permute.xlu0 %7106
    %7108 = vrot.lane.b32.xlu0 %v1225, 64
    %v7109 = vpop.permute.xlu0 %7108
    %7110 = vrot.lane.b32.xlu0 %v1226, 64
    %v7111 = vpop.permute.xlu0 %7110
    %7112 = vrot.lane.b32.xlu0 %v1227, 64
    %v7113 = vpop.permute.xlu0 %7112
    %7114 = vrot.lane.b32.xlu0 %v1228, 64
    %v7115 = vpop.permute.xlu0 %7114
    %7116 = vrot.lane.b32.xlu0 %v1229, 64
    %v7117 = vpop.permute.xlu0 %7116
    %7118 = vrot.lane.b32.xlu0 %v1230, 64
    %v7119 = vpop.permute.xlu0 %7118
    %7120 = vrot.lane.b32.xlu0 %v1231, 64
    %v7121 = vpop.permute.xlu0 %7120
    %7122 = vrot.lane.b32.xlu0 %v1232, 64
    %v7123 = vpop.permute.xlu0 %7122
    %7124 = vrot.lane.b32.xlu0 %v1233, 64
    %v7125 = vpop.permute.xlu0 %7124
    %7126 = vrot.lane.b32.xlu0 %v1234, 64
    %v7127 = vpop.permute.xlu0 %7126
    %7128 = vrot.lane.b32.xlu0 %v1235, 64
    %v7129 = vpop.permute.xlu0 %7128
    %7146 = vmatpush.msra.mxu0 %v7129
    %7147 = vmatpush.msra.mxu0 %v7127
    %7148 = vmatpush.msra.mxu0 %v7125
    %7149 = vmatpush.msra.mxu0 %v7123
    %7150 = vmatpush.msra.mxu0 %v7121
    %7151 = vmatpush.msra.mxu0 %v7119
    %7152 = vmatpush.msra.mxu0 %v7117
    %7153 = vmatpush.msra.mxu0 %v7115
    %7154 = vmatpush.msra.mxu0 %v7113
    %7155 = vmatpush.msra.mxu0 %v7111
    %7156 = vmatpush.msra.mxu0 %v7109
    %7157 = vmatpush.msra.mxu0 %v7107
    %7158 = vmatpush.msra.mxu0 %v7105
    %7159 = vmatpush.msra.mxu0 %v7103
    %7160 = vmatpush.msra.mxu0 %v7101
    %7161 = vmatpush.msra.mxu0 %v7099
    %7162 = vmatmul.f32.gmra.mxu0 %v5355
    %v7163 = vpop.f32.mrf.mxu0
    %v7164 = vadd.f32 0.0, %v7163
    %7165 = vmatmul.f32.gmra.mxu0 %v5357
    %v7166 = vpop.f32.mrf.mxu0
    %v7167 = vadd.f32 0.0, %v7166
    %7168 = vdwg.mxu0
    %7185 = vrot.lane.b32.xlu0 %v1236, 64
    %v7186 = vpop.permute.xlu0 %7185
    %7187 = vrot.lane.b32.xlu0 %v1237, 64
    %v7188 = vpop.permute.xlu0 %7187
    %7189 = vrot.lane.b32.xlu0 %v1238, 64
    %v7190 = vpop.permute.xlu0 %7189
    %7191 = vrot.lane.b32.xlu0 %v1239, 64
    %v7192 = vpop.permute.xlu0 %7191
    %7193 = vrot.lane.b32.xlu0 %v1240, 64
    %v7194 = vpop.permute.xlu0 %7193
    %7195 = vrot.lane.b32.xlu0 %v1241, 64
    %v7196 = vpop.permute.xlu0 %7195
    %7197 = vrot.lane.b32.xlu0 %v1242, 64
    %v7198 = vpop.permute.xlu0 %7197
    %7199 = vrot.lane.b32.xlu0 %v1243, 64
    %v7200 = vpop.permute.xlu0 %7199
    %7201 = vrot.lane.b32.xlu0 %v1244, 64
    %v7202 = vpop.permute.xlu0 %7201
    %7203 = vrot.lane.b32.xlu0 %v1245, 64
    %v7204 = vpop.permute.xlu0 %7203
    %7205 = vrot.lane.b32.xlu0 %v1246, 64
    %v7206 = vpop.permute.xlu0 %7205
    %7207 = vrot.lane.b32.xlu0 %v1247, 64
    %v7208 = vpop.permute.xlu0 %7207
    %7209 = vrot.lane.b32.xlu0 %v1248, 64
    %v7210 = vpop.permute.xlu0 %7209
    %7211 = vrot.lane.b32.xlu0 %v1249, 64
    %v7212 = vpop.permute.xlu0 %7211
    %7213 = vrot.lane.b32.xlu0 %v1250, 64
    %v7214 = vpop.permute.xlu0 %7213
    %7215 = vrot.lane.b32.xlu0 %v1251, 64
    %v7216 = vpop.permute.xlu0 %7215
    %7233 = vmatpush.msra.mxu0 %v7216
    %7234 = vmatpush.msra.mxu0 %v7214
    %7235 = vmatpush.msra.mxu0 %v7212
    %7236 = vmatpush.msra.mxu0 %v7210
    %7237 = vmatpush.msra.mxu0 %v7208
    %7238 = vmatpush.msra.mxu0 %v7206
    %7239 = vmatpush.msra.mxu0 %v7204
    %7240 = vmatpush.msra.mxu0 %v7202
    %7241 = vmatpush.msra.mxu0 %v7200
    %7242 = vmatpush.msra.mxu0 %v7198
    %7243 = vmatpush.msra.mxu0 %v7196
    %7244 = vmatpush.msra.mxu0 %v7194
    %7245 = vmatpush.msra.mxu0 %v7192
    %7246 = vmatpush.msra.mxu0 %v7190
    %7247 = vmatpush.msra.mxu0 %v7188
    %7248 = vmatpush.msra.mxu0 %v7186
    %7249 = vmatmul.f32.gmra.mxu0 %v5359
    %v7250 = vpop.f32.mrf.mxu0
    %v7251 = vadd.f32 0.0, %v7250
    %7252 = vmatmul.f32.gmra.mxu0 %v5361
    %v7253 = vpop.f32.mrf.mxu0
    %v7254 = vadd.f32 0.0, %v7253
    %7255 = vdwg.mxu0
    %7272 = vrot.lane.b32.xlu0 %v1252, 64
    %v7273 = vpop.permute.xlu0 %7272
    %7274 = vrot.lane.b32.xlu0 %v1253, 64
    %v7275 = vpop.permute.xlu0 %7274
    %7276 = vrot.lane.b32.xlu0 %v1254, 64
    %v7277 = vpop.permute.xlu0 %7276
    %7278 = vrot.lane.b32.xlu0 %v1255, 64
    %v7279 = vpop.permute.xlu0 %7278
    %7280 = vrot.lane.b32.xlu0 %v1256, 64
    %v7281 = vpop.permute.xlu0 %7280
    %7282 = vrot.lane.b32.xlu0 %v1257, 64
    %v7283 = vpop.permute.xlu0 %7282
    %7284 = vrot.lane.b32.xlu0 %v1258, 64
    %v7285 = vpop.permute.xlu0 %7284
    %7286 = vrot.lane.b32.xlu0 %v1259, 64
    %v7287 = vpop.permute.xlu0 %7286
    %7288 = vrot.lane.b32.xlu0 %v1260, 64
    %v7289 = vpop.permute.xlu0 %7288
    %7290 = vrot.lane.b32.xlu0 %v1261, 64
    %v7291 = vpop.permute.xlu0 %7290
    %7292 = vrot.lane.b32.xlu0 %v1262, 64
    %v7293 = vpop.permute.xlu0 %7292
    %7294 = vrot.lane.b32.xlu0 %v1263, 64
    %v7295 = vpop.permute.xlu0 %7294
    %7296 = vrot.lane.b32.xlu0 %v1264, 64
    %v7297 = vpop.permute.xlu0 %7296
    %7298 = vrot.lane.b32.xlu0 %v1265, 64
    %v7299 = vpop.permute.xlu0 %7298
    %7300 = vrot.lane.b32.xlu0 %v1266, 64
    %v7301 = vpop.permute.xlu0 %7300
    %7302 = vrot.lane.b32.xlu0 %v1267, 64
    %v7303 = vpop.permute.xlu0 %7302
    %7320 = vmatpush.msra.mxu0 %v7303
    %7321 = vmatpush.msra.mxu0 %v7301
    %7322 = vmatpush.msra.mxu0 %v7299
    %7323 = vmatpush.msra.mxu0 %v7297
    %7324 = vmatpush.msra.mxu0 %v7295
    %7325 = vmatpush.msra.mxu0 %v7293
    %7326 = vmatpush.msra.mxu0 %v7291
    %7327 = vmatpush.msra.mxu0 %v7289
    %7328 = vmatpush.msra.mxu0 %v7287
    %7329 = vmatpush.msra.mxu0 %v7285
    %7330 = vmatpush.msra.mxu0 %v7283
    %7331 = vmatpush.msra.mxu0 %v7281
    %7332 = vmatpush.msra.mxu0 %v7279
    %7333 = vmatpush.msra.mxu0 %v7277
    %7334 = vmatpush.msra.mxu0 %v7275
    %7335 = vmatpush.msra.mxu0 %v7273
    %7336 = vmatmul.f32.gmra.mxu0 %v5363
    %v7337 = vpop.f32.mrf.mxu0
    %v7338 = vadd.f32 0.0, %v7337
    %7339 = vmatmul.f32.gmra.mxu0 %v5365
    %v7340 = vpop.f32.mrf.mxu0
    %v7341 = vadd.f32 0.0, %v7340
    %7342 = vdwg.mxu0
    %7359 = vrot.lane.b32.xlu0 %v1268, 64
    %v7360 = vpop.permute.xlu0 %7359
    %7361 = vrot.lane.b32.xlu0 %v1269, 64
    %v7362 = vpop.permute.xlu0 %7361
    %7363 = vrot.lane.b32.xlu0 %v1270, 64
    %v7364 = vpop.permute.xlu0 %7363
    %7365 = vrot.lane.b32.xlu0 %v1271, 64
    %v7366 = vpop.permute.xlu0 %7365
    %7367 = vrot.lane.b32.xlu0 %v1272, 64
    %v7368 = vpop.permute.xlu0 %7367
    %7369 = vrot.lane.b32.xlu0 %v1273, 64
    %v7370 = vpop.permute.xlu0 %7369
    %7371 = vrot.lane.b32.xlu0 %v1274, 64
    %v7372 = vpop.permute.xlu0 %7371
    %7373 = vrot.lane.b32.xlu0 %v1275, 64
    %v7374 = vpop.permute.xlu0 %7373
    %7375 = vrot.lane.b32.xlu0 %v1276, 64
    %v7376 = vpop.permute.xlu0 %7375
    %7377 = vrot.lane.b32.xlu0 %v1277, 64
    %v7378 = vpop.permute.xlu0 %7377
    %7379 = vrot.lane.b32.xlu0 %v1278, 64
    %v7380 = vpop.permute.xlu0 %7379
    %7381 = vrot.lane.b32.xlu0 %v1279, 64
    %v7382 = vpop.permute.xlu0 %7381
    %7383 = vrot.lane.b32.xlu0 %v1280, 64
    %v7384 = vpop.permute.xlu0 %7383
    %7385 = vrot.lane.b32.xlu0 %v1281, 64
    %v7386 = vpop.permute.xlu0 %7385
    %7387 = vrot.lane.b32.xlu0 %v1282, 64
    %v7388 = vpop.permute.xlu0 %7387
    %7389 = vrot.lane.b32.xlu0 %v1283, 64
    %v7390 = vpop.permute.xlu0 %7389
    %7407 = vmatpush.msra.mxu0 %v7390
    %7408 = vmatpush.msra.mxu0 %v7388
    %7409 = vmatpush.msra.mxu0 %v7386
    %7410 = vmatpush.msra.mxu0 %v7384
    %7411 = vmatpush.msra.mxu0 %v7382
    %7412 = vmatpush.msra.mxu0 %v7380
    %7413 = vmatpush.msra.mxu0 %v7378
    %7414 = vmatpush.msra.mxu0 %v7376
    %7415 = vmatpush.msra.mxu0 %v7374
    %7416 = vmatpush.msra.mxu0 %v7372
    %7417 = vmatpush.msra.mxu0 %v7370
    %7418 = vmatpush.msra.mxu0 %v7368
    %7419 = vmatpush.msra.mxu0 %v7366
    %7420 = vmatpush.msra.mxu0 %v7364
    %7421 = vmatpush.msra.mxu0 %v7362
    %7422 = vmatpush.msra.mxu0 %v7360
    %7423 = vmatmul.f32.gmra.mxu0 %v5367
    %v7424 = vpop.f32.mrf.mxu0
    %v7425 = vadd.f32 0.0, %v7424
    %7426 = vmatmul.f32.gmra.mxu0 %v5369
    %v7427 = vpop.f32.mrf.mxu0
    %v7428 = vadd.f32 0.0, %v7427
    %7429 = vdwg.mxu0
    %7446 = vrot.lane.b32.xlu0 %v1284, 64
    %v7447 = vpop.permute.xlu0 %7446
    %7448 = vrot.lane.b32.xlu0 %v1285, 64
    %v7449 = vpop.permute.xlu0 %7448
    %7450 = vrot.lane.b32.xlu0 %v1286, 64
    %v7451 = vpop.permute.xlu0 %7450
    %7452 = vrot.lane.b32.xlu0 %v1287, 64
    %v7453 = vpop.permute.xlu0 %7452
    %7454 = vrot.lane.b32.xlu0 %v1288, 64
    %v7455 = vpop.permute.xlu0 %7454
    %7456 = vrot.lane.b32.xlu0 %v1289, 64
    %v7457 = vpop.permute.xlu0 %7456
    %7458 = vrot.lane.b32.xlu0 %v1290, 64
    %v7459 = vpop.permute.xlu0 %7458
    %7460 = vrot.lane.b32.xlu0 %v1291, 64
    %v7461 = vpop.permute.xlu0 %7460
    %7462 = vrot.lane.b32.xlu0 %v1292, 64
    %v7463 = vpop.permute.xlu0 %7462
    %7464 = vrot.lane.b32.xlu0 %v1293, 64
    %v7465 = vpop.permute.xlu0 %7464
    %7466 = vrot.lane.b32.xlu0 %v1294, 64
    %v7467 = vpop.permute.xlu0 %7466
    %7468 = vrot.lane.b32.xlu0 %v1295, 64
    %v7469 = vpop.permute.xlu0 %7468
    %7470 = vrot.lane.b32.xlu0 %v1296, 64
    %v7471 = vpop.permute.xlu0 %7470
    %7472 = vrot.lane.b32.xlu0 %v1297, 64
    %v7473 = vpop.permute.xlu0 %7472
    %7474 = vrot.lane.b32.xlu0 %v1298, 64
    %v7475 = vpop.permute.xlu0 %7474
    %7476 = vrot.lane.b32.xlu0 %v1299, 64
    %v7477 = vpop.permute.xlu0 %7476
    %7494 = vmatpush.msra.mxu0 %v7477
    %7495 = vmatpush.msra.mxu0 %v7475
    %7496 = vmatpush.msra.mxu0 %v7473
    %7497 = vmatpush.msra.mxu0 %v7471
    %7498 = vmatpush.msra.mxu0 %v7469
    %7499 = vmatpush.msra.mxu0 %v7467
    %7500 = vmatpush.msra.mxu0 %v7465
    %7501 = vmatpush.msra.mxu0 %v7463
    %7502 = vmatpush.msra.mxu0 %v7461
    %7503 = vmatpush.msra.mxu0 %v7459
    %7504 = vmatpush.msra.mxu0 %v7457
    %7505 = vmatpush.msra.mxu0 %v7455
    %7506 = vmatpush.msra.mxu0 %v7453
    %7507 = vmatpush.msra.mxu0 %v7451
    %7508 = vmatpush.msra.mxu0 %v7449
    %7509 = vmatpush.msra.mxu0 %v7447
    %7510 = vmatmul.f32.gmra.mxu0 %v5371
    %v7511 = vpop.f32.mrf.mxu0
    %v7512 = vadd.f32 0.0, %v7511
    %7513 = vmatmul.f32.gmra.mxu0 %v5373
    %v7514 = vpop.f32.mrf.mxu0
    %v7515 = vadd.f32 0.0, %v7514
    %7516 = vdwg.mxu0
    %7533 = vrot.lane.b32.xlu0 %v1300, 64
    %v7534 = vpop.permute.xlu0 %7533
    %7535 = vrot.lane.b32.xlu0 %v1301, 64
    %v7536 = vpop.permute.xlu0 %7535
    %7537 = vrot.lane.b32.xlu0 %v1302, 64
    %v7538 = vpop.permute.xlu0 %7537
    %7539 = vrot.lane.b32.xlu0 %v1303, 64
    %v7540 = vpop.permute.xlu0 %7539
    %7541 = vrot.lane.b32.xlu0 %v1304, 64
    %v7542 = vpop.permute.xlu0 %7541
    %7543 = vrot.lane.b32.xlu0 %v1305, 64
    %v7544 = vpop.permute.xlu0 %7543
    %7545 = vrot.lane.b32.xlu0 %v1306, 64
    %v7546 = vpop.permute.xlu0 %7545
    %7547 = vrot.lane.b32.xlu0 %v1307, 64
    %v7548 = vpop.permute.xlu0 %7547
    %7549 = vrot.lane.b32.xlu0 %v1308, 64
    %v7550 = vpop.permute.xlu0 %7549
    %7551 = vrot.lane.b32.xlu0 %v1309, 64
    %v7552 = vpop.permute.xlu0 %7551
    %7553 = vrot.lane.b32.xlu0 %v1310, 64
    %v7554 = vpop.permute.xlu0 %7553
    %7555 = vrot.lane.b32.xlu0 %v1311, 64
    %v7556 = vpop.permute.xlu0 %7555
    %7557 = vrot.lane.b32.xlu0 %v1312, 64
    %v7558 = vpop.permute.xlu0 %7557
    %7559 = vrot.lane.b32.xlu0 %v1313, 64
    %v7560 = vpop.permute.xlu0 %7559
    %7561 = vrot.lane.b32.xlu0 %v1314, 64
    %v7562 = vpop.permute.xlu0 %7561
    %7563 = vrot.lane.b32.xlu0 %v1315, 64
    %v7564 = vpop.permute.xlu0 %7563
    %7581 = vmatpush.msra.mxu0 %v7564
    %7582 = vmatpush.msra.mxu0 %v7562
    %7583 = vmatpush.msra.mxu0 %v7560
    %7584 = vmatpush.msra.mxu0 %v7558
    %7585 = vmatpush.msra.mxu0 %v7556
    %7586 = vmatpush.msra.mxu0 %v7554
    %7587 = vmatpush.msra.mxu0 %v7552
    %7588 = vmatpush.msra.mxu0 %v7550
    %7589 = vmatpush.msra.mxu0 %v7548
    %7590 = vmatpush.msra.mxu0 %v7546
    %7591 = vmatpush.msra.mxu0 %v7544
    %7592 = vmatpush.msra.mxu0 %v7542
    %7593 = vmatpush.msra.mxu0 %v7540
    %7594 = vmatpush.msra.mxu0 %v7538
    %7595 = vmatpush.msra.mxu0 %v7536
    %7596 = vmatpush.msra.mxu0 %v7534
    %7597 = vmatmul.f32.gmra.mxu0 %v5375
    %v7598 = vpop.f32.mrf.mxu0
    %v7599 = vadd.f32 0.0, %v7598
    %7600 = vmatmul.f32.gmra.mxu0 %v5377
    %v7601 = vpop.f32.mrf.mxu0
    %v7602 = vadd.f32 0.0, %v7601
    %7603 = vdwg.mxu0
    %7620 = vrot.lane.b32.xlu0 %v1316, 64
    %v7621 = vpop.permute.xlu0 %7620
    %7622 = vrot.lane.b32.xlu0 %v1317, 64
    %v7623 = vpop.permute.xlu0 %7622
    %7624 = vrot.lane.b32.xlu0 %v1318, 64
    %v7625 = vpop.permute.xlu0 %7624
    %7626 = vrot.lane.b32.xlu0 %v1319, 64
    %v7627 = vpop.permute.xlu0 %7626
    %7628 = vrot.lane.b32.xlu0 %v1320, 64
    %v7629 = vpop.permute.xlu0 %7628
    %7630 = vrot.lane.b32.xlu0 %v1321, 64
    %v7631 = vpop.permute.xlu0 %7630
    %7632 = vrot.lane.b32.xlu0 %v1322, 64
    %v7633 = vpop.permute.xlu0 %7632
    %7634 = vrot.lane.b32.xlu0 %v1323, 64
    %v7635 = vpop.permute.xlu0 %7634
    %7636 = vrot.lane.b32.xlu0 %v1324, 64
    %v7637 = vpop.permute.xlu0 %7636
    %7638 = vrot.lane.b32.xlu0 %v1325, 64
    %v7639 = vpop.permute.xlu0 %7638
    %7640 = vrot.lane.b32.xlu0 %v1326, 64
    %v7641 = vpop.permute.xlu0 %7640
    %7642 = vrot.lane.b32.xlu0 %v1327, 64
    %v7643 = vpop.permute.xlu0 %7642
    %7644 = vrot.lane.b32.xlu0 %v1328, 64
    %v7645 = vpop.permute.xlu0 %7644
    %7646 = vrot.lane.b32.xlu0 %v1329, 64
    %v7647 = vpop.permute.xlu0 %7646
    %7648 = vrot.lane.b32.xlu0 %v1330, 64
    %v7649 = vpop.permute.xlu0 %7648
    %7650 = vrot.lane.b32.xlu0 %v1331, 64
    %v7651 = vpop.permute.xlu0 %7650
    %7668 = vmatpush.msra.mxu0 %v7651
    %7669 = vmatpush.msra.mxu0 %v7649
    %7670 = vmatpush.msra.mxu0 %v7647
    %7671 = vmatpush.msra.mxu0 %v7645
    %7672 = vmatpush.msra.mxu0 %v7643
    %7673 = vmatpush.msra.mxu0 %v7641
    %7674 = vmatpush.msra.mxu0 %v7639
    %7675 = vmatpush.msra.mxu0 %v7637
    %7676 = vmatpush.msra.mxu0 %v7635
    %7677 = vmatpush.msra.mxu0 %v7633
    %7678 = vmatpush.msra.mxu0 %v7631
    %7679 = vmatpush.msra.mxu0 %v7629
    %7680 = vmatpush.msra.mxu0 %v7627
    %7681 = vmatpush.msra.mxu0 %v7625
    %7682 = vmatpush.msra.mxu0 %v7623
    %7683 = vmatpush.msra.mxu0 %v7621
    %7684 = vmatmul.f32.gmra.mxu0 %v5379
    %v7685 = vpop.f32.mrf.mxu0
    %v7686 = vadd.f32 0.0, %v7685
    %7687 = vmatmul.f32.gmra.mxu0 %v5381
    %v7688 = vpop.f32.mrf.mxu0
    %v7689 = vadd.f32 0.0, %v7688
    %7690 = vdwg.mxu0
    %7707 = vrot.lane.b32.xlu0 %v1332, 64
    %v7708 = vpop.permute.xlu0 %7707
    %7709 = vrot.lane.b32.xlu0 %v1333, 64
    %v7710 = vpop.permute.xlu0 %7709
    %7711 = vrot.lane.b32.xlu0 %v1334, 64
    %v7712 = vpop.permute.xlu0 %7711
    %7713 = vrot.lane.b32.xlu0 %v1335, 64
    %v7714 = vpop.permute.xlu0 %7713
    %7715 = vrot.lane.b32.xlu0 %v1336, 64
    %v7716 = vpop.permute.xlu0 %7715
    %7717 = vrot.lane.b32.xlu0 %v1337, 64
    %v7718 = vpop.permute.xlu0 %7717
    %7719 = vrot.lane.b32.xlu0 %v1338, 64
    %v7720 = vpop.permute.xlu0 %7719
    %7721 = vrot.lane.b32.xlu0 %v1339, 64
    %v7722 = vpop.permute.xlu0 %7721
    %7723 = vrot.lane.b32.xlu0 %v1340, 64
    %v7724 = vpop.permute.xlu0 %7723
    %7725 = vrot.lane.b32.xlu0 %v1341, 64
    %v7726 = vpop.permute.xlu0 %7725
    %7727 = vrot.lane.b32.xlu0 %v1342, 64
    %v7728 = vpop.permute.xlu0 %7727
    %7729 = vrot.lane.b32.xlu0 %v1343, 64
    %v7730 = vpop.permute.xlu0 %7729
    %7731 = vrot.lane.b32.xlu0 %v1344, 64
    %v7732 = vpop.permute.xlu0 %7731
    %7733 = vrot.lane.b32.xlu0 %v1345, 64
    %v7734 = vpop.permute.xlu0 %7733
    %7735 = vrot.lane.b32.xlu0 %v1346, 64
    %v7736 = vpop.permute.xlu0 %7735
    %7737 = vrot.lane.b32.xlu0 %v1347, 64
    %v7738 = vpop.permute.xlu0 %7737
    %7755 = vmatpush.msra.mxu0 %v7738
    %7756 = vmatpush.msra.mxu0 %v7736
    %7757 = vmatpush.msra.mxu0 %v7734
    %7758 = vmatpush.msra.mxu0 %v7732
    %7759 = vmatpush.msra.mxu0 %v7730
    %7760 = vmatpush.msra.mxu0 %v7728
    %7761 = vmatpush.msra.mxu0 %v7726
    %7762 = vmatpush.msra.mxu0 %v7724
    %7763 = vmatpush.msra.mxu0 %v7722
    %7764 = vmatpush.msra.mxu0 %v7720
    %7765 = vmatpush.msra.mxu0 %v7718
    %7766 = vmatpush.msra.mxu0 %v7716
    %7767 = vmatpush.msra.mxu0 %v7714
    %7768 = vmatpush.msra.mxu0 %v7712
    %7769 = vmatpush.msra.mxu0 %v7710
    %7770 = vmatpush.msra.mxu0 %v7708
    %7771 = vmatmul.f32.gmra.mxu0 %v5383
    %v7772 = vpop.f32.mrf.mxu0
    %v7773 = vadd.f32 0.0, %v7772
    %7774 = vmatmul.f32.gmra.mxu0 %v5385
    %v7775 = vpop.f32.mrf.mxu0
    %v7776 = vadd.f32 0.0, %v7775
    %7777 = vdwg.mxu0
    %7794 = vrot.lane.b32.xlu0 %v1348, 64
    %v7795 = vpop.permute.xlu0 %7794
    %7796 = vrot.lane.b32.xlu0 %v1349, 64
    %v7797 = vpop.permute.xlu0 %7796
    %7798 = vrot.lane.b32.xlu0 %v1350, 64
    %v7799 = vpop.permute.xlu0 %7798
    %7800 = vrot.lane.b32.xlu0 %v1351, 64
    %v7801 = vpop.permute.xlu0 %7800
    %7802 = vrot.lane.b32.xlu0 %v1352, 64
    %v7803 = vpop.permute.xlu0 %7802
    %7804 = vrot.lane.b32.xlu0 %v1353, 64
    %v7805 = vpop.permute.xlu0 %7804
    %7806 = vrot.lane.b32.xlu0 %v1354, 64
    %v7807 = vpop.permute.xlu0 %7806
    %7808 = vrot.lane.b32.xlu0 %v1355, 64
    %v7809 = vpop.permute.xlu0 %7808
    %7810 = vrot.lane.b32.xlu0 %v1356, 64
    %v7811 = vpop.permute.xlu0 %7810
    %7812 = vrot.lane.b32.xlu0 %v1357, 64
    %v7813 = vpop.permute.xlu0 %7812
    %7814 = vrot.lane.b32.xlu0 %v1358, 64
    %v7815 = vpop.permute.xlu0 %7814
    %7816 = vrot.lane.b32.xlu0 %v1359, 64
    %v7817 = vpop.permute.xlu0 %7816
    %7818 = vrot.lane.b32.xlu0 %v1360, 64
    %v7819 = vpop.permute.xlu0 %7818
    %7820 = vrot.lane.b32.xlu0 %v1361, 64
    %v7821 = vpop.permute.xlu0 %7820
    %7822 = vrot.lane.b32.xlu0 %v1362, 64
    %v7823 = vpop.permute.xlu0 %7822
    %7824 = vrot.lane.b32.xlu0 %v1363, 64
    %v7825 = vpop.permute.xlu0 %7824
    %7842 = vmatpush.msra.mxu0 %v7825
    %7843 = vmatpush.msra.mxu0 %v7823
    %7844 = vmatpush.msra.mxu0 %v7821
    %7845 = vmatpush.msra.mxu0 %v7819
    %7846 = vmatpush.msra.mxu0 %v7817
    %7847 = vmatpush.msra.mxu0 %v7815
    %7848 = vmatpush.msra.mxu0 %v7813
    %7849 = vmatpush.msra.mxu0 %v7811
    %7850 = vmatpush.msra.mxu0 %v7809
    %7851 = vmatpush.msra.mxu0 %v7807
    %7852 = vmatpush.msra.mxu0 %v7805
    %7853 = vmatpush.msra.mxu0 %v7803
    %7854 = vmatpush.msra.mxu0 %v7801
    %7855 = vmatpush.msra.mxu0 %v7799
    %7856 = vmatpush.msra.mxu0 %v7797
    %7857 = vmatpush.msra.mxu0 %v7795
    %7858 = vmatmul.f32.gmra.mxu0 %v5387
    %v7859 = vpop.f32.mrf.mxu0
    %v7860 = vadd.f32 0.0, %v7859
    %7861 = vmatmul.f32.gmra.mxu0 %v5389
    %v7862 = vpop.f32.mrf.mxu0
    %v7863 = vadd.f32 0.0, %v7862
    %7864 = vdwg.mxu0
    %7881 = vrot.lane.b32.xlu0 %v1364, 64
    %v7882 = vpop.permute.xlu0 %7881
    %7883 = vrot.lane.b32.xlu0 %v1365, 64
    %v7884 = vpop.permute.xlu0 %7883
    %7885 = vrot.lane.b32.xlu0 %v1366, 64
    %v7886 = vpop.permute.xlu0 %7885
    %7887 = vrot.lane.b32.xlu0 %v1367, 64
    %v7888 = vpop.permute.xlu0 %7887
    %7889 = vrot.lane.b32.xlu0 %v1368, 64
    %v7890 = vpop.permute.xlu0 %7889
    %7891 = vrot.lane.b32.xlu0 %v1369, 64
    %v7892 = vpop.permute.xlu0 %7891
    %7893 = vrot.lane.b32.xlu0 %v1370, 64
    %v7894 = vpop.permute.xlu0 %7893
    %7895 = vrot.lane.b32.xlu0 %v1371, 64
    %v7896 = vpop.permute.xlu0 %7895
    %7897 = vrot.lane.b32.xlu0 %v1372, 64
    %v7898 = vpop.permute.xlu0 %7897
    %7899 = vrot.lane.b32.xlu0 %v1373, 64
    %v7900 = vpop.permute.xlu0 %7899
    %7901 = vrot.lane.b32.xlu0 %v1374, 64
    %v7902 = vpop.permute.xlu0 %7901
    %7903 = vrot.lane.b32.xlu0 %v1375, 64
    %v7904 = vpop.permute.xlu0 %7903
    %7905 = vrot.lane.b32.xlu0 %v1376, 64
    %v7906 = vpop.permute.xlu0 %7905
    %7907 = vrot.lane.b32.xlu0 %v1377, 64
    %v7908 = vpop.permute.xlu0 %7907
    %7909 = vrot.lane.b32.xlu0 %v1378, 64
    %v7910 = vpop.permute.xlu0 %7909
    %7911 = vrot.lane.b32.xlu0 %v1379, 64
    %v7912 = vpop.permute.xlu0 %7911
    %7929 = vmatpush.msra.mxu0 %v7912
    %7930 = vmatpush.msra.mxu0 %v7910
    %7931 = vmatpush.msra.mxu0 %v7908
    %7932 = vmatpush.msra.mxu0 %v7906
    %7933 = vmatpush.msra.mxu0 %v7904
    %7934 = vmatpush.msra.mxu0 %v7902
    %7935 = vmatpush.msra.mxu0 %v7900
    %7936 = vmatpush.msra.mxu0 %v7898
    %7937 = vmatpush.msra.mxu0 %v7896
    %7938 = vmatpush.msra.mxu0 %v7894
    %7939 = vmatpush.msra.mxu0 %v7892
    %7940 = vmatpush.msra.mxu0 %v7890
    %7941 = vmatpush.msra.mxu0 %v7888
    %7942 = vmatpush.msra.mxu0 %v7886
    %7943 = vmatpush.msra.mxu0 %v7884
    %7944 = vmatpush.msra.mxu0 %v7882
    %7945 = vmatmul.f32.gmra.mxu0 %v5391
    %v7946 = vpop.f32.mrf.mxu0
    %v7947 = vadd.f32 0.0, %v7946
    %7948 = vmatmul.f32.gmra.mxu0 %v5393
    %v7949 = vpop.f32.mrf.mxu0
    %v7950 = vadd.f32 0.0, %v7949
    %7951 = vdwg.mxu0
    %7968 = vrot.lane.b32.xlu0 %v1380, 64
    %v7969 = vpop.permute.xlu0 %7968
    %7970 = vrot.lane.b32.xlu0 %v1381, 64
    %v7971 = vpop.permute.xlu0 %7970
    %7972 = vrot.lane.b32.xlu0 %v1382, 64
    %v7973 = vpop.permute.xlu0 %7972
    %7974 = vrot.lane.b32.xlu0 %v1383, 64
    %v7975 = vpop.permute.xlu0 %7974
    %7976 = vrot.lane.b32.xlu0 %v1384, 64
    %v7977 = vpop.permute.xlu0 %7976
    %7978 = vrot.lane.b32.xlu0 %v1385, 64
    %v7979 = vpop.permute.xlu0 %7978
    %7980 = vrot.lane.b32.xlu0 %v1386, 64
    %v7981 = vpop.permute.xlu0 %7980
    %7982 = vrot.lane.b32.xlu0 %v1387, 64
    %v7983 = vpop.permute.xlu0 %7982
    %7984 = vrot.lane.b32.xlu0 %v1388, 64
    %v7985 = vpop.permute.xlu0 %7984
    %7986 = vrot.lane.b32.xlu0 %v1389, 64
    %v7987 = vpop.permute.xlu0 %7986
    %7988 = vrot.lane.b32.xlu0 %v1390, 64
    %v7989 = vpop.permute.xlu0 %7988
    %7990 = vrot.lane.b32.xlu0 %v1391, 64
    %v7991 = vpop.permute.xlu0 %7990
    %7992 = vrot.lane.b32.xlu0 %v1392, 64
    %v7993 = vpop.permute.xlu0 %7992
    %7994 = vrot.lane.b32.xlu0 %v1393, 64
    %v7995 = vpop.permute.xlu0 %7994
    %7996 = vrot.lane.b32.xlu0 %v1394, 64
    %v7997 = vpop.permute.xlu0 %7996
    %7998 = vrot.lane.b32.xlu0 %v1395, 64
    %v7999 = vpop.permute.xlu0 %7998
    %8016 = vmatpush.msra.mxu0 %v7999
    %8017 = vmatpush.msra.mxu0 %v7997
    %8018 = vmatpush.msra.mxu0 %v7995
    %8019 = vmatpush.msra.mxu0 %v7993
    %8020 = vmatpush.msra.mxu0 %v7991
    %8021 = vmatpush.msra.mxu0 %v7989
    %8022 = vmatpush.msra.mxu0 %v7987
    %8023 = vmatpush.msra.mxu0 %v7985
    %8024 = vmatpush.msra.mxu0 %v7983
    %8025 = vmatpush.msra.mxu0 %v7981
    %8026 = vmatpush.msra.mxu0 %v7979
    %8027 = vmatpush.msra.mxu0 %v7977
    %8028 = vmatpush.msra.mxu0 %v7975
    %8029 = vmatpush.msra.mxu0 %v7973
    %8030 = vmatpush.msra.mxu0 %v7971
    %8031 = vmatpush.msra.mxu0 %v7969
    %8032 = vmatmul.f32.gmra.mxu0 %v5395
    %v8033 = vpop.f32.mrf.mxu0
    %v8034 = vadd.f32 0.0, %v8033
    %8035 = vmatmul.f32.gmra.mxu0 %v5397
    %v8036 = vpop.f32.mrf.mxu0
    %v8037 = vadd.f32 0.0, %v8036
    %8038 = vdwg.mxu0
    %8055 = vrot.lane.b32.xlu0 %v1396, 64
    %v8056 = vpop.permute.xlu0 %8055
    %8057 = vrot.lane.b32.xlu0 %v1397, 64
    %v8058 = vpop.permute.xlu0 %8057
    %8059 = vrot.lane.b32.xlu0 %v1398, 64
    %v8060 = vpop.permute.xlu0 %8059
    %8061 = vrot.lane.b32.xlu0 %v1399, 64
    %v8062 = vpop.permute.xlu0 %8061
    %8063 = vrot.lane.b32.xlu0 %v1400, 64
    %v8064 = vpop.permute.xlu0 %8063
    %8065 = vrot.lane.b32.xlu0 %v1401, 64
    %v8066 = vpop.permute.xlu0 %8065
    %8067 = vrot.lane.b32.xlu0 %v1402, 64
    %v8068 = vpop.permute.xlu0 %8067
    %8069 = vrot.lane.b32.xlu0 %v1403, 64
    %v8070 = vpop.permute.xlu0 %8069
    %8071 = vrot.lane.b32.xlu0 %v1404, 64
    %v8072 = vpop.permute.xlu0 %8071
    %8073 = vrot.lane.b32.xlu0 %v1405, 64
    %v8074 = vpop.permute.xlu0 %8073
    %8075 = vrot.lane.b32.xlu0 %v1406, 64
    %v8076 = vpop.permute.xlu0 %8075
    %8077 = vrot.lane.b32.xlu0 %v1407, 64
    %v8078 = vpop.permute.xlu0 %8077
    %8079 = vrot.lane.b32.xlu0 %v1408, 64
    %v8080 = vpop.permute.xlu0 %8079
    %8081 = vrot.lane.b32.xlu0 %v1409, 64
    %v8082 = vpop.permute.xlu0 %8081
    %8083 = vrot.lane.b32.xlu0 %v1410, 64
    %v8084 = vpop.permute.xlu0 %8083
    %8085 = vrot.lane.b32.xlu0 %v1411, 64
    %v8086 = vpop.permute.xlu0 %8085
    %8103 = vmatpush.msra.mxu0 %v8086
    %8104 = vmatpush.msra.mxu0 %v8084
    %8105 = vmatpush.msra.mxu0 %v8082
    %8106 = vmatpush.msra.mxu0 %v8080
    %8107 = vmatpush.msra.mxu0 %v8078
    %8108 = vmatpush.msra.mxu0 %v8076
    %8109 = vmatpush.msra.mxu0 %v8074
    %8110 = vmatpush.msra.mxu0 %v8072
    %8111 = vmatpush.msra.mxu0 %v8070
    %8112 = vmatpush.msra.mxu0 %v8068
    %8113 = vmatpush.msra.mxu0 %v8066
    %8114 = vmatpush.msra.mxu0 %v8064
    %8115 = vmatpush.msra.mxu0 %v8062
    %8116 = vmatpush.msra.mxu0 %v8060
    %8117 = vmatpush.msra.mxu0 %v8058
    %8118 = vmatpush.msra.mxu0 %v8056
    %8119 = vmatmul.f32.gmra.mxu0 %v5399
    %v8120 = vpop.f32.mrf.mxu0
    %v8121 = vadd.f32 0.0, %v8120
    %8122 = vmatmul.f32.gmra.mxu0 %v5401
    %v8123 = vpop.f32.mrf.mxu0
    %v8124 = vadd.f32 0.0, %v8123
    %8125 = vdwg.mxu0
    %8142 = vrot.lane.b32.xlu0 %v1412, 64
    %v8143 = vpop.permute.xlu0 %8142
    %8144 = vrot.lane.b32.xlu0 %v1413, 64
    %v8145 = vpop.permute.xlu0 %8144
    %8146 = vrot.lane.b32.xlu0 %v1414, 64
    %v8147 = vpop.permute.xlu0 %8146
    %8148 = vrot.lane.b32.xlu0 %v1415, 64
    %v8149 = vpop.permute.xlu0 %8148
    %8150 = vrot.lane.b32.xlu0 %v1416, 64
    %v8151 = vpop.permute.xlu0 %8150
    %8152 = vrot.lane.b32.xlu0 %v1417, 64
    %v8153 = vpop.permute.xlu0 %8152
    %8154 = vrot.lane.b32.xlu0 %v1418, 64
    %v8155 = vpop.permute.xlu0 %8154
    %8156 = vrot.lane.b32.xlu0 %v1419, 64
    %v8157 = vpop.permute.xlu0 %8156
    %8158 = vrot.lane.b32.xlu0 %v1420, 64
    %v8159 = vpop.permute.xlu0 %8158
    %8160 = vrot.lane.b32.xlu0 %v1421, 64
    %v8161 = vpop.permute.xlu0 %8160
    %8162 = vrot.lane.b32.xlu0 %v1422, 64
    %v8163 = vpop.permute.xlu0 %8162
    %8164 = vrot.lane.b32.xlu0 %v1423, 64
    %v8165 = vpop.permute.xlu0 %8164
    %8166 = vrot.lane.b32.xlu0 %v1424, 64
    %v8167 = vpop.permute.xlu0 %8166
    %8168 = vrot.lane.b32.xlu0 %v1425, 64
    %v8169 = vpop.permute.xlu0 %8168
    %8170 = vrot.lane.b32.xlu0 %v1426, 64
    %v8171 = vpop.permute.xlu0 %8170
    %8172 = vrot.lane.b32.xlu0 %v1427, 64
    %v8173 = vpop.permute.xlu0 %8172
    %8190 = vmatpush.msra.mxu0 %v8173
    %8191 = vmatpush.msra.mxu0 %v8171
    %8192 = vmatpush.msra.mxu0 %v8169
    %8193 = vmatpush.msra.mxu0 %v8167
    %8194 = vmatpush.msra.mxu0 %v8165
    %8195 = vmatpush.msra.mxu0 %v8163
    %8196 = vmatpush.msra.mxu0 %v8161
    %8197 = vmatpush.msra.mxu0 %v8159
    %8198 = vmatpush.msra.mxu0 %v8157
    %8199 = vmatpush.msra.mxu0 %v8155
    %8200 = vmatpush.msra.mxu0 %v8153
    %8201 = vmatpush.msra.mxu0 %v8151
    %8202 = vmatpush.msra.mxu0 %v8149
    %8203 = vmatpush.msra.mxu0 %v8147
    %8204 = vmatpush.msra.mxu0 %v8145
    %8205 = vmatpush.msra.mxu0 %v8143
    %8206 = vmatmul.f32.gmra.mxu0 %v5403
    %v8207 = vpop.f32.mrf.mxu0
    %v8208 = vadd.f32 0.0, %v8207
    %8209 = vmatmul.f32.gmra.mxu0 %v5405
    %v8210 = vpop.f32.mrf.mxu0
    %v8211 = vadd.f32 0.0, %v8210
    %8212 = vdwg.mxu0
    %8229 = vrot.lane.b32.xlu0 %v1428, 64
    %v8230 = vpop.permute.xlu0 %8229
    %8231 = vrot.lane.b32.xlu0 %v1429, 64
    %v8232 = vpop.permute.xlu0 %8231
    %8233 = vrot.lane.b32.xlu0 %v1430, 64
    %v8234 = vpop.permute.xlu0 %8233
    %8235 = vrot.lane.b32.xlu0 %v1431, 64
    %v8236 = vpop.permute.xlu0 %8235
    %8237 = vrot.lane.b32.xlu0 %v1432, 64
    %v8238 = vpop.permute.xlu0 %8237
    %8239 = vrot.lane.b32.xlu0 %v1433, 64
    %v8240 = vpop.permute.xlu0 %8239
    %8241 = vrot.lane.b32.xlu0 %v1434, 64
    %v8242 = vpop.permute.xlu0 %8241
    %8243 = vrot.lane.b32.xlu0 %v1435, 64
    %v8244 = vpop.permute.xlu0 %8243
    %8245 = vrot.lane.b32.xlu0 %v1436, 64
    %v8246 = vpop.permute.xlu0 %8245
    %8247 = vrot.lane.b32.xlu0 %v1437, 64
    %v8248 = vpop.permute.xlu0 %8247
    %8249 = vrot.lane.b32.xlu0 %v1438, 64
    %v8250 = vpop.permute.xlu0 %8249
    %8251 = vrot.lane.b32.xlu0 %v1439, 64
    %v8252 = vpop.permute.xlu0 %8251
    %8253 = vrot.lane.b32.xlu0 %v1440, 64
    %v8254 = vpop.permute.xlu0 %8253
    %8255 = vrot.lane.b32.xlu0 %v1441, 64
    %v8256 = vpop.permute.xlu0 %8255
    %8257 = vrot.lane.b32.xlu0 %v1442, 64
    %v8258 = vpop.permute.xlu0 %8257
    %8259 = vrot.lane.b32.xlu0 %v1443, 64
    %v8260 = vpop.permute.xlu0 %8259
    %8277 = vmatpush.msra.mxu0 %v8260
    %8278 = vmatpush.msra.mxu0 %v8258
    %8279 = vmatpush.msra.mxu0 %v8256
    %8280 = vmatpush.msra.mxu0 %v8254
    %8281 = vmatpush.msra.mxu0 %v8252
    %8282 = vmatpush.msra.mxu0 %v8250
    %8283 = vmatpush.msra.mxu0 %v8248
    %8284 = vmatpush.msra.mxu0 %v8246
    %8285 = vmatpush.msra.mxu0 %v8244
    %8286 = vmatpush.msra.mxu0 %v8242
    %8287 = vmatpush.msra.mxu0 %v8240
    %8288 = vmatpush.msra.mxu0 %v8238
    %8289 = vmatpush.msra.mxu0 %v8236
    %8290 = vmatpush.msra.mxu0 %v8234
    %8291 = vmatpush.msra.mxu0 %v8232
    %8292 = vmatpush.msra.mxu0 %v8230
    %8293 = vmatmul.f32.gmra.mxu0 %v5407
    %v8294 = vpop.f32.mrf.mxu0
    %v8295 = vadd.f32 0.0, %v8294
    %8296 = vmatmul.f32.gmra.mxu0 %v5409
    %v8297 = vpop.f32.mrf.mxu0
    %v8298 = vadd.f32 0.0, %v8297
    %8299 = vdwg.mxu0
    %8316 = vrot.lane.b32.xlu0 %v1444, 64
    %v8317 = vpop.permute.xlu0 %8316
    %8318 = vrot.lane.b32.xlu0 %v1445, 64
    %v8319 = vpop.permute.xlu0 %8318
    %8320 = vrot.lane.b32.xlu0 %v1446, 64
    %v8321 = vpop.permute.xlu0 %8320
    %8322 = vrot.lane.b32.xlu0 %v1447, 64
    %v8323 = vpop.permute.xlu0 %8322
    %8324 = vrot.lane.b32.xlu0 %v1448, 64
    %v8325 = vpop.permute.xlu0 %8324
    %8326 = vrot.lane.b32.xlu0 %v1449, 64
    %v8327 = vpop.permute.xlu0 %8326
    %8328 = vrot.lane.b32.xlu0 %v1450, 64
    %v8329 = vpop.permute.xlu0 %8328
    %8330 = vrot.lane.b32.xlu0 %v1451, 64
    %v8331 = vpop.permute.xlu0 %8330
    %8332 = vrot.lane.b32.xlu0 %v1452, 64
    %v8333 = vpop.permute.xlu0 %8332
    %8334 = vrot.lane.b32.xlu0 %v1453, 64
    %v8335 = vpop.permute.xlu0 %8334
    %8336 = vrot.lane.b32.xlu0 %v1454, 64
    %v8337 = vpop.permute.xlu0 %8336
    %8338 = vrot.lane.b32.xlu0 %v1455, 64
    %v8339 = vpop.permute.xlu0 %8338
    %8340 = vrot.lane.b32.xlu0 %v1456, 64
    %v8341 = vpop.permute.xlu0 %8340
    %8342 = vrot.lane.b32.xlu0 %v1457, 64
    %v8343 = vpop.permute.xlu0 %8342
    %8344 = vrot.lane.b32.xlu0 %v1458, 64
    %v8345 = vpop.permute.xlu0 %8344
    %8346 = vrot.lane.b32.xlu0 %v1459, 64
    %v8347 = vpop.permute.xlu0 %8346
    %8364 = vmatpush.msra.mxu0 %v8347
    %8365 = vmatpush.msra.mxu0 %v8345
    %8366 = vmatpush.msra.mxu0 %v8343
    %8367 = vmatpush.msra.mxu0 %v8341
    %8368 = vmatpush.msra.mxu0 %v8339
    %8369 = vmatpush.msra.mxu0 %v8337
    %8370 = vmatpush.msra.mxu0 %v8335
    %8371 = vmatpush.msra.mxu0 %v8333
    %8372 = vmatpush.msra.mxu0 %v8331
    %8373 = vmatpush.msra.mxu0 %v8329
    %8374 = vmatpush.msra.mxu0 %v8327
    %8375 = vmatpush.msra.mxu0 %v8325
    %8376 = vmatpush.msra.mxu0 %v8323
    %8377 = vmatpush.msra.mxu0 %v8321
    %8378 = vmatpush.msra.mxu0 %v8319
    %8379 = vmatpush.msra.mxu0 %v8317
    %8380 = vmatmul.f32.gmra.mxu0 %v5411
    %v8381 = vpop.f32.mrf.mxu0
    %v8382 = vadd.f32 0.0, %v8381
    %8383 = vmatmul.f32.gmra.mxu0 %v5413
    %v8384 = vpop.f32.mrf.mxu0
    %v8385 = vadd.f32 0.0, %v8384
    %8386 = vdwg.mxu0
    %8403 = vrot.lane.b32.xlu0 %v1460, 64
    %v8404 = vpop.permute.xlu0 %8403
    %8405 = vrot.lane.b32.xlu0 %v1461, 64
    %v8406 = vpop.permute.xlu0 %8405
    %8407 = vrot.lane.b32.xlu0 %v1462, 64
    %v8408 = vpop.permute.xlu0 %8407
    %8409 = vrot.lane.b32.xlu0 %v1463, 64
    %v8410 = vpop.permute.xlu0 %8409
    %8411 = vrot.lane.b32.xlu0 %v1464, 64
    %v8412 = vpop.permute.xlu0 %8411
    %8413 = vrot.lane.b32.xlu0 %v1465, 64
    %v8414 = vpop.permute.xlu0 %8413
    %8415 = vrot.lane.b32.xlu0 %v1466, 64
    %v8416 = vpop.permute.xlu0 %8415
    %8417 = vrot.lane.b32.xlu0 %v1467, 64
    %v8418 = vpop.permute.xlu0 %8417
    %8419 = vrot.lane.b32.xlu0 %v1468, 64
    %v8420 = vpop.permute.xlu0 %8419
    %8421 = vrot.lane.b32.xlu0 %v1469, 64
    %v8422 = vpop.permute.xlu0 %8421
    %8423 = vrot.lane.b32.xlu0 %v1470, 64
    %v8424 = vpop.permute.xlu0 %8423
    %8425 = vrot.lane.b32.xlu0 %v1471, 64
    %v8426 = vpop.permute.xlu0 %8425
    %8427 = vrot.lane.b32.xlu0 %v1472, 64
    %v8428 = vpop.permute.xlu0 %8427
    %8429 = vrot.lane.b32.xlu0 %v1473, 64
    %v8430 = vpop.permute.xlu0 %8429
    %8431 = vrot.lane.b32.xlu0 %v1474, 64
    %v8432 = vpop.permute.xlu0 %8431
    %8433 = vrot.lane.b32.xlu0 %v1475, 64
    %v8434 = vpop.permute.xlu0 %8433
    %8451 = vmatpush.msra.mxu0 %v8434
    %8452 = vmatpush.msra.mxu0 %v8432
    %8453 = vmatpush.msra.mxu0 %v8430
    %8454 = vmatpush.msra.mxu0 %v8428
    %8455 = vmatpush.msra.mxu0 %v8426
    %8456 = vmatpush.msra.mxu0 %v8424
    %8457 = vmatpush.msra.mxu0 %v8422
    %8458 = vmatpush.msra.mxu0 %v8420
    %8459 = vmatpush.msra.mxu0 %v8418
    %8460 = vmatpush.msra.mxu0 %v8416
    %8461 = vmatpush.msra.mxu0 %v8414
    %8462 = vmatpush.msra.mxu0 %v8412
    %8463 = vmatpush.msra.mxu0 %v8410
    %8464 = vmatpush.msra.mxu0 %v8408
    %8465 = vmatpush.msra.mxu0 %v8406
    %8466 = vmatpush.msra.mxu0 %v8404
    %8467 = vmatmul.f32.gmra.mxu0 %v5415
    %v8468 = vpop.f32.mrf.mxu0
    %v8469 = vadd.f32 0.0, %v8468
    %8470 = vmatmul.f32.gmra.mxu0 %v5417
    %v8471 = vpop.f32.mrf.mxu0
    %v8472 = vadd.f32 0.0, %v8471
    %8473 = vdwg.mxu0
    %8490 = vrot.lane.b32.xlu0 %v1476, 64
    %v8491 = vpop.permute.xlu0 %8490
    %8492 = vrot.lane.b32.xlu0 %v1477, 64
    %v8493 = vpop.permute.xlu0 %8492
    %8494 = vrot.lane.b32.xlu0 %v1478, 64
    %v8495 = vpop.permute.xlu0 %8494
    %8496 = vrot.lane.b32.xlu0 %v1479, 64
    %v8497 = vpop.permute.xlu0 %8496
    %8498 = vrot.lane.b32.xlu0 %v1480, 64
    %v8499 = vpop.permute.xlu0 %8498
    %8500 = vrot.lane.b32.xlu0 %v1481, 64
    %v8501 = vpop.permute.xlu0 %8500
    %8502 = vrot.lane.b32.xlu0 %v1482, 64
    %v8503 = vpop.permute.xlu0 %8502
    %8504 = vrot.lane.b32.xlu0 %v1483, 64
    %v8505 = vpop.permute.xlu0 %8504
    %8506 = vrot.lane.b32.xlu0 %v1484, 64
    %v8507 = vpop.permute.xlu0 %8506
    %8508 = vrot.lane.b32.xlu0 %v1485, 64
    %v8509 = vpop.permute.xlu0 %8508
    %8510 = vrot.lane.b32.xlu0 %v1486, 64
    %v8511 = vpop.permute.xlu0 %8510
    %8512 = vrot.lane.b32.xlu0 %v1487, 64
    %v8513 = vpop.permute.xlu0 %8512
    %8514 = vrot.lane.b32.xlu0 %v1488, 64
    %v8515 = vpop.permute.xlu0 %8514
    %8516 = vrot.lane.b32.xlu0 %v1489, 64
    %v8517 = vpop.permute.xlu0 %8516
    %8518 = vrot.lane.b32.xlu0 %v1490, 64
    %v8519 = vpop.permute.xlu0 %8518
    %8520 = vrot.lane.b32.xlu0 %v1491, 64
    %v8521 = vpop.permute.xlu0 %8520
    %8538 = vmatpush.msra.mxu0 %v8521
    %8539 = vmatpush.msra.mxu0 %v8519
    %8540 = vmatpush.msra.mxu0 %v8517
    %8541 = vmatpush.msra.mxu0 %v8515
    %8542 = vmatpush.msra.mxu0 %v8513
    %8543 = vmatpush.msra.mxu0 %v8511
    %8544 = vmatpush.msra.mxu0 %v8509
    %8545 = vmatpush.msra.mxu0 %v8507
    %8546 = vmatpush.msra.mxu0 %v8505
    %8547 = vmatpush.msra.mxu0 %v8503
    %8548 = vmatpush.msra.mxu0 %v8501
    %8549 = vmatpush.msra.mxu0 %v8499
    %8550 = vmatpush.msra.mxu0 %v8497
    %8551 = vmatpush.msra.mxu0 %v8495
    %8552 = vmatpush.msra.mxu0 %v8493
    %8553 = vmatpush.msra.mxu0 %v8491
    %8554 = vmatmul.f32.gmra.mxu0 %v5419
    %v8555 = vpop.f32.mrf.mxu0
    %v8556 = vadd.f32 0.0, %v8555
    %8557 = vmatmul.f32.gmra.mxu0 %v5421
    %v8558 = vpop.f32.mrf.mxu0
    %v8559 = vadd.f32 0.0, %v8558
    %8560 = vdwg.mxu0
    %8577 = vrot.lane.b32.xlu0 %v1492, 64
    %v8578 = vpop.permute.xlu0 %8577
    %8579 = vrot.lane.b32.xlu0 %v1493, 64
    %v8580 = vpop.permute.xlu0 %8579
    %8581 = vrot.lane.b32.xlu0 %v1494, 64
    %v8582 = vpop.permute.xlu0 %8581
    %8583 = vrot.lane.b32.xlu0 %v1495, 64
    %v8584 = vpop.permute.xlu0 %8583
    %8585 = vrot.lane.b32.xlu0 %v1496, 64
    %v8586 = vpop.permute.xlu0 %8585
    %8587 = vrot.lane.b32.xlu0 %v1497, 64
    %v8588 = vpop.permute.xlu0 %8587
    %8589 = vrot.lane.b32.xlu0 %v1498, 64
    %v8590 = vpop.permute.xlu0 %8589
    %8591 = vrot.lane.b32.xlu0 %v1499, 64
    %v8592 = vpop.permute.xlu0 %8591
    %8593 = vrot.lane.b32.xlu0 %v1500, 64
    %v8594 = vpop.permute.xlu0 %8593
    %8595 = vrot.lane.b32.xlu0 %v1501, 64
    %v8596 = vpop.permute.xlu0 %8595
    %8597 = vrot.lane.b32.xlu0 %v1502, 64
    %v8598 = vpop.permute.xlu0 %8597
    %8599 = vrot.lane.b32.xlu0 %v1503, 64
    %v8600 = vpop.permute.xlu0 %8599
    %8601 = vrot.lane.b32.xlu0 %v1504, 64
    %v8602 = vpop.permute.xlu0 %8601
    %8603 = vrot.lane.b32.xlu0 %v1505, 64
    %v8604 = vpop.permute.xlu0 %8603
    %8605 = vrot.lane.b32.xlu0 %v1506, 64
    %v8606 = vpop.permute.xlu0 %8605
    %8607 = vrot.lane.b32.xlu0 %v1507, 64
    %v8608 = vpop.permute.xlu0 %8607
    %8625 = vmatpush.msra.mxu0 %v8608
    %8626 = vmatpush.msra.mxu0 %v8606
    %8627 = vmatpush.msra.mxu0 %v8604
    %8628 = vmatpush.msra.mxu0 %v8602
    %8629 = vmatpush.msra.mxu0 %v8600
    %8630 = vmatpush.msra.mxu0 %v8598
    %8631 = vmatpush.msra.mxu0 %v8596
    %8632 = vmatpush.msra.mxu0 %v8594
    %8633 = vmatpush.msra.mxu0 %v8592
    %8634 = vmatpush.msra.mxu0 %v8590
    %8635 = vmatpush.msra.mxu0 %v8588
    %8636 = vmatpush.msra.mxu0 %v8586
    %8637 = vmatpush.msra.mxu0 %v8584
    %8638 = vmatpush.msra.mxu0 %v8582
    %8639 = vmatpush.msra.mxu0 %v8580
    %8640 = vmatpush.msra.mxu0 %v8578
    %8641 = vmatmul.f32.gmra.mxu0 %v5423
    %v8642 = vpop.f32.mrf.mxu0
    %v8643 = vadd.f32 0.0, %v8642
    %8644 = vmatmul.f32.gmra.mxu0 %v5425
    %v8645 = vpop.f32.mrf.mxu0
    %v8646 = vadd.f32 0.0, %v8645
    %8647 = vdwg.mxu0
    %8664 = vrot.lane.b32.xlu0 %v1508, 64
    %v8665 = vpop.permute.xlu0 %8664
    %8666 = vrot.lane.b32.xlu0 %v1509, 64
    %v8667 = vpop.permute.xlu0 %8666
    %8668 = vrot.lane.b32.xlu0 %v1510, 64
    %v8669 = vpop.permute.xlu0 %8668
    %8670 = vrot.lane.b32.xlu0 %v1511, 64
    %v8671 = vpop.permute.xlu0 %8670
    %8672 = vrot.lane.b32.xlu0 %v1512, 64
    %v8673 = vpop.permute.xlu0 %8672
    %8674 = vrot.lane.b32.xlu0 %v1513, 64
    %v8675 = vpop.permute.xlu0 %8674
    %8676 = vrot.lane.b32.xlu0 %v1514, 64
    %v8677 = vpop.permute.xlu0 %8676
    %8678 = vrot.lane.b32.xlu0 %v1515, 64
    %v8679 = vpop.permute.xlu0 %8678
    %8680 = vrot.lane.b32.xlu0 %v1516, 64
    %v8681 = vpop.permute.xlu0 %8680
    %8682 = vrot.lane.b32.xlu0 %v1517, 64
    %v8683 = vpop.permute.xlu0 %8682
    %8684 = vrot.lane.b32.xlu0 %v1518, 64
    %v8685 = vpop.permute.xlu0 %8684
    %8686 = vrot.lane.b32.xlu0 %v1519, 64
    %v8687 = vpop.permute.xlu0 %8686
    %8688 = vrot.lane.b32.xlu0 %v1520, 64
    %v8689 = vpop.permute.xlu0 %8688
    %8690 = vrot.lane.b32.xlu0 %v1521, 64
    %v8691 = vpop.permute.xlu0 %8690
    %8692 = vrot.lane.b32.xlu0 %v1522, 64
    %v8693 = vpop.permute.xlu0 %8692
    %8694 = vrot.lane.b32.xlu0 %v1523, 64
    %v8695 = vpop.permute.xlu0 %8694
    %8712 = vmatpush.msra.mxu0 %v8695
    %8713 = vmatpush.msra.mxu0 %v8693
    %8714 = vmatpush.msra.mxu0 %v8691
    %8715 = vmatpush.msra.mxu0 %v8689
    %8716 = vmatpush.msra.mxu0 %v8687
    %8717 = vmatpush.msra.mxu0 %v8685
    %8718 = vmatpush.msra.mxu0 %v8683
    %8719 = vmatpush.msra.mxu0 %v8681
    %8720 = vmatpush.msra.mxu0 %v8679
    %8721 = vmatpush.msra.mxu0 %v8677
    %8722 = vmatpush.msra.mxu0 %v8675
    %8723 = vmatpush.msra.mxu0 %v8673
    %8724 = vmatpush.msra.mxu0 %v8671
    %8725 = vmatpush.msra.mxu0 %v8669
    %8726 = vmatpush.msra.mxu0 %v8667
    %8727 = vmatpush.msra.mxu0 %v8665
    %8728 = vmatmul.f32.gmra.mxu0 %v5427
    %v8729 = vpop.f32.mrf.mxu0
    %v8730 = vadd.f32 0.0, %v8729
    %8731 = vmatmul.f32.gmra.mxu0 %v5429
    %v8732 = vpop.f32.mrf.mxu0
    %v8733 = vadd.f32 0.0, %v8732
    %8734 = vdwg.mxu0
    %8751 = vrot.lane.b32.xlu0 %v1524, 64
    %v8752 = vpop.permute.xlu0 %8751
    %8753 = vrot.lane.b32.xlu0 %v1525, 64
    %v8754 = vpop.permute.xlu0 %8753
    %8755 = vrot.lane.b32.xlu0 %v1526, 64
    %v8756 = vpop.permute.xlu0 %8755
    %8757 = vrot.lane.b32.xlu0 %v1527, 64
    %v8758 = vpop.permute.xlu0 %8757
    %8759 = vrot.lane.b32.xlu0 %v1528, 64
    %v8760 = vpop.permute.xlu0 %8759
    %8761 = vrot.lane.b32.xlu0 %v1529, 64
    %v8762 = vpop.permute.xlu0 %8761
    %8763 = vrot.lane.b32.xlu0 %v1530, 64
    %v8764 = vpop.permute.xlu0 %8763
    %8765 = vrot.lane.b32.xlu0 %v1531, 64
    %v8766 = vpop.permute.xlu0 %8765
    %8767 = vrot.lane.b32.xlu0 %v1532, 64
    %v8768 = vpop.permute.xlu0 %8767
    %8769 = vrot.lane.b32.xlu0 %v1533, 64
    %v8770 = vpop.permute.xlu0 %8769
    %8771 = vrot.lane.b32.xlu0 %v1534, 64
    %v8772 = vpop.permute.xlu0 %8771
    %8773 = vrot.lane.b32.xlu0 %v1535, 64
    %v8774 = vpop.permute.xlu0 %8773
    %8775 = vrot.lane.b32.xlu0 %v1536, 64
    %v8776 = vpop.permute.xlu0 %8775
    %8777 = vrot.lane.b32.xlu0 %v1537, 64
    %v8778 = vpop.permute.xlu0 %8777
    %8779 = vrot.lane.b32.xlu0 %v1538, 64
    %v8780 = vpop.permute.xlu0 %8779
    %8781 = vrot.lane.b32.xlu0 %v1539, 64
    %v8782 = vpop.permute.xlu0 %8781
    %8799 = vmatpush.msra.mxu0 %v8782
    %8800 = vmatpush.msra.mxu0 %v8780
    %8801 = vmatpush.msra.mxu0 %v8778
    %8802 = vmatpush.msra.mxu0 %v8776
    %8803 = vmatpush.msra.mxu0 %v8774
    %8804 = vmatpush.msra.mxu0 %v8772
    %8805 = vmatpush.msra.mxu0 %v8770
    %8806 = vmatpush.msra.mxu0 %v8768
    %8807 = vmatpush.msra.mxu0 %v8766
    %8808 = vmatpush.msra.mxu0 %v8764
    %8809 = vmatpush.msra.mxu0 %v8762
    %8810 = vmatpush.msra.mxu0 %v8760
    %8811 = vmatpush.msra.mxu0 %v8758
    %8812 = vmatpush.msra.mxu0 %v8756
    %8813 = vmatpush.msra.mxu0 %v8754
    %8814 = vmatpush.msra.mxu0 %v8752
    %8815 = vmatmul.f32.gmra.mxu0 %v5431
    %v8816 = vpop.f32.mrf.mxu0
    %v8817 = vadd.f32 0.0, %v8816
    %8818 = vmatmul.f32.gmra.mxu0 %v5433
    %v8819 = vpop.f32.mrf.mxu0
    %v8820 = vadd.f32 0.0, %v8819
    %8821 = vdwg.mxu0
    %8838 = vrot.lane.b32.xlu0 %v1540, 64
    %v8839 = vpop.permute.xlu0 %8838
    %8840 = vrot.lane.b32.xlu0 %v1541, 64
    %v8841 = vpop.permute.xlu0 %8840
    %8842 = vrot.lane.b32.xlu0 %v1542, 64
    %v8843 = vpop.permute.xlu0 %8842
    %8844 = vrot.lane.b32.xlu0 %v1543, 64
    %v8845 = vpop.permute.xlu0 %8844
    %8846 = vrot.lane.b32.xlu0 %v1544, 64
    %v8847 = vpop.permute.xlu0 %8846
    %8848 = vrot.lane.b32.xlu0 %v1545, 64
    %v8849 = vpop.permute.xlu0 %8848
    %8850 = vrot.lane.b32.xlu0 %v1546, 64
    %v8851 = vpop.permute.xlu0 %8850
    %8852 = vrot.lane.b32.xlu0 %v1547, 64
    %v8853 = vpop.permute.xlu0 %8852
    %8854 = vrot.lane.b32.xlu0 %v1548, 64
    %v8855 = vpop.permute.xlu0 %8854
    %8856 = vrot.lane.b32.xlu0 %v1549, 64
    %v8857 = vpop.permute.xlu0 %8856
    %8858 = vrot.lane.b32.xlu0 %v1550, 64
    %v8859 = vpop.permute.xlu0 %8858
    %8860 = vrot.lane.b32.xlu0 %v1551, 64
    %v8861 = vpop.permute.xlu0 %8860
    %8862 = vrot.lane.b32.xlu0 %v1552, 64
    %v8863 = vpop.permute.xlu0 %8862
    %8864 = vrot.lane.b32.xlu0 %v1553, 64
    %v8865 = vpop.permute.xlu0 %8864
    %8866 = vrot.lane.b32.xlu0 %v1554, 64
    %v8867 = vpop.permute.xlu0 %8866
    %8868 = vrot.lane.b32.xlu0 %v1555, 64
    %v8869 = vpop.permute.xlu0 %8868
    %8886 = vmatpush.msra.mxu0 %v8869
    %8887 = vmatpush.msra.mxu0 %v8867
    %8888 = vmatpush.msra.mxu0 %v8865
    %8889 = vmatpush.msra.mxu0 %v8863
    %8890 = vmatpush.msra.mxu0 %v8861
    %8891 = vmatpush.msra.mxu0 %v8859
    %8892 = vmatpush.msra.mxu0 %v8857
    %8893 = vmatpush.msra.mxu0 %v8855
    %8894 = vmatpush.msra.mxu0 %v8853
    %8895 = vmatpush.msra.mxu0 %v8851
    %8896 = vmatpush.msra.mxu0 %v8849
    %8897 = vmatpush.msra.mxu0 %v8847
    %8898 = vmatpush.msra.mxu0 %v8845
    %8899 = vmatpush.msra.mxu0 %v8843
    %8900 = vmatpush.msra.mxu0 %v8841
    %8901 = vmatpush.msra.mxu0 %v8839
    %8902 = vmatmul.f32.gmra.mxu0 %v5435
    %v8903 = vpop.f32.mrf.mxu0
    %v8904 = vadd.f32 0.0, %v8903
    %8905 = vmatmul.f32.gmra.mxu0 %v5437
    %v8906 = vpop.f32.mrf.mxu0
    %v8907 = vadd.f32 0.0, %v8906
    %8908 = vdwg.mxu0
    %8925 = vrot.lane.b32.xlu0 %v1556, 64
    %v8926 = vpop.permute.xlu0 %8925
    %8927 = vrot.lane.b32.xlu0 %v1557, 64
    %v8928 = vpop.permute.xlu0 %8927
    %8929 = vrot.lane.b32.xlu0 %v1558, 64
    %v8930 = vpop.permute.xlu0 %8929
    %8931 = vrot.lane.b32.xlu0 %v1559, 64
    %v8932 = vpop.permute.xlu0 %8931
    %8933 = vrot.lane.b32.xlu0 %v1560, 64
    %v8934 = vpop.permute.xlu0 %8933
    %8935 = vrot.lane.b32.xlu0 %v1561, 64
    %v8936 = vpop.permute.xlu0 %8935
    %8937 = vrot.lane.b32.xlu0 %v1562, 64
    %v8938 = vpop.permute.xlu0 %8937
    %8939 = vrot.lane.b32.xlu0 %v1563, 64
    %v8940 = vpop.permute.xlu0 %8939
    %8941 = vrot.lane.b32.xlu0 %v1564, 64
    %v8942 = vpop.permute.xlu0 %8941
    %8943 = vrot.lane.b32.xlu0 %v1565, 64
    %v8944 = vpop.permute.xlu0 %8943
    %8945 = vrot.lane.b32.xlu0 %v1566, 64
    %v8946 = vpop.permute.xlu0 %8945
    %8947 = vrot.lane.b32.xlu0 %v1567, 64
    %v8948 = vpop.permute.xlu0 %8947
    %8949 = vrot.lane.b32.xlu0 %v1568, 64
    %v8950 = vpop.permute.xlu0 %8949
    %8951 = vrot.lane.b32.xlu0 %v1569, 64
    %v8952 = vpop.permute.xlu0 %8951
    %8953 = vrot.lane.b32.xlu0 %v1570, 64
    %v8954 = vpop.permute.xlu0 %8953
    %8955 = vrot.lane.b32.xlu0 %v1571, 64
    %v8956 = vpop.permute.xlu0 %8955
    %8973 = vmatpush.msra.mxu0 %v8956
    %8974 = vmatpush.msra.mxu0 %v8954
    %8975 = vmatpush.msra.mxu0 %v8952
    %8976 = vmatpush.msra.mxu0 %v8950
    %8977 = vmatpush.msra.mxu0 %v8948
    %8978 = vmatpush.msra.mxu0 %v8946
    %8979 = vmatpush.msra.mxu0 %v8944
    %8980 = vmatpush.msra.mxu0 %v8942
    %8981 = vmatpush.msra.mxu0 %v8940
    %8982 = vmatpush.msra.mxu0 %v8938
    %8983 = vmatpush.msra.mxu0 %v8936
    %8984 = vmatpush.msra.mxu0 %v8934
    %8985 = vmatpush.msra.mxu0 %v8932
    %8986 = vmatpush.msra.mxu0 %v8930
    %8987 = vmatpush.msra.mxu0 %v8928
    %8988 = vmatpush.msra.mxu0 %v8926
    %8989 = vmatmul.f32.gmra.mxu0 %v5439
    %v8990 = vpop.f32.mrf.mxu0
    %v8991 = vadd.f32 0.0, %v8990
    %8992 = vmatmul.f32.gmra.mxu0 %v5441
    %v8993 = vpop.f32.mrf.mxu0
    %v8994 = vadd.f32 0.0, %v8993
    %8995 = vdwg.mxu0
    %9012 = vrot.lane.b32.xlu0 %v1572, 64
    %v9013 = vpop.permute.xlu0 %9012
    %9014 = vrot.lane.b32.xlu0 %v1573, 64
    %v9015 = vpop.permute.xlu0 %9014
    %9016 = vrot.lane.b32.xlu0 %v1574, 64
    %v9017 = vpop.permute.xlu0 %9016
    %9018 = vrot.lane.b32.xlu0 %v1575, 64
    %v9019 = vpop.permute.xlu0 %9018
    %9020 = vrot.lane.b32.xlu0 %v1576, 64
    %v9021 = vpop.permute.xlu0 %9020
    %9022 = vrot.lane.b32.xlu0 %v1577, 64
    %v9023 = vpop.permute.xlu0 %9022
    %9024 = vrot.lane.b32.xlu0 %v1578, 64
    %v9025 = vpop.permute.xlu0 %9024
    %9026 = vrot.lane.b32.xlu0 %v1579, 64
    %v9027 = vpop.permute.xlu0 %9026
    %9028 = vrot.lane.b32.xlu0 %v1580, 64
    %v9029 = vpop.permute.xlu0 %9028
    %9030 = vrot.lane.b32.xlu0 %v1581, 64
    %v9031 = vpop.permute.xlu0 %9030
    %9032 = vrot.lane.b32.xlu0 %v1582, 64
    %v9033 = vpop.permute.xlu0 %9032
    %9034 = vrot.lane.b32.xlu0 %v1583, 64
    %v9035 = vpop.permute.xlu0 %9034
    %9036 = vrot.lane.b32.xlu0 %v1584, 64
    %v9037 = vpop.permute.xlu0 %9036
    %9038 = vrot.lane.b32.xlu0 %v1585, 64
    %v9039 = vpop.permute.xlu0 %9038
    %9040 = vrot.lane.b32.xlu0 %v1586, 64
    %v9041 = vpop.permute.xlu0 %9040
    %9042 = vrot.lane.b32.xlu0 %v1587, 64
    %v9043 = vpop.permute.xlu0 %9042
    %9060 = vmatpush.msra.mxu0 %v9043
    %9061 = vmatpush.msra.mxu0 %v9041
    %9062 = vmatpush.msra.mxu0 %v9039
    %9063 = vmatpush.msra.mxu0 %v9037
    %9064 = vmatpush.msra.mxu0 %v9035
    %9065 = vmatpush.msra.mxu0 %v9033
    %9066 = vmatpush.msra.mxu0 %v9031
    %9067 = vmatpush.msra.mxu0 %v9029
    %9068 = vmatpush.msra.mxu0 %v9027
    %9069 = vmatpush.msra.mxu0 %v9025
    %9070 = vmatpush.msra.mxu0 %v9023
    %9071 = vmatpush.msra.mxu0 %v9021
    %9072 = vmatpush.msra.mxu0 %v9019
    %9073 = vmatpush.msra.mxu0 %v9017
    %9074 = vmatpush.msra.mxu0 %v9015
    %9075 = vmatpush.msra.mxu0 %v9013
    %9076 = vmatmul.f32.gmra.mxu0 %v5443
    %v9077 = vpop.f32.mrf.mxu0
    %v9078 = vadd.f32 0.0, %v9077
    %9079 = vmatmul.f32.gmra.mxu0 %v5445
    %v9080 = vpop.f32.mrf.mxu0
    %v9081 = vadd.f32 0.0, %v9080
    %9082 = vdwg.mxu0
    %9099 = vrot.lane.b32.xlu0 %v1588, 64
    %v9100 = vpop.permute.xlu0 %9099
    %9101 = vrot.lane.b32.xlu0 %v1589, 64
    %v9102 = vpop.permute.xlu0 %9101
    %9103 = vrot.lane.b32.xlu0 %v1590, 64
    %v9104 = vpop.permute.xlu0 %9103
    %9105 = vrot.lane.b32.xlu0 %v1591, 64
    %v9106 = vpop.permute.xlu0 %9105
    %9107 = vrot.lane.b32.xlu0 %v1592, 64
    %v9108 = vpop.permute.xlu0 %9107
    %9109 = vrot.lane.b32.xlu0 %v1593, 64
    %v9110 = vpop.permute.xlu0 %9109
    %9111 = vrot.lane.b32.xlu0 %v1594, 64
    %v9112 = vpop.permute.xlu0 %9111
    %9113 = vrot.lane.b32.xlu0 %v1595, 64
    %v9114 = vpop.permute.xlu0 %9113
    %9115 = vrot.lane.b32.xlu0 %v1596, 64
    %v9116 = vpop.permute.xlu0 %9115
    %9117 = vrot.lane.b32.xlu0 %v1597, 64
    %v9118 = vpop.permute.xlu0 %9117
    %9119 = vrot.lane.b32.xlu0 %v1598, 64
    %v9120 = vpop.permute.xlu0 %9119
    %9121 = vrot.lane.b32.xlu0 %v1599, 64
    %v9122 = vpop.permute.xlu0 %9121
    %9123 = vrot.lane.b32.xlu0 %v1600, 64
    %v9124 = vpop.permute.xlu0 %9123
    %9125 = vrot.lane.b32.xlu0 %v1601, 64
    %v9126 = vpop.permute.xlu0 %9125
    %9127 = vrot.lane.b32.xlu0 %v1602, 64
    %v9128 = vpop.permute.xlu0 %9127
    %9129 = vrot.lane.b32.xlu0 %v1603, 64
    %v9130 = vpop.permute.xlu0 %9129
    %9147 = vmatpush.msra.mxu0 %v9130
    %9148 = vmatpush.msra.mxu0 %v9128
    %9149 = vmatpush.msra.mxu0 %v9126
    %9150 = vmatpush.msra.mxu0 %v9124
    %9151 = vmatpush.msra.mxu0 %v9122
    %9152 = vmatpush.msra.mxu0 %v9120
    %9153 = vmatpush.msra.mxu0 %v9118
    %9154 = vmatpush.msra.mxu0 %v9116
    %9155 = vmatpush.msra.mxu0 %v9114
    %9156 = vmatpush.msra.mxu0 %v9112
    %9157 = vmatpush.msra.mxu0 %v9110
    %9158 = vmatpush.msra.mxu0 %v9108
    %9159 = vmatpush.msra.mxu0 %v9106
    %9160 = vmatpush.msra.mxu0 %v9104
    %9161 = vmatpush.msra.mxu0 %v9102
    %9162 = vmatpush.msra.mxu0 %v9100
    %9163 = vmatmul.f32.gmra.mxu0 %v5447
    %v9164 = vpop.f32.mrf.mxu0
    %v9165 = vadd.f32 0.0, %v9164
    %9166 = vmatmul.f32.gmra.mxu0 %v5449
    %v9167 = vpop.f32.mrf.mxu0
    %v9168 = vadd.f32 0.0, %v9167
    %9169 = vdwg.mxu0
    %9186 = vrot.lane.b32.xlu0 %v1604, 64
    %v9187 = vpop.permute.xlu0 %9186
    %9188 = vrot.lane.b32.xlu0 %v1605, 64
    %v9189 = vpop.permute.xlu0 %9188
    %9190 = vrot.lane.b32.xlu0 %v1606, 64
    %v9191 = vpop.permute.xlu0 %9190
    %9192 = vrot.lane.b32.xlu0 %v1607, 64
    %v9193 = vpop.permute.xlu0 %9192
    %9194 = vrot.lane.b32.xlu0 %v1608, 64
    %v9195 = vpop.permute.xlu0 %9194
    %9196 = vrot.lane.b32.xlu0 %v1609, 64
    %v9197 = vpop.permute.xlu0 %9196
    %9198 = vrot.lane.b32.xlu0 %v1610, 64
    %v9199 = vpop.permute.xlu0 %9198
    %9200 = vrot.lane.b32.xlu0 %v1611, 64
    %v9201 = vpop.permute.xlu0 %9200
    %9202 = vrot.lane.b32.xlu0 %v1612, 64
    %v9203 = vpop.permute.xlu0 %9202
    %9204 = vrot.lane.b32.xlu0 %v1613, 64
    %v9205 = vpop.permute.xlu0 %9204
    %9206 = vrot.lane.b32.xlu0 %v1614, 64
    %v9207 = vpop.permute.xlu0 %9206
    %9208 = vrot.lane.b32.xlu0 %v1615, 64
    %v9209 = vpop.permute.xlu0 %9208
    %9210 = vrot.lane.b32.xlu0 %v1616, 64
    %v9211 = vpop.permute.xlu0 %9210
    %9212 = vrot.lane.b32.xlu0 %v1617, 64
    %v9213 = vpop.permute.xlu0 %9212
    %9214 = vrot.lane.b32.xlu0 %v1618, 64
    %v9215 = vpop.permute.xlu0 %9214
    %9216 = vrot.lane.b32.xlu0 %v1619, 64
    %v9217 = vpop.permute.xlu0 %9216
    %9234 = vmatpush.msra.mxu0 %v9217
    %9235 = vmatpush.msra.mxu0 %v9215
    %9236 = vmatpush.msra.mxu0 %v9213
    %9237 = vmatpush.msra.mxu0 %v9211
    %9238 = vmatpush.msra.mxu0 %v9209
    %9239 = vmatpush.msra.mxu0 %v9207
    %9240 = vmatpush.msra.mxu0 %v9205
    %9241 = vmatpush.msra.mxu0 %v9203
    %9242 = vmatpush.msra.mxu0 %v9201
    %9243 = vmatpush.msra.mxu0 %v9199
    %9244 = vmatpush.msra.mxu0 %v9197
    %9245 = vmatpush.msra.mxu0 %v9195
    %9246 = vmatpush.msra.mxu0 %v9193
    %9247 = vmatpush.msra.mxu0 %v9191
    %9248 = vmatpush.msra.mxu0 %v9189
    %9249 = vmatpush.msra.mxu0 %v9187
    %9250 = vmatmul.f32.gmra.mxu0 %v5451
    %v9251 = vpop.f32.mrf.mxu0
    %v9252 = vadd.f32 0.0, %v9251
    %9253 = vmatmul.f32.gmra.mxu0 %v5453
    %v9254 = vpop.f32.mrf.mxu0
    %v9255 = vadd.f32 0.0, %v9254
    %9256 = vdwg.mxu0
    %9273 = vrot.lane.b32.xlu0 %v1620, 64
    %v9274 = vpop.permute.xlu0 %9273
    %9275 = vrot.lane.b32.xlu0 %v1621, 64
    %v9276 = vpop.permute.xlu0 %9275
    %9277 = vrot.lane.b32.xlu0 %v1622, 64
    %v9278 = vpop.permute.xlu0 %9277
    %9279 = vrot.lane.b32.xlu0 %v1623, 64
    %v9280 = vpop.permute.xlu0 %9279
    %9281 = vrot.lane.b32.xlu0 %v1624, 64
    %v9282 = vpop.permute.xlu0 %9281
    %9283 = vrot.lane.b32.xlu0 %v1625, 64
    %v9284 = vpop.permute.xlu0 %9283
    %9285 = vrot.lane.b32.xlu0 %v1626, 64
    %v9286 = vpop.permute.xlu0 %9285
    %9287 = vrot.lane.b32.xlu0 %v1627, 64
    %v9288 = vpop.permute.xlu0 %9287
    %9289 = vrot.lane.b32.xlu0 %v1628, 64
    %v9290 = vpop.permute.xlu0 %9289
    %9291 = vrot.lane.b32.xlu0 %v1629, 64
    %v9292 = vpop.permute.xlu0 %9291
    %9293 = vrot.lane.b32.xlu0 %v1630, 64
    %v9294 = vpop.permute.xlu0 %9293
    %9295 = vrot.lane.b32.xlu0 %v1631, 64
    %v9296 = vpop.permute.xlu0 %9295
    %9297 = vrot.lane.b32.xlu0 %v1632, 64
    %v9298 = vpop.permute.xlu0 %9297
    %9299 = vrot.lane.b32.xlu0 %v1633, 64
    %v9300 = vpop.permute.xlu0 %9299
    %9301 = vrot.lane.b32.xlu0 %v1634, 64
    %v9302 = vpop.permute.xlu0 %9301
    %9303 = vrot.lane.b32.xlu0 %v1635, 64
    %v9304 = vpop.permute.xlu0 %9303
    %9321 = vmatpush.msra.mxu0 %v9304
    %9322 = vmatpush.msra.mxu0 %v9302
    %9323 = vmatpush.msra.mxu0 %v9300
    %9324 = vmatpush.msra.mxu0 %v9298
    %9325 = vmatpush.msra.mxu0 %v9296
    %9326 = vmatpush.msra.mxu0 %v9294
    %9327 = vmatpush.msra.mxu0 %v9292
    %9328 = vmatpush.msra.mxu0 %v9290
    %9329 = vmatpush.msra.mxu0 %v9288
    %9330 = vmatpush.msra.mxu0 %v9286
    %9331 = vmatpush.msra.mxu0 %v9284
    %9332 = vmatpush.msra.mxu0 %v9282
    %9333 = vmatpush.msra.mxu0 %v9280
    %9334 = vmatpush.msra.mxu0 %v9278
    %9335 = vmatpush.msra.mxu0 %v9276
    %9336 = vmatpush.msra.mxu0 %v9274
    %9337 = vmatmul.f32.gmra.mxu0 %v5455
    %v9338 = vpop.f32.mrf.mxu0
    %v9339 = vadd.f32 0.0, %v9338
    %9340 = vmatmul.f32.gmra.mxu0 %v5457
    %v9341 = vpop.f32.mrf.mxu0
    %v9342 = vadd.f32 0.0, %v9341
    %9343 = vdwg.mxu0
    %9360 = vrot.lane.b32.xlu0 %v1636, 64
    %v9361 = vpop.permute.xlu0 %9360
    %9362 = vrot.lane.b32.xlu0 %v1637, 64
    %v9363 = vpop.permute.xlu0 %9362
    %9364 = vrot.lane.b32.xlu0 %v1638, 64
    %v9365 = vpop.permute.xlu0 %9364
    %9366 = vrot.lane.b32.xlu0 %v1639, 64
    %v9367 = vpop.permute.xlu0 %9366
    %9368 = vrot.lane.b32.xlu0 %v1640, 64
    %v9369 = vpop.permute.xlu0 %9368
    %9370 = vrot.lane.b32.xlu0 %v1641, 64
    %v9371 = vpop.permute.xlu0 %9370
    %9372 = vrot.lane.b32.xlu0 %v1642, 64
    %v9373 = vpop.permute.xlu0 %9372
    %9374 = vrot.lane.b32.xlu0 %v1643, 64
    %v9375 = vpop.permute.xlu0 %9374
    %9376 = vrot.lane.b32.xlu0 %v1644, 64
    %v9377 = vpop.permute.xlu0 %9376
    %9378 = vrot.lane.b32.xlu0 %v1645, 64
    %v9379 = vpop.permute.xlu0 %9378
    %9380 = vrot.lane.b32.xlu0 %v1646, 64
    %v9381 = vpop.permute.xlu0 %9380
    %9382 = vrot.lane.b32.xlu0 %v1647, 64
    %v9383 = vpop.permute.xlu0 %9382
    %9384 = vrot.lane.b32.xlu0 %v1648, 64
    %v9385 = vpop.permute.xlu0 %9384
    %9386 = vrot.lane.b32.xlu0 %v1649, 64
    %v9387 = vpop.permute.xlu0 %9386
    %9388 = vrot.lane.b32.xlu0 %v1650, 64
    %v9389 = vpop.permute.xlu0 %9388
    %9390 = vrot.lane.b32.xlu0 %v1651, 64
    %v9391 = vpop.permute.xlu0 %9390
    %9408 = vmatpush.msra.mxu0 %v9391
    %9409 = vmatpush.msra.mxu0 %v9389
    %9410 = vmatpush.msra.mxu0 %v9387
    %9411 = vmatpush.msra.mxu0 %v9385
    %9412 = vmatpush.msra.mxu0 %v9383
    %9413 = vmatpush.msra.mxu0 %v9381
    %9414 = vmatpush.msra.mxu0 %v9379
    %9415 = vmatpush.msra.mxu0 %v9377
    %9416 = vmatpush.msra.mxu0 %v9375
    %9417 = vmatpush.msra.mxu0 %v9373
    %9418 = vmatpush.msra.mxu0 %v9371
    %9419 = vmatpush.msra.mxu0 %v9369
    %9420 = vmatpush.msra.mxu0 %v9367
    %9421 = vmatpush.msra.mxu0 %v9365
    %9422 = vmatpush.msra.mxu0 %v9363
    %9423 = vmatpush.msra.mxu0 %v9361
    %9424 = vmatmul.f32.gmra.mxu0 %v5459
    %v9425 = vpop.f32.mrf.mxu0
    %v9426 = vadd.f32 0.0, %v9425
    %9427 = vmatmul.f32.gmra.mxu0 %v5461
    %v9428 = vpop.f32.mrf.mxu0
    %v9429 = vadd.f32 0.0, %v9428
    %9430 = vdwg.mxu0
    %v9431 = vld [vmem:[%s7] sm:$0xff]
    %vm9432 = vcmask 64512
    %v9434 = vsel %vm9432, %v5701, 0
    %v9437 = vsel %vm9432, %v5716, 0
    %v9440 = vsel %vm9432, %v5731, 0
    %v9443 = vsel %vm9432, %v5746, 0
    %v9446 = vsel %vm9432, %v5761, 0
    %v9449 = vsel %vm9432, %v5776, 0
    %v9452 = vsel %vm9432, %v5791, 0
    %v9455 = vsel %vm9432, %v5806, 0
    %v9458 = vsel %vm9432, %v5821, 0
    %v9461 = vsel %vm9432, %v5836, 0
    %v9464 = vsel %vm9432, %v5851, 0
    %v9467 = vsel %vm9432, %v5866, 0
    %v9470 = vsel %vm9432, %v5881, 0
    %v9473 = vsel %vm9432, %v5896, 0
    %v9476 = vsel %vm9432, %v5911, 0
    %v9479 = vsel %vm9432, %v5926, 0
    %v9482 = vsel %vm9432, %v5941, 0
    %v9485 = vsel %vm9432, %v5956, 0
    %v9488 = vsel %vm9432, %v5971, 0
    %v9491 = vsel %vm9432, %v5986, 0
    %v9494 = vsel %vm9432, %v6001, 0
    %v9497 = vsel %vm9432, %v6016, 0
    %v9500 = vsel %vm9432, %v6031, 0
    %v9503 = vsel %vm9432, %v6046, 0
    %v9506 = vsel %vm9432, %v6061, 0
    %v9509 = vsel %vm9432, %v6076, 0
    %v9512 = vsel %vm9432, %v6091, 0
    %v9515 = vsel %vm9432, %v6106, 0
    %v9518 = vsel %vm9432, %v6121, 0
    %v9521 = vsel %vm9432, %v6136, 0
    %v9524 = vsel %vm9432, %v6151, 0
    %v9527 = vsel %vm9432, %v6166, 0
    %v9530 = vsel %vm9432, %v6181, 0
    %v9533 = vsel %vm9432, %v6196, 0
    %v9536 = vsel %vm9432, %v6211, 0
    %v9539 = vsel %vm9432, %v6226, 0
    %v9542 = vsel %vm9432, %v6241, 0
    %v9545 = vsel %vm9432, %v6256, 0
    %v9548 = vsel %vm9432, %v6271, 0
    %v9551 = vsel %vm9432, %v6286, 0
    %v9554 = vsel %vm9432, %v6301, 0
    %v9557 = vsel %vm9432, %v6316, 0
    %v9560 = vsel %vm9432, %v6331, 0
    %v9563 = vsel %vm9432, %v6346, 0
    %v9566 = vsel %vm9432, %v6361, 0
    %v9569 = vsel %vm9432, %v6376, 0
    %v9572 = vsel %vm9432, %v6391, 0
    %v9575 = vsel %vm9432, %v6406, 0
    %v9578 = vsel %vm9432, %v6421, 0
    %v9581 = vsel %vm9432, %v6436, 0
    %v9584 = vsel %vm9432, %v6451, 0
    %v9587 = vsel %vm9432, %v6466, 0
    %v9590 = vsel %vm9432, %v6481, 0
    %v9593 = vsel %vm9432, %v6496, 0
    %v9596 = vsel %vm9432, %v6511, 0
    %v9599 = vsel %vm9432, %v6526, 0
    %v9602 = vsel %vm9432, %v6541, 0
    %v9605 = vsel %vm9432, %v6556, 0
    %v9608 = vsel %vm9432, %v6571, 0
    %v9611 = vsel %vm9432, %v6586, 0
    %v9614 = vsel %vm9432, %v6601, 0
    %v9617 = vsel %vm9432, %v6616, 0
    %v9620 = vsel %vm9432, %v6631, 0
    %v9623 = vsel %vm9432, %v6646, 0
    %9625 = vmatpush.msra.mxu0 0.0
    %9626 = vmatpush.msra.mxu0 0.0
    %9627 = vmatpush.msra.mxu0 0.0
    %9628 = vmatpush.msra.mxu0 0.0
    %9629 = vmatpush.msra.mxu0 0.0
    %9630 = vmatpush.msra.mxu0 0.0
    %9631 = vmatpush.msra.mxu0 0.0
    %9632 = vmatpush.msra.mxu0 0.0
    %9633 = vmatpush.msra.mxu0 0.0
    %9634 = vmatpush.msra.mxu0 0.0
    %9635 = vmatpush.msra.mxu0 0.0
    %9636 = vmatpush.msra.mxu0 0.0
    %9637 = vmatpush.msra.mxu0 0.0
    %9638 = vmatpush.msra.mxu0 0.0
    %9639 = vmatpush.msra.mxu0 0.0
    %9640 = vmatpush.msra.mxu0 %v9431
    %9641 = vmatmul.f32.gmra.mxu0 %v9434
    %v9642 = vpop.f32.mrf.mxu0
    %v9643 = vadd.f32 0.0, %v9642
    %9644 = vmatmul.f32.gmra.mxu0 %v9437
    %v9645 = vpop.f32.mrf.mxu0
    %v9646 = vadd.f32 0.0, %v9645
    %9647 = vmatmul.f32.gmra.mxu0 %v9440
    %v9648 = vpop.f32.mrf.mxu0
    %v9649 = vadd.f32 0.0, %v9648
    %9650 = vmatmul.f32.gmra.mxu0 %v9443
    %v9651 = vpop.f32.mrf.mxu0
    %v9652 = vadd.f32 0.0, %v9651
    %9653 = vmatmul.f32.gmra.mxu0 %v9446
    %v9654 = vpop.f32.mrf.mxu0
    %v9655 = vadd.f32 0.0, %v9654
    %9656 = vmatmul.f32.gmra.mxu0 %v9449
    %v9657 = vpop.f32.mrf.mxu0
    %v9658 = vadd.f32 0.0, %v9657
    %9659 = vmatmul.f32.gmra.mxu0 %v9452
    %v9660 = vpop.f32.mrf.mxu0
    %v9661 = vadd.f32 0.0, %v9660
    %9662 = vmatmul.f32.gmra.mxu0 %v9455
    %v9663 = vpop.f32.mrf.mxu0
    %v9664 = vadd.f32 0.0, %v9663
    %9665 = vmatmul.f32.gmra.mxu0 %v9458
    %v9666 = vpop.f32.mrf.mxu0
    %v9667 = vadd.f32 0.0, %v9666
    %9668 = vmatmul.f32.gmra.mxu0 %v9461
    %v9669 = vpop.f32.mrf.mxu0
    %v9670 = vadd.f32 0.0, %v9669
    %9671 = vmatmul.f32.gmra.mxu0 %v9464
    %v9672 = vpop.f32.mrf.mxu0
    %v9673 = vadd.f32 0.0, %v9672
    %9674 = vmatmul.f32.gmra.mxu0 %v9467
    %v9675 = vpop.f32.mrf.mxu0
    %v9676 = vadd.f32 0.0, %v9675
    %9677 = vmatmul.f32.gmra.mxu0 %v9470
    %v9678 = vpop.f32.mrf.mxu0
    %v9679 = vadd.f32 0.0, %v9678
    %9680 = vmatmul.f32.gmra.mxu0 %v9473
    %v9681 = vpop.f32.mrf.mxu0
    %v9682 = vadd.f32 0.0, %v9681
    %9683 = vmatmul.f32.gmra.mxu0 %v9476
    %v9684 = vpop.f32.mrf.mxu0
    %v9685 = vadd.f32 0.0, %v9684
    %9686 = vmatmul.f32.gmra.mxu0 %v9479
    %v9687 = vpop.f32.mrf.mxu0
    %v9688 = vadd.f32 0.0, %v9687
    %9689 = vmatmul.f32.gmra.mxu0 %v9482
    %v9690 = vpop.f32.mrf.mxu0
    %v9691 = vadd.f32 0.0, %v9690
    %9692 = vmatmul.f32.gmra.mxu0 %v9485
    %v9693 = vpop.f32.mrf.mxu0
    %v9694 = vadd.f32 0.0, %v9693
    %9695 = vmatmul.f32.gmra.mxu0 %v9488
    %v9696 = vpop.f32.mrf.mxu0
    %v9697 = vadd.f32 0.0, %v9696
    %9698 = vmatmul.f32.gmra.mxu0 %v9491
    %v9699 = vpop.f32.mrf.mxu0
    %v9700 = vadd.f32 0.0, %v9699
    %9701 = vmatmul.f32.gmra.mxu0 %v9494
    %v9702 = vpop.f32.mrf.mxu0
    %v9703 = vadd.f32 0.0, %v9702
    %9704 = vmatmul.f32.gmra.mxu0 %v9497
    %v9705 = vpop.f32.mrf.mxu0
    %v9706 = vadd.f32 0.0, %v9705
    %9707 = vmatmul.f32.gmra.mxu0 %v9500
    %v9708 = vpop.f32.mrf.mxu0
    %v9709 = vadd.f32 0.0, %v9708
    %9710 = vmatmul.f32.gmra.mxu0 %v9503
    %v9711 = vpop.f32.mrf.mxu0
    %v9712 = vadd.f32 0.0, %v9711
    %9713 = vmatmul.f32.gmra.mxu0 %v9506
    %v9714 = vpop.f32.mrf.mxu0
    %v9715 = vadd.f32 0.0, %v9714
    %9716 = vmatmul.f32.gmra.mxu0 %v9509
    %v9717 = vpop.f32.mrf.mxu0
    %v9718 = vadd.f32 0.0, %v9717
    %9719 = vmatmul.f32.gmra.mxu0 %v9512
    %v9720 = vpop.f32.mrf.mxu0
    %v9721 = vadd.f32 0.0, %v9720
    %9722 = vmatmul.f32.gmra.mxu0 %v9515
    %v9723 = vpop.f32.mrf.mxu0
    %v9724 = vadd.f32 0.0, %v9723
    %9725 = vmatmul.f32.gmra.mxu0 %v9518
    %v9726 = vpop.f32.mrf.mxu0
    %v9727 = vadd.f32 0.0, %v9726
    %9728 = vmatmul.f32.gmra.mxu0 %v9521
    %v9729 = vpop.f32.mrf.mxu0
    %v9730 = vadd.f32 0.0, %v9729
    %9731 = vmatmul.f32.gmra.mxu0 %v9524
    %v9732 = vpop.f32.mrf.mxu0
    %v9733 = vadd.f32 0.0, %v9732
    %9734 = vmatmul.f32.gmra.mxu0 %v9527
    %v9735 = vpop.f32.mrf.mxu0
    %v9736 = vadd.f32 0.0, %v9735
    %9737 = vmatmul.f32.gmra.mxu0 %v9530
    %v9738 = vpop.f32.mrf.mxu0
    %v9739 = vadd.f32 0.0, %v9738
    %9740 = vmatmul.f32.gmra.mxu0 %v9533
    %v9741 = vpop.f32.mrf.mxu0
    %v9742 = vadd.f32 0.0, %v9741
    %9743 = vmatmul.f32.gmra.mxu0 %v9536
    %v9744 = vpop.f32.mrf.mxu0
    %v9745 = vadd.f32 0.0, %v9744
    %9746 = vmatmul.f32.gmra.mxu0 %v9539
    %v9747 = vpop.f32.mrf.mxu0
    %v9748 = vadd.f32 0.0, %v9747
    %9749 = vmatmul.f32.gmra.mxu0 %v9542
    %v9750 = vpop.f32.mrf.mxu0
    %v9751 = vadd.f32 0.0, %v9750
    %9752 = vmatmul.f32.gmra.mxu0 %v9545
    %v9753 = vpop.f32.mrf.mxu0
    %v9754 = vadd.f32 0.0, %v9753
    %9755 = vmatmul.f32.gmra.mxu0 %v9548
    %v9756 = vpop.f32.mrf.mxu0
    %v9757 = vadd.f32 0.0, %v9756
    %9758 = vmatmul.f32.gmra.mxu0 %v9551
    %v9759 = vpop.f32.mrf.mxu0
    %v9760 = vadd.f32 0.0, %v9759
    %9761 = vmatmul.f32.gmra.mxu0 %v9554
    %v9762 = vpop.f32.mrf.mxu0
    %v9763 = vadd.f32 0.0, %v9762
    %9764 = vmatmul.f32.gmra.mxu0 %v9557
    %v9765 = vpop.f32.mrf.mxu0
    %v9766 = vadd.f32 0.0, %v9765
    %9767 = vmatmul.f32.gmra.mxu0 %v9560
    %v9768 = vpop.f32.mrf.mxu0
    %v9769 = vadd.f32 0.0, %v9768
    %9770 = vmatmul.f32.gmra.mxu0 %v9563
    %v9771 = vpop.f32.mrf.mxu0
    %v9772 = vadd.f32 0.0, %v9771
    %9773 = vmatmul.f32.gmra.mxu0 %v9566
    %v9774 = vpop.f32.mrf.mxu0
    %v9775 = vadd.f32 0.0, %v9774
    %9776 = vmatmul.f32.gmra.mxu0 %v9569
    %v9777 = vpop.f32.mrf.mxu0
    %v9778 = vadd.f32 0.0, %v9777
    %9779 = vmatmul.f32.gmra.mxu0 %v9572
    %v9780 = vpop.f32.mrf.mxu0
    %v9781 = vadd.f32 0.0, %v9780
    %9782 = vmatmul.f32.gmra.mxu0 %v9575
    %v9783 = vpop.f32.mrf.mxu0
    %v9784 = vadd.f32 0.0, %v9783
    %9785 = vmatmul.f32.gmra.mxu0 %v9578
    %v9786 = vpop.f32.mrf.mxu0
    %v9787 = vadd.f32 0.0, %v9786
    %9788 = vmatmul.f32.gmra.mxu0 %v9581
    %v9789 = vpop.f32.mrf.mxu0
    %v9790 = vadd.f32 0.0, %v9789
    %9791 = vmatmul.f32.gmra.mxu0 %v9584
    %v9792 = vpop.f32.mrf.mxu0
    %v9793 = vadd.f32 0.0, %v9792
    %9794 = vmatmul.f32.gmra.mxu0 %v9587
    %v9795 = vpop.f32.mrf.mxu0
    %v9796 = vadd.f32 0.0, %v9795
    %9797 = vmatmul.f32.gmra.mxu0 %v9590
    %v9798 = vpop.f32.mrf.mxu0
    %v9799 = vadd.f32 0.0, %v9798
    %9800 = vmatmul.f32.gmra.mxu0 %v9593
    %v9801 = vpop.f32.mrf.mxu0
    %v9802 = vadd.f32 0.0, %v9801
    %9803 = vmatmul.f32.gmra.mxu0 %v9596
    %v9804 = vpop.f32.mrf.mxu0
    %v9805 = vadd.f32 0.0, %v9804
    %9806 = vmatmul.f32.gmra.mxu0 %v9599
    %v9807 = vpop.f32.mrf.mxu0
    %v9808 = vadd.f32 0.0, %v9807
    %9809 = vmatmul.f32.gmra.mxu0 %v9602
    %v9810 = vpop.f32.mrf.mxu0
    %v9811 = vadd.f32 0.0, %v9810
    %9812 = vmatmul.f32.gmra.mxu0 %v9605
    %v9813 = vpop.f32.mrf.mxu0
    %v9814 = vadd.f32 0.0, %v9813
    %9815 = vmatmul.f32.gmra.mxu0 %v9608
    %v9816 = vpop.f32.mrf.mxu0
    %v9817 = vadd.f32 0.0, %v9816
    %9818 = vmatmul.f32.gmra.mxu0 %v9611
    %v9819 = vpop.f32.mrf.mxu0
    %v9820 = vadd.f32 0.0, %v9819
    %9821 = vmatmul.f32.gmra.mxu0 %v9614
    %v9822 = vpop.f32.mrf.mxu0
    %v9823 = vadd.f32 0.0, %v9822
    %9824 = vmatmul.f32.gmra.mxu0 %v9617
    %v9825 = vpop.f32.mrf.mxu0
    %v9826 = vadd.f32 0.0, %v9825
    %9827 = vmatmul.f32.gmra.mxu0 %v9620
    %v9828 = vpop.f32.mrf.mxu0
    %v9829 = vadd.f32 0.0, %v9828
    %9830 = vmatmul.f32.gmra.mxu0 %v9623
    %v9831 = vpop.f32.mrf.mxu0
    %v9832 = vadd.f32 0.0, %v9831
    %9833 = vdwg.mxu0
    %v9834 = vmul.f32 %v6729, %v9643
    %v9835 = vmul.f32 %v6732, %v9646
    %v9836 = vmul.f32 %v6816, %v9649
    %v9837 = vmul.f32 %v6819, %v9652
    %v9838 = vmul.f32 %v6903, %v9655
    %v9839 = vmul.f32 %v6906, %v9658
    %v9840 = vmul.f32 %v6990, %v9661
    %v9841 = vmul.f32 %v6993, %v9664
    %v9842 = vmul.f32 %v7077, %v9667
    %v9843 = vmul.f32 %v7080, %v9670
    %v9844 = vmul.f32 %v7164, %v9673
    %v9845 = vmul.f32 %v7167, %v9676
    %v9846 = vmul.f32 %v7251, %v9679
    %v9847 = vmul.f32 %v7254, %v9682
    %v9848 = vmul.f32 %v7338, %v9685
    %v9849 = vmul.f32 %v7341, %v9688
    %v9850 = vmul.f32 %v7425, %v9691
    %v9851 = vmul.f32 %v7428, %v9694
    %v9852 = vmul.f32 %v7512, %v9697
    %v9853 = vmul.f32 %v7515, %v9700
    %v9854 = vmul.f32 %v7599, %v9703
    %v9855 = vmul.f32 %v7602, %v9706
    %v9856 = vmul.f32 %v7686, %v9709
    %v9857 = vmul.f32 %v7689, %v9712
    %v9858 = vmul.f32 %v7773, %v9715
    %v9859 = vmul.f32 %v7776, %v9718
    %v9860 = vmul.f32 %v7860, %v9721
    %v9861 = vmul.f32 %v7863, %v9724
    %v9862 = vmul.f32 %v7947, %v9727
    %v9863 = vmul.f32 %v7950, %v9730
    %v9864 = vmul.f32 %v8034, %v9733
    %v9865 = vmul.f32 %v8037, %v9736
    %v9866 = vmul.f32 %v8121, %v9739
    %v9867 = vmul.f32 %v8124, %v9742
    %v9868 = vmul.f32 %v8208, %v9745
    %v9869 = vmul.f32 %v8211, %v9748
    %v9870 = vmul.f32 %v8295, %v9751
    %v9871 = vmul.f32 %v8298, %v9754
    %v9872 = vmul.f32 %v8382, %v9757
    %v9873 = vmul.f32 %v8385, %v9760
    %v9874 = vmul.f32 %v8469, %v9763
    %v9875 = vmul.f32 %v8472, %v9766
    %v9876 = vmul.f32 %v8556, %v9769
    %v9877 = vmul.f32 %v8559, %v9772
    %v9878 = vmul.f32 %v8643, %v9775
    %v9879 = vmul.f32 %v8646, %v9778
    %v9880 = vmul.f32 %v8730, %v9781
    %v9881 = vmul.f32 %v8733, %v9784
    %v9882 = vmul.f32 %v8817, %v9787
    %v9883 = vmul.f32 %v8820, %v9790
    %v9884 = vmul.f32 %v8904, %v9793
    %v9885 = vmul.f32 %v8907, %v9796
    %v9886 = vmul.f32 %v8991, %v9799
    %v9887 = vmul.f32 %v8994, %v9802
    %v9888 = vmul.f32 %v9078, %v9805
    %v9889 = vmul.f32 %v9081, %v9808
    %v9890 = vmul.f32 %v9165, %v9811
    %v9891 = vmul.f32 %v9168, %v9814
    %v9892 = vmul.f32 %v9252, %v9817
    %v9893 = vmul.f32 %v9255, %v9820
    %v9894 = vmul.f32 %v9339, %v9823
    %v9895 = vmul.f32 %v9342, %v9826
    %v9896 = vmul.f32 %v9426, %v9829
    %v9897 = vmul.f32 %v9429, %v9832
    %v9898 = vld [vmem:[%s2] sm:$0xff]
    %v9899 = vld [vmem:[%s2 + $0x8] sm:$0xff]
    %v9900 = vld [vmem:[%s2 + $0x10] sm:$0xff]
    %v9901 = vld [vmem:[%s2 + $0x18] sm:$0xff]
    %v9902 = vld [vmem:[%s3] sm:$0x1]
    %v9904 = vperm.slane %v9902, 0
    %v9907 = vsel %vm98, %v9834, 0
    %v9910 = vsel %vm98, %v9835, 0
    %v9913 = vsel %vm98, %v9836, 0
    %v9916 = vsel %vm98, %v9837, 0
    %v9919 = vsel %vm98, %v9838, 0
    %v9922 = vsel %vm98, %v9839, 0
    %v9925 = vsel %vm98, %v9840, 0
    %v9928 = vsel %vm98, %v9841, 0
    %v9931 = vsel %vm98, %v9842, 0
    %v9934 = vsel %vm98, %v9843, 0
    %v9937 = vsel %vm98, %v9844, 0
    %v9940 = vsel %vm98, %v9845, 0
    %v9943 = vsel %vm98, %v9846, 0
    %v9946 = vsel %vm98, %v9847, 0
    %v9949 = vsel %vm98, %v9848, 0
    %v9952 = vsel %vm98, %v9849, 0
    %v9955 = vsel %vm98, %v9850, 0
    %v9958 = vsel %vm98, %v9851, 0
    %v9961 = vsel %vm98, %v9852, 0
    %v9964 = vsel %vm98, %v9853, 0
    %v9967 = vsel %vm98, %v9854, 0
    %v9970 = vsel %vm98, %v9855, 0
    %v9973 = vsel %vm98, %v9856, 0
    %v9976 = vsel %vm98, %v9857, 0
    %v9979 = vsel %vm98, %v9858, 0
    %v9982 = vsel %vm98, %v9859, 0
    %v9985 = vsel %vm98, %v9860, 0
    %v9988 = vsel %vm98, %v9861, 0
    %v9991 = vsel %vm98, %v9862, 0
    %v9994 = vsel %vm98, %v9863, 0
    %v9997 = vsel %vm98, %v9864, 0
    %v10000 = vsel %vm98, %v9865, 0
    %v10003 = vsel %vm98, %v9866, 0
    %v10006 = vsel %vm98, %v9867, 0
    %v10009 = vsel %vm98, %v9868, 0
    %v10012 = vsel %vm98, %v9869, 0
    %v10015 = vsel %vm98, %v9870, 0
    %v10018 = vsel %vm98, %v9871, 0
    %v10021 = vsel %vm98, %v9872, 0
    %v10024 = vsel %vm98, %v9873, 0
    %v10027 = vsel %vm98, %v9874, 0
    %v10030 = vsel %vm98, %v9875, 0
    %v10033 = vsel %vm98, %v9876, 0
    %v10036 = vsel %vm98, %v9877, 0
    %v10039 = vsel %vm98, %v9878, 0
    %v10042 = vsel %vm98, %v9879, 0
    %v10045 = vsel %vm98, %v9880, 0
    %v10048 = vsel %vm98, %v9881, 0
    %v10051 = vsel %vm98, %v9882, 0
    %v10054 = vsel %vm98, %v9883, 0
    %v10057 = vsel %vm98, %v9884, 0
    %v10060 = vsel %vm98, %v9885, 0
    %v10063 = vsel %vm98, %v9886, 0
    %v10066 = vsel %vm98, %v9887, 0
    %v10069 = vsel %vm98, %v9888, 0
    %v10072 = vsel %vm98, %v9889, 0
    %v10075 = vsel %vm98, %v9890, 0
    %v10078 = vsel %vm98, %v9891, 0
    %v10081 = vsel %vm98, %v9892, 0
    %v10084 = vsel %vm98, %v9893, 0
    %v10087 = vsel %vm98, %v9894, 0
    %v10090 = vsel %vm98, %v9895, 0
    %v10093 = vsel %vm98, %v9896, 0
    %v10096 = vsel %vm98, %v9897, 0
    %10098 = vmatpush.msra.mxu0 0.0
    %10099 = vmatpush.msra.mxu0 0.0
    %10100 = vmatpush.msra.mxu0 0.0
    %10101 = vmatpush.msra.mxu0 0.0
    %10102 = vmatpush.msra.mxu0 0.0
    %10103 = vmatpush.msra.mxu0 0.0
    %10104 = vmatpush.msra.mxu0 0.0
    %10105 = vmatpush.msra.mxu0 0.0
    %10106 = vmatpush.msra.mxu0 0.0
    %10107 = vmatpush.msra.mxu0 0.0
    %10108 = vmatpush.msra.mxu0 0.0
    %10109 = vmatpush.msra.mxu0 0.0
    %10110 = vmatpush.msra.mxu0 %v9901
    %10111 = vmatpush.msra.mxu0 %v9900
    %10112 = vmatpush.msra.mxu0 %v9899
    %10113 = vmatpush.msra.mxu0 %v9898
    %10114 = vmatmul.f32.gmra.mxu0 %v9907
    %v10115 = vpop.f32.mrf.mxu0
    %v10116 = vadd.f32 %v9904, %v10115
    %10117 = vmatmul.f32.gmra.mxu0 %v9910
    %v10118 = vpop.f32.mrf.mxu0
    %v10119 = vadd.f32 %v9904, %v10118
    %10120 = vmatmul.f32.gmra.mxu0 %v9913
    %v10121 = vpop.f32.mrf.mxu0
    %v10122 = vadd.f32 %v9904, %v10121
    %10123 = vmatmul.f32.gmra.mxu0 %v9916
    %v10124 = vpop.f32.mrf.mxu0
    %v10125 = vadd.f32 %v9904, %v10124
    %10126 = vmatmul.f32.gmra.mxu0 %v9919
    %v10127 = vpop.f32.mrf.mxu0
    %v10128 = vadd.f32 %v9904, %v10127
    %10129 = vmatmul.f32.gmra.mxu0 %v9922
    %v10130 = vpop.f32.mrf.mxu0
    %v10131 = vadd.f32 %v9904, %v10130
    %10132 = vmatmul.f32.gmra.mxu0 %v9925
    %v10133 = vpop.f32.mrf.mxu0
    %v10134 = vadd.f32 %v9904, %v10133
    %10135 = vmatmul.f32.gmra.mxu0 %v9928
    %v10136 = vpop.f32.mrf.mxu0
    %v10137 = vadd.f32 %v9904, %v10136
    %10138 = vmatmul.f32.gmra.mxu0 %v9931
    %v10139 = vpop.f32.mrf.mxu0
    %v10140 = vadd.f32 %v9904, %v10139
    %10141 = vmatmul.f32.gmra.mxu0 %v9934
    %v10142 = vpop.f32.mrf.mxu0
    %v10143 = vadd.f32 %v9904, %v10142
    %10144 = vmatmul.f32.gmra.mxu0 %v9937
    %v10145 = vpop.f32.mrf.mxu0
    %v10146 = vadd.f32 %v9904, %v10145
    %10147 = vmatmul.f32.gmra.mxu0 %v9940
    %v10148 = vpop.f32.mrf.mxu0
    %v10149 = vadd.f32 %v9904, %v10148
    %10150 = vmatmul.f32.gmra.mxu0 %v9943
    %v10151 = vpop.f32.mrf.mxu0
    %v10152 = vadd.f32 %v9904, %v10151
    %10153 = vmatmul.f32.gmra.mxu0 %v9946
    %v10154 = vpop.f32.mrf.mxu0
    %v10155 = vadd.f32 %v9904, %v10154
    %10156 = vmatmul.f32.gmra.mxu0 %v9949
    %v10157 = vpop.f32.mrf.mxu0
    %v10158 = vadd.f32 %v9904, %v10157
    %10159 = vmatmul.f32.gmra.mxu0 %v9952
    %v10160 = vpop.f32.mrf.mxu0
    %v10161 = vadd.f32 %v9904, %v10160
    %10162 = vmatmul.f32.gmra.mxu0 %v9955
    %v10163 = vpop.f32.mrf.mxu0
    %v10164 = vadd.f32 %v9904, %v10163
    %10165 = vmatmul.f32.gmra.mxu0 %v9958
    %v10166 = vpop.f32.mrf.mxu0
    %v10167 = vadd.f32 %v9904, %v10166
    %10168 = vmatmul.f32.gmra.mxu0 %v9961
    %v10169 = vpop.f32.mrf.mxu0
    %v10170 = vadd.f32 %v9904, %v10169
    %10171 = vmatmul.f32.gmra.mxu0 %v9964
    %v10172 = vpop.f32.mrf.mxu0
    %v10173 = vadd.f32 %v9904, %v10172
    %10174 = vmatmul.f32.gmra.mxu0 %v9967
    %v10175 = vpop.f32.mrf.mxu0
    %v10176 = vadd.f32 %v9904, %v10175
    %10177 = vmatmul.f32.gmra.mxu0 %v9970
    %v10178 = vpop.f32.mrf.mxu0
    %v10179 = vadd.f32 %v9904, %v10178
    %10180 = vmatmul.f32.gmra.mxu0 %v9973
    %v10181 = vpop.f32.mrf.mxu0
    %v10182 = vadd.f32 %v9904, %v10181
    %10183 = vmatmul.f32.gmra.mxu0 %v9976
    %v10184 = vpop.f32.mrf.mxu0
    %v10185 = vadd.f32 %v9904, %v10184
    %10186 = vmatmul.f32.gmra.mxu0 %v9979
    %v10187 = vpop.f32.mrf.mxu0
    %v10188 = vadd.f32 %v9904, %v10187
    %10189 = vmatmul.f32.gmra.mxu0 %v9982
    %v10190 = vpop.f32.mrf.mxu0
    %v10191 = vadd.f32 %v9904, %v10190
    %10192 = vmatmul.f32.gmra.mxu0 %v9985
    %v10193 = vpop.f32.mrf.mxu0
    %v10194 = vadd.f32 %v9904, %v10193
    %10195 = vmatmul.f32.gmra.mxu0 %v9988
    %v10196 = vpop.f32.mrf.mxu0
    %v10197 = vadd.f32 %v9904, %v10196
    %10198 = vmatmul.f32.gmra.mxu0 %v9991
    %v10199 = vpop.f32.mrf.mxu0
    %v10200 = vadd.f32 %v9904, %v10199
    %10201 = vmatmul.f32.gmra.mxu0 %v9994
    %v10202 = vpop.f32.mrf.mxu0
    %v10203 = vadd.f32 %v9904, %v10202
    %10204 = vmatmul.f32.gmra.mxu0 %v9997
    %v10205 = vpop.f32.mrf.mxu0
    %v10206 = vadd.f32 %v9904, %v10205
    %10207 = vmatmul.f32.gmra.mxu0 %v10000
    %v10208 = vpop.f32.mrf.mxu0
    %v10209 = vadd.f32 %v9904, %v10208
    %10210 = vmatmul.f32.gmra.mxu0 %v10003
    %v10211 = vpop.f32.mrf.mxu0
    %v10212 = vadd.f32 %v9904, %v10211
    %10213 = vmatmul.f32.gmra.mxu0 %v10006
    %v10214 = vpop.f32.mrf.mxu0
    %v10215 = vadd.f32 %v9904, %v10214
    %10216 = vmatmul.f32.gmra.mxu0 %v10009
    %v10217 = vpop.f32.mrf.mxu0
    %v10218 = vadd.f32 %v9904, %v10217
    %10219 = vmatmul.f32.gmra.mxu0 %v10012
    %v10220 = vpop.f32.mrf.mxu0
    %v10221 = vadd.f32 %v9904, %v10220
    %10222 = vmatmul.f32.gmra.mxu0 %v10015
    %v10223 = vpop.f32.mrf.mxu0
    %v10224 = vadd.f32 %v9904, %v10223
    %10225 = vmatmul.f32.gmra.mxu0 %v10018
    %v10226 = vpop.f32.mrf.mxu0
    %v10227 = vadd.f32 %v9904, %v10226
    %10228 = vmatmul.f32.gmra.mxu0 %v10021
    %v10229 = vpop.f32.mrf.mxu0
    %v10230 = vadd.f32 %v9904, %v10229
    %10231 = vmatmul.f32.gmra.mxu0 %v10024
    %v10232 = vpop.f32.mrf.mxu0
    %v10233 = vadd.f32 %v9904, %v10232
    %10234 = vmatmul.f32.gmra.mxu0 %v10027
    %v10235 = vpop.f32.mrf.mxu0
    %v10236 = vadd.f32 %v9904, %v10235
    %10237 = vmatmul.f32.gmra.mxu0 %v10030
    %v10238 = vpop.f32.mrf.mxu0
    %v10239 = vadd.f32 %v9904, %v10238
    %10240 = vmatmul.f32.gmra.mxu0 %v10033
    %v10241 = vpop.f32.mrf.mxu0
    %v10242 = vadd.f32 %v9904, %v10241
    %10243 = vmatmul.f32.gmra.mxu0 %v10036
    %v10244 = vpop.f32.mrf.mxu0
    %v10245 = vadd.f32 %v9904, %v10244
    %10246 = vmatmul.f32.gmra.mxu0 %v10039
    %v10247 = vpop.f32.mrf.mxu0
    %v10248 = vadd.f32 %v9904, %v10247
    %10249 = vmatmul.f32.gmra.mxu0 %v10042
    %v10250 = vpop.f32.mrf.mxu0
    %v10251 = vadd.f32 %v9904, %v10250
    %10252 = vmatmul.f32.gmra.mxu0 %v10045
    %v10253 = vpop.f32.mrf.mxu0
    %v10254 = vadd.f32 %v9904, %v10253
    %10255 = vmatmul.f32.gmra.mxu0 %v10048
    %v10256 = vpop.f32.mrf.mxu0
    %v10257 = vadd.f32 %v9904, %v10256
    %10258 = vmatmul.f32.gmra.mxu0 %v10051
    %v10259 = vpop.f32.mrf.mxu0
    %v10260 = vadd.f32 %v9904, %v10259
    %10261 = vmatmul.f32.gmra.mxu0 %v10054
    %v10262 = vpop.f32.mrf.mxu0
    %v10263 = vadd.f32 %v9904, %v10262
    %10264 = vmatmul.f32.gmra.mxu0 %v10057
    %v10265 = vpop.f32.mrf.mxu0
    %v10266 = vadd.f32 %v9904, %v10265
    %10267 = vmatmul.f32.gmra.mxu0 %v10060
    %v10268 = vpop.f32.mrf.mxu0
    %v10269 = vadd.f32 %v9904, %v10268
    %10270 = vmatmul.f32.gmra.mxu0 %v10063
    %v10271 = vpop.f32.mrf.mxu0
    %v10272 = vadd.f32 %v9904, %v10271
    %10273 = vmatmul.f32.gmra.mxu0 %v10066
    %v10274 = vpop.f32.mrf.mxu0
    %v10275 = vadd.f32 %v9904, %v10274
    %10276 = vmatmul.f32.gmra.mxu0 %v10069
    %v10277 = vpop.f32.mrf.mxu0
    %v10278 = vadd.f32 %v9904, %v10277
    %10279 = vmatmul.f32.gmra.mxu0 %v10072
    %v10280 = vpop.f32.mrf.mxu0
    %v10281 = vadd.f32 %v9904, %v10280
    %10282 = vmatmul.f32.gmra.mxu0 %v10075
    %v10283 = vpop.f32.mrf.mxu0
    %v10284 = vadd.f32 %v9904, %v10283
    %10285 = vmatmul.f32.gmra.mxu0 %v10078
    %v10286 = vpop.f32.mrf.mxu0
    %v10287 = vadd.f32 %v9904, %v10286
    %10288 = vmatmul.f32.gmra.mxu0 %v10081
    %v10289 = vpop.f32.mrf.mxu0
    %v10290 = vadd.f32 %v9904, %v10289
    %10291 = vmatmul.f32.gmra.mxu0 %v10084
    %v10292 = vpop.f32.mrf.mxu0
    %v10293 = vadd.f32 %v9904, %v10292
    %10294 = vmatmul.f32.gmra.mxu0 %v10087
    %v10295 = vpop.f32.mrf.mxu0
    %v10296 = vadd.f32 %v9904, %v10295
    %10297 = vmatmul.f32.gmra.mxu0 %v10090
    %v10298 = vpop.f32.mrf.mxu0
    %v10299 = vadd.f32 %v9904, %v10298
    %10300 = vmatmul.f32.gmra.mxu0 %v10093
    %v10301 = vpop.f32.mrf.mxu0
    %v10302 = vadd.f32 %v9904, %v10301
    %10303 = vmatmul.f32.gmra.mxu0 %v10096
    %v10304 = vpop.f32.mrf.mxu0
    %v10305 = vadd.f32 %v9904, %v10304
    %10306 = vdwg.mxu0
    %10307 = vst.msk [vmem:[#allocation2] sm:$0xff] %vm98, %v10116
    %10308 = vst.msk [vmem:[#allocation2 + $0x8] sm:$0xff] %vm98, %v10119
    %10309 = vst.msk [vmem:[#allocation2 + $0x10] sm:$0xff] %vm98, %v10122
    %10310 = vst.msk [vmem:[#allocation2 + $0x18] sm:$0xff] %vm98, %v10125
    %10311 = vst.msk [vmem:[#allocation2 + $0x20] sm:$0xff] %vm98, %v10128
    %10312 = vst.msk [vmem:[#allocation2 + $0x28] sm:$0xff] %vm98, %v10131
    %10313 = vst.msk [vmem:[#allocation2 + $0x30] sm:$0xff] %vm98, %v10134
    %10314 = vst.msk [vmem:[#allocation2 + $0x38] sm:$0xff] %vm98, %v10137
    %10315 = vst.msk [vmem:[#allocation2 + $0x40] sm:$0xff] %vm98, %v10140
    %10316 = vst.msk [vmem:[#allocation2 + $0x48] sm:$0xff] %vm98, %v10143
    %10317 = vst.msk [vmem:[#allocation2 + $0x50] sm:$0xff] %vm98, %v10146
    %10318 = vst.msk [vmem:[#allocation2 + $0x58] sm:$0xff] %vm98, %v10149
    %10319 = vst.msk [vmem:[#allocation2 + $0x60] sm:$0xff] %vm98, %v10152
    %10320 = vst.msk [vmem:[#allocation2 + $0x68] sm:$0xff] %vm98, %v10155
    %10321 = vst.msk [vmem:[#allocation2 + $0x70] sm:$0xff] %vm98, %v10158
    %10322 = vst.msk [vmem:[#allocation2 + $0x78] sm:$0xff] %vm98, %v10161
    %10323 = vst.msk [vmem:[#allocation2 + $0x80] sm:$0xff] %vm98, %v10164
    %10324 = vst.msk [vmem:[#allocation2 + $0x88] sm:$0xff] %vm98, %v10167
    %10325 = vst.msk [vmem:[#allocation2 + $0x90] sm:$0xff] %vm98, %v10170
    %10326 = vst.msk [vmem:[#allocation2 + $0x98] sm:$0xff] %vm98, %v10173
    %10327 = vst.msk [vmem:[#allocation2 + $0xa0] sm:$0xff] %vm98, %v10176
    %10328 = vst.msk [vmem:[#allocation2 + $0xa8] sm:$0xff] %vm98, %v10179
    %10329 = vst.msk [vmem:[#allocation2 + $0xb0] sm:$0xff] %vm98, %v10182
    %10330 = vst.msk [vmem:[#allocation2 + $0xb8] sm:$0xff] %vm98, %v10185
    %10331 = vst.msk [vmem:[#allocation2 + $0xc0] sm:$0xff] %vm98, %v10188
    %10332 = vst.msk [vmem:[#allocation2 + $0xc8] sm:$0xff] %vm98, %v10191
    %10333 = vst.msk [vmem:[#allocation2 + $0xd0] sm:$0xff] %vm98, %v10194
    %10334 = vst.msk [vmem:[#allocation2 + $0xd8] sm:$0xff] %vm98, %v10197
    %10335 = vst.msk [vmem:[#allocation2 + $0xe0] sm:$0xff] %vm98, %v10200
    %10336 = vst.msk [vmem:[#allocation2 + $0xe8] sm:$0xff] %vm98, %v10203
    %10337 = vst.msk [vmem:[#allocation2 + $0xf0] sm:$0xff] %vm98, %v10206
    %10338 = vst.msk [vmem:[#allocation2 + $0xf8] sm:$0xff] %vm98, %v10209
    %10339 = vst.msk [vmem:[#allocation2 + $0x100] sm:$0xff] %vm98, %v10212
    %10340 = vst.msk [vmem:[#allocation2 + $0x108] sm:$0xff] %vm98, %v10215
    %10341 = vst.msk [vmem:[#allocation2 + $0x110] sm:$0xff] %vm98, %v10218
    %10342 = vst.msk [vmem:[#allocation2 + $0x118] sm:$0xff] %vm98, %v10221
    %10343 = vst.msk [vmem:[#allocation2 + $0x120] sm:$0xff] %vm98, %v10224
    %10344 = vst.msk [vmem:[#allocation2 + $0x128] sm:$0xff] %vm98, %v10227
    %10345 = vst.msk [vmem:[#allocation2 + $0x130] sm:$0xff] %vm98, %v10230
    %10346 = vst.msk [vmem:[#allocation2 + $0x138] sm:$0xff] %vm98, %v10233
    %10347 = vst.msk [vmem:[#allocation2 + $0x140] sm:$0xff] %vm98, %v10236
    %10348 = vst.msk [vmem:[#allocation2 + $0x148] sm:$0xff] %vm98, %v10239
    %10349 = vst.msk [vmem:[#allocation2 + $0x150] sm:$0xff] %vm98, %v10242
    %10350 = vst.msk [vmem:[#allocation2 + $0x158] sm:$0xff] %vm98, %v10245
    %10351 = vst.msk [vmem:[#allocation2 + $0x160] sm:$0xff] %vm98, %v10248
    %10352 = vst.msk [vmem:[#allocation2 + $0x168] sm:$0xff] %vm98, %v10251
    %10353 = vst.msk [vmem:[#allocation2 + $0x170] sm:$0xff] %vm98, %v10254
    %10354 = vst.msk [vmem:[#allocation2 + $0x178] sm:$0xff] %vm98, %v10257
    %10355 = vst.msk [vmem:[#allocation2 + $0x180] sm:$0xff] %vm98, %v10260
    %10356 = vst.msk [vmem:[#allocation2 + $0x188] sm:$0xff] %vm98, %v10263
    %10357 = vst.msk [vmem:[#allocation2 + $0x190] sm:$0xff] %vm98, %v10266
    %10358 = vst.msk [vmem:[#allocation2 + $0x198] sm:$0xff] %vm98, %v10269
    %10359 = vst.msk [vmem:[#allocation2 + $0x1a0] sm:$0xff] %vm98, %v10272
    %10360 = vst.msk [vmem:[#allocation2 + $0x1a8] sm:$0xff] %vm98, %v10275
    %10361 = vst.msk [vmem:[#allocation2 + $0x1b0] sm:$0xff] %vm98, %v10278
    %10362 = vst.msk [vmem:[#allocation2 + $0x1b8] sm:$0xff] %vm98, %v10281
    %10363 = vst.msk [vmem:[#allocation2 + $0x1c0] sm:$0xff] %vm98, %v10284
    %10364 = vst.msk [vmem:[#allocation2 + $0x1c8] sm:$0xff] %vm98, %v10287
    %10365 = vst.msk [vmem:[#allocation2 + $0x1d0] sm:$0xff] %vm98, %v10290
    %10366 = vst.msk [vmem:[#allocation2 + $0x1d8] sm:$0xff] %vm98, %v10293
    %10367 = vst.msk [vmem:[#allocation2 + $0x1e0] sm:$0xff] %vm98, %v10296
    %10368 = vst.msk [vmem:[#allocation2 + $0x1e8] sm:$0xff] %vm98, %v10299
    %10369 = vst.msk [vmem:[#allocation2 + $0x1f0] sm:$0xff] %vm98, %v10302
    %10370 = vst.msk [vmem:[#allocation2 + $0x1f8] sm:$0xff] %vm98, %v10305
    // Predicated region
    $region34: #{window_attention.1} parent=1 // pred_check
      _
    $region35: #{window_attention.1} parent=1 // pred_check_branch
      %10372 = sbr.rel (0) target = $region37
    $region36: #{window_attention.1} parent=1 // pred_region
      %10374 = vsyncadd [#allocation3], 0
      %s10375 = sshll.u32 [#allocation2], 4
      %s10376 = int_to_ptr.vmem [resolvable:$true] %s10375
      %s10377 = sshll.u32 %s8, 4
      %s10378 = int_to_ptr.hbm [resolvable:$true] %s10377
      %10383 = dma.vmem_to_hbm [thread:$0]  %s10376, 8192, %s10378, [#allocation3], 128, 128, 8
    $region37: #{window_attention.1} parent=1 // pred_fallthru
      _
    // Predicated region
    $region38: #{window_attention.1} parent=1 // pred_check
      _
    $region39: #{window_attention.1} parent=1 // pred_check_branch
      %10385 = sbr.rel (0) target = $region41
    $region40: #{window_attention.1} parent=1 // pred_region
      %10387 = dma.done [#allocation3], 8192
    $region41: #{window_attention.1} parent=1 // pred_fallthru
      _
    %10388 = vsyncpa [#allocation3], 1

</llo_original>
